<compile_context>
chip_gen: v5e
topology: v5e:2x2
jax: 0.10.0
libtpu: 0.0.40
codegen_flags: <defaults>
</compile_context>

<pallas_src>
import jax
import jax.numpy as jnp
from jax import lax
from jax.experimental import pallas as pl
from jax.experimental.pallas import tpu as pltpu


def _conv_matrix_nchw(w, H, W):
    """Fold a 3x3 'same' conv (HWIO weights) into a (Cin*H*W, Cout*H*W) matrix that
    acts on NCHW-flattened images: out_flat = in_flat @ M, with
        M[ci*H*W + hi*W + wi, co*H*W + ho*W + wo] = w[hi-ho+1, wi-wo+1, ci, co]
    and zero outside the 3x3 band (so 'same' zero padding is implicit)."""
    KH, KW, Cin, Cout = w.shape
    dh = jnp.arange(H)[:, None] - jnp.arange(H)[None, :] + (KH // 2)   # (H, H) = hi - ho + 1
    dw = jnp.arange(W)[:, None] - jnp.arange(W)[None, :] + (KW // 2)   # (W, W) = wi - wo + 1
    vh = (dh >= 0) & (dh < KH)
    vw = (dw >= 0) & (dw < KW)
    m = w[jnp.clip(dh, 0, KH - 1)]            # (hi, ho, kw, ci, co)
    m = m[:, :, jnp.clip(dw, 0, KW - 1)]      # (hi, ho, wi, wo, ci, co)
    mask = vh[:, :, None, None, None, None] & vw[None, None, :, :, None, None]
    m = m * mask.astype(w.dtype)
    m = jnp.transpose(m, (4, 0, 2, 5, 1, 3))  # -> (ci, hi, wi, co, ho, wo)
    return m.reshape(Cin * H * W, Cout * H * W)


def _ode_block_kernel(x_ref, w1_ref, b1_ref, w2_ref, b2_ref, o_ref):
    B, CHW = x_ref.shape

    # Weights read once per invocation; bias broadcasts hoisted (built once, not per call).
    w1 = w1_ref[...]                                      # (CHW, CHW) bf16
    w2 = w2_ref[...]
    bias1 = jnp.broadcast_to(b1_ref[...], (B, CHW))       # f32
    bias2 = jnp.broadcast_to(b2_ref[...], (B, CHW))

    def conv(y, w, bias):
        # One lane-dense bf16 MXU matmul per conv; f32 accumulate + f32 bias.
        return jnp.dot(y.astype(jnp.bfloat16), w,
                       preferred_element_type=jnp.float32) + bias

    def odefunc(y):
        h = jnp.maximum(conv(y, w1, bias1), 0.0)          # Conv -> ReLU
        return conv(h, w2, bias2)                         # -> Conv

    y0 = x_ref[...].astype(jnp.float32)

    # torchdiffeq 3/8-rule RK4, single step dt = 1; sum kept in registers (no VMEM scratch).
    third = jnp.float32(1.0 / 3.0)
    k1 = odefunc(y0)
    k2 = odefunc(y0 + k1 * third)
    k3 = odefunc(y0 + (k2 - k1 * third))
    k4 = odefunc(y0 + (k1 - k2 + k3))
    y1 = y0 + (k1 + 3.0 * (k2 + k3) + k4) * 0.125

    o_ref[...] = y1.astype(o_ref.dtype)                   # lane-dense (CHW multiple of 128)


def ode_block_forward(x_nchw, w1, b1, w2, b2, *, batch_tile=None):
    """ODEBlock forward. x_nchw: (N,C,H,W) f32; w*: (3,3,Cin,Cout) HWIO; b*: (C,)."""
    N, C, H, W = x_nchw.shape
    CHW = C * H * W

    # NCHW flattening (free reshape, no transpose); lane axis = CHW (multiple of 128 here).
    x = x_nchw.reshape(N, CHW)

    m1 = _conv_matrix_nchw(w1.astype(jnp.float32), H, W).astype(jnp.bfloat16)
    m2 = _conv_matrix_nchw(w2.astype(jnp.float32), H, W).astype(jnp.bfloat16)
    b1r = jnp.repeat(b1.astype(jnp.float32), H * W).reshape(1, CHW)
    b2r = jnp.repeat(b2.astype(jnp.float32), H * W).reshape(1, CHW)

    # --- batch-tile selection with an explicit VMEM budget --------------------------
    weight_vmem = 2 * 2 * CHW * CHW * 2        # two bf16 weight matrices, double-buffered
    per_img = 16 * CHW * 4                     # in/out (dbl-buffered) + ~8 live RK4 temps, f32
    act_budget = max(per_img, 24 * 1024 * 1024 - weight_vmem)
    if batch_tile is None:
        cap = max(1, act_budget // per_img)
        if N <= cap:
            batch_tile = N                     # single TC (v5e/v6e): one big-M step
        else:
            bt = (min(cap, N) // 8) * 8        # block sublane dim must be 8-aligned ...
            while bt >= 8 and N % bt:
                bt -= 8
            batch_tile = bt if bt >= 8 else N  # ... or equal to the full batch
    assert N % batch_tile == 0, "batch_tile must divide N"
    assert batch_tile == N or batch_tile % 8 == 0
    B = batch_tile

    vmem_est = weight_vmem + 16 * B * CHW * 4 + (2 << 20)
    vmem_limit = max(32 << 20, min(48 << 20, int(vmem_est)))   # stays under v7x 64 MiB physical

    out = pl.pallas_call(
        _ode_block_kernel,
        out_shape=jax.ShapeDtypeStruct((N, CHW), x.dtype),
        grid_spec=pltpu.PrefetchScalarGridSpec(
            num_scalar_prefetch=0,
            grid=(N // B,),
            in_specs=[
                pl.BlockSpec((B, CHW), lambda n: (n, 0)),       # x tile
                pl.BlockSpec((CHW, CHW), lambda n: (0, 0)),     # conv1 banded matrix (bf16)
                pl.BlockSpec((1, CHW), lambda n: (0, 0)),       # bias1 row (f32)
                pl.BlockSpec((CHW, CHW), lambda n: (0, 0)),     # conv2 banded matrix (bf16)
                pl.BlockSpec((1, CHW), lambda n: (0, 0)),       # bias2 row (f32)
            ],
            out_specs=pl.BlockSpec((B, CHW), lambda n: (n, 0)),
        ),
        compiler_params=pltpu.CompilerParams(
            dimension_semantics=("parallel",),
            vmem_limit_bytes=vmem_limit),
    )(x, m1, b1r, m2, b2r)

    return out.reshape(N, C, H, W)


# ---------------- pure-JAX f32 reference (for correctness check) ----------------
def _ref_forward_nchw(x, w1, b1, w2, b2):
    dn = ("NCHW", "HWIO", "NCHW")
    pad = [(1, 1), (1, 1)]
    b1r = b1.reshape(1, -1, 1, 1)
    b2r = b2.reshape(1, -1, 1, 1)

    def f(y):
        h = lax.conv_general_dilated(y, w1, (1, 1), pad, dimension_numbers=dn) + b1r
        h = jnp.maximum(h, 0.0)
        return lax.conv_general_dilated(h, w2, (1, 1), pad, dimension_numbers=dn) + b2r

    k1 = f(x)
    k2 = f(x + k1 / 3.0)
    k3 = f(x + (k2 - k1 / 3.0))
    k4 = f(x + (k1 - k2 + k3))
    return x + (k1 + 3.0 * (k2 + k3) + k4) * 0.125


if __name__ == "__main__":
    N, C, H, W = 2, 4, 16, 16
    key = jax.random.PRNGKey(0)
    kx, kw1, kb1, kw2, kb2 = jax.random.split(key, 5)

    # Deterministic parameter init (PyTorch Conv2d-style uniform bounds), HWIO layout.
    fan_in = C * 3 * 3
    bound = 1.0 / (fan_in ** 0.5)
    w1 = jax.random.uniform(kw1, (3, 3, C, C), jnp.float32, -bound, bound)
    b1 = jax.random.uniform(kb1, (C,), jnp.float32, -bound, bound)
    w2 = jax.random.uniform(kw2, (3, 3, C, C), jnp.float32, -bound, bound)
    b2 = jax.random.uniform(kb2, (C,), jnp.float32, -bound, bound)

    x = jax.random.normal(kx, (N, C, H, W), jnp.float32)

    out = jax.block_until_ready(ode_block_forward(x, w1, b1, w2, b2))
    ref = _ref_forward_nchw(x, w1, b1, w2, b2)

    assert out.shape == (N, C, H, W)
    max_err = float(jnp.max(jnp.abs(out - ref)))
    # bf16 MXU path through 8 chained convs -> loosened tolerance vs. the f32 reference.
    assert jnp.allclose(out, ref, rtol=3e-2, atol=3e-2), f"max abs err {max_err}"

    print("KERNEL_OK")
</pallas_src>

<mosaic_0001>
module attributes {stable_mosaic.version = 11 : i64} {
  func.func @_ode_block_kernel(%arg0: i32, %arg1: memref<2x1024xf32, #tpu.memory_space<vmem>>, %arg2: memref<1024x1024xbf16, #tpu.memory_space<vmem>>, %arg3: memref<1x1024xf32, #tpu.memory_space<vmem>>, %arg4: memref<1024x1024xbf16, #tpu.memory_space<vmem>>, %arg5: memref<1x1024xf32, #tpu.memory_space<vmem>>, %arg6: memref<2x1024xf32, #tpu.memory_space<vmem>>) attributes {dimension_semantics = [#tpu.dimension_semantics<parallel>], iteration_bounds = array<i64: 1>, scalar_prefetch = 0 : i64, scratch_operands = 0 : i64, tpu.core_type = #tpu.core_type<tc>, window_params = [{transform_indices = @transform_0, window_bounds = array<i64: 2, 1024>}, {pipeline_mode = #tpu.pipeline_mode<synchronous>, transform_indices = @transform_1, window_bounds = array<i64: 1024, 1024>}, {pipeline_mode = #tpu.pipeline_mode<synchronous>, transform_indices = @transform_2, window_bounds = array<i64: 1, 1024>}, {pipeline_mode = #tpu.pipeline_mode<synchronous>, transform_indices = @transform_3, window_bounds = array<i64: 1024, 1024>}, {pipeline_mode = #tpu.pipeline_mode<synchronous>, transform_indices = @transform_4, window_bounds = array<i64: 1, 1024>}, {transform_indices = @transform_5, window_bounds = array<i64: 2, 1024>}]} {
    %c0 = arith.constant 0 : index
    %c0_0 = arith.constant 0 : index
    %0 = vector.load %arg2[%c0, %c0_0] : memref<1024x1024xbf16, #tpu.memory_space<vmem>>, vector<1024x1024xbf16>
    %c0_1 = arith.constant 0 : index
    %c0_2 = arith.constant 0 : index
    %1 = vector.load %arg4[%c0_1, %c0_2] : memref<1024x1024xbf16, #tpu.memory_space<vmem>>, vector<1024x1024xbf16>
    %c0_3 = arith.constant 0 : index
    %c0_4 = arith.constant 0 : index
    %2 = vector.load %arg3[%c0_3, %c0_4] : memref<1x1024xf32, #tpu.memory_space<vmem>>, vector<1x1024xf32>
    %3 = vector.shape_cast %2 : vector<1x1024xf32> to vector<1x1024xf32>
    %4 = vector.broadcast %3 : vector<1x1024xf32> to vector<2x1024xf32>
    %c0_5 = arith.constant 0 : index
    %c0_6 = arith.constant 0 : index
    %5 = vector.load %arg5[%c0_5, %c0_6] : memref<1x1024xf32, #tpu.memory_space<vmem>>, vector<1x1024xf32>
    %6 = vector.shape_cast %5 : vector<1x1024xf32> to vector<1x1024xf32>
    %7 = vector.broadcast %6 : vector<1x1024xf32> to vector<2x1024xf32>
    %c0_7 = arith.constant 0 : index
    %c0_8 = arith.constant 0 : index
    %8 = vector.load %arg1[%c0_7, %c0_8] : memref<2x1024xf32, #tpu.memory_space<vmem>>, vector<2x1024xf32>
    %9 = arith.truncf %8 : vector<2x1024xf32> to vector<2x1024xbf16>
    %cst = arith.constant dense<0.000000e+00> : vector<2x1024xf32>
    %10 = tpu.matmul %9, %0, %cst {dimension_numbers = #tpu.dot_dimension_numbers<[1], [0], [0], [1], [0, 0, 1, 1], [], []>} : vector<2x1024xbf16>, vector<1024x1024xbf16>, vector<2x1024xf32> -> vector<2x1024xf32>
    %11 = arith.addf %10, %4 : vector<2x1024xf32>
    %cst_9 = arith.constant 0.000000e+00 : f32
    %12 = vector.broadcast %cst_9 : f32 to vector<2x1024xf32>
    %13 = arith.maximumf %11, %12 : vector<2x1024xf32>
    %14 = arith.truncf %13 : vector<2x1024xf32> to vector<2x1024xbf16>
    %cst_10 = arith.constant dense<0.000000e+00> : vector<2x1024xf32>
    %15 = tpu.matmul %14, %1, %cst_10 {dimension_numbers = #tpu.dot_dimension_numbers<[1], [0], [0], [1], [0, 0, 1, 1], [], []>} : vector<2x1024xbf16>, vector<1024x1024xbf16>, vector<2x1024xf32> -> vector<2x1024xf32>
    %16 = arith.addf %15, %7 : vector<2x1024xf32>
    %cst_11 = arith.constant 0.333333343 : f32
    %17 = vector.broadcast %cst_11 : f32 to vector<2x1024xf32>
    %18 = arith.mulf %16, %17 : vector<2x1024xf32>
    %19 = arith.addf %8, %18 : vector<2x1024xf32>
    %20 = arith.truncf %19 : vector<2x1024xf32> to vector<2x1024xbf16>
    %cst_12 = arith.constant dense<0.000000e+00> : vector<2x1024xf32>
    %21 = tpu.matmul %20, %0, %cst_12 {dimension_numbers = #tpu.dot_dimension_numbers<[1], [0], [0], [1], [0, 0, 1, 1], [], []>} : vector<2x1024xbf16>, vector<1024x1024xbf16>, vector<2x1024xf32> -> vector<2x1024xf32>
    %22 = arith.addf %21, %4 : vector<2x1024xf32>
    %cst_13 = arith.constant 0.000000e+00 : f32
    %23 = vector.broadcast %cst_13 : f32 to vector<2x1024xf32>
    %24 = arith.maximumf %22, %23 : vector<2x1024xf32>
    %25 = arith.truncf %24 : vector<2x1024xf32> to vector<2x1024xbf16>
    %cst_14 = arith.constant dense<0.000000e+00> : vector<2x1024xf32>
    %26 = tpu.matmul %25, %1, %cst_14 {dimension_numbers = #tpu.dot_dimension_numbers<[1], [0], [0], [1], [0, 0, 1, 1], [], []>} : vector<2x1024xbf16>, vector<1024x1024xbf16>, vector<2x1024xf32> -> vector<2x1024xf32>
    %27 = arith.addf %26, %7 : vector<2x1024xf32>
    %cst_15 = arith.constant 0.333333343 : f32
    %28 = vector.broadcast %cst_15 : f32 to vector<2x1024xf32>
    %29 = arith.mulf %16, %28 : vector<2x1024xf32>
    %30 = arith.subf %27, %29 : vector<2x1024xf32>
    %31 = arith.addf %8, %30 : vector<2x1024xf32>
    %32 = arith.truncf %31 : vector<2x1024xf32> to vector<2x1024xbf16>
    %cst_16 = arith.constant dense<0.000000e+00> : vector<2x1024xf32>
    %33 = tpu.matmul %32, %0, %cst_16 {dimension_numbers = #tpu.dot_dimension_numbers<[1], [0], [0], [1], [0, 0, 1, 1], [], []>} : vector<2x1024xbf16>, vector<1024x1024xbf16>, vector<2x1024xf32> -> vector<2x1024xf32>
    %34 = arith.addf %33, %4 : vector<2x1024xf32>
    %cst_17 = arith.constant 0.000000e+00 : f32
    %35 = vector.broadcast %cst_17 : f32 to vector<2x1024xf32>
    %36 = arith.maximumf %34, %35 : vector<2x1024xf32>
    %37 = arith.truncf %36 : vector<2x1024xf32> to vector<2x1024xbf16>
    %cst_18 = arith.constant dense<0.000000e+00> : vector<2x1024xf32>
    %38 = tpu.matmul %37, %1, %cst_18 {dimension_numbers = #tpu.dot_dimension_numbers<[1], [0], [0], [1], [0, 0, 1, 1], [], []>} : vector<2x1024xbf16>, vector<1024x1024xbf16>, vector<2x1024xf32> -> vector<2x1024xf32>
    %39 = arith.addf %38, %7 : vector<2x1024xf32>
    %40 = arith.subf %16, %27 : vector<2x1024xf32>
    %41 = arith.addf %40, %39 : vector<2x1024xf32>
    %42 = arith.addf %8, %41 : vector<2x1024xf32>
    %43 = arith.truncf %42 : vector<2x1024xf32> to vector<2x1024xbf16>
    %cst_19 = arith.constant dense<0.000000e+00> : vector<2x1024xf32>
    %44 = tpu.matmul %43, %0, %cst_19 {dimension_numbers = #tpu.dot_dimension_numbers<[1], [0], [0], [1], [0, 0, 1, 1], [], []>} : vector<2x1024xbf16>, vector<1024x1024xbf16>, vector<2x1024xf32> -> vector<2x1024xf32>
    %45 = arith.addf %44, %4 : vector<2x1024xf32>
    %cst_20 = arith.constant 0.000000e+00 : f32
    %46 = vector.broadcast %cst_20 : f32 to vector<2x1024xf32>
    %47 = arith.maximumf %45, %46 : vector<2x1024xf32>
    %48 = arith.truncf %47 : vector<2x1024xf32> to vector<2x1024xbf16>
    %cst_21 = arith.constant dense<0.000000e+00> : vector<2x1024xf32>
    %49 = tpu.matmul %48, %1, %cst_21 {dimension_numbers = #tpu.dot_dimension_numbers<[1], [0], [0], [1], [0, 0, 1, 1], [], []>} : vector<2x1024xbf16>, vector<1024x1024xbf16>, vector<2x1024xf32> -> vector<2x1024xf32>
    %50 = arith.addf %49, %7 : vector<2x1024xf32>
    %51 = arith.addf %27, %39 : vector<2x1024xf32>
    %cst_22 = arith.constant 3.000000e+00 : f32
    %52 = vector.broadcast %cst_22 : f32 to vector<2x1024xf32>
    %53 = arith.mulf %52, %51 : vector<2x1024xf32>
    %54 = arith.addf %16, %53 : vector<2x1024xf32>
    %55 = arith.addf %54, %50 : vector<2x1024xf32>
    %cst_23 = arith.constant 1.250000e-01 : f32
    %56 = vector.broadcast %cst_23 : f32 to vector<2x1024xf32>
    %57 = arith.mulf %55, %56 : vector<2x1024xf32>
    %58 = arith.addf %8, %57 : vector<2x1024xf32>
    %c0_24 = arith.constant 0 : index
    %c0_25 = arith.constant 0 : index
    %59 = vector.load %arg6[%c0_24, %c0_25] : memref<2x1024xf32, #tpu.memory_space<vmem>>, vector<2x1024xf32>
    tpu.vector_store %arg6[%c0_24, %c0_25], %58 {strides = array<i32>} : memref<2x1024xf32, #tpu.memory_space<vmem>>, vector<2x1024xf32>,
    return
  }
  func.func @transform_0(%arg0: i32) -> (i32, i32) {
    %c0_i32 = arith.constant 0 : i32
    %c0_i32_0 = arith.constant 0 : i32
    return %arg0, %c0_i32 : i32, i32
  }
  func.func @transform_1(%arg0: i32) -> (i32, i32) {
    %c0_i32 = arith.constant 0 : i32
    %c0_i32_0 = arith.constant 0 : i32
    %c0_i32_1 = arith.constant 0 : i32
    return %c0_i32, %c0_i32_0 : i32, i32
  }
  func.func @transform_2(%arg0: i32) -> (i32, i32) {
    %c0_i32 = arith.constant 0 : i32
    %c0_i32_0 = arith.constant 0 : i32
    %c0_i32_1 = arith.constant 0 : i32
    return %c0_i32, %c0_i32_0 : i32, i32
  }
  func.func @transform_3(%arg0: i32) -> (i32, i32) {
    %c0_i32 = arith.constant 0 : i32
    %c0_i32_0 = arith.constant 0 : i32
    %c0_i32_1 = arith.constant 0 : i32
    return %c0_i32, %c0_i32_0 : i32, i32
  }
  func.func @transform_4(%arg0: i32) -> (i32, i32) {
    %c0_i32 = arith.constant 0 : i32
    %c0_i32_0 = arith.constant 0 : i32
    %c0_i32_1 = arith.constant 0 : i32
    return %c0_i32, %c0_i32_0 : i32, i32
  }
  func.func @transform_5(%arg0: i32) -> (i32, i32) {
    %c0_i32 = arith.constant 0 : i32
    %c0_i32_0 = arith.constant 0 : i32
    return %arg0, %c0_i32 : i32, i32
  }
}

</mosaic_0001>

<llo_original>
// kernel: tpu_custom_call.1
$region0: #{tpu_custom_call.1}
  #allocation0 [shape = 'u32[]', space=smem, size = 0x4, offset = 0x4, fixed_abs, tag = 'smem constant byte address 0x4 - core index']
  #allocation1 [shape = 'u32[72,128]{1,0:T(1,128)}', space=vmem, size = 0x9000, scoped, tag = 'internal scratch']
  %s0 = inlined_call_operand.hbm [shape: f32[2,1024], index: 0, kind: input, shape index: {}]
  %s1 = inlined_call_operand.hbm [shape: bf16[1024,1024], index: 1, kind: input, shape index: {}]
  %s2 = inlined_call_operand.hbm [shape: f32[1,1024], index: 2, kind: input, shape index: {}]
  %s3 = inlined_call_operand.hbm [shape: bf16[1024,1024], index: 3, kind: input, shape index: {}]
  %s4 = inlined_call_operand.hbm [shape: f32[1,1024], index: 4, kind: input, shape index: {}]
  %s5 = inlined_call_operand.hbm [shape: f32[2,1024], index: 5, kind: output, shape index: {}]
  %s6 = sld [smem:[#allocation0]]
  $region50: #{tpu_custom_call.1} parent=0
    _
  %s8 = ssub.s32 1, %s6
  %s9 = scalar_select 0, %s8, %s6
  $region1: #{tpu_custom_call.1} parent=0
    #allocation2 [shape = 'u8[8192]{0}', space=vmem, size = 0x2000, scoped, tag = 'input window, operand 0, single buffered']
    #allocation3 [shape = 's32[1]{0}', space=sflag, size = 0x4, scoped, tag = 'scoped memory for tpu_custom_call.1']
    #allocation4 [shape = 's32[1]{0}', space=sflag, size = 0x4, scoped, tag = 'scoped memory for tpu_custom_call.1']
    #allocation5 [shape = 'u8[2097152]{0}', space=vmem, size = 0x200000, scoped, tag = 'input window, operand 1, single buffered']
    #allocation6 [shape = 's32[1]{0}', space=sflag, size = 0x4, scoped, tag = 'scoped memory for tpu_custom_call.1']
    #allocation7 [shape = 'u8[4096]{0}', space=vmem, size = 0x1000, scoped, tag = 'input window, operand 2, single buffered']
    #allocation8 [shape = 'u8[2097152]{0}', space=vmem, size = 0x200000, scoped, tag = 'input window, operand 3, single buffered']
    #allocation9 [shape = 's32[1]{0}', space=sflag, size = 0x4, scoped, tag = 'scoped memory for tpu_custom_call.1']
    #allocation10 [shape = 'u8[4096]{0}', space=vmem, size = 0x1000, scoped, tag = 'input window, operand 4, single buffered']
    #allocation11 [shape = 'u8[8192]{0}', space=vmem, size = 0x2000, scoped, tag = 'output window, operand 0, single buffered']
    %10 = vsyncpa [#allocation3], 0
    %11 = vsyncpa [#allocation6], 0
    %12 = vsyncpa [#allocation9], 0
    %13 = vsyncpa [#allocation4], 0
    // Predicated region
    $region2: #{tpu_custom_call.1} parent=1 // pred_check
      _
    $region3: #{tpu_custom_call.1} parent=1 // pred_check_branch
      %15 = sbr.rel (0) target = $region5
    $region4: #{tpu_custom_call.1} parent=1 // pred_region
      %17 = vsyncadd [#allocation3], 0
      %s19 = sshll.u32 %s0, 4
      %s20 = int_to_ptr.hbm [resolvable:$true] %s19
      %s21 = sshll.u32 [#allocation2], 4
      %s22 = int_to_ptr.vmem [resolvable:$true] %s21
      %24 = dma.hbm_to_vmem [thread:$0]  %s20, 256, %s22, [#allocation3]
    $region5: #{tpu_custom_call.1} parent=1 // pred_fallthru
      _
    // Predicated region
    $region6: #{tpu_custom_call.1} parent=1 // pred_check
      _
    $region7: #{tpu_custom_call.1} parent=1 // pred_check_branch
      %26 = sbr.rel (0) target = $region9
    $region8: #{tpu_custom_call.1} parent=1 // pred_region
      %28 = vsyncadd [#allocation6], 0
      %s29 = sshll.u32 %s1, 4
      %s30 = int_to_ptr.hbm [resolvable:$true] %s29
      %s31 = sshll.u32 [#allocation5], 4
      %s32 = int_to_ptr.vmem [resolvable:$true] %s31
      %37 = dma.hbm_to_vmem [thread:$0]  %s30, 65536, %s32, [#allocation6], 512, 512, 32
    $region9: #{tpu_custom_call.1} parent=1 // pred_fallthru
      _
    // Predicated region
    $region10: #{tpu_custom_call.1} parent=1 // pred_check
      _
    $region11: #{tpu_custom_call.1} parent=1 // pred_check_branch
      %39 = sbr.rel (0) target = $region13
    $region12: #{tpu_custom_call.1} parent=1 // pred_region
      %41 = vsyncadd [#allocation6], 0
      %s43 = sshll.u32 %s2, 4
      %s44 = int_to_ptr.hbm [resolvable:$true] %s43
      %s45 = sshll.u32 [#allocation7], 4
      %s46 = int_to_ptr.vmem [resolvable:$true] %s45
      %48 = dma.hbm_to_vmem [thread:$0]  %s44, 128, %s46, [#allocation6]
    $region13: #{tpu_custom_call.1} parent=1 // pred_fallthru
      _
    // Predicated region
    $region14: #{tpu_custom_call.1} parent=1 // pred_check
      _
    $region15: #{tpu_custom_call.1} parent=1 // pred_check_branch
      %50 = sbr.rel (0) target = $region17
    $region16: #{tpu_custom_call.1} parent=1 // pred_region
      %52 = vsyncadd [#allocation9], 0
      %s53 = sshll.u32 %s3, 4
      %s54 = int_to_ptr.hbm [resolvable:$true] %s53
      %s55 = sshll.u32 [#allocation8], 4
      %s56 = int_to_ptr.vmem [resolvable:$true] %s55
      %61 = dma.hbm_to_vmem [thread:$0]  %s54, 65536, %s56, [#allocation9], 512, 512, 32
    $region17: #{tpu_custom_call.1} parent=1 // pred_fallthru
      _
    // Predicated region
    $region18: #{tpu_custom_call.1} parent=1 // pred_check
      _
    $region19: #{tpu_custom_call.1} parent=1 // pred_check_branch
      %63 = sbr.rel (0) target = $region21
    $region20: #{tpu_custom_call.1} parent=1 // pred_region
      %65 = vsyncadd [#allocation9], 0
      %s67 = sshll.u32 %s4, 4
      %s68 = int_to_ptr.hbm [resolvable:$true] %s67
      %s69 = sshll.u32 [#allocation10], 4
      %s70 = int_to_ptr.vmem [resolvable:$true] %s69
      %72 = dma.hbm_to_vmem [thread:$0]  %s68, 128, %s70, [#allocation9]
    $region21: #{tpu_custom_call.1} parent=1 // pred_fallthru
      _
    // Predicated region
    $region22: #{tpu_custom_call.1} parent=1 // pred_check
      _
    $region23: #{tpu_custom_call.1} parent=1 // pred_check_branch
      %74 = sbr.rel (0) target = $region25
    $region24: #{tpu_custom_call.1} parent=1 // pred_region
      %76 = dma.done [#allocation3], 256
    $region25: #{tpu_custom_call.1} parent=1 // pred_fallthru
      _
    // Predicated region
    $region26: #{tpu_custom_call.1} parent=1 // pred_check
      _
    $region27: #{tpu_custom_call.1} parent=1 // pred_check_branch
      %78 = sbr.rel (0) target = $region29
    $region28: #{tpu_custom_call.1} parent=1 // pred_region
      %80 = dma.done [#allocation6], 65536
    $region29: #{tpu_custom_call.1} parent=1 // pred_fallthru
      _
    // Predicated region
    $region30: #{tpu_custom_call.1} parent=1 // pred_check
      _
    $region31: #{tpu_custom_call.1} parent=1 // pred_check_branch
      %82 = sbr.rel (0) target = $region33
    $region32: #{tpu_custom_call.1} parent=1 // pred_region
      %84 = dma.done [#allocation6], 128
    $region33: #{tpu_custom_call.1} parent=1 // pred_fallthru
      _
    // Predicated region
    $region34: #{tpu_custom_call.1} parent=1 // pred_check
      _
    $region35: #{tpu_custom_call.1} parent=1 // pred_check_branch
      %86 = sbr.rel (0) target = $region37
    $region36: #{tpu_custom_call.1} parent=1 // pred_region
      %88 = dma.done [#allocation9], 65536
    $region37: #{tpu_custom_call.1} parent=1 // pred_fallthru
      _
    // Predicated region
    $region38: #{tpu_custom_call.1} parent=1 // pred_check
      _
    $region39: #{tpu_custom_call.1} parent=1 // pred_check_branch
      %90 = sbr.rel (0) target = $region41
    $region40: #{tpu_custom_call.1} parent=1 // pred_region
      %92 = dma.done [#allocation9], 128
    $region41: #{tpu_custom_call.1} parent=1 // pred_fallthru
      _
    %v93 = vld [vmem:[#allocation5] sm:$0xff]
    %v94 = vld [vmem:[#allocation5 + $0x8] sm:$0xff]
    %v95 = vld [vmem:[#allocation5 + $0x10] sm:$0xff]
    %v96 = vld [vmem:[#allocation5 + $0x18] sm:$0xff]
    %v97 = vld [vmem:[#allocation5 + $0x20] sm:$0xff]
    %v98 = vld [vmem:[#allocation5 + $0x28] sm:$0xff]
    %v99 = vld [vmem:[#allocation5 + $0x30] sm:$0xff]
    %v100 = vld [vmem:[#allocation5 + $0x38] sm:$0xff]
    %v101 = vld [vmem:[#allocation5 + $0x40] sm:$0xff]
    %v102 = vld [vmem:[#allocation5 + $0x48] sm:$0xff]
    %v103 = vld [vmem:[#allocation5 + $0x50] sm:$0xff]
    %v104 = vld [vmem:[#allocation5 + $0x58] sm:$0xff]
    %v105 = vld [vmem:[#allocation5 + $0x60] sm:$0xff]
    %v106 = vld [vmem:[#allocation5 + $0x68] sm:$0xff]
    %v107 = vld [vmem:[#allocation5 + $0x70] sm:$0xff]
    %v108 = vld [vmem:[#allocation5 + $0x78] sm:$0xff]
    %v109 = vld [vmem:[#allocation5 + $0x80] sm:$0xff]
    %v110 = vld [vmem:[#allocation5 + $0x88] sm:$0xff]
    %v111 = vld [vmem:[#allocation5 + $0x90] sm:$0xff]
    %v112 = vld [vmem:[#allocation5 + $0x98] sm:$0xff]
    %v113 = vld [vmem:[#allocation5 + $0xa0] sm:$0xff]
    %v114 = vld [vmem:[#allocation5 + $0xa8] sm:$0xff]
    %v115 = vld [vmem:[#allocation5 + $0xb0] sm:$0xff]
    %v116 = vld [vmem:[#allocation5 + $0xb8] sm:$0xff]
    %v117 = vld [vmem:[#allocation5 + $0xc0] sm:$0xff]
    %v118 = vld [vmem:[#allocation5 + $0xc8] sm:$0xff]
    %v119 = vld [vmem:[#allocation5 + $0xd0] sm:$0xff]
    %v120 = vld [vmem:[#allocation5 + $0xd8] sm:$0xff]
    %v121 = vld [vmem:[#allocation5 + $0xe0] sm:$0xff]
    %v122 = vld [vmem:[#allocation5 + $0xe8] sm:$0xff]
    %v123 = vld [vmem:[#allocation5 + $0xf0] sm:$0xff]
    %v124 = vld [vmem:[#allocation5 + $0xf8] sm:$0xff]
    %v125 = vld [vmem:[#allocation5 + $0x100] sm:$0xff]
    %v126 = vld [vmem:[#allocation5 + $0x108] sm:$0xff]
    %v127 = vld [vmem:[#allocation5 + $0x110] sm:$0xff]
    %v128 = vld [vmem:[#allocation5 + $0x118] sm:$0xff]
    %v129 = vld [vmem:[#allocation5 + $0x120] sm:$0xff]
    %v130 = vld [vmem:[#allocation5 + $0x128] sm:$0xff]
    %v131 = vld [vmem:[#allocation5 + $0x130] sm:$0xff]
    %v132 = vld [vmem:[#allocation5 + $0x138] sm:$0xff]
    %v133 = vld [vmem:[#allocation5 + $0x140] sm:$0xff]
    %v134 = vld [vmem:[#allocation5 + $0x148] sm:$0xff]
    %v135 = vld [vmem:[#allocation5 + $0x150] sm:$0xff]
    %v136 = vld [vmem:[#allocation5 + $0x158] sm:$0xff]
    %v137 = vld [vmem:[#allocation5 + $0x160] sm:$0xff]
    %v138 = vld [vmem:[#allocation5 + $0x168] sm:$0xff]
    %v139 = vld [vmem:[#allocation5 + $0x170] sm:$0xff]
    %v140 = vld [vmem:[#allocation5 + $0x178] sm:$0xff]
    %v141 = vld [vmem:[#allocation5 + $0x180] sm:$0xff]
    %v142 = vld [vmem:[#allocation5 + $0x188] sm:$0xff]
    %v143 = vld [vmem:[#allocation5 + $0x190] sm:$0xff]
    %v144 = vld [vmem:[#allocation5 + $0x198] sm:$0xff]
    %v145 = vld [vmem:[#allocation5 + $0x1a0] sm:$0xff]
    %v146 = vld [vmem:[#allocation5 + $0x1a8] sm:$0xff]
    %v147 = vld [vmem:[#allocation5 + $0x1b0] sm:$0xff]
    %v148 = vld [vmem:[#allocation5 + $0x1b8] sm:$0xff]
    %v149 = vld [vmem:[#allocation5 + $0x1c0] sm:$0xff]
    %v150 = vld [vmem:[#allocation5 + $0x1c8] sm:$0xff]
    %v151 = vld [vmem:[#allocation5 + $0x1d0] sm:$0xff]
    %v152 = vld [vmem:[#allocation5 + $0x1d8] sm:$0xff]
    %v153 = vld [vmem:[#allocation5 + $0x1e0] sm:$0xff]
    %v154 = vld [vmem:[#allocation5 + $0x1e8] sm:$0xff]
    %v155 = vld [vmem:[#allocation5 + $0x1f0] sm:$0xff]
    %v156 = vld [vmem:[#allocation5 + $0x1f8] sm:$0xff]
    %v157 = vld [vmem:[#allocation5 + $0x200] sm:$0xff]
    %v158 = vld [vmem:[#allocation5 + $0x208] sm:$0xff]
    %v159 = vld [vmem:[#allocation5 + $0x210] sm:$0xff]
    %v160 = vld [vmem:[#allocation5 + $0x218] sm:$0xff]
    %v161 = vld [vmem:[#allocation5 + $0x220] sm:$0xff]
    %v162 = vld [vmem:[#allocation5 + $0x228] sm:$0xff]
    %v163 = vld [vmem:[#allocation5 + $0x230] sm:$0xff]
    %v164 = vld [vmem:[#allocation5 + $0x238] sm:$0xff]
    %v165 = vld [vmem:[#allocation5 + $0x240] sm:$0xff]
    %v166 = vld [vmem:[#allocation5 + $0x248] sm:$0xff]
    %v167 = vld [vmem:[#allocation5 + $0x250] sm:$0xff]
    %v168 = vld [vmem:[#allocation5 + $0x258] sm:$0xff]
    %v169 = vld [vmem:[#allocation5 + $0x260] sm:$0xff]
    %v170 = vld [vmem:[#allocation5 + $0x268] sm:$0xff]
    %v171 = vld [vmem:[#allocation5 + $0x270] sm:$0xff]
    %v172 = vld [vmem:[#allocation5 + $0x278] sm:$0xff]
    %v173 = vld [vmem:[#allocation5 + $0x280] sm:$0xff]
    %v174 = vld [vmem:[#allocation5 + $0x288] sm:$0xff]
    %v175 = vld [vmem:[#allocation5 + $0x290] sm:$0xff]
    %v176 = vld [vmem:[#allocation5 + $0x298] sm:$0xff]
    %v177 = vld [vmem:[#allocation5 + $0x2a0] sm:$0xff]
    %v178 = vld [vmem:[#allocation5 + $0x2a8] sm:$0xff]
    %v179 = vld [vmem:[#allocation5 + $0x2b0] sm:$0xff]
    %v180 = vld [vmem:[#allocation5 + $0x2b8] sm:$0xff]
    %v181 = vld [vmem:[#allocation5 + $0x2c0] sm:$0xff]
    %v182 = vld [vmem:[#allocation5 + $0x2c8] sm:$0xff]
    %v183 = vld [vmem:[#allocation5 + $0x2d0] sm:$0xff]
    %v184 = vld [vmem:[#allocation5 + $0x2d8] sm:$0xff]
    %v185 = vld [vmem:[#allocation5 + $0x2e0] sm:$0xff]
    %v186 = vld [vmem:[#allocation5 + $0x2e8] sm:$0xff]
    %v187 = vld [vmem:[#allocation5 + $0x2f0] sm:$0xff]
    %v188 = vld [vmem:[#allocation5 + $0x2f8] sm:$0xff]
    %v189 = vld [vmem:[#allocation5 + $0x300] sm:$0xff]
    %v190 = vld [vmem:[#allocation5 + $0x308] sm:$0xff]
    %v191 = vld [vmem:[#allocation5 + $0x310] sm:$0xff]
    %v192 = vld [vmem:[#allocation5 + $0x318] sm:$0xff]
    %v193 = vld [vmem:[#allocation5 + $0x320] sm:$0xff]
    %v194 = vld [vmem:[#allocation5 + $0x328] sm:$0xff]
    %v195 = vld [vmem:[#allocation5 + $0x330] sm:$0xff]
    %v196 = vld [vmem:[#allocation5 + $0x338] sm:$0xff]
    %v197 = vld [vmem:[#allocation5 + $0x340] sm:$0xff]
    %v198 = vld [vmem:[#allocation5 + $0x348] sm:$0xff]
    %v199 = vld [vmem:[#allocation5 + $0x350] sm:$0xff]
    %v200 = vld [vmem:[#allocation5 + $0x358] sm:$0xff]
    %v201 = vld [vmem:[#allocation5 + $0x360] sm:$0xff]
    %v202 = vld [vmem:[#allocation5 + $0x368] sm:$0xff]
    %v203 = vld [vmem:[#allocation5 + $0x370] sm:$0xff]
    %v204 = vld [vmem:[#allocation5 + $0x378] sm:$0xff]
    %v205 = vld [vmem:[#allocation5 + $0x380] sm:$0xff]
    %v206 = vld [vmem:[#allocation5 + $0x388] sm:$0xff]
    %v207 = vld [vmem:[#allocation5 + $0x390] sm:$0xff]
    %v208 = vld [vmem:[#allocation5 + $0x398] sm:$0xff]
    %v209 = vld [vmem:[#allocation5 + $0x3a0] sm:$0xff]
    %v210 = vld [vmem:[#allocation5 + $0x3a8] sm:$0xff]
    %v211 = vld [vmem:[#allocation5 + $0x3b0] sm:$0xff]
    %v212 = vld [vmem:[#allocation5 + $0x3b8] sm:$0xff]
    %v213 = vld [vmem:[#allocation5 + $0x3c0] sm:$0xff]
    %v214 = vld [vmem:[#allocation5 + $0x3c8] sm:$0xff]
    %v215 = vld [vmem:[#allocation5 + $0x3d0] sm:$0xff]
    %v216 = vld [vmem:[#allocation5 + $0x3d8] sm:$0xff]
    %v217 = vld [vmem:[#allocation5 + $0x3e0] sm:$0xff]
    %v218 = vld [vmem:[#allocation5 + $0x3e8] sm:$0xff]
    %v219 = vld [vmem:[#allocation5 + $0x3f0] sm:$0xff]
    %v220 = vld [vmem:[#allocation5 + $0x3f8] sm:$0xff]
    %v221 = vld [vmem:[#allocation5 + $0x400] sm:$0xff]
    %v222 = vld [vmem:[#allocation5 + $0x408] sm:$0xff]
    %v223 = vld [vmem:[#allocation5 + $0x410] sm:$0xff]
    %v224 = vld [vmem:[#allocation5 + $0x418] sm:$0xff]
    %v225 = vld [vmem:[#allocation5 + $0x420] sm:$0xff]
    %v226 = vld [vmem:[#allocation5 + $0x428] sm:$0xff]
    %v227 = vld [vmem:[#allocation5 + $0x430] sm:$0xff]
    %v228 = vld [vmem:[#allocation5 + $0x438] sm:$0xff]
    %v229 = vld [vmem:[#allocation5 + $0x440] sm:$0xff]
    %v230 = vld [vmem:[#allocation5 + $0x448] sm:$0xff]
    %v231 = vld [vmem:[#allocation5 + $0x450] sm:$0xff]
    %v232 = vld [vmem:[#allocation5 + $0x458] sm:$0xff]
    %v233 = vld [vmem:[#allocation5 + $0x460] sm:$0xff]
    %v234 = vld [vmem:[#allocation5 + $0x468] sm:$0xff]
    %v235 = vld [vmem:[#allocation5 + $0x470] sm:$0xff]
    %v236 = vld [vmem:[#allocation5 + $0x478] sm:$0xff]
    %v237 = vld [vmem:[#allocation5 + $0x480] sm:$0xff]
    %v238 = vld [vmem:[#allocation5 + $0x488] sm:$0xff]
    %v239 = vld [vmem:[#allocation5 + $0x490] sm:$0xff]
    %v240 = vld [vmem:[#allocation5 + $0x498] sm:$0xff]
    %v241 = vld [vmem:[#allocation5 + $0x4a0] sm:$0xff]
    %v242 = vld [vmem:[#allocation5 + $0x4a8] sm:$0xff]
    %v243 = vld [vmem:[#allocation5 + $0x4b0] sm:$0xff]
    %v244 = vld [vmem:[#allocation5 + $0x4b8] sm:$0xff]
    %v245 = vld [vmem:[#allocation5 + $0x4c0] sm:$0xff]
    %v246 = vld [vmem:[#allocation5 + $0x4c8] sm:$0xff]
    %v247 = vld [vmem:[#allocation5 + $0x4d0] sm:$0xff]
    %v248 = vld [vmem:[#allocation5 + $0x4d8] sm:$0xff]
    %v249 = vld [vmem:[#allocation5 + $0x4e0] sm:$0xff]
    %v250 = vld [vmem:[#allocation5 + $0x4e8] sm:$0xff]
    %v251 = vld [vmem:[#allocation5 + $0x4f0] sm:$0xff]
    %v252 = vld [vmem:[#allocation5 + $0x4f8] sm:$0xff]
    %v253 = vld [vmem:[#allocation5 + $0x500] sm:$0xff]
    %v254 = vld [vmem:[#allocation5 + $0x508] sm:$0xff]
    %v255 = vld [vmem:[#allocation5 + $0x510] sm:$0xff]
    %v256 = vld [vmem:[#allocation5 + $0x518] sm:$0xff]
    %v257 = vld [vmem:[#allocation5 + $0x520] sm:$0xff]
    %v258 = vld [vmem:[#allocation5 + $0x528] sm:$0xff]
    %v259 = vld [vmem:[#allocation5 + $0x530] sm:$0xff]
    %v260 = vld [vmem:[#allocation5 + $0x538] sm:$0xff]
    %v261 = vld [vmem:[#allocation5 + $0x540] sm:$0xff]
    %v262 = vld [vmem:[#allocation5 + $0x548] sm:$0xff]
    %v263 = vld [vmem:[#allocation5 + $0x550] sm:$0xff]
    %v264 = vld [vmem:[#allocation5 + $0x558] sm:$0xff]
    %v265 = vld [vmem:[#allocation5 + $0x560] sm:$0xff]
    %v266 = vld [vmem:[#allocation5 + $0x568] sm:$0xff]
    %v267 = vld [vmem:[#allocation5 + $0x570] sm:$0xff]
    %v268 = vld [vmem:[#allocation5 + $0x578] sm:$0xff]
    %v269 = vld [vmem:[#allocation5 + $0x580] sm:$0xff]
    %v270 = vld [vmem:[#allocation5 + $0x588] sm:$0xff]
    %v271 = vld [vmem:[#allocation5 + $0x590] sm:$0xff]
    %v272 = vld [vmem:[#allocation5 + $0x598] sm:$0xff]
    %v273 = vld [vmem:[#allocation5 + $0x5a0] sm:$0xff]
    %v274 = vld [vmem:[#allocation5 + $0x5a8] sm:$0xff]
    %v275 = vld [vmem:[#allocation5 + $0x5b0] sm:$0xff]
    %v276 = vld [vmem:[#allocation5 + $0x5b8] sm:$0xff]
    %v277 = vld [vmem:[#allocation5 + $0x5c0] sm:$0xff]
    %v278 = vld [vmem:[#allocation5 + $0x5c8] sm:$0xff]
    %v279 = vld [vmem:[#allocation5 + $0x5d0] sm:$0xff]
    %v280 = vld [vmem:[#allocation5 + $0x5d8] sm:$0xff]
    %v281 = vld [vmem:[#allocation5 + $0x5e0] sm:$0xff]
    %v282 = vld [vmem:[#allocation5 + $0x5e8] sm:$0xff]
    %v283 = vld [vmem:[#allocation5 + $0x5f0] sm:$0xff]
    %v284 = vld [vmem:[#allocation5 + $0x5f8] sm:$0xff]
    %v285 = vld [vmem:[#allocation5 + $0x600] sm:$0xff]
    %v286 = vld [vmem:[#allocation5 + $0x608] sm:$0xff]
    %v287 = vld [vmem:[#allocation5 + $0x610] sm:$0xff]
    %v288 = vld [vmem:[#allocation5 + $0x618] sm:$0xff]
    %v289 = vld [vmem:[#allocation5 + $0x620] sm:$0xff]
    %v290 = vld [vmem:[#allocation5 + $0x628] sm:$0xff]
    %v291 = vld [vmem:[#allocation5 + $0x630] sm:$0xff]
    %v292 = vld [vmem:[#allocation5 + $0x638] sm:$0xff]
    %v293 = vld [vmem:[#allocation5 + $0x640] sm:$0xff]
    %v294 = vld [vmem:[#allocation5 + $0x648] sm:$0xff]
    %v295 = vld [vmem:[#allocation5 + $0x650] sm:$0xff]
    %v296 = vld [vmem:[#allocation5 + $0x658] sm:$0xff]
    %v297 = vld [vmem:[#allocation5 + $0x660] sm:$0xff]
    %v298 = vld [vmem:[#allocation5 + $0x668] sm:$0xff]
    %v299 = vld [vmem:[#allocation5 + $0x670] sm:$0xff]
    %v300 = vld [vmem:[#allocation5 + $0x678] sm:$0xff]
    %v301 = vld [vmem:[#allocation5 + $0x680] sm:$0xff]
    %v302 = vld [vmem:[#allocation5 + $0x688] sm:$0xff]
    %v303 = vld [vmem:[#allocation5 + $0x690] sm:$0xff]
    %v304 = vld [vmem:[#allocation5 + $0x698] sm:$0xff]
    %v305 = vld [vmem:[#allocation5 + $0x6a0] sm:$0xff]
    %v306 = vld [vmem:[#allocation5 + $0x6a8] sm:$0xff]
    %v307 = vld [vmem:[#allocation5 + $0x6b0] sm:$0xff]
    %v308 = vld [vmem:[#allocation5 + $0x6b8] sm:$0xff]
    %v309 = vld [vmem:[#allocation5 + $0x6c0] sm:$0xff]
    %v310 = vld [vmem:[#allocation5 + $0x6c8] sm:$0xff]
    %v311 = vld [vmem:[#allocation5 + $0x6d0] sm:$0xff]
    %v312 = vld [vmem:[#allocation5 + $0x6d8] sm:$0xff]
    %v313 = vld [vmem:[#allocation5 + $0x6e0] sm:$0xff]
    %v314 = vld [vmem:[#allocation5 + $0x6e8] sm:$0xff]
    %v315 = vld [vmem:[#allocation5 + $0x6f0] sm:$0xff]
    %v316 = vld [vmem:[#allocation5 + $0x6f8] sm:$0xff]
    %v317 = vld [vmem:[#allocation5 + $0x700] sm:$0xff]
    %v318 = vld [vmem:[#allocation5 + $0x708] sm:$0xff]
    %v319 = vld [vmem:[#allocation5 + $0x710] sm:$0xff]
    %v320 = vld [vmem:[#allocation5 + $0x718] sm:$0xff]
    %v321 = vld [vmem:[#allocation5 + $0x720] sm:$0xff]
    %v322 = vld [vmem:[#allocation5 + $0x728] sm:$0xff]
    %v323 = vld [vmem:[#allocation5 + $0x730] sm:$0xff]
    %v324 = vld [vmem:[#allocation5 + $0x738] sm:$0xff]
    %v325 = vld [vmem:[#allocation5 + $0x740] sm:$0xff]
    %v326 = vld [vmem:[#allocation5 + $0x748] sm:$0xff]
    %v327 = vld [vmem:[#allocation5 + $0x750] sm:$0xff]
    %v328 = vld [vmem:[#allocation5 + $0x758] sm:$0xff]
    %v329 = vld [vmem:[#allocation5 + $0x760] sm:$0xff]
    %v330 = vld [vmem:[#allocation5 + $0x768] sm:$0xff]
    %v331 = vld [vmem:[#allocation5 + $0x770] sm:$0xff]
    %v332 = vld [vmem:[#allocation5 + $0x778] sm:$0xff]
    %v333 = vld [vmem:[#allocation5 + $0x780] sm:$0xff]
    %v334 = vld [vmem:[#allocation5 + $0x788] sm:$0xff]
    %v335 = vld [vmem:[#allocation5 + $0x790] sm:$0xff]
    %v336 = vld [vmem:[#allocation5 + $0x798] sm:$0xff]
    %v337 = vld [vmem:[#allocation5 + $0x7a0] sm:$0xff]
    %v338 = vld [vmem:[#allocation5 + $0x7a8] sm:$0xff]
    %v339 = vld [vmem:[#allocation5 + $0x7b0] sm:$0xff]
    %v340 = vld [vmem:[#allocation5 + $0x7b8] sm:$0xff]
    %v341 = vld [vmem:[#allocation5 + $0x7c0] sm:$0xff]
    %v342 = vld [vmem:[#allocation5 + $0x7c8] sm:$0xff]
    %v343 = vld [vmem:[#allocation5 + $0x7d0] sm:$0xff]
    %v344 = vld [vmem:[#allocation5 + $0x7d8] sm:$0xff]
    %v345 = vld [vmem:[#allocation5 + $0x7e0] sm:$0xff]
    %v346 = vld [vmem:[#allocation5 + $0x7e8] sm:$0xff]
    %v347 = vld [vmem:[#allocation5 + $0x7f0] sm:$0xff]
    %v348 = vld [vmem:[#allocation5 + $0x7f8] sm:$0xff]
    %v349 = vld [vmem:[#allocation5 + $0x800] sm:$0xff]
    %v350 = vld [vmem:[#allocation5 + $0x808] sm:$0xff]
    %v351 = vld [vmem:[#allocation5 + $0x810] sm:$0xff]
    %v352 = vld [vmem:[#allocation5 + $0x818] sm:$0xff]
    %v353 = vld [vmem:[#allocation5 + $0x820] sm:$0xff]
    %v354 = vld [vmem:[#allocation5 + $0x828] sm:$0xff]
    %v355 = vld [vmem:[#allocation5 + $0x830] sm:$0xff]
    %v356 = vld [vmem:[#allocation5 + $0x838] sm:$0xff]
    %v357 = vld [vmem:[#allocation5 + $0x840] sm:$0xff]
    %v358 = vld [vmem:[#allocation5 + $0x848] sm:$0xff]
    %v359 = vld [vmem:[#allocation5 + $0x850] sm:$0xff]
    %v360 = vld [vmem:[#allocation5 + $0x858] sm:$0xff]
    %v361 = vld [vmem:[#allocation5 + $0x860] sm:$0xff]
    %v362 = vld [vmem:[#allocation5 + $0x868] sm:$0xff]
    %v363 = vld [vmem:[#allocation5 + $0x870] sm:$0xff]
    %v364 = vld [vmem:[#allocation5 + $0x878] sm:$0xff]
    %v365 = vld [vmem:[#allocation5 + $0x880] sm:$0xff]
    %v366 = vld [vmem:[#allocation5 + $0x888] sm:$0xff]
    %v367 = vld [vmem:[#allocation5 + $0x890] sm:$0xff]
    %v368 = vld [vmem:[#allocation5 + $0x898] sm:$0xff]
    %v369 = vld [vmem:[#allocation5 + $0x8a0] sm:$0xff]
    %v370 = vld [vmem:[#allocation5 + $0x8a8] sm:$0xff]
    %v371 = vld [vmem:[#allocation5 + $0x8b0] sm:$0xff]
    %v372 = vld [vmem:[#allocation5 + $0x8b8] sm:$0xff]
    %v373 = vld [vmem:[#allocation5 + $0x8c0] sm:$0xff]
    %v374 = vld [vmem:[#allocation5 + $0x8c8] sm:$0xff]
    %v375 = vld [vmem:[#allocation5 + $0x8d0] sm:$0xff]
    %v376 = vld [vmem:[#allocation5 + $0x8d8] sm:$0xff]
    %v377 = vld [vmem:[#allocation5 + $0x8e0] sm:$0xff]
    %v378 = vld [vmem:[#allocation5 + $0x8e8] sm:$0xff]
    %v379 = vld [vmem:[#allocation5 + $0x8f0] sm:$0xff]
    %v380 = vld [vmem:[#allocation5 + $0x8f8] sm:$0xff]
    %v381 = vld [vmem:[#allocation5 + $0x900] sm:$0xff]
    %v382 = vld [vmem:[#allocation5 + $0x908] sm:$0xff]
    %v383 = vld [vmem:[#allocation5 + $0x910] sm:$0xff]
    %v384 = vld [vmem:[#allocation5 + $0x918] sm:$0xff]
    %v385 = vld [vmem:[#allocation5 + $0x920] sm:$0xff]
    %v386 = vld [vmem:[#allocation5 + $0x928] sm:$0xff]
    %v387 = vld [vmem:[#allocation5 + $0x930] sm:$0xff]
    %v388 = vld [vmem:[#allocation5 + $0x938] sm:$0xff]
    %v389 = vld [vmem:[#allocation5 + $0x940] sm:$0xff]
    %v390 = vld [vmem:[#allocation5 + $0x948] sm:$0xff]
    %v391 = vld [vmem:[#allocation5 + $0x950] sm:$0xff]
    %v392 = vld [vmem:[#allocation5 + $0x958] sm:$0xff]
    %v393 = vld [vmem:[#allocation5 + $0x960] sm:$0xff]
    %v394 = vld [vmem:[#allocation5 + $0x968] sm:$0xff]
    %v395 = vld [vmem:[#allocation5 + $0x970] sm:$0xff]
    %v396 = vld [vmem:[#allocation5 + $0x978] sm:$0xff]
    %v397 = vld [vmem:[#allocation5 + $0x980] sm:$0xff]
    %v398 = vld [vmem:[#allocation5 + $0x988] sm:$0xff]
    %v399 = vld [vmem:[#allocation5 + $0x990] sm:$0xff]
    %v400 = vld [vmem:[#allocation5 + $0x998] sm:$0xff]
    %v401 = vld [vmem:[#allocation5 + $0x9a0] sm:$0xff]
    %v402 = vld [vmem:[#allocation5 + $0x9a8] sm:$0xff]
    %v403 = vld [vmem:[#allocation5 + $0x9b0] sm:$0xff]
    %v404 = vld [vmem:[#allocation5 + $0x9b8] sm:$0xff]
    %v405 = vld [vmem:[#allocation5 + $0x9c0] sm:$0xff]
    %v406 = vld [vmem:[#allocation5 + $0x9c8] sm:$0xff]
    %v407 = vld [vmem:[#allocation5 + $0x9d0] sm:$0xff]
    %v408 = vld [vmem:[#allocation5 + $0x9d8] sm:$0xff]
    %v409 = vld [vmem:[#allocation5 + $0x9e0] sm:$0xff]
    %v410 = vld [vmem:[#allocation5 + $0x9e8] sm:$0xff]
    %v411 = vld [vmem:[#allocation5 + $0x9f0] sm:$0xff]
    %v412 = vld [vmem:[#allocation5 + $0x9f8] sm:$0xff]
    %v413 = vld [vmem:[#allocation5 + $0xa00] sm:$0xff]
    %v414 = vld [vmem:[#allocation5 + $0xa08] sm:$0xff]
    %v415 = vld [vmem:[#allocation5 + $0xa10] sm:$0xff]
    %v416 = vld [vmem:[#allocation5 + $0xa18] sm:$0xff]
    %v417 = vld [vmem:[#allocation5 + $0xa20] sm:$0xff]
    %v418 = vld [vmem:[#allocation5 + $0xa28] sm:$0xff]
    %v419 = vld [vmem:[#allocation5 + $0xa30] sm:$0xff]
    %v420 = vld [vmem:[#allocation5 + $0xa38] sm:$0xff]
    %v421 = vld [vmem:[#allocation5 + $0xa40] sm:$0xff]
    %v422 = vld [vmem:[#allocation5 + $0xa48] sm:$0xff]
    %v423 = vld [vmem:[#allocation5 + $0xa50] sm:$0xff]
    %v424 = vld [vmem:[#allocation5 + $0xa58] sm:$0xff]
    %v425 = vld [vmem:[#allocation5 + $0xa60] sm:$0xff]
    %v426 = vld [vmem:[#allocation5 + $0xa68] sm:$0xff]
    %v427 = vld [vmem:[#allocation5 + $0xa70] sm:$0xff]
    %v428 = vld [vmem:[#allocation5 + $0xa78] sm:$0xff]
    %v429 = vld [vmem:[#allocation5 + $0xa80] sm:$0xff]
    %v430 = vld [vmem:[#allocation5 + $0xa88] sm:$0xff]
    %v431 = vld [vmem:[#allocation5 + $0xa90] sm:$0xff]
    %v432 = vld [vmem:[#allocation5 + $0xa98] sm:$0xff]
    %v433 = vld [vmem:[#allocation5 + $0xaa0] sm:$0xff]
    %v434 = vld [vmem:[#allocation5 + $0xaa8] sm:$0xff]
    %v435 = vld [vmem:[#allocation5 + $0xab0] sm:$0xff]
    %v436 = vld [vmem:[#allocation5 + $0xab8] sm:$0xff]
    %v437 = vld [vmem:[#allocation5 + $0xac0] sm:$0xff]
    %v438 = vld [vmem:[#allocation5 + $0xac8] sm:$0xff]
    %v439 = vld [vmem:[#allocation5 + $0xad0] sm:$0xff]
    %v440 = vld [vmem:[#allocation5 + $0xad8] sm:$0xff]
    %v441 = vld [vmem:[#allocation5 + $0xae0] sm:$0xff]
    %v442 = vld [vmem:[#allocation5 + $0xae8] sm:$0xff]
    %v443 = vld [vmem:[#allocation5 + $0xaf0] sm:$0xff]
    %v444 = vld [vmem:[#allocation5 + $0xaf8] sm:$0xff]
    %v445 = vld [vmem:[#allocation5 + $0xb00] sm:$0xff]
    %v446 = vld [vmem:[#allocation5 + $0xb08] sm:$0xff]
    %v447 = vld [vmem:[#allocation5 + $0xb10] sm:$0xff]
    %v448 = vld [vmem:[#allocation5 + $0xb18] sm:$0xff]
    %v449 = vld [vmem:[#allocation5 + $0xb20] sm:$0xff]
    %v450 = vld [vmem:[#allocation5 + $0xb28] sm:$0xff]
    %v451 = vld [vmem:[#allocation5 + $0xb30] sm:$0xff]
    %v452 = vld [vmem:[#allocation5 + $0xb38] sm:$0xff]
    %v453 = vld [vmem:[#allocation5 + $0xb40] sm:$0xff]
    %v454 = vld [vmem:[#allocation5 + $0xb48] sm:$0xff]
    %v455 = vld [vmem:[#allocation5 + $0xb50] sm:$0xff]
    %v456 = vld [vmem:[#allocation5 + $0xb58] sm:$0xff]
    %v457 = vld [vmem:[#allocation5 + $0xb60] sm:$0xff]
    %v458 = vld [vmem:[#allocation5 + $0xb68] sm:$0xff]
    %v459 = vld [vmem:[#allocation5 + $0xb70] sm:$0xff]
    %v460 = vld [vmem:[#allocation5 + $0xb78] sm:$0xff]
    %v461 = vld [vmem:[#allocation5 + $0xb80] sm:$0xff]
    %v462 = vld [vmem:[#allocation5 + $0xb88] sm:$0xff]
    %v463 = vld [vmem:[#allocation5 + $0xb90] sm:$0xff]
    %v464 = vld [vmem:[#allocation5 + $0xb98] sm:$0xff]
    %v465 = vld [vmem:[#allocation5 + $0xba0] sm:$0xff]
    %v466 = vld [vmem:[#allocation5 + $0xba8] sm:$0xff]
    %v467 = vld [vmem:[#allocation5 + $0xbb0] sm:$0xff]
    %v468 = vld [vmem:[#allocation5 + $0xbb8] sm:$0xff]
    %v469 = vld [vmem:[#allocation5 + $0xbc0] sm:$0xff]
    %v470 = vld [vmem:[#allocation5 + $0xbc8] sm:$0xff]
    %v471 = vld [vmem:[#allocation5 + $0xbd0] sm:$0xff]
    %v472 = vld [vmem:[#allocation5 + $0xbd8] sm:$0xff]
    %v473 = vld [vmem:[#allocation5 + $0xbe0] sm:$0xff]
    %v474 = vld [vmem:[#allocation5 + $0xbe8] sm:$0xff]
    %v475 = vld [vmem:[#allocation5 + $0xbf0] sm:$0xff]
    %v476 = vld [vmem:[#allocation5 + $0xbf8] sm:$0xff]
    %v477 = vld [vmem:[#allocation5 + $0xc00] sm:$0xff]
    %v478 = vld [vmem:[#allocation5 + $0xc08] sm:$0xff]
    %v479 = vld [vmem:[#allocation5 + $0xc10] sm:$0xff]
    %v480 = vld [vmem:[#allocation5 + $0xc18] sm:$0xff]
    %v481 = vld [vmem:[#allocation5 + $0xc20] sm:$0xff]
    %v482 = vld [vmem:[#allocation5 + $0xc28] sm:$0xff]
    %v483 = vld [vmem:[#allocation5 + $0xc30] sm:$0xff]
    %v484 = vld [vmem:[#allocation5 + $0xc38] sm:$0xff]
    %v485 = vld [vmem:[#allocation5 + $0xc40] sm:$0xff]
    %v486 = vld [vmem:[#allocation5 + $0xc48] sm:$0xff]
    %v487 = vld [vmem:[#allocation5 + $0xc50] sm:$0xff]
    %v488 = vld [vmem:[#allocation5 + $0xc58] sm:$0xff]
    %v489 = vld [vmem:[#allocation5 + $0xc60] sm:$0xff]
    %v490 = vld [vmem:[#allocation5 + $0xc68] sm:$0xff]
    %v491 = vld [vmem:[#allocation5 + $0xc70] sm:$0xff]
    %v492 = vld [vmem:[#allocation5 + $0xc78] sm:$0xff]
    %v493 = vld [vmem:[#allocation5 + $0xc80] sm:$0xff]
    %v494 = vld [vmem:[#allocation5 + $0xc88] sm:$0xff]
    %v495 = vld [vmem:[#allocation5 + $0xc90] sm:$0xff]
    %v496 = vld [vmem:[#allocation5 + $0xc98] sm:$0xff]
    %v497 = vld [vmem:[#allocation5 + $0xca0] sm:$0xff]
    %v498 = vld [vmem:[#allocation5 + $0xca8] sm:$0xff]
    %v499 = vld [vmem:[#allocation5 + $0xcb0] sm:$0xff]
    %v500 = vld [vmem:[#allocation5 + $0xcb8] sm:$0xff]
    %v501 = vld [vmem:[#allocation5 + $0xcc0] sm:$0xff]
    %v502 = vld [vmem:[#allocation5 + $0xcc8] sm:$0xff]
    %v503 = vld [vmem:[#allocation5 + $0xcd0] sm:$0xff]
    %v504 = vld [vmem:[#allocation5 + $0xcd8] sm:$0xff]
    %v505 = vld [vmem:[#allocation5 + $0xce0] sm:$0xff]
    %v506 = vld [vmem:[#allocation5 + $0xce8] sm:$0xff]
    %v507 = vld [vmem:[#allocation5 + $0xcf0] sm:$0xff]
    %v508 = vld [vmem:[#allocation5 + $0xcf8] sm:$0xff]
    %v509 = vld [vmem:[#allocation5 + $0xd00] sm:$0xff]
    %v510 = vld [vmem:[#allocation5 + $0xd08] sm:$0xff]
    %v511 = vld [vmem:[#allocation5 + $0xd10] sm:$0xff]
    %v512 = vld [vmem:[#allocation5 + $0xd18] sm:$0xff]
    %v513 = vld [vmem:[#allocation5 + $0xd20] sm:$0xff]
    %v514 = vld [vmem:[#allocation5 + $0xd28] sm:$0xff]
    %v515 = vld [vmem:[#allocation5 + $0xd30] sm:$0xff]
    %v516 = vld [vmem:[#allocation5 + $0xd38] sm:$0xff]
    %v517 = vld [vmem:[#allocation5 + $0xd40] sm:$0xff]
    %v518 = vld [vmem:[#allocation5 + $0xd48] sm:$0xff]
    %v519 = vld [vmem:[#allocation5 + $0xd50] sm:$0xff]
    %v520 = vld [vmem:[#allocation5 + $0xd58] sm:$0xff]
    %v521 = vld [vmem:[#allocation5 + $0xd60] sm:$0xff]
    %v522 = vld [vmem:[#allocation5 + $0xd68] sm:$0xff]
    %v523 = vld [vmem:[#allocation5 + $0xd70] sm:$0xff]
    %v524 = vld [vmem:[#allocation5 + $0xd78] sm:$0xff]
    %v525 = vld [vmem:[#allocation5 + $0xd80] sm:$0xff]
    %v526 = vld [vmem:[#allocation5 + $0xd88] sm:$0xff]
    %v527 = vld [vmem:[#allocation5 + $0xd90] sm:$0xff]
    %v528 = vld [vmem:[#allocation5 + $0xd98] sm:$0xff]
    %v529 = vld [vmem:[#allocation5 + $0xda0] sm:$0xff]
    %v530 = vld [vmem:[#allocation5 + $0xda8] sm:$0xff]
    %v531 = vld [vmem:[#allocation5 + $0xdb0] sm:$0xff]
    %v532 = vld [vmem:[#allocation5 + $0xdb8] sm:$0xff]
    %v533 = vld [vmem:[#allocation5 + $0xdc0] sm:$0xff]
    %v534 = vld [vmem:[#allocation5 + $0xdc8] sm:$0xff]
    %v535 = vld [vmem:[#allocation5 + $0xdd0] sm:$0xff]
    %v536 = vld [vmem:[#allocation5 + $0xdd8] sm:$0xff]
    %v537 = vld [vmem:[#allocation5 + $0xde0] sm:$0xff]
    %v538 = vld [vmem:[#allocation5 + $0xde8] sm:$0xff]
    %v539 = vld [vmem:[#allocation5 + $0xdf0] sm:$0xff]
    %v540 = vld [vmem:[#allocation5 + $0xdf8] sm:$0xff]
    %v541 = vld [vmem:[#allocation5 + $0xe00] sm:$0xff]
    %v542 = vld [vmem:[#allocation5 + $0xe08] sm:$0xff]
    %v543 = vld [vmem:[#allocation5 + $0xe10] sm:$0xff]
    %v544 = vld [vmem:[#allocation5 + $0xe18] sm:$0xff]
    %v545 = vld [vmem:[#allocation5 + $0xe20] sm:$0xff]
    %v546 = vld [vmem:[#allocation5 + $0xe28] sm:$0xff]
    %v547 = vld [vmem:[#allocation5 + $0xe30] sm:$0xff]
    %v548 = vld [vmem:[#allocation5 + $0xe38] sm:$0xff]
    %v549 = vld [vmem:[#allocation5 + $0xe40] sm:$0xff]
    %v550 = vld [vmem:[#allocation5 + $0xe48] sm:$0xff]
    %v551 = vld [vmem:[#allocation5 + $0xe50] sm:$0xff]
    %v552 = vld [vmem:[#allocation5 + $0xe58] sm:$0xff]
    %v553 = vld [vmem:[#allocation5 + $0xe60] sm:$0xff]
    %v554 = vld [vmem:[#allocation5 + $0xe68] sm:$0xff]
    %v555 = vld [vmem:[#allocation5 + $0xe70] sm:$0xff]
    %v556 = vld [vmem:[#allocation5 + $0xe78] sm:$0xff]
    %v557 = vld [vmem:[#allocation5 + $0xe80] sm:$0xff]
    %v558 = vld [vmem:[#allocation5 + $0xe88] sm:$0xff]
    %v559 = vld [vmem:[#allocation5 + $0xe90] sm:$0xff]
    %v560 = vld [vmem:[#allocation5 + $0xe98] sm:$0xff]
    %v561 = vld [vmem:[#allocation5 + $0xea0] sm:$0xff]
    %v562 = vld [vmem:[#allocation5 + $0xea8] sm:$0xff]
    %v563 = vld [vmem:[#allocation5 + $0xeb0] sm:$0xff]
    %v564 = vld [vmem:[#allocation5 + $0xeb8] sm:$0xff]
    %v565 = vld [vmem:[#allocation5 + $0xec0] sm:$0xff]
    %v566 = vld [vmem:[#allocation5 + $0xec8] sm:$0xff]
    %v567 = vld [vmem:[#allocation5 + $0xed0] sm:$0xff]
    %v568 = vld [vmem:[#allocation5 + $0xed8] sm:$0xff]
    %v569 = vld [vmem:[#allocation5 + $0xee0] sm:$0xff]
    %v570 = vld [vmem:[#allocation5 + $0xee8] sm:$0xff]
    %v571 = vld [vmem:[#allocation5 + $0xef0] sm:$0xff]
    %v572 = vld [vmem:[#allocation5 + $0xef8] sm:$0xff]
    %v573 = vld [vmem:[#allocation5 + $0xf00] sm:$0xff]
    %v574 = vld [vmem:[#allocation5 + $0xf08] sm:$0xff]
    %v575 = vld [vmem:[#allocation5 + $0xf10] sm:$0xff]
    %v576 = vld [vmem:[#allocation5 + $0xf18] sm:$0xff]
    %v577 = vld [vmem:[#allocation5 + $0xf20] sm:$0xff]
    %v578 = vld [vmem:[#allocation5 + $0xf28] sm:$0xff]
    %v579 = vld [vmem:[#allocation5 + $0xf30] sm:$0xff]
    %v580 = vld [vmem:[#allocation5 + $0xf38] sm:$0xff]
    %v581 = vld [vmem:[#allocation5 + $0xf40] sm:$0xff]
    %v582 = vld [vmem:[#allocation5 + $0xf48] sm:$0xff]
    %v583 = vld [vmem:[#allocation5 + $0xf50] sm:$0xff]
    %v584 = vld [vmem:[#allocation5 + $0xf58] sm:$0xff]
    %v585 = vld [vmem:[#allocation5 + $0xf60] sm:$0xff]
    %v586 = vld [vmem:[#allocation5 + $0xf68] sm:$0xff]
    %v587 = vld [vmem:[#allocation5 + $0xf70] sm:$0xff]
    %v588 = vld [vmem:[#allocation5 + $0xf78] sm:$0xff]
    %v589 = vld [vmem:[#allocation5 + $0xf80] sm:$0xff]
    %v590 = vld [vmem:[#allocation5 + $0xf88] sm:$0xff]
    %v591 = vld [vmem:[#allocation5 + $0xf90] sm:$0xff]
    %v592 = vld [vmem:[#allocation5 + $0xf98] sm:$0xff]
    %v593 = vld [vmem:[#allocation5 + $0xfa0] sm:$0xff]
    %v594 = vld [vmem:[#allocation5 + $0xfa8] sm:$0xff]
    %v595 = vld [vmem:[#allocation5 + $0xfb0] sm:$0xff]
    %v596 = vld [vmem:[#allocation5 + $0xfb8] sm:$0xff]
    %v597 = vld [vmem:[#allocation5 + $0xfc0] sm:$0xff]
    %v598 = vld [vmem:[#allocation5 + $0xfc8] sm:$0xff]
    %v599 = vld [vmem:[#allocation5 + $0xfd0] sm:$0xff]
    %v600 = vld [vmem:[#allocation5 + $0xfd8] sm:$0xff]
    %v601 = vld [vmem:[#allocation5 + $0xfe0] sm:$0xff]
    %v602 = vld [vmem:[#allocation5 + $0xfe8] sm:$0xff]
    %v603 = vld [vmem:[#allocation5 + $0xff0] sm:$0xff]
    %v604 = vld [vmem:[#allocation5 + $0xff8] sm:$0xff]
    %v605 = vld [vmem:[#allocation8] sm:$0xff]
    %v606 = vld [vmem:[#allocation8 + $0x8] sm:$0xff]
    %v607 = vld [vmem:[#allocation8 + $0x10] sm:$0xff]
    %v608 = vld [vmem:[#allocation8 + $0x18] sm:$0xff]
    %v609 = vld [vmem:[#allocation8 + $0x20] sm:$0xff]
    %v610 = vld [vmem:[#allocation8 + $0x28] sm:$0xff]
    %v611 = vld [vmem:[#allocation8 + $0x30] sm:$0xff]
    %v612 = vld [vmem:[#allocation8 + $0x38] sm:$0xff]
    %v613 = vld [vmem:[#allocation8 + $0x40] sm:$0xff]
    %v614 = vld [vmem:[#allocation8 + $0x48] sm:$0xff]
    %v615 = vld [vmem:[#allocation8 + $0x50] sm:$0xff]
    %v616 = vld [vmem:[#allocation8 + $0x58] sm:$0xff]
    %v617 = vld [vmem:[#allocation8 + $0x60] sm:$0xff]
    %v618 = vld [vmem:[#allocation8 + $0x68] sm:$0xff]
    %v619 = vld [vmem:[#allocation8 + $0x70] sm:$0xff]
    %v620 = vld [vmem:[#allocation8 + $0x78] sm:$0xff]
    %v621 = vld [vmem:[#allocation8 + $0x80] sm:$0xff]
    %v622 = vld [vmem:[#allocation8 + $0x88] sm:$0xff]
    %v623 = vld [vmem:[#allocation8 + $0x90] sm:$0xff]
    %v624 = vld [vmem:[#allocation8 + $0x98] sm:$0xff]
    %v625 = vld [vmem:[#allocation8 + $0xa0] sm:$0xff]
    %v626 = vld [vmem:[#allocation8 + $0xa8] sm:$0xff]
    %v627 = vld [vmem:[#allocation8 + $0xb0] sm:$0xff]
    %v628 = vld [vmem:[#allocation8 + $0xb8] sm:$0xff]
    %v629 = vld [vmem:[#allocation8 + $0xc0] sm:$0xff]
    %v630 = vld [vmem:[#allocation8 + $0xc8] sm:$0xff]
    %v631 = vld [vmem:[#allocation8 + $0xd0] sm:$0xff]
    %v632 = vld [vmem:[#allocation8 + $0xd8] sm:$0xff]
    %v633 = vld [vmem:[#allocation8 + $0xe0] sm:$0xff]
    %v634 = vld [vmem:[#allocation8 + $0xe8] sm:$0xff]
    %v635 = vld [vmem:[#allocation8 + $0xf0] sm:$0xff]
    %v636 = vld [vmem:[#allocation8 + $0xf8] sm:$0xff]
    %v637 = vld [vmem:[#allocation8 + $0x100] sm:$0xff]
    %v638 = vld [vmem:[#allocation8 + $0x108] sm:$0xff]
    %v639 = vld [vmem:[#allocation8 + $0x110] sm:$0xff]
    %v640 = vld [vmem:[#allocation8 + $0x118] sm:$0xff]
    %v641 = vld [vmem:[#allocation8 + $0x120] sm:$0xff]
    %v642 = vld [vmem:[#allocation8 + $0x128] sm:$0xff]
    %v643 = vld [vmem:[#allocation8 + $0x130] sm:$0xff]
    %v644 = vld [vmem:[#allocation8 + $0x138] sm:$0xff]
    %v645 = vld [vmem:[#allocation8 + $0x140] sm:$0xff]
    %v646 = vld [vmem:[#allocation8 + $0x148] sm:$0xff]
    %v647 = vld [vmem:[#allocation8 + $0x150] sm:$0xff]
    %v648 = vld [vmem:[#allocation8 + $0x158] sm:$0xff]
    %v649 = vld [vmem:[#allocation8 + $0x160] sm:$0xff]
    %v650 = vld [vmem:[#allocation8 + $0x168] sm:$0xff]
    %v651 = vld [vmem:[#allocation8 + $0x170] sm:$0xff]
    %v652 = vld [vmem:[#allocation8 + $0x178] sm:$0xff]
    %v653 = vld [vmem:[#allocation8 + $0x180] sm:$0xff]
    %v654 = vld [vmem:[#allocation8 + $0x188] sm:$0xff]
    %v655 = vld [vmem:[#allocation8 + $0x190] sm:$0xff]
    %v656 = vld [vmem:[#allocation8 + $0x198] sm:$0xff]
    %v657 = vld [vmem:[#allocation8 + $0x1a0] sm:$0xff]
    %v658 = vld [vmem:[#allocation8 + $0x1a8] sm:$0xff]
    %v659 = vld [vmem:[#allocation8 + $0x1b0] sm:$0xff]
    %v660 = vld [vmem:[#allocation8 + $0x1b8] sm:$0xff]
    %v661 = vld [vmem:[#allocation8 + $0x1c0] sm:$0xff]
    %v662 = vld [vmem:[#allocation8 + $0x1c8] sm:$0xff]
    %v663 = vld [vmem:[#allocation8 + $0x1d0] sm:$0xff]
    %v664 = vld [vmem:[#allocation8 + $0x1d8] sm:$0xff]
    %v665 = vld [vmem:[#allocation8 + $0x1e0] sm:$0xff]
    %v666 = vld [vmem:[#allocation8 + $0x1e8] sm:$0xff]
    %v667 = vld [vmem:[#allocation8 + $0x1f0] sm:$0xff]
    %v668 = vld [vmem:[#allocation8 + $0x1f8] sm:$0xff]
    %v669 = vld [vmem:[#allocation8 + $0x200] sm:$0xff]
    %v670 = vld [vmem:[#allocation8 + $0x208] sm:$0xff]
    %v671 = vld [vmem:[#allocation8 + $0x210] sm:$0xff]
    %v672 = vld [vmem:[#allocation8 + $0x218] sm:$0xff]
    %v673 = vld [vmem:[#allocation8 + $0x220] sm:$0xff]
    %v674 = vld [vmem:[#allocation8 + $0x228] sm:$0xff]
    %v675 = vld [vmem:[#allocation8 + $0x230] sm:$0xff]
    %v676 = vld [vmem:[#allocation8 + $0x238] sm:$0xff]
    %v677 = vld [vmem:[#allocation8 + $0x240] sm:$0xff]
    %v678 = vld [vmem:[#allocation8 + $0x248] sm:$0xff]
    %v679 = vld [vmem:[#allocation8 + $0x250] sm:$0xff]
    %v680 = vld [vmem:[#allocation8 + $0x258] sm:$0xff]
    %v681 = vld [vmem:[#allocation8 + $0x260] sm:$0xff]
    %v682 = vld [vmem:[#allocation8 + $0x268] sm:$0xff]
    %v683 = vld [vmem:[#allocation8 + $0x270] sm:$0xff]
    %v684 = vld [vmem:[#allocation8 + $0x278] sm:$0xff]
    %v685 = vld [vmem:[#allocation8 + $0x280] sm:$0xff]
    %v686 = vld [vmem:[#allocation8 + $0x288] sm:$0xff]
    %v687 = vld [vmem:[#allocation8 + $0x290] sm:$0xff]
    %v688 = vld [vmem:[#allocation8 + $0x298] sm:$0xff]
    %v689 = vld [vmem:[#allocation8 + $0x2a0] sm:$0xff]
    %v690 = vld [vmem:[#allocation8 + $0x2a8] sm:$0xff]
    %v691 = vld [vmem:[#allocation8 + $0x2b0] sm:$0xff]
    %v692 = vld [vmem:[#allocation8 + $0x2b8] sm:$0xff]
    %v693 = vld [vmem:[#allocation8 + $0x2c0] sm:$0xff]
    %v694 = vld [vmem:[#allocation8 + $0x2c8] sm:$0xff]
    %v695 = vld [vmem:[#allocation8 + $0x2d0] sm:$0xff]
    %v696 = vld [vmem:[#allocation8 + $0x2d8] sm:$0xff]
    %v697 = vld [vmem:[#allocation8 + $0x2e0] sm:$0xff]
    %v698 = vld [vmem:[#allocation8 + $0x2e8] sm:$0xff]
    %v699 = vld [vmem:[#allocation8 + $0x2f0] sm:$0xff]
    %v700 = vld [vmem:[#allocation8 + $0x2f8] sm:$0xff]
    %v701 = vld [vmem:[#allocation8 + $0x300] sm:$0xff]
    %v702 = vld [vmem:[#allocation8 + $0x308] sm:$0xff]
    %v703 = vld [vmem:[#allocation8 + $0x310] sm:$0xff]
    %v704 = vld [vmem:[#allocation8 + $0x318] sm:$0xff]
    %v705 = vld [vmem:[#allocation8 + $0x320] sm:$0xff]
    %v706 = vld [vmem:[#allocation8 + $0x328] sm:$0xff]
    %v707 = vld [vmem:[#allocation8 + $0x330] sm:$0xff]
    %v708 = vld [vmem:[#allocation8 + $0x338] sm:$0xff]
    %v709 = vld [vmem:[#allocation8 + $0x340] sm:$0xff]
    %v710 = vld [vmem:[#allocation8 + $0x348] sm:$0xff]
    %v711 = vld [vmem:[#allocation8 + $0x350] sm:$0xff]
    %v712 = vld [vmem:[#allocation8 + $0x358] sm:$0xff]
    %v713 = vld [vmem:[#allocation8 + $0x360] sm:$0xff]
    %v714 = vld [vmem:[#allocation8 + $0x368] sm:$0xff]
    %v715 = vld [vmem:[#allocation8 + $0x370] sm:$0xff]
    %v716 = vld [vmem:[#allocation8 + $0x378] sm:$0xff]
    %v717 = vld [vmem:[#allocation8 + $0x380] sm:$0xff]
    %v718 = vld [vmem:[#allocation8 + $0x388] sm:$0xff]
    %v719 = vld [vmem:[#allocation8 + $0x390] sm:$0xff]
    %v720 = vld [vmem:[#allocation8 + $0x398] sm:$0xff]
    %v721 = vld [vmem:[#allocation8 + $0x3a0] sm:$0xff]
    %v722 = vld [vmem:[#allocation8 + $0x3a8] sm:$0xff]
    %v723 = vld [vmem:[#allocation8 + $0x3b0] sm:$0xff]
    %v724 = vld [vmem:[#allocation8 + $0x3b8] sm:$0xff]
    %v725 = vld [vmem:[#allocation8 + $0x3c0] sm:$0xff]
    %v726 = vld [vmem:[#allocation8 + $0x3c8] sm:$0xff]
    %v727 = vld [vmem:[#allocation8 + $0x3d0] sm:$0xff]
    %v728 = vld [vmem:[#allocation8 + $0x3d8] sm:$0xff]
    %v729 = vld [vmem:[#allocation8 + $0x3e0] sm:$0xff]
    %v730 = vld [vmem:[#allocation8 + $0x3e8] sm:$0xff]
    %v731 = vld [vmem:[#allocation8 + $0x3f0] sm:$0xff]
    %v732 = vld [vmem:[#allocation8 + $0x3f8] sm:$0xff]
    %v733 = vld [vmem:[#allocation8 + $0x400] sm:$0xff]
    %v734 = vld [vmem:[#allocation8 + $0x408] sm:$0xff]
    %v735 = vld [vmem:[#allocation8 + $0x410] sm:$0xff]
    %v736 = vld [vmem:[#allocation8 + $0x418] sm:$0xff]
    %v737 = vld [vmem:[#allocation8 + $0x420] sm:$0xff]
    %v738 = vld [vmem:[#allocation8 + $0x428] sm:$0xff]
    %v739 = vld [vmem:[#allocation8 + $0x430] sm:$0xff]
    %v740 = vld [vmem:[#allocation8 + $0x438] sm:$0xff]
    %v741 = vld [vmem:[#allocation8 + $0x440] sm:$0xff]
    %v742 = vld [vmem:[#allocation8 + $0x448] sm:$0xff]
    %v743 = vld [vmem:[#allocation8 + $0x450] sm:$0xff]
    %v744 = vld [vmem:[#allocation8 + $0x458] sm:$0xff]
    %v745 = vld [vmem:[#allocation8 + $0x460] sm:$0xff]
    %v746 = vld [vmem:[#allocation8 + $0x468] sm:$0xff]
    %v747 = vld [vmem:[#allocation8 + $0x470] sm:$0xff]
    %v748 = vld [vmem:[#allocation8 + $0x478] sm:$0xff]
    %v749 = vld [vmem:[#allocation8 + $0x480] sm:$0xff]
    %v750 = vld [vmem:[#allocation8 + $0x488] sm:$0xff]
    %v751 = vld [vmem:[#allocation8 + $0x490] sm:$0xff]
    %v752 = vld [vmem:[#allocation8 + $0x498] sm:$0xff]
    %v753 = vld [vmem:[#allocation8 + $0x4a0] sm:$0xff]
    %v754 = vld [vmem:[#allocation8 + $0x4a8] sm:$0xff]
    %v755 = vld [vmem:[#allocation8 + $0x4b0] sm:$0xff]
    %v756 = vld [vmem:[#allocation8 + $0x4b8] sm:$0xff]
    %v757 = vld [vmem:[#allocation8 + $0x4c0] sm:$0xff]
    %v758 = vld [vmem:[#allocation8 + $0x4c8] sm:$0xff]
    %v759 = vld [vmem:[#allocation8 + $0x4d0] sm:$0xff]
    %v760 = vld [vmem:[#allocation8 + $0x4d8] sm:$0xff]
    %v761 = vld [vmem:[#allocation8 + $0x4e0] sm:$0xff]
    %v762 = vld [vmem:[#allocation8 + $0x4e8] sm:$0xff]
    %v763 = vld [vmem:[#allocation8 + $0x4f0] sm:$0xff]
    %v764 = vld [vmem:[#allocation8 + $0x4f8] sm:$0xff]
    %v765 = vld [vmem:[#allocation8 + $0x500] sm:$0xff]
    %v766 = vld [vmem:[#allocation8 + $0x508] sm:$0xff]
    %v767 = vld [vmem:[#allocation8 + $0x510] sm:$0xff]
    %v768 = vld [vmem:[#allocation8 + $0x518] sm:$0xff]
    %v769 = vld [vmem:[#allocation8 + $0x520] sm:$0xff]
    %v770 = vld [vmem:[#allocation8 + $0x528] sm:$0xff]
    %v771 = vld [vmem:[#allocation8 + $0x530] sm:$0xff]
    %v772 = vld [vmem:[#allocation8 + $0x538] sm:$0xff]
    %v773 = vld [vmem:[#allocation8 + $0x540] sm:$0xff]
    %v774 = vld [vmem:[#allocation8 + $0x548] sm:$0xff]
    %v775 = vld [vmem:[#allocation8 + $0x550] sm:$0xff]
    %v776 = vld [vmem:[#allocation8 + $0x558] sm:$0xff]
    %v777 = vld [vmem:[#allocation8 + $0x560] sm:$0xff]
    %v778 = vld [vmem:[#allocation8 + $0x568] sm:$0xff]
    %v779 = vld [vmem:[#allocation8 + $0x570] sm:$0xff]
    %v780 = vld [vmem:[#allocation8 + $0x578] sm:$0xff]
    %v781 = vld [vmem:[#allocation8 + $0x580] sm:$0xff]
    %v782 = vld [vmem:[#allocation8 + $0x588] sm:$0xff]
    %v783 = vld [vmem:[#allocation8 + $0x590] sm:$0xff]
    %v784 = vld [vmem:[#allocation8 + $0x598] sm:$0xff]
    %v785 = vld [vmem:[#allocation8 + $0x5a0] sm:$0xff]
    %v786 = vld [vmem:[#allocation8 + $0x5a8] sm:$0xff]
    %v787 = vld [vmem:[#allocation8 + $0x5b0] sm:$0xff]
    %v788 = vld [vmem:[#allocation8 + $0x5b8] sm:$0xff]
    %v789 = vld [vmem:[#allocation8 + $0x5c0] sm:$0xff]
    %v790 = vld [vmem:[#allocation8 + $0x5c8] sm:$0xff]
    %v791 = vld [vmem:[#allocation8 + $0x5d0] sm:$0xff]
    %v792 = vld [vmem:[#allocation8 + $0x5d8] sm:$0xff]
    %v793 = vld [vmem:[#allocation8 + $0x5e0] sm:$0xff]
    %v794 = vld [vmem:[#allocation8 + $0x5e8] sm:$0xff]
    %v795 = vld [vmem:[#allocation8 + $0x5f0] sm:$0xff]
    %v796 = vld [vmem:[#allocation8 + $0x5f8] sm:$0xff]
    %v797 = vld [vmem:[#allocation8 + $0x600] sm:$0xff]
    %v798 = vld [vmem:[#allocation8 + $0x608] sm:$0xff]
    %v799 = vld [vmem:[#allocation8 + $0x610] sm:$0xff]
    %v800 = vld [vmem:[#allocation8 + $0x618] sm:$0xff]
    %v801 = vld [vmem:[#allocation8 + $0x620] sm:$0xff]
    %v802 = vld [vmem:[#allocation8 + $0x628] sm:$0xff]
    %v803 = vld [vmem:[#allocation8 + $0x630] sm:$0xff]
    %v804 = vld [vmem:[#allocation8 + $0x638] sm:$0xff]
    %v805 = vld [vmem:[#allocation8 + $0x640] sm:$0xff]
    %v806 = vld [vmem:[#allocation8 + $0x648] sm:$0xff]
    %v807 = vld [vmem:[#allocation8 + $0x650] sm:$0xff]
    %v808 = vld [vmem:[#allocation8 + $0x658] sm:$0xff]
    %v809 = vld [vmem:[#allocation8 + $0x660] sm:$0xff]
    %v810 = vld [vmem:[#allocation8 + $0x668] sm:$0xff]
    %v811 = vld [vmem:[#allocation8 + $0x670] sm:$0xff]
    %v812 = vld [vmem:[#allocation8 + $0x678] sm:$0xff]
    %v813 = vld [vmem:[#allocation8 + $0x680] sm:$0xff]
    %v814 = vld [vmem:[#allocation8 + $0x688] sm:$0xff]
    %v815 = vld [vmem:[#allocation8 + $0x690] sm:$0xff]
    %v816 = vld [vmem:[#allocation8 + $0x698] sm:$0xff]
    %v817 = vld [vmem:[#allocation8 + $0x6a0] sm:$0xff]
    %v818 = vld [vmem:[#allocation8 + $0x6a8] sm:$0xff]
    %v819 = vld [vmem:[#allocation8 + $0x6b0] sm:$0xff]
    %v820 = vld [vmem:[#allocation8 + $0x6b8] sm:$0xff]
    %v821 = vld [vmem:[#allocation8 + $0x6c0] sm:$0xff]
    %v822 = vld [vmem:[#allocation8 + $0x6c8] sm:$0xff]
    %v823 = vld [vmem:[#allocation8 + $0x6d0] sm:$0xff]
    %v824 = vld [vmem:[#allocation8 + $0x6d8] sm:$0xff]
    %v825 = vld [vmem:[#allocation8 + $0x6e0] sm:$0xff]
    %v826 = vld [vmem:[#allocation8 + $0x6e8] sm:$0xff]
    %v827 = vld [vmem:[#allocation8 + $0x6f0] sm:$0xff]
    %v828 = vld [vmem:[#allocation8 + $0x6f8] sm:$0xff]
    %v829 = vld [vmem:[#allocation8 + $0x700] sm:$0xff]
    %v830 = vld [vmem:[#allocation8 + $0x708] sm:$0xff]
    %v831 = vld [vmem:[#allocation8 + $0x710] sm:$0xff]
    %v832 = vld [vmem:[#allocation8 + $0x718] sm:$0xff]
    %v833 = vld [vmem:[#allocation8 + $0x720] sm:$0xff]
    %v834 = vld [vmem:[#allocation8 + $0x728] sm:$0xff]
    %v835 = vld [vmem:[#allocation8 + $0x730] sm:$0xff]
    %v836 = vld [vmem:[#allocation8 + $0x738] sm:$0xff]
    %v837 = vld [vmem:[#allocation8 + $0x740] sm:$0xff]
    %v838 = vld [vmem:[#allocation8 + $0x748] sm:$0xff]
    %v839 = vld [vmem:[#allocation8 + $0x750] sm:$0xff]
    %v840 = vld [vmem:[#allocation8 + $0x758] sm:$0xff]
    %v841 = vld [vmem:[#allocation8 + $0x760] sm:$0xff]
    %v842 = vld [vmem:[#allocation8 + $0x768] sm:$0xff]
    %v843 = vld [vmem:[#allocation8 + $0x770] sm:$0xff]
    %v844 = vld [vmem:[#allocation8 + $0x778] sm:$0xff]
    %v845 = vld [vmem:[#allocation8 + $0x780] sm:$0xff]
    %v846 = vld [vmem:[#allocation8 + $0x788] sm:$0xff]
    %v847 = vld [vmem:[#allocation8 + $0x790] sm:$0xff]
    %v848 = vld [vmem:[#allocation8 + $0x798] sm:$0xff]
    %v849 = vld [vmem:[#allocation8 + $0x7a0] sm:$0xff]
    %v850 = vld [vmem:[#allocation8 + $0x7a8] sm:$0xff]
    %v851 = vld [vmem:[#allocation8 + $0x7b0] sm:$0xff]
    %v852 = vld [vmem:[#allocation8 + $0x7b8] sm:$0xff]
    %v853 = vld [vmem:[#allocation8 + $0x7c0] sm:$0xff]
    %v854 = vld [vmem:[#allocation8 + $0x7c8] sm:$0xff]
    %v855 = vld [vmem:[#allocation8 + $0x7d0] sm:$0xff]
    %v856 = vld [vmem:[#allocation8 + $0x7d8] sm:$0xff]
    %v857 = vld [vmem:[#allocation8 + $0x7e0] sm:$0xff]
    %v858 = vld [vmem:[#allocation8 + $0x7e8] sm:$0xff]
    %v859 = vld [vmem:[#allocation8 + $0x7f0] sm:$0xff]
    %v860 = vld [vmem:[#allocation8 + $0x7f8] sm:$0xff]
    %v861 = vld [vmem:[#allocation8 + $0x800] sm:$0xff]
    %v862 = vld [vmem:[#allocation8 + $0x808] sm:$0xff]
    %v863 = vld [vmem:[#allocation8 + $0x810] sm:$0xff]
    %v864 = vld [vmem:[#allocation8 + $0x818] sm:$0xff]
    %v865 = vld [vmem:[#allocation8 + $0x820] sm:$0xff]
    %v866 = vld [vmem:[#allocation8 + $0x828] sm:$0xff]
    %v867 = vld [vmem:[#allocation8 + $0x830] sm:$0xff]
    %v868 = vld [vmem:[#allocation8 + $0x838] sm:$0xff]
    %v869 = vld [vmem:[#allocation8 + $0x840] sm:$0xff]
    %v870 = vld [vmem:[#allocation8 + $0x848] sm:$0xff]
    %v871 = vld [vmem:[#allocation8 + $0x850] sm:$0xff]
    %v872 = vld [vmem:[#allocation8 + $0x858] sm:$0xff]
    %v873 = vld [vmem:[#allocation8 + $0x860] sm:$0xff]
    %v874 = vld [vmem:[#allocation8 + $0x868] sm:$0xff]
    %v875 = vld [vmem:[#allocation8 + $0x870] sm:$0xff]
    %v876 = vld [vmem:[#allocation8 + $0x878] sm:$0xff]
    %v877 = vld [vmem:[#allocation8 + $0x880] sm:$0xff]
    %v878 = vld [vmem:[#allocation8 + $0x888] sm:$0xff]
    %v879 = vld [vmem:[#allocation8 + $0x890] sm:$0xff]
    %v880 = vld [vmem:[#allocation8 + $0x898] sm:$0xff]
    %v881 = vld [vmem:[#allocation8 + $0x8a0] sm:$0xff]
    %v882 = vld [vmem:[#allocation8 + $0x8a8] sm:$0xff]
    %v883 = vld [vmem:[#allocation8 + $0x8b0] sm:$0xff]
    %v884 = vld [vmem:[#allocation8 + $0x8b8] sm:$0xff]
    %v885 = vld [vmem:[#allocation8 + $0x8c0] sm:$0xff]
    %v886 = vld [vmem:[#allocation8 + $0x8c8] sm:$0xff]
    %v887 = vld [vmem:[#allocation8 + $0x8d0] sm:$0xff]
    %v888 = vld [vmem:[#allocation8 + $0x8d8] sm:$0xff]
    %v889 = vld [vmem:[#allocation8 + $0x8e0] sm:$0xff]
    %v890 = vld [vmem:[#allocation8 + $0x8e8] sm:$0xff]
    %v891 = vld [vmem:[#allocation8 + $0x8f0] sm:$0xff]
    %v892 = vld [vmem:[#allocation8 + $0x8f8] sm:$0xff]
    %v893 = vld [vmem:[#allocation8 + $0x900] sm:$0xff]
    %v894 = vld [vmem:[#allocation8 + $0x908] sm:$0xff]
    %v895 = vld [vmem:[#allocation8 + $0x910] sm:$0xff]
    %v896 = vld [vmem:[#allocation8 + $0x918] sm:$0xff]
    %v897 = vld [vmem:[#allocation8 + $0x920] sm:$0xff]
    %v898 = vld [vmem:[#allocation8 + $0x928] sm:$0xff]
    %v899 = vld [vmem:[#allocation8 + $0x930] sm:$0xff]
    %v900 = vld [vmem:[#allocation8 + $0x938] sm:$0xff]
    %v901 = vld [vmem:[#allocation8 + $0x940] sm:$0xff]
    %v902 = vld [vmem:[#allocation8 + $0x948] sm:$0xff]
    %v903 = vld [vmem:[#allocation8 + $0x950] sm:$0xff]
    %v904 = vld [vmem:[#allocation8 + $0x958] sm:$0xff]
    %v905 = vld [vmem:[#allocation8 + $0x960] sm:$0xff]
    %v906 = vld [vmem:[#allocation8 + $0x968] sm:$0xff]
    %v907 = vld [vmem:[#allocation8 + $0x970] sm:$0xff]
    %v908 = vld [vmem:[#allocation8 + $0x978] sm:$0xff]
    %v909 = vld [vmem:[#allocation8 + $0x980] sm:$0xff]
    %v910 = vld [vmem:[#allocation8 + $0x988] sm:$0xff]
    %v911 = vld [vmem:[#allocation8 + $0x990] sm:$0xff]
    %v912 = vld [vmem:[#allocation8 + $0x998] sm:$0xff]
    %v913 = vld [vmem:[#allocation8 + $0x9a0] sm:$0xff]
    %v914 = vld [vmem:[#allocation8 + $0x9a8] sm:$0xff]
    %v915 = vld [vmem:[#allocation8 + $0x9b0] sm:$0xff]
    %v916 = vld [vmem:[#allocation8 + $0x9b8] sm:$0xff]
    %v917 = vld [vmem:[#allocation8 + $0x9c0] sm:$0xff]
    %v918 = vld [vmem:[#allocation8 + $0x9c8] sm:$0xff]
    %v919 = vld [vmem:[#allocation8 + $0x9d0] sm:$0xff]
    %v920 = vld [vmem:[#allocation8 + $0x9d8] sm:$0xff]
    %v921 = vld [vmem:[#allocation8 + $0x9e0] sm:$0xff]
    %v922 = vld [vmem:[#allocation8 + $0x9e8] sm:$0xff]
    %v923 = vld [vmem:[#allocation8 + $0x9f0] sm:$0xff]
    %v924 = vld [vmem:[#allocation8 + $0x9f8] sm:$0xff]
    %v925 = vld [vmem:[#allocation8 + $0xa00] sm:$0xff]
    %v926 = vld [vmem:[#allocation8 + $0xa08] sm:$0xff]
    %v927 = vld [vmem:[#allocation8 + $0xa10] sm:$0xff]
    %v928 = vld [vmem:[#allocation8 + $0xa18] sm:$0xff]
    %v929 = vld [vmem:[#allocation8 + $0xa20] sm:$0xff]
    %v930 = vld [vmem:[#allocation8 + $0xa28] sm:$0xff]
    %v931 = vld [vmem:[#allocation8 + $0xa30] sm:$0xff]
    %v932 = vld [vmem:[#allocation8 + $0xa38] sm:$0xff]
    %v933 = vld [vmem:[#allocation8 + $0xa40] sm:$0xff]
    %v934 = vld [vmem:[#allocation8 + $0xa48] sm:$0xff]
    %v935 = vld [vmem:[#allocation8 + $0xa50] sm:$0xff]
    %v936 = vld [vmem:[#allocation8 + $0xa58] sm:$0xff]
    %v937 = vld [vmem:[#allocation8 + $0xa60] sm:$0xff]
    %v938 = vld [vmem:[#allocation8 + $0xa68] sm:$0xff]
    %v939 = vld [vmem:[#allocation8 + $0xa70] sm:$0xff]
    %v940 = vld [vmem:[#allocation8 + $0xa78] sm:$0xff]
    %v941 = vld [vmem:[#allocation8 + $0xa80] sm:$0xff]
    %v942 = vld [vmem:[#allocation8 + $0xa88] sm:$0xff]
    %v943 = vld [vmem:[#allocation8 + $0xa90] sm:$0xff]
    %v944 = vld [vmem:[#allocation8 + $0xa98] sm:$0xff]
    %v945 = vld [vmem:[#allocation8 + $0xaa0] sm:$0xff]
    %v946 = vld [vmem:[#allocation8 + $0xaa8] sm:$0xff]
    %v947 = vld [vmem:[#allocation8 + $0xab0] sm:$0xff]
    %v948 = vld [vmem:[#allocation8 + $0xab8] sm:$0xff]
    %v949 = vld [vmem:[#allocation8 + $0xac0] sm:$0xff]
    %v950 = vld [vmem:[#allocation8 + $0xac8] sm:$0xff]
    %v951 = vld [vmem:[#allocation8 + $0xad0] sm:$0xff]
    %v952 = vld [vmem:[#allocation8 + $0xad8] sm:$0xff]
    %v953 = vld [vmem:[#allocation8 + $0xae0] sm:$0xff]
    %v954 = vld [vmem:[#allocation8 + $0xae8] sm:$0xff]
    %v955 = vld [vmem:[#allocation8 + $0xaf0] sm:$0xff]
    %v956 = vld [vmem:[#allocation8 + $0xaf8] sm:$0xff]
    %v957 = vld [vmem:[#allocation8 + $0xb00] sm:$0xff]
    %v958 = vld [vmem:[#allocation8 + $0xb08] sm:$0xff]
    %v959 = vld [vmem:[#allocation8 + $0xb10] sm:$0xff]
    %v960 = vld [vmem:[#allocation8 + $0xb18] sm:$0xff]
    %v961 = vld [vmem:[#allocation8 + $0xb20] sm:$0xff]
    %v962 = vld [vmem:[#allocation8 + $0xb28] sm:$0xff]
    %v963 = vld [vmem:[#allocation8 + $0xb30] sm:$0xff]
    %v964 = vld [vmem:[#allocation8 + $0xb38] sm:$0xff]
    %v965 = vld [vmem:[#allocation8 + $0xb40] sm:$0xff]
    %v966 = vld [vmem:[#allocation8 + $0xb48] sm:$0xff]
    %v967 = vld [vmem:[#allocation8 + $0xb50] sm:$0xff]
    %v968 = vld [vmem:[#allocation8 + $0xb58] sm:$0xff]
    %v969 = vld [vmem:[#allocation8 + $0xb60] sm:$0xff]
    %v970 = vld [vmem:[#allocation8 + $0xb68] sm:$0xff]
    %v971 = vld [vmem:[#allocation8 + $0xb70] sm:$0xff]
    %v972 = vld [vmem:[#allocation8 + $0xb78] sm:$0xff]
    %v973 = vld [vmem:[#allocation8 + $0xb80] sm:$0xff]
    %v974 = vld [vmem:[#allocation8 + $0xb88] sm:$0xff]
    %v975 = vld [vmem:[#allocation8 + $0xb90] sm:$0xff]
    %v976 = vld [vmem:[#allocation8 + $0xb98] sm:$0xff]
    %v977 = vld [vmem:[#allocation8 + $0xba0] sm:$0xff]
    %v978 = vld [vmem:[#allocation8 + $0xba8] sm:$0xff]
    %v979 = vld [vmem:[#allocation8 + $0xbb0] sm:$0xff]
    %v980 = vld [vmem:[#allocation8 + $0xbb8] sm:$0xff]
    %v981 = vld [vmem:[#allocation8 + $0xbc0] sm:$0xff]
    %v982 = vld [vmem:[#allocation8 + $0xbc8] sm:$0xff]
    %v983 = vld [vmem:[#allocation8 + $0xbd0] sm:$0xff]
    %v984 = vld [vmem:[#allocation8 + $0xbd8] sm:$0xff]
    %v985 = vld [vmem:[#allocation8 + $0xbe0] sm:$0xff]
    %v986 = vld [vmem:[#allocation8 + $0xbe8] sm:$0xff]
    %v987 = vld [vmem:[#allocation8 + $0xbf0] sm:$0xff]
    %v988 = vld [vmem:[#allocation8 + $0xbf8] sm:$0xff]
    %v989 = vld [vmem:[#allocation8 + $0xc00] sm:$0xff]
    %v990 = vld [vmem:[#allocation8 + $0xc08] sm:$0xff]
    %v991 = vld [vmem:[#allocation8 + $0xc10] sm:$0xff]
    %v992 = vld [vmem:[#allocation8 + $0xc18] sm:$0xff]
    %v993 = vld [vmem:[#allocation8 + $0xc20] sm:$0xff]
    %v994 = vld [vmem:[#allocation8 + $0xc28] sm:$0xff]
    %v995 = vld [vmem:[#allocation8 + $0xc30] sm:$0xff]
    %v996 = vld [vmem:[#allocation8 + $0xc38] sm:$0xff]
    %v997 = vld [vmem:[#allocation8 + $0xc40] sm:$0xff]
    %v998 = vld [vmem:[#allocation8 + $0xc48] sm:$0xff]
    %v999 = vld [vmem:[#allocation8 + $0xc50] sm:$0xff]
    %v1000 = vld [vmem:[#allocation8 + $0xc58] sm:$0xff]
    %v1001 = vld [vmem:[#allocation8 + $0xc60] sm:$0xff]
    %v1002 = vld [vmem:[#allocation8 + $0xc68] sm:$0xff]
    %v1003 = vld [vmem:[#allocation8 + $0xc70] sm:$0xff]
    %v1004 = vld [vmem:[#allocation8 + $0xc78] sm:$0xff]
    %v1005 = vld [vmem:[#allocation8 + $0xc80] sm:$0xff]
    %v1006 = vld [vmem:[#allocation8 + $0xc88] sm:$0xff]
    %v1007 = vld [vmem:[#allocation8 + $0xc90] sm:$0xff]
    %v1008 = vld [vmem:[#allocation8 + $0xc98] sm:$0xff]
    %v1009 = vld [vmem:[#allocation8 + $0xca0] sm:$0xff]
    %v1010 = vld [vmem:[#allocation8 + $0xca8] sm:$0xff]
    %v1011 = vld [vmem:[#allocation8 + $0xcb0] sm:$0xff]
    %v1012 = vld [vmem:[#allocation8 + $0xcb8] sm:$0xff]
    %v1013 = vld [vmem:[#allocation8 + $0xcc0] sm:$0xff]
    %v1014 = vld [vmem:[#allocation8 + $0xcc8] sm:$0xff]
    %v1015 = vld [vmem:[#allocation8 + $0xcd0] sm:$0xff]
    %v1016 = vld [vmem:[#allocation8 + $0xcd8] sm:$0xff]
    %v1017 = vld [vmem:[#allocation8 + $0xce0] sm:$0xff]
    %v1018 = vld [vmem:[#allocation8 + $0xce8] sm:$0xff]
    %v1019 = vld [vmem:[#allocation8 + $0xcf0] sm:$0xff]
    %v1020 = vld [vmem:[#allocation8 + $0xcf8] sm:$0xff]
    %v1021 = vld [vmem:[#allocation8 + $0xd00] sm:$0xff]
    %v1022 = vld [vmem:[#allocation8 + $0xd08] sm:$0xff]
    %v1023 = vld [vmem:[#allocation8 + $0xd10] sm:$0xff]
    %v1024 = vld [vmem:[#allocation8 + $0xd18] sm:$0xff]
    %v1025 = vld [vmem:[#allocation8 + $0xd20] sm:$0xff]
    %v1026 = vld [vmem:[#allocation8 + $0xd28] sm:$0xff]
    %v1027 = vld [vmem:[#allocation8 + $0xd30] sm:$0xff]
    %v1028 = vld [vmem:[#allocation8 + $0xd38] sm:$0xff]
    %v1029 = vld [vmem:[#allocation8 + $0xd40] sm:$0xff]
    %v1030 = vld [vmem:[#allocation8 + $0xd48] sm:$0xff]
    %v1031 = vld [vmem:[#allocation8 + $0xd50] sm:$0xff]
    %v1032 = vld [vmem:[#allocation8 + $0xd58] sm:$0xff]
    %v1033 = vld [vmem:[#allocation8 + $0xd60] sm:$0xff]
    %v1034 = vld [vmem:[#allocation8 + $0xd68] sm:$0xff]
    %v1035 = vld [vmem:[#allocation8 + $0xd70] sm:$0xff]
    %v1036 = vld [vmem:[#allocation8 + $0xd78] sm:$0xff]
    %v1037 = vld [vmem:[#allocation8 + $0xd80] sm:$0xff]
    %v1038 = vld [vmem:[#allocation8 + $0xd88] sm:$0xff]
    %v1039 = vld [vmem:[#allocation8 + $0xd90] sm:$0xff]
    %v1040 = vld [vmem:[#allocation8 + $0xd98] sm:$0xff]
    %v1041 = vld [vmem:[#allocation8 + $0xda0] sm:$0xff]
    %v1042 = vld [vmem:[#allocation8 + $0xda8] sm:$0xff]
    %v1043 = vld [vmem:[#allocation8 + $0xdb0] sm:$0xff]
    %v1044 = vld [vmem:[#allocation8 + $0xdb8] sm:$0xff]
    %v1045 = vld [vmem:[#allocation8 + $0xdc0] sm:$0xff]
    %v1046 = vld [vmem:[#allocation8 + $0xdc8] sm:$0xff]
    %v1047 = vld [vmem:[#allocation8 + $0xdd0] sm:$0xff]
    %v1048 = vld [vmem:[#allocation8 + $0xdd8] sm:$0xff]
    %v1049 = vld [vmem:[#allocation8 + $0xde0] sm:$0xff]
    %v1050 = vld [vmem:[#allocation8 + $0xde8] sm:$0xff]
    %v1051 = vld [vmem:[#allocation8 + $0xdf0] sm:$0xff]
    %v1052 = vld [vmem:[#allocation8 + $0xdf8] sm:$0xff]
    %v1053 = vld [vmem:[#allocation8 + $0xe00] sm:$0xff]
    %v1054 = vld [vmem:[#allocation8 + $0xe08] sm:$0xff]
    %v1055 = vld [vmem:[#allocation8 + $0xe10] sm:$0xff]
    %v1056 = vld [vmem:[#allocation8 + $0xe18] sm:$0xff]
    %v1057 = vld [vmem:[#allocation8 + $0xe20] sm:$0xff]
    %v1058 = vld [vmem:[#allocation8 + $0xe28] sm:$0xff]
    %v1059 = vld [vmem:[#allocation8 + $0xe30] sm:$0xff]
    %v1060 = vld [vmem:[#allocation8 + $0xe38] sm:$0xff]
    %v1061 = vld [vmem:[#allocation8 + $0xe40] sm:$0xff]
    %v1062 = vld [vmem:[#allocation8 + $0xe48] sm:$0xff]
    %v1063 = vld [vmem:[#allocation8 + $0xe50] sm:$0xff]
    %v1064 = vld [vmem:[#allocation8 + $0xe58] sm:$0xff]
    %v1065 = vld [vmem:[#allocation8 + $0xe60] sm:$0xff]
    %v1066 = vld [vmem:[#allocation8 + $0xe68] sm:$0xff]
    %v1067 = vld [vmem:[#allocation8 + $0xe70] sm:$0xff]
    %v1068 = vld [vmem:[#allocation8 + $0xe78] sm:$0xff]
    %v1069 = vld [vmem:[#allocation8 + $0xe80] sm:$0xff]
    %v1070 = vld [vmem:[#allocation8 + $0xe88] sm:$0xff]
    %v1071 = vld [vmem:[#allocation8 + $0xe90] sm:$0xff]
    %v1072 = vld [vmem:[#allocation8 + $0xe98] sm:$0xff]
    %v1073 = vld [vmem:[#allocation8 + $0xea0] sm:$0xff]
    %v1074 = vld [vmem:[#allocation8 + $0xea8] sm:$0xff]
    %v1075 = vld [vmem:[#allocation8 + $0xeb0] sm:$0xff]
    %v1076 = vld [vmem:[#allocation8 + $0xeb8] sm:$0xff]
    %v1077 = vld [vmem:[#allocation8 + $0xec0] sm:$0xff]
    %v1078 = vld [vmem:[#allocation8 + $0xec8] sm:$0xff]
    %v1079 = vld [vmem:[#allocation8 + $0xed0] sm:$0xff]
    %v1080 = vld [vmem:[#allocation8 + $0xed8] sm:$0xff]
    %v1081 = vld [vmem:[#allocation8 + $0xee0] sm:$0xff]
    %v1082 = vld [vmem:[#allocation8 + $0xee8] sm:$0xff]
    %v1083 = vld [vmem:[#allocation8 + $0xef0] sm:$0xff]
    %v1084 = vld [vmem:[#allocation8 + $0xef8] sm:$0xff]
    %v1085 = vld [vmem:[#allocation8 + $0xf00] sm:$0xff]
    %v1086 = vld [vmem:[#allocation8 + $0xf08] sm:$0xff]
    %v1087 = vld [vmem:[#allocation8 + $0xf10] sm:$0xff]
    %v1088 = vld [vmem:[#allocation8 + $0xf18] sm:$0xff]
    %v1089 = vld [vmem:[#allocation8 + $0xf20] sm:$0xff]
    %v1090 = vld [vmem:[#allocation8 + $0xf28] sm:$0xff]
    %v1091 = vld [vmem:[#allocation8 + $0xf30] sm:$0xff]
    %v1092 = vld [vmem:[#allocation8 + $0xf38] sm:$0xff]
    %v1093 = vld [vmem:[#allocation8 + $0xf40] sm:$0xff]
    %v1094 = vld [vmem:[#allocation8 + $0xf48] sm:$0xff]
    %v1095 = vld [vmem:[#allocation8 + $0xf50] sm:$0xff]
    %v1096 = vld [vmem:[#allocation8 + $0xf58] sm:$0xff]
    %v1097 = vld [vmem:[#allocation8 + $0xf60] sm:$0xff]
    %v1098 = vld [vmem:[#allocation8 + $0xf68] sm:$0xff]
    %v1099 = vld [vmem:[#allocation8 + $0xf70] sm:$0xff]
    %v1100 = vld [vmem:[#allocation8 + $0xf78] sm:$0xff]
    %v1101 = vld [vmem:[#allocation8 + $0xf80] sm:$0xff]
    %v1102 = vld [vmem:[#allocation8 + $0xf88] sm:$0xff]
    %v1103 = vld [vmem:[#allocation8 + $0xf90] sm:$0xff]
    %v1104 = vld [vmem:[#allocation8 + $0xf98] sm:$0xff]
    %v1105 = vld [vmem:[#allocation8 + $0xfa0] sm:$0xff]
    %v1106 = vld [vmem:[#allocation8 + $0xfa8] sm:$0xff]
    %v1107 = vld [vmem:[#allocation8 + $0xfb0] sm:$0xff]
    %v1108 = vld [vmem:[#allocation8 + $0xfb8] sm:$0xff]
    %v1109 = vld [vmem:[#allocation8 + $0xfc0] sm:$0xff]
    %v1110 = vld [vmem:[#allocation8 + $0xfc8] sm:$0xff]
    %v1111 = vld [vmem:[#allocation8 + $0xfd0] sm:$0xff]
    %v1112 = vld [vmem:[#allocation8 + $0xfd8] sm:$0xff]
    %v1113 = vld [vmem:[#allocation8 + $0xfe0] sm:$0xff]
    %v1114 = vld [vmem:[#allocation8 + $0xfe8] sm:$0xff]
    %v1115 = vld [vmem:[#allocation8 + $0xff0] sm:$0xff]
    %v1116 = vld [vmem:[#allocation8 + $0xff8] sm:$0xff]
    %v1117 = vld [vmem:[#allocation7] sm:$0xff]
    %v1119 = vperm.slane %v1117, 0
    %v1120 = vperm.slane %v1117, 1
    %v1121 = vperm.slane %v1117, 2
    %v1122 = vperm.slane %v1117, 3
    %v1123 = vperm.slane %v1117, 4
    %v1124 = vperm.slane %v1117, 5
    %v1125 = vperm.slane %v1117, 6
    %v1126 = vperm.slane %v1117, 7
    %v1135 = vld [vmem:[#allocation10] sm:$0xff]
    %v1137 = vperm.slane %v1135, 0
    %v1138 = vperm.slane %v1135, 1
    %v1139 = vperm.slane %v1135, 2
    %v1140 = vperm.slane %v1135, 3
    %v1141 = vperm.slane %v1135, 4
    %v1142 = vperm.slane %v1135, 5
    %v1143 = vperm.slane %v1135, 6
    %v1144 = vperm.slane %v1135, 7
    %v1153 = vld [vmem:[#allocation2] sm:$0xff]
    %v1154 = vld [vmem:[#allocation2 + $0x8] sm:$0xff]
    %1157 = vst [vmem:[#allocation1] ss:$4 sm:$0xff] %v1153
    %s1158 = scalar_lea.vmem [#allocation1], 32
    %1159 = vst [vmem:[%s1158] ss:$4 sm:$0xff] %v1154
    %v1160 = vld.sshfl [vmem:[#allocation1] sm:$0xff pattern:$0x73625140]
    %v1161 = vld.sshfl [vmem:[#allocation1 + $0x8] sm:$0xff pattern:$0x73625140]
    %v1162 = vld.sshfl [vmem:[#allocation1 + $0x10] sm:$0xff pattern:$0x73625140]
    %v1163 = vld.sshfl [vmem:[#allocation1 + $0x18] sm:$0xff pattern:$0x73625140]
    %v1164 = vld.sshfl [vmem:[#allocation1 + $0x20] sm:$0xff pattern:$0x73625140]
    %v1165 = vld.sshfl [vmem:[#allocation1 + $0x28] sm:$0xff pattern:$0x73625140]
    %v1166 = vld.sshfl [vmem:[#allocation1 + $0x30] sm:$0xff pattern:$0x73625140]
    %v1167 = vld.sshfl [vmem:[#allocation1 + $0x38] sm:$0xff pattern:$0x73625140]
    %v1176 = vpack.c.bf16 %v1160, %v1160
    %v1177 = vpack.c.bf16 %v1161, %v1161
    %v1178 = vpack.c.bf16 %v1162, %v1162
    %v1179 = vpack.c.bf16 %v1163, %v1163
    %v1180 = vpack.c.bf16 %v1164, %v1164
    %v1181 = vpack.c.bf16 %v1165, %v1165
    %v1182 = vpack.c.bf16 %v1166, %v1166
    %v1183 = vpack.c.bf16 %v1167, %v1167
    %v1696 = vunpack.c.l.b16 %v93
    %v1697 = vunpack.c.h.b16 %v93
    %v1698 = vunpack.c.l.b16 %v94
    %v1699 = vunpack.c.h.b16 %v94
    %v1700 = vunpack.c.l.b16 %v95
    %v1701 = vunpack.c.h.b16 %v95
    %v1702 = vunpack.c.l.b16 %v96
    %v1703 = vunpack.c.h.b16 %v96
    %v1704 = vunpack.c.l.b16 %v97
    %v1705 = vunpack.c.h.b16 %v97
    %v1706 = vunpack.c.l.b16 %v98
    %v1707 = vunpack.c.h.b16 %v98
    %v1708 = vunpack.c.l.b16 %v99
    %v1709 = vunpack.c.h.b16 %v99
    %v1710 = vunpack.c.l.b16 %v100
    %v1711 = vunpack.c.h.b16 %v100
    %v1712 = vunpack.c.l.b16 %v101
    %v1713 = vunpack.c.h.b16 %v101
    %v1714 = vunpack.c.l.b16 %v102
    %v1715 = vunpack.c.h.b16 %v102
    %v1716 = vunpack.c.l.b16 %v103
    %v1717 = vunpack.c.h.b16 %v103
    %v1718 = vunpack.c.l.b16 %v104
    %v1719 = vunpack.c.h.b16 %v104
    %v1720 = vunpack.c.l.b16 %v105
    %v1721 = vunpack.c.h.b16 %v105
    %v1722 = vunpack.c.l.b16 %v106
    %v1723 = vunpack.c.h.b16 %v106
    %v1724 = vunpack.c.l.b16 %v107
    %v1725 = vunpack.c.h.b16 %v107
    %v1726 = vunpack.c.l.b16 %v108
    %v1727 = vunpack.c.h.b16 %v108
    %v1728 = vunpack.c.l.b16 %v109
    %v1729 = vunpack.c.h.b16 %v109
    %v1730 = vunpack.c.l.b16 %v110
    %v1731 = vunpack.c.h.b16 %v110
    %v1732 = vunpack.c.l.b16 %v111
    %v1733 = vunpack.c.h.b16 %v111
    %v1734 = vunpack.c.l.b16 %v112
    %v1735 = vunpack.c.h.b16 %v112
    %v1736 = vunpack.c.l.b16 %v113
    %v1737 = vunpack.c.h.b16 %v113
    %v1738 = vunpack.c.l.b16 %v114
    %v1739 = vunpack.c.h.b16 %v114
    %v1740 = vunpack.c.l.b16 %v115
    %v1741 = vunpack.c.h.b16 %v115
    %v1742 = vunpack.c.l.b16 %v116
    %v1743 = vunpack.c.h.b16 %v116
    %v1744 = vunpack.c.l.b16 %v117
    %v1745 = vunpack.c.h.b16 %v117
    %v1746 = vunpack.c.l.b16 %v118
    %v1747 = vunpack.c.h.b16 %v118
    %v1748 = vunpack.c.l.b16 %v119
    %v1749 = vunpack.c.h.b16 %v119
    %v1750 = vunpack.c.l.b16 %v120
    %v1751 = vunpack.c.h.b16 %v120
    %v1752 = vunpack.c.l.b16 %v121
    %v1753 = vunpack.c.h.b16 %v121
    %v1754 = vunpack.c.l.b16 %v122
    %v1755 = vunpack.c.h.b16 %v122
    %v1756 = vunpack.c.l.b16 %v123
    %v1757 = vunpack.c.h.b16 %v123
    %v1758 = vunpack.c.l.b16 %v124
    %v1759 = vunpack.c.h.b16 %v124
    %v1760 = vunpack.c.l.b16 %v125
    %v1761 = vunpack.c.h.b16 %v125
    %v1762 = vunpack.c.l.b16 %v126
    %v1763 = vunpack.c.h.b16 %v126
    %v1764 = vunpack.c.l.b16 %v127
    %v1765 = vunpack.c.h.b16 %v127
    %v1766 = vunpack.c.l.b16 %v128
    %v1767 = vunpack.c.h.b16 %v128
    %v1768 = vunpack.c.l.b16 %v129
    %v1769 = vunpack.c.h.b16 %v129
    %v1770 = vunpack.c.l.b16 %v130
    %v1771 = vunpack.c.h.b16 %v130
    %v1772 = vunpack.c.l.b16 %v131
    %v1773 = vunpack.c.h.b16 %v131
    %v1774 = vunpack.c.l.b16 %v132
    %v1775 = vunpack.c.h.b16 %v132
    %v1776 = vunpack.c.l.b16 %v133
    %v1777 = vunpack.c.h.b16 %v133
    %v1778 = vunpack.c.l.b16 %v134
    %v1779 = vunpack.c.h.b16 %v134
    %v1780 = vunpack.c.l.b16 %v135
    %v1781 = vunpack.c.h.b16 %v135
    %v1782 = vunpack.c.l.b16 %v136
    %v1783 = vunpack.c.h.b16 %v136
    %v1784 = vunpack.c.l.b16 %v137
    %v1785 = vunpack.c.h.b16 %v137
    %v1786 = vunpack.c.l.b16 %v138
    %v1787 = vunpack.c.h.b16 %v138
    %v1788 = vunpack.c.l.b16 %v139
    %v1789 = vunpack.c.h.b16 %v139
    %v1790 = vunpack.c.l.b16 %v140
    %v1791 = vunpack.c.h.b16 %v140
    %v1792 = vunpack.c.l.b16 %v141
    %v1793 = vunpack.c.h.b16 %v141
    %v1794 = vunpack.c.l.b16 %v142
    %v1795 = vunpack.c.h.b16 %v142
    %v1796 = vunpack.c.l.b16 %v143
    %v1797 = vunpack.c.h.b16 %v143
    %v1798 = vunpack.c.l.b16 %v144
    %v1799 = vunpack.c.h.b16 %v144
    %v1800 = vunpack.c.l.b16 %v145
    %v1801 = vunpack.c.h.b16 %v145
    %v1802 = vunpack.c.l.b16 %v146
    %v1803 = vunpack.c.h.b16 %v146
    %v1804 = vunpack.c.l.b16 %v147
    %v1805 = vunpack.c.h.b16 %v147
    %v1806 = vunpack.c.l.b16 %v148
    %v1807 = vunpack.c.h.b16 %v148
    %v1808 = vunpack.c.l.b16 %v149
    %v1809 = vunpack.c.h.b16 %v149
    %v1810 = vunpack.c.l.b16 %v150
    %v1811 = vunpack.c.h.b16 %v150
    %v1812 = vunpack.c.l.b16 %v151
    %v1813 = vunpack.c.h.b16 %v151
    %v1814 = vunpack.c.l.b16 %v152
    %v1815 = vunpack.c.h.b16 %v152
    %v1816 = vunpack.c.l.b16 %v153
    %v1817 = vunpack.c.h.b16 %v153
    %v1818 = vunpack.c.l.b16 %v154
    %v1819 = vunpack.c.h.b16 %v154
    %v1820 = vunpack.c.l.b16 %v155
    %v1821 = vunpack.c.h.b16 %v155
    %v1822 = vunpack.c.l.b16 %v156
    %v1823 = vunpack.c.h.b16 %v156
    %v1824 = vunpack.c.l.b16 %v157
    %v1825 = vunpack.c.h.b16 %v157
    %v1826 = vunpack.c.l.b16 %v158
    %v1827 = vunpack.c.h.b16 %v158
    %v1828 = vunpack.c.l.b16 %v159
    %v1829 = vunpack.c.h.b16 %v159
    %v1830 = vunpack.c.l.b16 %v160
    %v1831 = vunpack.c.h.b16 %v160
    %v1832 = vunpack.c.l.b16 %v161
    %v1833 = vunpack.c.h.b16 %v161
    %v1834 = vunpack.c.l.b16 %v162
    %v1835 = vunpack.c.h.b16 %v162
    %v1836 = vunpack.c.l.b16 %v163
    %v1837 = vunpack.c.h.b16 %v163
    %v1838 = vunpack.c.l.b16 %v164
    %v1839 = vunpack.c.h.b16 %v164
    %v1840 = vunpack.c.l.b16 %v165
    %v1841 = vunpack.c.h.b16 %v165
    %v1842 = vunpack.c.l.b16 %v166
    %v1843 = vunpack.c.h.b16 %v166
    %v1844 = vunpack.c.l.b16 %v167
    %v1845 = vunpack.c.h.b16 %v167
    %v1846 = vunpack.c.l.b16 %v168
    %v1847 = vunpack.c.h.b16 %v168
    %v1848 = vunpack.c.l.b16 %v169
    %v1849 = vunpack.c.h.b16 %v169
    %v1850 = vunpack.c.l.b16 %v170
    %v1851 = vunpack.c.h.b16 %v170
    %v1852 = vunpack.c.l.b16 %v171
    %v1853 = vunpack.c.h.b16 %v171
    %v1854 = vunpack.c.l.b16 %v172
    %v1855 = vunpack.c.h.b16 %v172
    %v1856 = vunpack.c.l.b16 %v173
    %v1857 = vunpack.c.h.b16 %v173
    %v1858 = vunpack.c.l.b16 %v174
    %v1859 = vunpack.c.h.b16 %v174
    %v1860 = vunpack.c.l.b16 %v175
    %v1861 = vunpack.c.h.b16 %v175
    %v1862 = vunpack.c.l.b16 %v176
    %v1863 = vunpack.c.h.b16 %v176
    %v1864 = vunpack.c.l.b16 %v177
    %v1865 = vunpack.c.h.b16 %v177
    %v1866 = vunpack.c.l.b16 %v178
    %v1867 = vunpack.c.h.b16 %v178
    %v1868 = vunpack.c.l.b16 %v179
    %v1869 = vunpack.c.h.b16 %v179
    %v1870 = vunpack.c.l.b16 %v180
    %v1871 = vunpack.c.h.b16 %v180
    %v1872 = vunpack.c.l.b16 %v181
    %v1873 = vunpack.c.h.b16 %v181
    %v1874 = vunpack.c.l.b16 %v182
    %v1875 = vunpack.c.h.b16 %v182
    %v1876 = vunpack.c.l.b16 %v183
    %v1877 = vunpack.c.h.b16 %v183
    %v1878 = vunpack.c.l.b16 %v184
    %v1879 = vunpack.c.h.b16 %v184
    %v1880 = vunpack.c.l.b16 %v185
    %v1881 = vunpack.c.h.b16 %v185
    %v1882 = vunpack.c.l.b16 %v186
    %v1883 = vunpack.c.h.b16 %v186
    %v1884 = vunpack.c.l.b16 %v187
    %v1885 = vunpack.c.h.b16 %v187
    %v1886 = vunpack.c.l.b16 %v188
    %v1887 = vunpack.c.h.b16 %v188
    %v1888 = vunpack.c.l.b16 %v189
    %v1889 = vunpack.c.h.b16 %v189
    %v1890 = vunpack.c.l.b16 %v190
    %v1891 = vunpack.c.h.b16 %v190
    %v1892 = vunpack.c.l.b16 %v191
    %v1893 = vunpack.c.h.b16 %v191
    %v1894 = vunpack.c.l.b16 %v192
    %v1895 = vunpack.c.h.b16 %v192
    %v1896 = vunpack.c.l.b16 %v193
    %v1897 = vunpack.c.h.b16 %v193
    %v1898 = vunpack.c.l.b16 %v194
    %v1899 = vunpack.c.h.b16 %v194
    %v1900 = vunpack.c.l.b16 %v195
    %v1901 = vunpack.c.h.b16 %v195
    %v1902 = vunpack.c.l.b16 %v196
    %v1903 = vunpack.c.h.b16 %v196
    %v1904 = vunpack.c.l.b16 %v197
    %v1905 = vunpack.c.h.b16 %v197
    %v1906 = vunpack.c.l.b16 %v198
    %v1907 = vunpack.c.h.b16 %v198
    %v1908 = vunpack.c.l.b16 %v199
    %v1909 = vunpack.c.h.b16 %v199
    %v1910 = vunpack.c.l.b16 %v200
    %v1911 = vunpack.c.h.b16 %v200
    %v1912 = vunpack.c.l.b16 %v201
    %v1913 = vunpack.c.h.b16 %v201
    %v1914 = vunpack.c.l.b16 %v202
    %v1915 = vunpack.c.h.b16 %v202
    %v1916 = vunpack.c.l.b16 %v203
    %v1917 = vunpack.c.h.b16 %v203
    %v1918 = vunpack.c.l.b16 %v204
    %v1919 = vunpack.c.h.b16 %v204
    %v1920 = vunpack.c.l.b16 %v205
    %v1921 = vunpack.c.h.b16 %v205
    %v1922 = vunpack.c.l.b16 %v206
    %v1923 = vunpack.c.h.b16 %v206
    %v1924 = vunpack.c.l.b16 %v207
    %v1925 = vunpack.c.h.b16 %v207
    %v1926 = vunpack.c.l.b16 %v208
    %v1927 = vunpack.c.h.b16 %v208
    %v1928 = vunpack.c.l.b16 %v209
    %v1929 = vunpack.c.h.b16 %v209
    %v1930 = vunpack.c.l.b16 %v210
    %v1931 = vunpack.c.h.b16 %v210
    %v1932 = vunpack.c.l.b16 %v211
    %v1933 = vunpack.c.h.b16 %v211
    %v1934 = vunpack.c.l.b16 %v212
    %v1935 = vunpack.c.h.b16 %v212
    %v1936 = vunpack.c.l.b16 %v213
    %v1937 = vunpack.c.h.b16 %v213
    %v1938 = vunpack.c.l.b16 %v214
    %v1939 = vunpack.c.h.b16 %v214
    %v1940 = vunpack.c.l.b16 %v215
    %v1941 = vunpack.c.h.b16 %v215
    %v1942 = vunpack.c.l.b16 %v216
    %v1943 = vunpack.c.h.b16 %v216
    %v1944 = vunpack.c.l.b16 %v217
    %v1945 = vunpack.c.h.b16 %v217
    %v1946 = vunpack.c.l.b16 %v218
    %v1947 = vunpack.c.h.b16 %v218
    %v1948 = vunpack.c.l.b16 %v219
    %v1949 = vunpack.c.h.b16 %v219
    %v1950 = vunpack.c.l.b16 %v220
    %v1951 = vunpack.c.h.b16 %v220
    %v1952 = vunpack.c.l.b16 %v221
    %v1953 = vunpack.c.h.b16 %v221
    %v1954 = vunpack.c.l.b16 %v222
    %v1955 = vunpack.c.h.b16 %v222
    %v1956 = vunpack.c.l.b16 %v223
    %v1957 = vunpack.c.h.b16 %v223
    %v1958 = vunpack.c.l.b16 %v224
    %v1959 = vunpack.c.h.b16 %v224
    %v1960 = vunpack.c.l.b16 %v225
    %v1961 = vunpack.c.h.b16 %v225
    %v1962 = vunpack.c.l.b16 %v226
    %v1963 = vunpack.c.h.b16 %v226
    %v1964 = vunpack.c.l.b16 %v227
    %v1965 = vunpack.c.h.b16 %v227
    %v1966 = vunpack.c.l.b16 %v228
    %v1967 = vunpack.c.h.b16 %v228
    %v1968 = vunpack.c.l.b16 %v229
    %v1969 = vunpack.c.h.b16 %v229
    %v1970 = vunpack.c.l.b16 %v230
    %v1971 = vunpack.c.h.b16 %v230
    %v1972 = vunpack.c.l.b16 %v231
    %v1973 = vunpack.c.h.b16 %v231
    %v1974 = vunpack.c.l.b16 %v232
    %v1975 = vunpack.c.h.b16 %v232
    %v1976 = vunpack.c.l.b16 %v233
    %v1977 = vunpack.c.h.b16 %v233
    %v1978 = vunpack.c.l.b16 %v234
    %v1979 = vunpack.c.h.b16 %v234
    %v1980 = vunpack.c.l.b16 %v235
    %v1981 = vunpack.c.h.b16 %v235
    %v1982 = vunpack.c.l.b16 %v236
    %v1983 = vunpack.c.h.b16 %v236
    %v1984 = vunpack.c.l.b16 %v237
    %v1985 = vunpack.c.h.b16 %v237
    %v1986 = vunpack.c.l.b16 %v238
    %v1987 = vunpack.c.h.b16 %v238
    %v1988 = vunpack.c.l.b16 %v239
    %v1989 = vunpack.c.h.b16 %v239
    %v1990 = vunpack.c.l.b16 %v240
    %v1991 = vunpack.c.h.b16 %v240
    %v1992 = vunpack.c.l.b16 %v241
    %v1993 = vunpack.c.h.b16 %v241
    %v1994 = vunpack.c.l.b16 %v242
    %v1995 = vunpack.c.h.b16 %v242
    %v1996 = vunpack.c.l.b16 %v243
    %v1997 = vunpack.c.h.b16 %v243
    %v1998 = vunpack.c.l.b16 %v244
    %v1999 = vunpack.c.h.b16 %v244
    %v2000 = vunpack.c.l.b16 %v245
    %v2001 = vunpack.c.h.b16 %v245
    %v2002 = vunpack.c.l.b16 %v246
    %v2003 = vunpack.c.h.b16 %v246
    %v2004 = vunpack.c.l.b16 %v247
    %v2005 = vunpack.c.h.b16 %v247
    %v2006 = vunpack.c.l.b16 %v248
    %v2007 = vunpack.c.h.b16 %v248
    %v2008 = vunpack.c.l.b16 %v249
    %v2009 = vunpack.c.h.b16 %v249
    %v2010 = vunpack.c.l.b16 %v250
    %v2011 = vunpack.c.h.b16 %v250
    %v2012 = vunpack.c.l.b16 %v251
    %v2013 = vunpack.c.h.b16 %v251
    %v2014 = vunpack.c.l.b16 %v252
    %v2015 = vunpack.c.h.b16 %v252
    %v2016 = vunpack.c.l.b16 %v253
    %v2017 = vunpack.c.h.b16 %v253
    %v2018 = vunpack.c.l.b16 %v254
    %v2019 = vunpack.c.h.b16 %v254
    %v2020 = vunpack.c.l.b16 %v255
    %v2021 = vunpack.c.h.b16 %v255
    %v2022 = vunpack.c.l.b16 %v256
    %v2023 = vunpack.c.h.b16 %v256
    %v2024 = vunpack.c.l.b16 %v257
    %v2025 = vunpack.c.h.b16 %v257
    %v2026 = vunpack.c.l.b16 %v258
    %v2027 = vunpack.c.h.b16 %v258
    %v2028 = vunpack.c.l.b16 %v259
    %v2029 = vunpack.c.h.b16 %v259
    %v2030 = vunpack.c.l.b16 %v260
    %v2031 = vunpack.c.h.b16 %v260
    %v2032 = vunpack.c.l.b16 %v261
    %v2033 = vunpack.c.h.b16 %v261
    %v2034 = vunpack.c.l.b16 %v262
    %v2035 = vunpack.c.h.b16 %v262
    %v2036 = vunpack.c.l.b16 %v263
    %v2037 = vunpack.c.h.b16 %v263
    %v2038 = vunpack.c.l.b16 %v264
    %v2039 = vunpack.c.h.b16 %v264
    %v2040 = vunpack.c.l.b16 %v265
    %v2041 = vunpack.c.h.b16 %v265
    %v2042 = vunpack.c.l.b16 %v266
    %v2043 = vunpack.c.h.b16 %v266
    %v2044 = vunpack.c.l.b16 %v267
    %v2045 = vunpack.c.h.b16 %v267
    %v2046 = vunpack.c.l.b16 %v268
    %v2047 = vunpack.c.h.b16 %v268
    %v2048 = vunpack.c.l.b16 %v269
    %v2049 = vunpack.c.h.b16 %v269
    %v2050 = vunpack.c.l.b16 %v270
    %v2051 = vunpack.c.h.b16 %v270
    %v2052 = vunpack.c.l.b16 %v271
    %v2053 = vunpack.c.h.b16 %v271
    %v2054 = vunpack.c.l.b16 %v272
    %v2055 = vunpack.c.h.b16 %v272
    %v2056 = vunpack.c.l.b16 %v273
    %v2057 = vunpack.c.h.b16 %v273
    %v2058 = vunpack.c.l.b16 %v274
    %v2059 = vunpack.c.h.b16 %v274
    %v2060 = vunpack.c.l.b16 %v275
    %v2061 = vunpack.c.h.b16 %v275
    %v2062 = vunpack.c.l.b16 %v276
    %v2063 = vunpack.c.h.b16 %v276
    %v2064 = vunpack.c.l.b16 %v277
    %v2065 = vunpack.c.h.b16 %v277
    %v2066 = vunpack.c.l.b16 %v278
    %v2067 = vunpack.c.h.b16 %v278
    %v2068 = vunpack.c.l.b16 %v279
    %v2069 = vunpack.c.h.b16 %v279
    %v2070 = vunpack.c.l.b16 %v280
    %v2071 = vunpack.c.h.b16 %v280
    %v2072 = vunpack.c.l.b16 %v281
    %v2073 = vunpack.c.h.b16 %v281
    %v2074 = vunpack.c.l.b16 %v282
    %v2075 = vunpack.c.h.b16 %v282
    %v2076 = vunpack.c.l.b16 %v283
    %v2077 = vunpack.c.h.b16 %v283
    %v2078 = vunpack.c.l.b16 %v284
    %v2079 = vunpack.c.h.b16 %v284
    %v2080 = vunpack.c.l.b16 %v285
    %v2081 = vunpack.c.h.b16 %v285
    %v2082 = vunpack.c.l.b16 %v286
    %v2083 = vunpack.c.h.b16 %v286
    %v2084 = vunpack.c.l.b16 %v287
    %v2085 = vunpack.c.h.b16 %v287
    %v2086 = vunpack.c.l.b16 %v288
    %v2087 = vunpack.c.h.b16 %v288
    %v2088 = vunpack.c.l.b16 %v289
    %v2089 = vunpack.c.h.b16 %v289
    %v2090 = vunpack.c.l.b16 %v290
    %v2091 = vunpack.c.h.b16 %v290
    %v2092 = vunpack.c.l.b16 %v291
    %v2093 = vunpack.c.h.b16 %v291
    %v2094 = vunpack.c.l.b16 %v292
    %v2095 = vunpack.c.h.b16 %v292
    %v2096 = vunpack.c.l.b16 %v293
    %v2097 = vunpack.c.h.b16 %v293
    %v2098 = vunpack.c.l.b16 %v294
    %v2099 = vunpack.c.h.b16 %v294
    %v2100 = vunpack.c.l.b16 %v295
    %v2101 = vunpack.c.h.b16 %v295
    %v2102 = vunpack.c.l.b16 %v296
    %v2103 = vunpack.c.h.b16 %v296
    %v2104 = vunpack.c.l.b16 %v297
    %v2105 = vunpack.c.h.b16 %v297
    %v2106 = vunpack.c.l.b16 %v298
    %v2107 = vunpack.c.h.b16 %v298
    %v2108 = vunpack.c.l.b16 %v299
    %v2109 = vunpack.c.h.b16 %v299
    %v2110 = vunpack.c.l.b16 %v300
    %v2111 = vunpack.c.h.b16 %v300
    %v2112 = vunpack.c.l.b16 %v301
    %v2113 = vunpack.c.h.b16 %v301
    %v2114 = vunpack.c.l.b16 %v302
    %v2115 = vunpack.c.h.b16 %v302
    %v2116 = vunpack.c.l.b16 %v303
    %v2117 = vunpack.c.h.b16 %v303
    %v2118 = vunpack.c.l.b16 %v304
    %v2119 = vunpack.c.h.b16 %v304
    %v2120 = vunpack.c.l.b16 %v305
    %v2121 = vunpack.c.h.b16 %v305
    %v2122 = vunpack.c.l.b16 %v306
    %v2123 = vunpack.c.h.b16 %v306
    %v2124 = vunpack.c.l.b16 %v307
    %v2125 = vunpack.c.h.b16 %v307
    %v2126 = vunpack.c.l.b16 %v308
    %v2127 = vunpack.c.h.b16 %v308
    %v2128 = vunpack.c.l.b16 %v309
    %v2129 = vunpack.c.h.b16 %v309
    %v2130 = vunpack.c.l.b16 %v310
    %v2131 = vunpack.c.h.b16 %v310
    %v2132 = vunpack.c.l.b16 %v311
    %v2133 = vunpack.c.h.b16 %v311
    %v2134 = vunpack.c.l.b16 %v312
    %v2135 = vunpack.c.h.b16 %v312
    %v2136 = vunpack.c.l.b16 %v313
    %v2137 = vunpack.c.h.b16 %v313
    %v2138 = vunpack.c.l.b16 %v314
    %v2139 = vunpack.c.h.b16 %v314
    %v2140 = vunpack.c.l.b16 %v315
    %v2141 = vunpack.c.h.b16 %v315
    %v2142 = vunpack.c.l.b16 %v316
    %v2143 = vunpack.c.h.b16 %v316
    %v2144 = vunpack.c.l.b16 %v317
    %v2145 = vunpack.c.h.b16 %v317
    %v2146 = vunpack.c.l.b16 %v318
    %v2147 = vunpack.c.h.b16 %v318
    %v2148 = vunpack.c.l.b16 %v319
    %v2149 = vunpack.c.h.b16 %v319
    %v2150 = vunpack.c.l.b16 %v320
    %v2151 = vunpack.c.h.b16 %v320
    %v2152 = vunpack.c.l.b16 %v321
    %v2153 = vunpack.c.h.b16 %v321
    %v2154 = vunpack.c.l.b16 %v322
    %v2155 = vunpack.c.h.b16 %v322
    %v2156 = vunpack.c.l.b16 %v323
    %v2157 = vunpack.c.h.b16 %v323
    %v2158 = vunpack.c.l.b16 %v324
    %v2159 = vunpack.c.h.b16 %v324
    %v2160 = vunpack.c.l.b16 %v325
    %v2161 = vunpack.c.h.b16 %v325
    %v2162 = vunpack.c.l.b16 %v326
    %v2163 = vunpack.c.h.b16 %v326
    %v2164 = vunpack.c.l.b16 %v327
    %v2165 = vunpack.c.h.b16 %v327
    %v2166 = vunpack.c.l.b16 %v328
    %v2167 = vunpack.c.h.b16 %v328
    %v2168 = vunpack.c.l.b16 %v329
    %v2169 = vunpack.c.h.b16 %v329
    %v2170 = vunpack.c.l.b16 %v330
    %v2171 = vunpack.c.h.b16 %v330
    %v2172 = vunpack.c.l.b16 %v331
    %v2173 = vunpack.c.h.b16 %v331
    %v2174 = vunpack.c.l.b16 %v332
    %v2175 = vunpack.c.h.b16 %v332
    %v2176 = vunpack.c.l.b16 %v333
    %v2177 = vunpack.c.h.b16 %v333
    %v2178 = vunpack.c.l.b16 %v334
    %v2179 = vunpack.c.h.b16 %v334
    %v2180 = vunpack.c.l.b16 %v335
    %v2181 = vunpack.c.h.b16 %v335
    %v2182 = vunpack.c.l.b16 %v336
    %v2183 = vunpack.c.h.b16 %v336
    %v2184 = vunpack.c.l.b16 %v337
    %v2185 = vunpack.c.h.b16 %v337
    %v2186 = vunpack.c.l.b16 %v338
    %v2187 = vunpack.c.h.b16 %v338
    %v2188 = vunpack.c.l.b16 %v339
    %v2189 = vunpack.c.h.b16 %v339
    %v2190 = vunpack.c.l.b16 %v340
    %v2191 = vunpack.c.h.b16 %v340
    %v2192 = vunpack.c.l.b16 %v341
    %v2193 = vunpack.c.h.b16 %v341
    %v2194 = vunpack.c.l.b16 %v342
    %v2195 = vunpack.c.h.b16 %v342
    %v2196 = vunpack.c.l.b16 %v343
    %v2197 = vunpack.c.h.b16 %v343
    %v2198 = vunpack.c.l.b16 %v344
    %v2199 = vunpack.c.h.b16 %v344
    %v2200 = vunpack.c.l.b16 %v345
    %v2201 = vunpack.c.h.b16 %v345
    %v2202 = vunpack.c.l.b16 %v346
    %v2203 = vunpack.c.h.b16 %v346
    %v2204 = vunpack.c.l.b16 %v347
    %v2205 = vunpack.c.h.b16 %v347
    %v2206 = vunpack.c.l.b16 %v348
    %v2207 = vunpack.c.h.b16 %v348
    %v2208 = vunpack.c.l.b16 %v349
    %v2209 = vunpack.c.h.b16 %v349
    %v2210 = vunpack.c.l.b16 %v350
    %v2211 = vunpack.c.h.b16 %v350
    %v2212 = vunpack.c.l.b16 %v351
    %v2213 = vunpack.c.h.b16 %v351
    %v2214 = vunpack.c.l.b16 %v352
    %v2215 = vunpack.c.h.b16 %v352
    %v2216 = vunpack.c.l.b16 %v353
    %v2217 = vunpack.c.h.b16 %v353
    %v2218 = vunpack.c.l.b16 %v354
    %v2219 = vunpack.c.h.b16 %v354
    %v2220 = vunpack.c.l.b16 %v355
    %v2221 = vunpack.c.h.b16 %v355
    %v2222 = vunpack.c.l.b16 %v356
    %v2223 = vunpack.c.h.b16 %v356
    %v2224 = vunpack.c.l.b16 %v357
    %v2225 = vunpack.c.h.b16 %v357
    %v2226 = vunpack.c.l.b16 %v358
    %v2227 = vunpack.c.h.b16 %v358
    %v2228 = vunpack.c.l.b16 %v359
    %v2229 = vunpack.c.h.b16 %v359
    %v2230 = vunpack.c.l.b16 %v360
    %v2231 = vunpack.c.h.b16 %v360
    %v2232 = vunpack.c.l.b16 %v361
    %v2233 = vunpack.c.h.b16 %v361
    %v2234 = vunpack.c.l.b16 %v362
    %v2235 = vunpack.c.h.b16 %v362
    %v2236 = vunpack.c.l.b16 %v363
    %v2237 = vunpack.c.h.b16 %v363
    %v2238 = vunpack.c.l.b16 %v364
    %v2239 = vunpack.c.h.b16 %v364
    %v2240 = vunpack.c.l.b16 %v365
    %v2241 = vunpack.c.h.b16 %v365
    %v2242 = vunpack.c.l.b16 %v366
    %v2243 = vunpack.c.h.b16 %v366
    %v2244 = vunpack.c.l.b16 %v367
    %v2245 = vunpack.c.h.b16 %v367
    %v2246 = vunpack.c.l.b16 %v368
    %v2247 = vunpack.c.h.b16 %v368
    %v2248 = vunpack.c.l.b16 %v369
    %v2249 = vunpack.c.h.b16 %v369
    %v2250 = vunpack.c.l.b16 %v370
    %v2251 = vunpack.c.h.b16 %v370
    %v2252 = vunpack.c.l.b16 %v371
    %v2253 = vunpack.c.h.b16 %v371
    %v2254 = vunpack.c.l.b16 %v372
    %v2255 = vunpack.c.h.b16 %v372
    %v2256 = vunpack.c.l.b16 %v373
    %v2257 = vunpack.c.h.b16 %v373
    %v2258 = vunpack.c.l.b16 %v374
    %v2259 = vunpack.c.h.b16 %v374
    %v2260 = vunpack.c.l.b16 %v375
    %v2261 = vunpack.c.h.b16 %v375
    %v2262 = vunpack.c.l.b16 %v376
    %v2263 = vunpack.c.h.b16 %v376
    %v2264 = vunpack.c.l.b16 %v377
    %v2265 = vunpack.c.h.b16 %v377
    %v2266 = vunpack.c.l.b16 %v378
    %v2267 = vunpack.c.h.b16 %v378
    %v2268 = vunpack.c.l.b16 %v379
    %v2269 = vunpack.c.h.b16 %v379
    %v2270 = vunpack.c.l.b16 %v380
    %v2271 = vunpack.c.h.b16 %v380
    %v2272 = vunpack.c.l.b16 %v381
    %v2273 = vunpack.c.h.b16 %v381
    %v2274 = vunpack.c.l.b16 %v382
    %v2275 = vunpack.c.h.b16 %v382
    %v2276 = vunpack.c.l.b16 %v383
    %v2277 = vunpack.c.h.b16 %v383
    %v2278 = vunpack.c.l.b16 %v384
    %v2279 = vunpack.c.h.b16 %v384
    %v2280 = vunpack.c.l.b16 %v385
    %v2281 = vunpack.c.h.b16 %v385
    %v2282 = vunpack.c.l.b16 %v386
    %v2283 = vunpack.c.h.b16 %v386
    %v2284 = vunpack.c.l.b16 %v387
    %v2285 = vunpack.c.h.b16 %v387
    %v2286 = vunpack.c.l.b16 %v388
    %v2287 = vunpack.c.h.b16 %v388
    %v2288 = vunpack.c.l.b16 %v389
    %v2289 = vunpack.c.h.b16 %v389
    %v2290 = vunpack.c.l.b16 %v390
    %v2291 = vunpack.c.h.b16 %v390
    %v2292 = vunpack.c.l.b16 %v391
    %v2293 = vunpack.c.h.b16 %v391
    %v2294 = vunpack.c.l.b16 %v392
    %v2295 = vunpack.c.h.b16 %v392
    %v2296 = vunpack.c.l.b16 %v393
    %v2297 = vunpack.c.h.b16 %v393
    %v2298 = vunpack.c.l.b16 %v394
    %v2299 = vunpack.c.h.b16 %v394
    %v2300 = vunpack.c.l.b16 %v395
    %v2301 = vunpack.c.h.b16 %v395
    %v2302 = vunpack.c.l.b16 %v396
    %v2303 = vunpack.c.h.b16 %v396
    %v2304 = vunpack.c.l.b16 %v397
    %v2305 = vunpack.c.h.b16 %v397
    %v2306 = vunpack.c.l.b16 %v398
    %v2307 = vunpack.c.h.b16 %v398
    %v2308 = vunpack.c.l.b16 %v399
    %v2309 = vunpack.c.h.b16 %v399
    %v2310 = vunpack.c.l.b16 %v400
    %v2311 = vunpack.c.h.b16 %v400
    %v2312 = vunpack.c.l.b16 %v401
    %v2313 = vunpack.c.h.b16 %v401
    %v2314 = vunpack.c.l.b16 %v402
    %v2315 = vunpack.c.h.b16 %v402
    %v2316 = vunpack.c.l.b16 %v403
    %v2317 = vunpack.c.h.b16 %v403
    %v2318 = vunpack.c.l.b16 %v404
    %v2319 = vunpack.c.h.b16 %v404
    %v2320 = vunpack.c.l.b16 %v405
    %v2321 = vunpack.c.h.b16 %v405
    %v2322 = vunpack.c.l.b16 %v406
    %v2323 = vunpack.c.h.b16 %v406
    %v2324 = vunpack.c.l.b16 %v407
    %v2325 = vunpack.c.h.b16 %v407
    %v2326 = vunpack.c.l.b16 %v408
    %v2327 = vunpack.c.h.b16 %v408
    %v2328 = vunpack.c.l.b16 %v409
    %v2329 = vunpack.c.h.b16 %v409
    %v2330 = vunpack.c.l.b16 %v410
    %v2331 = vunpack.c.h.b16 %v410
    %v2332 = vunpack.c.l.b16 %v411
    %v2333 = vunpack.c.h.b16 %v411
    %v2334 = vunpack.c.l.b16 %v412
    %v2335 = vunpack.c.h.b16 %v412
    %v2336 = vunpack.c.l.b16 %v413
    %v2337 = vunpack.c.h.b16 %v413
    %v2338 = vunpack.c.l.b16 %v414
    %v2339 = vunpack.c.h.b16 %v414
    %v2340 = vunpack.c.l.b16 %v415
    %v2341 = vunpack.c.h.b16 %v415
    %v2342 = vunpack.c.l.b16 %v416
    %v2343 = vunpack.c.h.b16 %v416
    %v2344 = vunpack.c.l.b16 %v417
    %v2345 = vunpack.c.h.b16 %v417
    %v2346 = vunpack.c.l.b16 %v418
    %v2347 = vunpack.c.h.b16 %v418
    %v2348 = vunpack.c.l.b16 %v419
    %v2349 = vunpack.c.h.b16 %v419
    %v2350 = vunpack.c.l.b16 %v420
    %v2351 = vunpack.c.h.b16 %v420
    %v2352 = vunpack.c.l.b16 %v421
    %v2353 = vunpack.c.h.b16 %v421
    %v2354 = vunpack.c.l.b16 %v422
    %v2355 = vunpack.c.h.b16 %v422
    %v2356 = vunpack.c.l.b16 %v423
    %v2357 = vunpack.c.h.b16 %v423
    %v2358 = vunpack.c.l.b16 %v424
    %v2359 = vunpack.c.h.b16 %v424
    %v2360 = vunpack.c.l.b16 %v425
    %v2361 = vunpack.c.h.b16 %v425
    %v2362 = vunpack.c.l.b16 %v426
    %v2363 = vunpack.c.h.b16 %v426
    %v2364 = vunpack.c.l.b16 %v427
    %v2365 = vunpack.c.h.b16 %v427
    %v2366 = vunpack.c.l.b16 %v428
    %v2367 = vunpack.c.h.b16 %v428
    %v2368 = vunpack.c.l.b16 %v429
    %v2369 = vunpack.c.h.b16 %v429
    %v2370 = vunpack.c.l.b16 %v430
    %v2371 = vunpack.c.h.b16 %v430
    %v2372 = vunpack.c.l.b16 %v431
    %v2373 = vunpack.c.h.b16 %v431
    %v2374 = vunpack.c.l.b16 %v432
    %v2375 = vunpack.c.h.b16 %v432
    %v2376 = vunpack.c.l.b16 %v433
    %v2377 = vunpack.c.h.b16 %v433
    %v2378 = vunpack.c.l.b16 %v434
    %v2379 = vunpack.c.h.b16 %v434
    %v2380 = vunpack.c.l.b16 %v435
    %v2381 = vunpack.c.h.b16 %v435
    %v2382 = vunpack.c.l.b16 %v436
    %v2383 = vunpack.c.h.b16 %v436
    %v2384 = vunpack.c.l.b16 %v437
    %v2385 = vunpack.c.h.b16 %v437
    %v2386 = vunpack.c.l.b16 %v438
    %v2387 = vunpack.c.h.b16 %v438
    %v2388 = vunpack.c.l.b16 %v439
    %v2389 = vunpack.c.h.b16 %v439
    %v2390 = vunpack.c.l.b16 %v440
    %v2391 = vunpack.c.h.b16 %v440
    %v2392 = vunpack.c.l.b16 %v441
    %v2393 = vunpack.c.h.b16 %v441
    %v2394 = vunpack.c.l.b16 %v442
    %v2395 = vunpack.c.h.b16 %v442
    %v2396 = vunpack.c.l.b16 %v443
    %v2397 = vunpack.c.h.b16 %v443
    %v2398 = vunpack.c.l.b16 %v444
    %v2399 = vunpack.c.h.b16 %v444
    %v2400 = vunpack.c.l.b16 %v445
    %v2401 = vunpack.c.h.b16 %v445
    %v2402 = vunpack.c.l.b16 %v446
    %v2403 = vunpack.c.h.b16 %v446
    %v2404 = vunpack.c.l.b16 %v447
    %v2405 = vunpack.c.h.b16 %v447
    %v2406 = vunpack.c.l.b16 %v448
    %v2407 = vunpack.c.h.b16 %v448
    %v2408 = vunpack.c.l.b16 %v449
    %v2409 = vunpack.c.h.b16 %v449
    %v2410 = vunpack.c.l.b16 %v450
    %v2411 = vunpack.c.h.b16 %v450
    %v2412 = vunpack.c.l.b16 %v451
    %v2413 = vunpack.c.h.b16 %v451
    %v2414 = vunpack.c.l.b16 %v452
    %v2415 = vunpack.c.h.b16 %v452
    %v2416 = vunpack.c.l.b16 %v453
    %v2417 = vunpack.c.h.b16 %v453
    %v2418 = vunpack.c.l.b16 %v454
    %v2419 = vunpack.c.h.b16 %v454
    %v2420 = vunpack.c.l.b16 %v455
    %v2421 = vunpack.c.h.b16 %v455
    %v2422 = vunpack.c.l.b16 %v456
    %v2423 = vunpack.c.h.b16 %v456
    %v2424 = vunpack.c.l.b16 %v457
    %v2425 = vunpack.c.h.b16 %v457
    %v2426 = vunpack.c.l.b16 %v458
    %v2427 = vunpack.c.h.b16 %v458
    %v2428 = vunpack.c.l.b16 %v459
    %v2429 = vunpack.c.h.b16 %v459
    %v2430 = vunpack.c.l.b16 %v460
    %v2431 = vunpack.c.h.b16 %v460
    %v2432 = vunpack.c.l.b16 %v461
    %v2433 = vunpack.c.h.b16 %v461
    %v2434 = vunpack.c.l.b16 %v462
    %v2435 = vunpack.c.h.b16 %v462
    %v2436 = vunpack.c.l.b16 %v463
    %v2437 = vunpack.c.h.b16 %v463
    %v2438 = vunpack.c.l.b16 %v464
    %v2439 = vunpack.c.h.b16 %v464
    %v2440 = vunpack.c.l.b16 %v465
    %v2441 = vunpack.c.h.b16 %v465
    %v2442 = vunpack.c.l.b16 %v466
    %v2443 = vunpack.c.h.b16 %v466
    %v2444 = vunpack.c.l.b16 %v467
    %v2445 = vunpack.c.h.b16 %v467
    %v2446 = vunpack.c.l.b16 %v468
    %v2447 = vunpack.c.h.b16 %v468
    %v2448 = vunpack.c.l.b16 %v469
    %v2449 = vunpack.c.h.b16 %v469
    %v2450 = vunpack.c.l.b16 %v470
    %v2451 = vunpack.c.h.b16 %v470
    %v2452 = vunpack.c.l.b16 %v471
    %v2453 = vunpack.c.h.b16 %v471
    %v2454 = vunpack.c.l.b16 %v472
    %v2455 = vunpack.c.h.b16 %v472
    %v2456 = vunpack.c.l.b16 %v473
    %v2457 = vunpack.c.h.b16 %v473
    %v2458 = vunpack.c.l.b16 %v474
    %v2459 = vunpack.c.h.b16 %v474
    %v2460 = vunpack.c.l.b16 %v475
    %v2461 = vunpack.c.h.b16 %v475
    %v2462 = vunpack.c.l.b16 %v476
    %v2463 = vunpack.c.h.b16 %v476
    %v2464 = vunpack.c.l.b16 %v477
    %v2465 = vunpack.c.h.b16 %v477
    %v2466 = vunpack.c.l.b16 %v478
    %v2467 = vunpack.c.h.b16 %v478
    %v2468 = vunpack.c.l.b16 %v479
    %v2469 = vunpack.c.h.b16 %v479
    %v2470 = vunpack.c.l.b16 %v480
    %v2471 = vunpack.c.h.b16 %v480
    %v2472 = vunpack.c.l.b16 %v481
    %v2473 = vunpack.c.h.b16 %v481
    %v2474 = vunpack.c.l.b16 %v482
    %v2475 = vunpack.c.h.b16 %v482
    %v2476 = vunpack.c.l.b16 %v483
    %v2477 = vunpack.c.h.b16 %v483
    %v2478 = vunpack.c.l.b16 %v484
    %v2479 = vunpack.c.h.b16 %v484
    %v2480 = vunpack.c.l.b16 %v485
    %v2481 = vunpack.c.h.b16 %v485
    %v2482 = vunpack.c.l.b16 %v486
    %v2483 = vunpack.c.h.b16 %v486
    %v2484 = vunpack.c.l.b16 %v487
    %v2485 = vunpack.c.h.b16 %v487
    %v2486 = vunpack.c.l.b16 %v488
    %v2487 = vunpack.c.h.b16 %v488
    %v2488 = vunpack.c.l.b16 %v489
    %v2489 = vunpack.c.h.b16 %v489
    %v2490 = vunpack.c.l.b16 %v490
    %v2491 = vunpack.c.h.b16 %v490
    %v2492 = vunpack.c.l.b16 %v491
    %v2493 = vunpack.c.h.b16 %v491
    %v2494 = vunpack.c.l.b16 %v492
    %v2495 = vunpack.c.h.b16 %v492
    %v2496 = vunpack.c.l.b16 %v493
    %v2497 = vunpack.c.h.b16 %v493
    %v2498 = vunpack.c.l.b16 %v494
    %v2499 = vunpack.c.h.b16 %v494
    %v2500 = vunpack.c.l.b16 %v495
    %v2501 = vunpack.c.h.b16 %v495
    %v2502 = vunpack.c.l.b16 %v496
    %v2503 = vunpack.c.h.b16 %v496
    %v2504 = vunpack.c.l.b16 %v497
    %v2505 = vunpack.c.h.b16 %v497
    %v2506 = vunpack.c.l.b16 %v498
    %v2507 = vunpack.c.h.b16 %v498
    %v2508 = vunpack.c.l.b16 %v499
    %v2509 = vunpack.c.h.b16 %v499
    %v2510 = vunpack.c.l.b16 %v500
    %v2511 = vunpack.c.h.b16 %v500
    %v2512 = vunpack.c.l.b16 %v501
    %v2513 = vunpack.c.h.b16 %v501
    %v2514 = vunpack.c.l.b16 %v502
    %v2515 = vunpack.c.h.b16 %v502
    %v2516 = vunpack.c.l.b16 %v503
    %v2517 = vunpack.c.h.b16 %v503
    %v2518 = vunpack.c.l.b16 %v504
    %v2519 = vunpack.c.h.b16 %v504
    %v2520 = vunpack.c.l.b16 %v505
    %v2521 = vunpack.c.h.b16 %v505
    %v2522 = vunpack.c.l.b16 %v506
    %v2523 = vunpack.c.h.b16 %v506
    %v2524 = vunpack.c.l.b16 %v507
    %v2525 = vunpack.c.h.b16 %v507
    %v2526 = vunpack.c.l.b16 %v508
    %v2527 = vunpack.c.h.b16 %v508
    %v2528 = vunpack.c.l.b16 %v509
    %v2529 = vunpack.c.h.b16 %v509
    %v2530 = vunpack.c.l.b16 %v510
    %v2531 = vunpack.c.h.b16 %v510
    %v2532 = vunpack.c.l.b16 %v511
    %v2533 = vunpack.c.h.b16 %v511
    %v2534 = vunpack.c.l.b16 %v512
    %v2535 = vunpack.c.h.b16 %v512
    %v2536 = vunpack.c.l.b16 %v513
    %v2537 = vunpack.c.h.b16 %v513
    %v2538 = vunpack.c.l.b16 %v514
    %v2539 = vunpack.c.h.b16 %v514
    %v2540 = vunpack.c.l.b16 %v515
    %v2541 = vunpack.c.h.b16 %v515
    %v2542 = vunpack.c.l.b16 %v516
    %v2543 = vunpack.c.h.b16 %v516
    %v2544 = vunpack.c.l.b16 %v517
    %v2545 = vunpack.c.h.b16 %v517
    %v2546 = vunpack.c.l.b16 %v518
    %v2547 = vunpack.c.h.b16 %v518
    %v2548 = vunpack.c.l.b16 %v519
    %v2549 = vunpack.c.h.b16 %v519
    %v2550 = vunpack.c.l.b16 %v520
    %v2551 = vunpack.c.h.b16 %v520
    %v2552 = vunpack.c.l.b16 %v521
    %v2553 = vunpack.c.h.b16 %v521
    %v2554 = vunpack.c.l.b16 %v522
    %v2555 = vunpack.c.h.b16 %v522
    %v2556 = vunpack.c.l.b16 %v523
    %v2557 = vunpack.c.h.b16 %v523
    %v2558 = vunpack.c.l.b16 %v524
    %v2559 = vunpack.c.h.b16 %v524
    %v2560 = vunpack.c.l.b16 %v525
    %v2561 = vunpack.c.h.b16 %v525
    %v2562 = vunpack.c.l.b16 %v526
    %v2563 = vunpack.c.h.b16 %v526
    %v2564 = vunpack.c.l.b16 %v527
    %v2565 = vunpack.c.h.b16 %v527
    %v2566 = vunpack.c.l.b16 %v528
    %v2567 = vunpack.c.h.b16 %v528
    %v2568 = vunpack.c.l.b16 %v529
    %v2569 = vunpack.c.h.b16 %v529
    %v2570 = vunpack.c.l.b16 %v530
    %v2571 = vunpack.c.h.b16 %v530
    %v2572 = vunpack.c.l.b16 %v531
    %v2573 = vunpack.c.h.b16 %v531
    %v2574 = vunpack.c.l.b16 %v532
    %v2575 = vunpack.c.h.b16 %v532
    %v2576 = vunpack.c.l.b16 %v533
    %v2577 = vunpack.c.h.b16 %v533
    %v2578 = vunpack.c.l.b16 %v534
    %v2579 = vunpack.c.h.b16 %v534
    %v2580 = vunpack.c.l.b16 %v535
    %v2581 = vunpack.c.h.b16 %v535
    %v2582 = vunpack.c.l.b16 %v536
    %v2583 = vunpack.c.h.b16 %v536
    %v2584 = vunpack.c.l.b16 %v537
    %v2585 = vunpack.c.h.b16 %v537
    %v2586 = vunpack.c.l.b16 %v538
    %v2587 = vunpack.c.h.b16 %v538
    %v2588 = vunpack.c.l.b16 %v539
    %v2589 = vunpack.c.h.b16 %v539
    %v2590 = vunpack.c.l.b16 %v540
    %v2591 = vunpack.c.h.b16 %v540
    %v2592 = vunpack.c.l.b16 %v541
    %v2593 = vunpack.c.h.b16 %v541
    %v2594 = vunpack.c.l.b16 %v542
    %v2595 = vunpack.c.h.b16 %v542
    %v2596 = vunpack.c.l.b16 %v543
    %v2597 = vunpack.c.h.b16 %v543
    %v2598 = vunpack.c.l.b16 %v544
    %v2599 = vunpack.c.h.b16 %v544
    %v2600 = vunpack.c.l.b16 %v545
    %v2601 = vunpack.c.h.b16 %v545
    %v2602 = vunpack.c.l.b16 %v546
    %v2603 = vunpack.c.h.b16 %v546
    %v2604 = vunpack.c.l.b16 %v547
    %v2605 = vunpack.c.h.b16 %v547
    %v2606 = vunpack.c.l.b16 %v548
    %v2607 = vunpack.c.h.b16 %v548
    %v2608 = vunpack.c.l.b16 %v549
    %v2609 = vunpack.c.h.b16 %v549
    %v2610 = vunpack.c.l.b16 %v550
    %v2611 = vunpack.c.h.b16 %v550
    %v2612 = vunpack.c.l.b16 %v551
    %v2613 = vunpack.c.h.b16 %v551
    %v2614 = vunpack.c.l.b16 %v552
    %v2615 = vunpack.c.h.b16 %v552
    %v2616 = vunpack.c.l.b16 %v553
    %v2617 = vunpack.c.h.b16 %v553
    %v2618 = vunpack.c.l.b16 %v554
    %v2619 = vunpack.c.h.b16 %v554
    %v2620 = vunpack.c.l.b16 %v555
    %v2621 = vunpack.c.h.b16 %v555
    %v2622 = vunpack.c.l.b16 %v556
    %v2623 = vunpack.c.h.b16 %v556
    %v2624 = vunpack.c.l.b16 %v557
    %v2625 = vunpack.c.h.b16 %v557
    %v2626 = vunpack.c.l.b16 %v558
    %v2627 = vunpack.c.h.b16 %v558
    %v2628 = vunpack.c.l.b16 %v559
    %v2629 = vunpack.c.h.b16 %v559
    %v2630 = vunpack.c.l.b16 %v560
    %v2631 = vunpack.c.h.b16 %v560
    %v2632 = vunpack.c.l.b16 %v561
    %v2633 = vunpack.c.h.b16 %v561
    %v2634 = vunpack.c.l.b16 %v562
    %v2635 = vunpack.c.h.b16 %v562
    %v2636 = vunpack.c.l.b16 %v563
    %v2637 = vunpack.c.h.b16 %v563
    %v2638 = vunpack.c.l.b16 %v564
    %v2639 = vunpack.c.h.b16 %v564
    %v2640 = vunpack.c.l.b16 %v565
    %v2641 = vunpack.c.h.b16 %v565
    %v2642 = vunpack.c.l.b16 %v566
    %v2643 = vunpack.c.h.b16 %v566
    %v2644 = vunpack.c.l.b16 %v567
    %v2645 = vunpack.c.h.b16 %v567
    %v2646 = vunpack.c.l.b16 %v568
    %v2647 = vunpack.c.h.b16 %v568
    %v2648 = vunpack.c.l.b16 %v569
    %v2649 = vunpack.c.h.b16 %v569
    %v2650 = vunpack.c.l.b16 %v570
    %v2651 = vunpack.c.h.b16 %v570
    %v2652 = vunpack.c.l.b16 %v571
    %v2653 = vunpack.c.h.b16 %v571
    %v2654 = vunpack.c.l.b16 %v572
    %v2655 = vunpack.c.h.b16 %v572
    %v2656 = vunpack.c.l.b16 %v573
    %v2657 = vunpack.c.h.b16 %v573
    %v2658 = vunpack.c.l.b16 %v574
    %v2659 = vunpack.c.h.b16 %v574
    %v2660 = vunpack.c.l.b16 %v575
    %v2661 = vunpack.c.h.b16 %v575
    %v2662 = vunpack.c.l.b16 %v576
    %v2663 = vunpack.c.h.b16 %v576
    %v2664 = vunpack.c.l.b16 %v577
    %v2665 = vunpack.c.h.b16 %v577
    %v2666 = vunpack.c.l.b16 %v578
    %v2667 = vunpack.c.h.b16 %v578
    %v2668 = vunpack.c.l.b16 %v579
    %v2669 = vunpack.c.h.b16 %v579
    %v2670 = vunpack.c.l.b16 %v580
    %v2671 = vunpack.c.h.b16 %v580
    %v2672 = vunpack.c.l.b16 %v581
    %v2673 = vunpack.c.h.b16 %v581
    %v2674 = vunpack.c.l.b16 %v582
    %v2675 = vunpack.c.h.b16 %v582
    %v2676 = vunpack.c.l.b16 %v583
    %v2677 = vunpack.c.h.b16 %v583
    %v2678 = vunpack.c.l.b16 %v584
    %v2679 = vunpack.c.h.b16 %v584
    %v2680 = vunpack.c.l.b16 %v585
    %v2681 = vunpack.c.h.b16 %v585
    %v2682 = vunpack.c.l.b16 %v586
    %v2683 = vunpack.c.h.b16 %v586
    %v2684 = vunpack.c.l.b16 %v587
    %v2685 = vunpack.c.h.b16 %v587
    %v2686 = vunpack.c.l.b16 %v588
    %v2687 = vunpack.c.h.b16 %v588
    %v2688 = vunpack.c.l.b16 %v589
    %v2689 = vunpack.c.h.b16 %v589
    %v2690 = vunpack.c.l.b16 %v590
    %v2691 = vunpack.c.h.b16 %v590
    %v2692 = vunpack.c.l.b16 %v591
    %v2693 = vunpack.c.h.b16 %v591
    %v2694 = vunpack.c.l.b16 %v592
    %v2695 = vunpack.c.h.b16 %v592
    %v2696 = vunpack.c.l.b16 %v593
    %v2697 = vunpack.c.h.b16 %v593
    %v2698 = vunpack.c.l.b16 %v594
    %v2699 = vunpack.c.h.b16 %v594
    %v2700 = vunpack.c.l.b16 %v595
    %v2701 = vunpack.c.h.b16 %v595
    %v2702 = vunpack.c.l.b16 %v596
    %v2703 = vunpack.c.h.b16 %v596
    %v2704 = vunpack.c.l.b16 %v597
    %v2705 = vunpack.c.h.b16 %v597
    %v2706 = vunpack.c.l.b16 %v598
    %v2707 = vunpack.c.h.b16 %v598
    %v2708 = vunpack.c.l.b16 %v599
    %v2709 = vunpack.c.h.b16 %v599
    %v2710 = vunpack.c.l.b16 %v600
    %v2711 = vunpack.c.h.b16 %v600
    %v2712 = vunpack.c.l.b16 %v601
    %v2713 = vunpack.c.h.b16 %v601
    %v2714 = vunpack.c.l.b16 %v602
    %v2715 = vunpack.c.h.b16 %v602
    %v2716 = vunpack.c.l.b16 %v603
    %v2717 = vunpack.c.h.b16 %v603
    %v2718 = vunpack.c.l.b16 %v604
    %v2719 = vunpack.c.h.b16 %v604
    %v2720 = vpack.c.b16 %v1704, %v1696
    %v2721 = vpack.c.b16 %v1705, %v1697
    %v2722 = vpack.c.b16 %v1706, %v1698
    %v2723 = vpack.c.b16 %v1707, %v1699
    %v2724 = vpack.c.b16 %v1708, %v1700
    %v2725 = vpack.c.b16 %v1709, %v1701
    %v2726 = vpack.c.b16 %v1710, %v1702
    %v2727 = vpack.c.b16 %v1711, %v1703
    %v2728 = vpack.c.b16 %v1720, %v1712
    %v2729 = vpack.c.b16 %v1721, %v1713
    %v2730 = vpack.c.b16 %v1722, %v1714
    %v2731 = vpack.c.b16 %v1723, %v1715
    %v2732 = vpack.c.b16 %v1724, %v1716
    %v2733 = vpack.c.b16 %v1725, %v1717
    %v2734 = vpack.c.b16 %v1726, %v1718
    %v2735 = vpack.c.b16 %v1727, %v1719
    %v2736 = vpack.c.b16 %v1736, %v1728
    %v2737 = vpack.c.b16 %v1737, %v1729
    %v2738 = vpack.c.b16 %v1738, %v1730
    %v2739 = vpack.c.b16 %v1739, %v1731
    %v2740 = vpack.c.b16 %v1740, %v1732
    %v2741 = vpack.c.b16 %v1741, %v1733
    %v2742 = vpack.c.b16 %v1742, %v1734
    %v2743 = vpack.c.b16 %v1743, %v1735
    %v2744 = vpack.c.b16 %v1752, %v1744
    %v2745 = vpack.c.b16 %v1753, %v1745
    %v2746 = vpack.c.b16 %v1754, %v1746
    %v2747 = vpack.c.b16 %v1755, %v1747
    %v2748 = vpack.c.b16 %v1756, %v1748
    %v2749 = vpack.c.b16 %v1757, %v1749
    %v2750 = vpack.c.b16 %v1758, %v1750
    %v2751 = vpack.c.b16 %v1759, %v1751
    %v2752 = vpack.c.b16 %v1768, %v1760
    %v2753 = vpack.c.b16 %v1769, %v1761
    %v2754 = vpack.c.b16 %v1770, %v1762
    %v2755 = vpack.c.b16 %v1771, %v1763
    %v2756 = vpack.c.b16 %v1772, %v1764
    %v2757 = vpack.c.b16 %v1773, %v1765
    %v2758 = vpack.c.b16 %v1774, %v1766
    %v2759 = vpack.c.b16 %v1775, %v1767
    %v2760 = vpack.c.b16 %v1784, %v1776
    %v2761 = vpack.c.b16 %v1785, %v1777
    %v2762 = vpack.c.b16 %v1786, %v1778
    %v2763 = vpack.c.b16 %v1787, %v1779
    %v2764 = vpack.c.b16 %v1788, %v1780
    %v2765 = vpack.c.b16 %v1789, %v1781
    %v2766 = vpack.c.b16 %v1790, %v1782
    %v2767 = vpack.c.b16 %v1791, %v1783
    %v2768 = vpack.c.b16 %v1800, %v1792
    %v2769 = vpack.c.b16 %v1801, %v1793
    %v2770 = vpack.c.b16 %v1802, %v1794
    %v2771 = vpack.c.b16 %v1803, %v1795
    %v2772 = vpack.c.b16 %v1804, %v1796
    %v2773 = vpack.c.b16 %v1805, %v1797
    %v2774 = vpack.c.b16 %v1806, %v1798
    %v2775 = vpack.c.b16 %v1807, %v1799
    %v2776 = vpack.c.b16 %v1816, %v1808
    %v2777 = vpack.c.b16 %v1817, %v1809
    %v2778 = vpack.c.b16 %v1818, %v1810
    %v2779 = vpack.c.b16 %v1819, %v1811
    %v2780 = vpack.c.b16 %v1820, %v1812
    %v2781 = vpack.c.b16 %v1821, %v1813
    %v2782 = vpack.c.b16 %v1822, %v1814
    %v2783 = vpack.c.b16 %v1823, %v1815
    %v2784 = vpack.c.b16 %v1832, %v1824
    %v2785 = vpack.c.b16 %v1833, %v1825
    %v2786 = vpack.c.b16 %v1834, %v1826
    %v2787 = vpack.c.b16 %v1835, %v1827
    %v2788 = vpack.c.b16 %v1836, %v1828
    %v2789 = vpack.c.b16 %v1837, %v1829
    %v2790 = vpack.c.b16 %v1838, %v1830
    %v2791 = vpack.c.b16 %v1839, %v1831
    %v2792 = vpack.c.b16 %v1848, %v1840
    %v2793 = vpack.c.b16 %v1849, %v1841
    %v2794 = vpack.c.b16 %v1850, %v1842
    %v2795 = vpack.c.b16 %v1851, %v1843
    %v2796 = vpack.c.b16 %v1852, %v1844
    %v2797 = vpack.c.b16 %v1853, %v1845
    %v2798 = vpack.c.b16 %v1854, %v1846
    %v2799 = vpack.c.b16 %v1855, %v1847
    %v2800 = vpack.c.b16 %v1864, %v1856
    %v2801 = vpack.c.b16 %v1865, %v1857
    %v2802 = vpack.c.b16 %v1866, %v1858
    %v2803 = vpack.c.b16 %v1867, %v1859
    %v2804 = vpack.c.b16 %v1868, %v1860
    %v2805 = vpack.c.b16 %v1869, %v1861
    %v2806 = vpack.c.b16 %v1870, %v1862
    %v2807 = vpack.c.b16 %v1871, %v1863
    %v2808 = vpack.c.b16 %v1880, %v1872
    %v2809 = vpack.c.b16 %v1881, %v1873
    %v2810 = vpack.c.b16 %v1882, %v1874
    %v2811 = vpack.c.b16 %v1883, %v1875
    %v2812 = vpack.c.b16 %v1884, %v1876
    %v2813 = vpack.c.b16 %v1885, %v1877
    %v2814 = vpack.c.b16 %v1886, %v1878
    %v2815 = vpack.c.b16 %v1887, %v1879
    %v2816 = vpack.c.b16 %v1896, %v1888
    %v2817 = vpack.c.b16 %v1897, %v1889
    %v2818 = vpack.c.b16 %v1898, %v1890
    %v2819 = vpack.c.b16 %v1899, %v1891
    %v2820 = vpack.c.b16 %v1900, %v1892
    %v2821 = vpack.c.b16 %v1901, %v1893
    %v2822 = vpack.c.b16 %v1902, %v1894
    %v2823 = vpack.c.b16 %v1903, %v1895
    %v2824 = vpack.c.b16 %v1912, %v1904
    %v2825 = vpack.c.b16 %v1913, %v1905
    %v2826 = vpack.c.b16 %v1914, %v1906
    %v2827 = vpack.c.b16 %v1915, %v1907
    %v2828 = vpack.c.b16 %v1916, %v1908
    %v2829 = vpack.c.b16 %v1917, %v1909
    %v2830 = vpack.c.b16 %v1918, %v1910
    %v2831 = vpack.c.b16 %v1919, %v1911
    %v2832 = vpack.c.b16 %v1928, %v1920
    %v2833 = vpack.c.b16 %v1929, %v1921
    %v2834 = vpack.c.b16 %v1930, %v1922
    %v2835 = vpack.c.b16 %v1931, %v1923
    %v2836 = vpack.c.b16 %v1932, %v1924
    %v2837 = vpack.c.b16 %v1933, %v1925
    %v2838 = vpack.c.b16 %v1934, %v1926
    %v2839 = vpack.c.b16 %v1935, %v1927
    %v2840 = vpack.c.b16 %v1944, %v1936
    %v2841 = vpack.c.b16 %v1945, %v1937
    %v2842 = vpack.c.b16 %v1946, %v1938
    %v2843 = vpack.c.b16 %v1947, %v1939
    %v2844 = vpack.c.b16 %v1948, %v1940
    %v2845 = vpack.c.b16 %v1949, %v1941
    %v2846 = vpack.c.b16 %v1950, %v1942
    %v2847 = vpack.c.b16 %v1951, %v1943
    %v2848 = vpack.c.b16 %v1960, %v1952
    %v2849 = vpack.c.b16 %v1961, %v1953
    %v2850 = vpack.c.b16 %v1962, %v1954
    %v2851 = vpack.c.b16 %v1963, %v1955
    %v2852 = vpack.c.b16 %v1964, %v1956
    %v2853 = vpack.c.b16 %v1965, %v1957
    %v2854 = vpack.c.b16 %v1966, %v1958
    %v2855 = vpack.c.b16 %v1967, %v1959
    %v2856 = vpack.c.b16 %v1976, %v1968
    %v2857 = vpack.c.b16 %v1977, %v1969
    %v2858 = vpack.c.b16 %v1978, %v1970
    %v2859 = vpack.c.b16 %v1979, %v1971
    %v2860 = vpack.c.b16 %v1980, %v1972
    %v2861 = vpack.c.b16 %v1981, %v1973
    %v2862 = vpack.c.b16 %v1982, %v1974
    %v2863 = vpack.c.b16 %v1983, %v1975
    %v2864 = vpack.c.b16 %v1992, %v1984
    %v2865 = vpack.c.b16 %v1993, %v1985
    %v2866 = vpack.c.b16 %v1994, %v1986
    %v2867 = vpack.c.b16 %v1995, %v1987
    %v2868 = vpack.c.b16 %v1996, %v1988
    %v2869 = vpack.c.b16 %v1997, %v1989
    %v2870 = vpack.c.b16 %v1998, %v1990
    %v2871 = vpack.c.b16 %v1999, %v1991
    %v2872 = vpack.c.b16 %v2008, %v2000
    %v2873 = vpack.c.b16 %v2009, %v2001
    %v2874 = vpack.c.b16 %v2010, %v2002
    %v2875 = vpack.c.b16 %v2011, %v2003
    %v2876 = vpack.c.b16 %v2012, %v2004
    %v2877 = vpack.c.b16 %v2013, %v2005
    %v2878 = vpack.c.b16 %v2014, %v2006
    %v2879 = vpack.c.b16 %v2015, %v2007
    %v2880 = vpack.c.b16 %v2024, %v2016
    %v2881 = vpack.c.b16 %v2025, %v2017
    %v2882 = vpack.c.b16 %v2026, %v2018
    %v2883 = vpack.c.b16 %v2027, %v2019
    %v2884 = vpack.c.b16 %v2028, %v2020
    %v2885 = vpack.c.b16 %v2029, %v2021
    %v2886 = vpack.c.b16 %v2030, %v2022
    %v2887 = vpack.c.b16 %v2031, %v2023
    %v2888 = vpack.c.b16 %v2040, %v2032
    %v2889 = vpack.c.b16 %v2041, %v2033
    %v2890 = vpack.c.b16 %v2042, %v2034
    %v2891 = vpack.c.b16 %v2043, %v2035
    %v2892 = vpack.c.b16 %v2044, %v2036
    %v2893 = vpack.c.b16 %v2045, %v2037
    %v2894 = vpack.c.b16 %v2046, %v2038
    %v2895 = vpack.c.b16 %v2047, %v2039
    %v2896 = vpack.c.b16 %v2056, %v2048
    %v2897 = vpack.c.b16 %v2057, %v2049
    %v2898 = vpack.c.b16 %v2058, %v2050
    %v2899 = vpack.c.b16 %v2059, %v2051
    %v2900 = vpack.c.b16 %v2060, %v2052
    %v2901 = vpack.c.b16 %v2061, %v2053
    %v2902 = vpack.c.b16 %v2062, %v2054
    %v2903 = vpack.c.b16 %v2063, %v2055
    %v2904 = vpack.c.b16 %v2072, %v2064
    %v2905 = vpack.c.b16 %v2073, %v2065
    %v2906 = vpack.c.b16 %v2074, %v2066
    %v2907 = vpack.c.b16 %v2075, %v2067
    %v2908 = vpack.c.b16 %v2076, %v2068
    %v2909 = vpack.c.b16 %v2077, %v2069
    %v2910 = vpack.c.b16 %v2078, %v2070
    %v2911 = vpack.c.b16 %v2079, %v2071
    %v2912 = vpack.c.b16 %v2088, %v2080
    %v2913 = vpack.c.b16 %v2089, %v2081
    %v2914 = vpack.c.b16 %v2090, %v2082
    %v2915 = vpack.c.b16 %v2091, %v2083
    %v2916 = vpack.c.b16 %v2092, %v2084
    %v2917 = vpack.c.b16 %v2093, %v2085
    %v2918 = vpack.c.b16 %v2094, %v2086
    %v2919 = vpack.c.b16 %v2095, %v2087
    %v2920 = vpack.c.b16 %v2104, %v2096
    %v2921 = vpack.c.b16 %v2105, %v2097
    %v2922 = vpack.c.b16 %v2106, %v2098
    %v2923 = vpack.c.b16 %v2107, %v2099
    %v2924 = vpack.c.b16 %v2108, %v2100
    %v2925 = vpack.c.b16 %v2109, %v2101
    %v2926 = vpack.c.b16 %v2110, %v2102
    %v2927 = vpack.c.b16 %v2111, %v2103
    %v2928 = vpack.c.b16 %v2120, %v2112
    %v2929 = vpack.c.b16 %v2121, %v2113
    %v2930 = vpack.c.b16 %v2122, %v2114
    %v2931 = vpack.c.b16 %v2123, %v2115
    %v2932 = vpack.c.b16 %v2124, %v2116
    %v2933 = vpack.c.b16 %v2125, %v2117
    %v2934 = vpack.c.b16 %v2126, %v2118
    %v2935 = vpack.c.b16 %v2127, %v2119
    %v2936 = vpack.c.b16 %v2136, %v2128
    %v2937 = vpack.c.b16 %v2137, %v2129
    %v2938 = vpack.c.b16 %v2138, %v2130
    %v2939 = vpack.c.b16 %v2139, %v2131
    %v2940 = vpack.c.b16 %v2140, %v2132
    %v2941 = vpack.c.b16 %v2141, %v2133
    %v2942 = vpack.c.b16 %v2142, %v2134
    %v2943 = vpack.c.b16 %v2143, %v2135
    %v2944 = vpack.c.b16 %v2152, %v2144
    %v2945 = vpack.c.b16 %v2153, %v2145
    %v2946 = vpack.c.b16 %v2154, %v2146
    %v2947 = vpack.c.b16 %v2155, %v2147
    %v2948 = vpack.c.b16 %v2156, %v2148
    %v2949 = vpack.c.b16 %v2157, %v2149
    %v2950 = vpack.c.b16 %v2158, %v2150
    %v2951 = vpack.c.b16 %v2159, %v2151
    %v2952 = vpack.c.b16 %v2168, %v2160
    %v2953 = vpack.c.b16 %v2169, %v2161
    %v2954 = vpack.c.b16 %v2170, %v2162
    %v2955 = vpack.c.b16 %v2171, %v2163
    %v2956 = vpack.c.b16 %v2172, %v2164
    %v2957 = vpack.c.b16 %v2173, %v2165
    %v2958 = vpack.c.b16 %v2174, %v2166
    %v2959 = vpack.c.b16 %v2175, %v2167
    %v2960 = vpack.c.b16 %v2184, %v2176
    %v2961 = vpack.c.b16 %v2185, %v2177
    %v2962 = vpack.c.b16 %v2186, %v2178
    %v2963 = vpack.c.b16 %v2187, %v2179
    %v2964 = vpack.c.b16 %v2188, %v2180
    %v2965 = vpack.c.b16 %v2189, %v2181
    %v2966 = vpack.c.b16 %v2190, %v2182
    %v2967 = vpack.c.b16 %v2191, %v2183
    %v2968 = vpack.c.b16 %v2200, %v2192
    %v2969 = vpack.c.b16 %v2201, %v2193
    %v2970 = vpack.c.b16 %v2202, %v2194
    %v2971 = vpack.c.b16 %v2203, %v2195
    %v2972 = vpack.c.b16 %v2204, %v2196
    %v2973 = vpack.c.b16 %v2205, %v2197
    %v2974 = vpack.c.b16 %v2206, %v2198
    %v2975 = vpack.c.b16 %v2207, %v2199
    %v2976 = vpack.c.b16 %v2216, %v2208
    %v2977 = vpack.c.b16 %v2217, %v2209
    %v2978 = vpack.c.b16 %v2218, %v2210
    %v2979 = vpack.c.b16 %v2219, %v2211
    %v2980 = vpack.c.b16 %v2220, %v2212
    %v2981 = vpack.c.b16 %v2221, %v2213
    %v2982 = vpack.c.b16 %v2222, %v2214
    %v2983 = vpack.c.b16 %v2223, %v2215
    %v2984 = vpack.c.b16 %v2232, %v2224
    %v2985 = vpack.c.b16 %v2233, %v2225
    %v2986 = vpack.c.b16 %v2234, %v2226
    %v2987 = vpack.c.b16 %v2235, %v2227
    %v2988 = vpack.c.b16 %v2236, %v2228
    %v2989 = vpack.c.b16 %v2237, %v2229
    %v2990 = vpack.c.b16 %v2238, %v2230
    %v2991 = vpack.c.b16 %v2239, %v2231
    %v2992 = vpack.c.b16 %v2248, %v2240
    %v2993 = vpack.c.b16 %v2249, %v2241
    %v2994 = vpack.c.b16 %v2250, %v2242
    %v2995 = vpack.c.b16 %v2251, %v2243
    %v2996 = vpack.c.b16 %v2252, %v2244
    %v2997 = vpack.c.b16 %v2253, %v2245
    %v2998 = vpack.c.b16 %v2254, %v2246
    %v2999 = vpack.c.b16 %v2255, %v2247
    %v3000 = vpack.c.b16 %v2264, %v2256
    %v3001 = vpack.c.b16 %v2265, %v2257
    %v3002 = vpack.c.b16 %v2266, %v2258
    %v3003 = vpack.c.b16 %v2267, %v2259
    %v3004 = vpack.c.b16 %v2268, %v2260
    %v3005 = vpack.c.b16 %v2269, %v2261
    %v3006 = vpack.c.b16 %v2270, %v2262
    %v3007 = vpack.c.b16 %v2271, %v2263
    %v3008 = vpack.c.b16 %v2280, %v2272
    %v3009 = vpack.c.b16 %v2281, %v2273
    %v3010 = vpack.c.b16 %v2282, %v2274
    %v3011 = vpack.c.b16 %v2283, %v2275
    %v3012 = vpack.c.b16 %v2284, %v2276
    %v3013 = vpack.c.b16 %v2285, %v2277
    %v3014 = vpack.c.b16 %v2286, %v2278
    %v3015 = vpack.c.b16 %v2287, %v2279
    %v3016 = vpack.c.b16 %v2296, %v2288
    %v3017 = vpack.c.b16 %v2297, %v2289
    %v3018 = vpack.c.b16 %v2298, %v2290
    %v3019 = vpack.c.b16 %v2299, %v2291
    %v3020 = vpack.c.b16 %v2300, %v2292
    %v3021 = vpack.c.b16 %v2301, %v2293
    %v3022 = vpack.c.b16 %v2302, %v2294
    %v3023 = vpack.c.b16 %v2303, %v2295
    %v3024 = vpack.c.b16 %v2312, %v2304
    %v3025 = vpack.c.b16 %v2313, %v2305
    %v3026 = vpack.c.b16 %v2314, %v2306
    %v3027 = vpack.c.b16 %v2315, %v2307
    %v3028 = vpack.c.b16 %v2316, %v2308
    %v3029 = vpack.c.b16 %v2317, %v2309
    %v3030 = vpack.c.b16 %v2318, %v2310
    %v3031 = vpack.c.b16 %v2319, %v2311
    %v3032 = vpack.c.b16 %v2328, %v2320
    %v3033 = vpack.c.b16 %v2329, %v2321
    %v3034 = vpack.c.b16 %v2330, %v2322
    %v3035 = vpack.c.b16 %v2331, %v2323
    %v3036 = vpack.c.b16 %v2332, %v2324
    %v3037 = vpack.c.b16 %v2333, %v2325
    %v3038 = vpack.c.b16 %v2334, %v2326
    %v3039 = vpack.c.b16 %v2335, %v2327
    %v3040 = vpack.c.b16 %v2344, %v2336
    %v3041 = vpack.c.b16 %v2345, %v2337
    %v3042 = vpack.c.b16 %v2346, %v2338
    %v3043 = vpack.c.b16 %v2347, %v2339
    %v3044 = vpack.c.b16 %v2348, %v2340
    %v3045 = vpack.c.b16 %v2349, %v2341
    %v3046 = vpack.c.b16 %v2350, %v2342
    %v3047 = vpack.c.b16 %v2351, %v2343
    %v3048 = vpack.c.b16 %v2360, %v2352
    %v3049 = vpack.c.b16 %v2361, %v2353
    %v3050 = vpack.c.b16 %v2362, %v2354
    %v3051 = vpack.c.b16 %v2363, %v2355
    %v3052 = vpack.c.b16 %v2364, %v2356
    %v3053 = vpack.c.b16 %v2365, %v2357
    %v3054 = vpack.c.b16 %v2366, %v2358
    %v3055 = vpack.c.b16 %v2367, %v2359
    %v3056 = vpack.c.b16 %v2376, %v2368
    %v3057 = vpack.c.b16 %v2377, %v2369
    %v3058 = vpack.c.b16 %v2378, %v2370
    %v3059 = vpack.c.b16 %v2379, %v2371
    %v3060 = vpack.c.b16 %v2380, %v2372
    %v3061 = vpack.c.b16 %v2381, %v2373
    %v3062 = vpack.c.b16 %v2382, %v2374
    %v3063 = vpack.c.b16 %v2383, %v2375
    %v3064 = vpack.c.b16 %v2392, %v2384
    %v3065 = vpack.c.b16 %v2393, %v2385
    %v3066 = vpack.c.b16 %v2394, %v2386
    %v3067 = vpack.c.b16 %v2395, %v2387
    %v3068 = vpack.c.b16 %v2396, %v2388
    %v3069 = vpack.c.b16 %v2397, %v2389
    %v3070 = vpack.c.b16 %v2398, %v2390
    %v3071 = vpack.c.b16 %v2399, %v2391
    %v3072 = vpack.c.b16 %v2408, %v2400
    %v3073 = vpack.c.b16 %v2409, %v2401
    %v3074 = vpack.c.b16 %v2410, %v2402
    %v3075 = vpack.c.b16 %v2411, %v2403
    %v3076 = vpack.c.b16 %v2412, %v2404
    %v3077 = vpack.c.b16 %v2413, %v2405
    %v3078 = vpack.c.b16 %v2414, %v2406
    %v3079 = vpack.c.b16 %v2415, %v2407
    %v3080 = vpack.c.b16 %v2424, %v2416
    %v3081 = vpack.c.b16 %v2425, %v2417
    %v3082 = vpack.c.b16 %v2426, %v2418
    %v3083 = vpack.c.b16 %v2427, %v2419
    %v3084 = vpack.c.b16 %v2428, %v2420
    %v3085 = vpack.c.b16 %v2429, %v2421
    %v3086 = vpack.c.b16 %v2430, %v2422
    %v3087 = vpack.c.b16 %v2431, %v2423
    %v3088 = vpack.c.b16 %v2440, %v2432
    %v3089 = vpack.c.b16 %v2441, %v2433
    %v3090 = vpack.c.b16 %v2442, %v2434
    %v3091 = vpack.c.b16 %v2443, %v2435
    %v3092 = vpack.c.b16 %v2444, %v2436
    %v3093 = vpack.c.b16 %v2445, %v2437
    %v3094 = vpack.c.b16 %v2446, %v2438
    %v3095 = vpack.c.b16 %v2447, %v2439
    %v3096 = vpack.c.b16 %v2456, %v2448
    %v3097 = vpack.c.b16 %v2457, %v2449
    %v3098 = vpack.c.b16 %v2458, %v2450
    %v3099 = vpack.c.b16 %v2459, %v2451
    %v3100 = vpack.c.b16 %v2460, %v2452
    %v3101 = vpack.c.b16 %v2461, %v2453
    %v3102 = vpack.c.b16 %v2462, %v2454
    %v3103 = vpack.c.b16 %v2463, %v2455
    %v3104 = vpack.c.b16 %v2472, %v2464
    %v3105 = vpack.c.b16 %v2473, %v2465
    %v3106 = vpack.c.b16 %v2474, %v2466
    %v3107 = vpack.c.b16 %v2475, %v2467
    %v3108 = vpack.c.b16 %v2476, %v2468
    %v3109 = vpack.c.b16 %v2477, %v2469
    %v3110 = vpack.c.b16 %v2478, %v2470
    %v3111 = vpack.c.b16 %v2479, %v2471
    %v3112 = vpack.c.b16 %v2488, %v2480
    %v3113 = vpack.c.b16 %v2489, %v2481
    %v3114 = vpack.c.b16 %v2490, %v2482
    %v3115 = vpack.c.b16 %v2491, %v2483
    %v3116 = vpack.c.b16 %v2492, %v2484
    %v3117 = vpack.c.b16 %v2493, %v2485
    %v3118 = vpack.c.b16 %v2494, %v2486
    %v3119 = vpack.c.b16 %v2495, %v2487
    %v3120 = vpack.c.b16 %v2504, %v2496
    %v3121 = vpack.c.b16 %v2505, %v2497
    %v3122 = vpack.c.b16 %v2506, %v2498
    %v3123 = vpack.c.b16 %v2507, %v2499
    %v3124 = vpack.c.b16 %v2508, %v2500
    %v3125 = vpack.c.b16 %v2509, %v2501
    %v3126 = vpack.c.b16 %v2510, %v2502
    %v3127 = vpack.c.b16 %v2511, %v2503
    %v3128 = vpack.c.b16 %v2520, %v2512
    %v3129 = vpack.c.b16 %v2521, %v2513
    %v3130 = vpack.c.b16 %v2522, %v2514
    %v3131 = vpack.c.b16 %v2523, %v2515
    %v3132 = vpack.c.b16 %v2524, %v2516
    %v3133 = vpack.c.b16 %v2525, %v2517
    %v3134 = vpack.c.b16 %v2526, %v2518
    %v3135 = vpack.c.b16 %v2527, %v2519
    %v3136 = vpack.c.b16 %v2536, %v2528
    %v3137 = vpack.c.b16 %v2537, %v2529
    %v3138 = vpack.c.b16 %v2538, %v2530
    %v3139 = vpack.c.b16 %v2539, %v2531
    %v3140 = vpack.c.b16 %v2540, %v2532
    %v3141 = vpack.c.b16 %v2541, %v2533
    %v3142 = vpack.c.b16 %v2542, %v2534
    %v3143 = vpack.c.b16 %v2543, %v2535
    %v3144 = vpack.c.b16 %v2552, %v2544
    %v3145 = vpack.c.b16 %v2553, %v2545
    %v3146 = vpack.c.b16 %v2554, %v2546
    %v3147 = vpack.c.b16 %v2555, %v2547
    %v3148 = vpack.c.b16 %v2556, %v2548
    %v3149 = vpack.c.b16 %v2557, %v2549
    %v3150 = vpack.c.b16 %v2558, %v2550
    %v3151 = vpack.c.b16 %v2559, %v2551
    %v3152 = vpack.c.b16 %v2568, %v2560
    %v3153 = vpack.c.b16 %v2569, %v2561
    %v3154 = vpack.c.b16 %v2570, %v2562
    %v3155 = vpack.c.b16 %v2571, %v2563
    %v3156 = vpack.c.b16 %v2572, %v2564
    %v3157 = vpack.c.b16 %v2573, %v2565
    %v3158 = vpack.c.b16 %v2574, %v2566
    %v3159 = vpack.c.b16 %v2575, %v2567
    %v3160 = vpack.c.b16 %v2584, %v2576
    %v3161 = vpack.c.b16 %v2585, %v2577
    %v3162 = vpack.c.b16 %v2586, %v2578
    %v3163 = vpack.c.b16 %v2587, %v2579
    %v3164 = vpack.c.b16 %v2588, %v2580
    %v3165 = vpack.c.b16 %v2589, %v2581
    %v3166 = vpack.c.b16 %v2590, %v2582
    %v3167 = vpack.c.b16 %v2591, %v2583
    %v3168 = vpack.c.b16 %v2600, %v2592
    %v3169 = vpack.c.b16 %v2601, %v2593
    %v3170 = vpack.c.b16 %v2602, %v2594
    %v3171 = vpack.c.b16 %v2603, %v2595
    %v3172 = vpack.c.b16 %v2604, %v2596
    %v3173 = vpack.c.b16 %v2605, %v2597
    %v3174 = vpack.c.b16 %v2606, %v2598
    %v3175 = vpack.c.b16 %v2607, %v2599
    %v3176 = vpack.c.b16 %v2616, %v2608
    %v3177 = vpack.c.b16 %v2617, %v2609
    %v3178 = vpack.c.b16 %v2618, %v2610
    %v3179 = vpack.c.b16 %v2619, %v2611
    %v3180 = vpack.c.b16 %v2620, %v2612
    %v3181 = vpack.c.b16 %v2621, %v2613
    %v3182 = vpack.c.b16 %v2622, %v2614
    %v3183 = vpack.c.b16 %v2623, %v2615
    %v3184 = vpack.c.b16 %v2632, %v2624
    %v3185 = vpack.c.b16 %v2633, %v2625
    %v3186 = vpack.c.b16 %v2634, %v2626
    %v3187 = vpack.c.b16 %v2635, %v2627
    %v3188 = vpack.c.b16 %v2636, %v2628
    %v3189 = vpack.c.b16 %v2637, %v2629
    %v3190 = vpack.c.b16 %v2638, %v2630
    %v3191 = vpack.c.b16 %v2639, %v2631
    %v3192 = vpack.c.b16 %v2648, %v2640
    %v3193 = vpack.c.b16 %v2649, %v2641
    %v3194 = vpack.c.b16 %v2650, %v2642
    %v3195 = vpack.c.b16 %v2651, %v2643
    %v3196 = vpack.c.b16 %v2652, %v2644
    %v3197 = vpack.c.b16 %v2653, %v2645
    %v3198 = vpack.c.b16 %v2654, %v2646
    %v3199 = vpack.c.b16 %v2655, %v2647
    %v3200 = vpack.c.b16 %v2664, %v2656
    %v3201 = vpack.c.b16 %v2665, %v2657
    %v3202 = vpack.c.b16 %v2666, %v2658
    %v3203 = vpack.c.b16 %v2667, %v2659
    %v3204 = vpack.c.b16 %v2668, %v2660
    %v3205 = vpack.c.b16 %v2669, %v2661
    %v3206 = vpack.c.b16 %v2670, %v2662
    %v3207 = vpack.c.b16 %v2671, %v2663
    %v3208 = vpack.c.b16 %v2680, %v2672
    %v3209 = vpack.c.b16 %v2681, %v2673
    %v3210 = vpack.c.b16 %v2682, %v2674
    %v3211 = vpack.c.b16 %v2683, %v2675
    %v3212 = vpack.c.b16 %v2684, %v2676
    %v3213 = vpack.c.b16 %v2685, %v2677
    %v3214 = vpack.c.b16 %v2686, %v2678
    %v3215 = vpack.c.b16 %v2687, %v2679
    %v3216 = vpack.c.b16 %v2696, %v2688
    %v3217 = vpack.c.b16 %v2697, %v2689
    %v3218 = vpack.c.b16 %v2698, %v2690
    %v3219 = vpack.c.b16 %v2699, %v2691
    %v3220 = vpack.c.b16 %v2700, %v2692
    %v3221 = vpack.c.b16 %v2701, %v2693
    %v3222 = vpack.c.b16 %v2702, %v2694
    %v3223 = vpack.c.b16 %v2703, %v2695
    %v3224 = vpack.c.b16 %v2712, %v2704
    %v3225 = vpack.c.b16 %v2713, %v2705
    %v3226 = vpack.c.b16 %v2714, %v2706
    %v3227 = vpack.c.b16 %v2715, %v2707
    %v3228 = vpack.c.b16 %v2716, %v2708
    %v3229 = vpack.c.b16 %v2717, %v2709
    %v3230 = vpack.c.b16 %v2718, %v2710
    %v3231 = vpack.c.b16 %v2719, %v2711
    %3744 = vmatpush.bf16.msra.mxu0 %v2776
    %3745 = vmatpush.bf16.msra.mxu0 %v2768
    %3746 = vmatpush.bf16.msra.mxu0 %v2760
    %3747 = vmatpush.bf16.msra.mxu0 %v2752
    %3748 = vmatpush.bf16.msra.mxu0 %v2744
    %3749 = vmatpush.bf16.msra.mxu0 %v2736
    %3750 = vmatpush.bf16.msra.mxu0 %v2728
    %3751 = vmatpush.bf16.msra.mxu0 %v2720
    %3752 = vmatmul.bf16.gmra.mxu0 %v1176
    %v3753 = vpop.f32.mrf.mxu0
    %v3754 = vadd.f32 %v1119, %v3753
    %v3755 = vpop.f32.mrf.mxu0
    %3756 = vdwg.mxu0
    %3757 = vmatpush.bf16.msra.mxu0 %v2840
    %3758 = vmatpush.bf16.msra.mxu0 %v2832
    %3759 = vmatpush.bf16.msra.mxu0 %v2824
    %3760 = vmatpush.bf16.msra.mxu0 %v2816
    %3761 = vmatpush.bf16.msra.mxu0 %v2808
    %3762 = vmatpush.bf16.msra.mxu0 %v2800
    %3763 = vmatpush.bf16.msra.mxu0 %v2792
    %3764 = vmatpush.bf16.msra.mxu0 %v2784
    %3765 = vmatmul.bf16.gmra.mxu0 %v1177
    %v3766 = vpop.f32.mrf.mxu0
    %v3767 = vadd.f32 %v3754, %v3766
    %v3768 = vpop.f32.mrf.mxu0
    %3769 = vdwg.mxu0
    %3770 = vmatpush.bf16.msra.mxu0 %v2904
    %3771 = vmatpush.bf16.msra.mxu0 %v2896
    %3772 = vmatpush.bf16.msra.mxu0 %v2888
    %3773 = vmatpush.bf16.msra.mxu0 %v2880
    %3774 = vmatpush.bf16.msra.mxu0 %v2872
    %3775 = vmatpush.bf16.msra.mxu0 %v2864
    %3776 = vmatpush.bf16.msra.mxu0 %v2856
    %3777 = vmatpush.bf16.msra.mxu0 %v2848
    %3778 = vmatmul.bf16.gmra.mxu0 %v1178
    %v3779 = vpop.f32.mrf.mxu0
    %v3780 = vadd.f32 %v3767, %v3779
    %v3781 = vpop.f32.mrf.mxu0
    %3782 = vdwg.mxu0
    %3783 = vmatpush.bf16.msra.mxu0 %v2968
    %3784 = vmatpush.bf16.msra.mxu0 %v2960
    %3785 = vmatpush.bf16.msra.mxu0 %v2952
    %3786 = vmatpush.bf16.msra.mxu0 %v2944
    %3787 = vmatpush.bf16.msra.mxu0 %v2936
    %3788 = vmatpush.bf16.msra.mxu0 %v2928
    %3789 = vmatpush.bf16.msra.mxu0 %v2920
    %3790 = vmatpush.bf16.msra.mxu0 %v2912
    %3791 = vmatmul.bf16.gmra.mxu0 %v1179
    %v3792 = vpop.f32.mrf.mxu0
    %v3793 = vadd.f32 %v3780, %v3792
    %v3794 = vpop.f32.mrf.mxu0
    %3795 = vdwg.mxu0
    %3796 = vmatpush.bf16.msra.mxu0 %v3032
    %3797 = vmatpush.bf16.msra.mxu0 %v3024
    %3798 = vmatpush.bf16.msra.mxu0 %v3016
    %3799 = vmatpush.bf16.msra.mxu0 %v3008
    %3800 = vmatpush.bf16.msra.mxu0 %v3000
    %3801 = vmatpush.bf16.msra.mxu0 %v2992
    %3802 = vmatpush.bf16.msra.mxu0 %v2984
    %3803 = vmatpush.bf16.msra.mxu0 %v2976
    %3804 = vmatmul.bf16.gmra.mxu0 %v1180
    %v3805 = vpop.f32.mrf.mxu0
    %v3806 = vadd.f32 %v3793, %v3805
    %v3807 = vpop.f32.mrf.mxu0
    %3808 = vdwg.mxu0
    %3809 = vmatpush.bf16.msra.mxu0 %v3096
    %3810 = vmatpush.bf16.msra.mxu0 %v3088
    %3811 = vmatpush.bf16.msra.mxu0 %v3080
    %3812 = vmatpush.bf16.msra.mxu0 %v3072
    %3813 = vmatpush.bf16.msra.mxu0 %v3064
    %3814 = vmatpush.bf16.msra.mxu0 %v3056
    %3815 = vmatpush.bf16.msra.mxu0 %v3048
    %3816 = vmatpush.bf16.msra.mxu0 %v3040
    %3817 = vmatmul.bf16.gmra.mxu0 %v1181
    %v3818 = vpop.f32.mrf.mxu0
    %v3819 = vadd.f32 %v3806, %v3818
    %v3820 = vpop.f32.mrf.mxu0
    %3821 = vdwg.mxu0
    %3822 = vmatpush.bf16.msra.mxu0 %v3160
    %3823 = vmatpush.bf16.msra.mxu0 %v3152
    %3824 = vmatpush.bf16.msra.mxu0 %v3144
    %3825 = vmatpush.bf16.msra.mxu0 %v3136
    %3826 = vmatpush.bf16.msra.mxu0 %v3128
    %3827 = vmatpush.bf16.msra.mxu0 %v3120
    %3828 = vmatpush.bf16.msra.mxu0 %v3112
    %3829 = vmatpush.bf16.msra.mxu0 %v3104
    %3830 = vmatmul.bf16.gmra.mxu0 %v1182
    %v3831 = vpop.f32.mrf.mxu0
    %v3832 = vadd.f32 %v3819, %v3831
    %v3833 = vpop.f32.mrf.mxu0
    %3834 = vdwg.mxu0
    %3835 = vmatpush.bf16.msra.mxu0 %v3224
    %3836 = vmatpush.bf16.msra.mxu0 %v3216
    %3837 = vmatpush.bf16.msra.mxu0 %v3208
    %3838 = vmatpush.bf16.msra.mxu0 %v3200
    %3839 = vmatpush.bf16.msra.mxu0 %v3192
    %3840 = vmatpush.bf16.msra.mxu0 %v3184
    %3841 = vmatpush.bf16.msra.mxu0 %v3176
    %3842 = vmatpush.bf16.msra.mxu0 %v3168
    %3843 = vmatmul.bf16.gmra.mxu0 %v1183
    %v3844 = vpop.f32.mrf.mxu0
    %v3845 = vadd.f32 %v3832, %v3844
    %v3846 = vpop.f32.mrf.mxu0
    %3847 = vdwg.mxu0
    %3848 = vmatpush.bf16.msra.mxu0 %v2777
    %3849 = vmatpush.bf16.msra.mxu0 %v2769
    %3850 = vmatpush.bf16.msra.mxu0 %v2761
    %3851 = vmatpush.bf16.msra.mxu0 %v2753
    %3852 = vmatpush.bf16.msra.mxu0 %v2745
    %3853 = vmatpush.bf16.msra.mxu0 %v2737
    %3854 = vmatpush.bf16.msra.mxu0 %v2729
    %3855 = vmatpush.bf16.msra.mxu0 %v2721
    %3856 = vmatmul.bf16.gmra.mxu0 %v1176
    %v3857 = vpop.f32.mrf.mxu0
    %v3858 = vadd.f32 %v1120, %v3857
    %v3859 = vpop.f32.mrf.mxu0
    %3860 = vdwg.mxu0
    %3861 = vmatpush.bf16.msra.mxu0 %v2841
    %3862 = vmatpush.bf16.msra.mxu0 %v2833
    %3863 = vmatpush.bf16.msra.mxu0 %v2825
    %3864 = vmatpush.bf16.msra.mxu0 %v2817
    %3865 = vmatpush.bf16.msra.mxu0 %v2809
    %3866 = vmatpush.bf16.msra.mxu0 %v2801
    %3867 = vmatpush.bf16.msra.mxu0 %v2793
    %3868 = vmatpush.bf16.msra.mxu0 %v2785
    %3869 = vmatmul.bf16.gmra.mxu0 %v1177
    %v3870 = vpop.f32.mrf.mxu0
    %v3871 = vadd.f32 %v3858, %v3870
    %v3872 = vpop.f32.mrf.mxu0
    %3873 = vdwg.mxu0
    %3874 = vmatpush.bf16.msra.mxu0 %v2905
    %3875 = vmatpush.bf16.msra.mxu0 %v2897
    %3876 = vmatpush.bf16.msra.mxu0 %v2889
    %3877 = vmatpush.bf16.msra.mxu0 %v2881
    %3878 = vmatpush.bf16.msra.mxu0 %v2873
    %3879 = vmatpush.bf16.msra.mxu0 %v2865
    %3880 = vmatpush.bf16.msra.mxu0 %v2857
    %3881 = vmatpush.bf16.msra.mxu0 %v2849
    %3882 = vmatmul.bf16.gmra.mxu0 %v1178
    %v3883 = vpop.f32.mrf.mxu0
    %v3884 = vadd.f32 %v3871, %v3883
    %v3885 = vpop.f32.mrf.mxu0
    %3886 = vdwg.mxu0
    %3887 = vmatpush.bf16.msra.mxu0 %v2969
    %3888 = vmatpush.bf16.msra.mxu0 %v2961
    %3889 = vmatpush.bf16.msra.mxu0 %v2953
    %3890 = vmatpush.bf16.msra.mxu0 %v2945
    %3891 = vmatpush.bf16.msra.mxu0 %v2937
    %3892 = vmatpush.bf16.msra.mxu0 %v2929
    %3893 = vmatpush.bf16.msra.mxu0 %v2921
    %3894 = vmatpush.bf16.msra.mxu0 %v2913
    %3895 = vmatmul.bf16.gmra.mxu0 %v1179
    %v3896 = vpop.f32.mrf.mxu0
    %v3897 = vadd.f32 %v3884, %v3896
    %v3898 = vpop.f32.mrf.mxu0
    %3899 = vdwg.mxu0
    %3900 = vmatpush.bf16.msra.mxu0 %v3033
    %3901 = vmatpush.bf16.msra.mxu0 %v3025
    %3902 = vmatpush.bf16.msra.mxu0 %v3017
    %3903 = vmatpush.bf16.msra.mxu0 %v3009
    %3904 = vmatpush.bf16.msra.mxu0 %v3001
    %3905 = vmatpush.bf16.msra.mxu0 %v2993
    %3906 = vmatpush.bf16.msra.mxu0 %v2985
    %3907 = vmatpush.bf16.msra.mxu0 %v2977
    %3908 = vmatmul.bf16.gmra.mxu0 %v1180
    %v3909 = vpop.f32.mrf.mxu0
    %v3910 = vadd.f32 %v3897, %v3909
    %v3911 = vpop.f32.mrf.mxu0
    %3912 = vdwg.mxu0
    %3913 = vmatpush.bf16.msra.mxu0 %v3097
    %3914 = vmatpush.bf16.msra.mxu0 %v3089
    %3915 = vmatpush.bf16.msra.mxu0 %v3081
    %3916 = vmatpush.bf16.msra.mxu0 %v3073
    %3917 = vmatpush.bf16.msra.mxu0 %v3065
    %3918 = vmatpush.bf16.msra.mxu0 %v3057
    %3919 = vmatpush.bf16.msra.mxu0 %v3049
    %3920 = vmatpush.bf16.msra.mxu0 %v3041
    %3921 = vmatmul.bf16.gmra.mxu0 %v1181
    %v3922 = vpop.f32.mrf.mxu0
    %v3923 = vadd.f32 %v3910, %v3922
    %v3924 = vpop.f32.mrf.mxu0
    %3925 = vdwg.mxu0
    %3926 = vmatpush.bf16.msra.mxu0 %v3161
    %3927 = vmatpush.bf16.msra.mxu0 %v3153
    %3928 = vmatpush.bf16.msra.mxu0 %v3145
    %3929 = vmatpush.bf16.msra.mxu0 %v3137
    %3930 = vmatpush.bf16.msra.mxu0 %v3129
    %3931 = vmatpush.bf16.msra.mxu0 %v3121
    %3932 = vmatpush.bf16.msra.mxu0 %v3113
    %3933 = vmatpush.bf16.msra.mxu0 %v3105
    %3934 = vmatmul.bf16.gmra.mxu0 %v1182
    %v3935 = vpop.f32.mrf.mxu0
    %v3936 = vadd.f32 %v3923, %v3935
    %v3937 = vpop.f32.mrf.mxu0
    %3938 = vdwg.mxu0
    %3939 = vmatpush.bf16.msra.mxu0 %v3225
    %3940 = vmatpush.bf16.msra.mxu0 %v3217
    %3941 = vmatpush.bf16.msra.mxu0 %v3209
    %3942 = vmatpush.bf16.msra.mxu0 %v3201
    %3943 = vmatpush.bf16.msra.mxu0 %v3193
    %3944 = vmatpush.bf16.msra.mxu0 %v3185
    %3945 = vmatpush.bf16.msra.mxu0 %v3177
    %3946 = vmatpush.bf16.msra.mxu0 %v3169
    %3947 = vmatmul.bf16.gmra.mxu0 %v1183
    %v3948 = vpop.f32.mrf.mxu0
    %v3949 = vadd.f32 %v3936, %v3948
    %v3950 = vpop.f32.mrf.mxu0
    %3951 = vdwg.mxu0
    %3952 = vmatpush.bf16.msra.mxu0 %v2778
    %3953 = vmatpush.bf16.msra.mxu0 %v2770
    %3954 = vmatpush.bf16.msra.mxu0 %v2762
    %3955 = vmatpush.bf16.msra.mxu0 %v2754
    %3956 = vmatpush.bf16.msra.mxu0 %v2746
    %3957 = vmatpush.bf16.msra.mxu0 %v2738
    %3958 = vmatpush.bf16.msra.mxu0 %v2730
    %3959 = vmatpush.bf16.msra.mxu0 %v2722
    %3960 = vmatmul.bf16.gmra.mxu0 %v1176
    %v3961 = vpop.f32.mrf.mxu0
    %v3962 = vadd.f32 %v1121, %v3961
    %v3963 = vpop.f32.mrf.mxu0
    %3964 = vdwg.mxu0
    %3965 = vmatpush.bf16.msra.mxu0 %v2842
    %3966 = vmatpush.bf16.msra.mxu0 %v2834
    %3967 = vmatpush.bf16.msra.mxu0 %v2826
    %3968 = vmatpush.bf16.msra.mxu0 %v2818
    %3969 = vmatpush.bf16.msra.mxu0 %v2810
    %3970 = vmatpush.bf16.msra.mxu0 %v2802
    %3971 = vmatpush.bf16.msra.mxu0 %v2794
    %3972 = vmatpush.bf16.msra.mxu0 %v2786
    %3973 = vmatmul.bf16.gmra.mxu0 %v1177
    %v3974 = vpop.f32.mrf.mxu0
    %v3975 = vadd.f32 %v3962, %v3974
    %v3976 = vpop.f32.mrf.mxu0
    %3977 = vdwg.mxu0
    %3978 = vmatpush.bf16.msra.mxu0 %v2906
    %3979 = vmatpush.bf16.msra.mxu0 %v2898
    %3980 = vmatpush.bf16.msra.mxu0 %v2890
    %3981 = vmatpush.bf16.msra.mxu0 %v2882
    %3982 = vmatpush.bf16.msra.mxu0 %v2874
    %3983 = vmatpush.bf16.msra.mxu0 %v2866
    %3984 = vmatpush.bf16.msra.mxu0 %v2858
    %3985 = vmatpush.bf16.msra.mxu0 %v2850
    %3986 = vmatmul.bf16.gmra.mxu0 %v1178
    %v3987 = vpop.f32.mrf.mxu0
    %v3988 = vadd.f32 %v3975, %v3987
    %v3989 = vpop.f32.mrf.mxu0
    %3990 = vdwg.mxu0
    %3991 = vmatpush.bf16.msra.mxu0 %v2970
    %3992 = vmatpush.bf16.msra.mxu0 %v2962
    %3993 = vmatpush.bf16.msra.mxu0 %v2954
    %3994 = vmatpush.bf16.msra.mxu0 %v2946
    %3995 = vmatpush.bf16.msra.mxu0 %v2938
    %3996 = vmatpush.bf16.msra.mxu0 %v2930
    %3997 = vmatpush.bf16.msra.mxu0 %v2922
    %3998 = vmatpush.bf16.msra.mxu0 %v2914
    %3999 = vmatmul.bf16.gmra.mxu0 %v1179
    %v4000 = vpop.f32.mrf.mxu0
    %v4001 = vadd.f32 %v3988, %v4000
    %v4002 = vpop.f32.mrf.mxu0
    %4003 = vdwg.mxu0
    %4004 = vmatpush.bf16.msra.mxu0 %v3034
    %4005 = vmatpush.bf16.msra.mxu0 %v3026
    %4006 = vmatpush.bf16.msra.mxu0 %v3018
    %4007 = vmatpush.bf16.msra.mxu0 %v3010
    %4008 = vmatpush.bf16.msra.mxu0 %v3002
    %4009 = vmatpush.bf16.msra.mxu0 %v2994
    %4010 = vmatpush.bf16.msra.mxu0 %v2986
    %4011 = vmatpush.bf16.msra.mxu0 %v2978
    %4012 = vmatmul.bf16.gmra.mxu0 %v1180
    %v4013 = vpop.f32.mrf.mxu0
    %v4014 = vadd.f32 %v4001, %v4013
    %v4015 = vpop.f32.mrf.mxu0
    %4016 = vdwg.mxu0
    %4017 = vmatpush.bf16.msra.mxu0 %v3098
    %4018 = vmatpush.bf16.msra.mxu0 %v3090
    %4019 = vmatpush.bf16.msra.mxu0 %v3082
    %4020 = vmatpush.bf16.msra.mxu0 %v3074
    %4021 = vmatpush.bf16.msra.mxu0 %v3066
    %4022 = vmatpush.bf16.msra.mxu0 %v3058
    %4023 = vmatpush.bf16.msra.mxu0 %v3050
    %4024 = vmatpush.bf16.msra.mxu0 %v3042
    %4025 = vmatmul.bf16.gmra.mxu0 %v1181
    %v4026 = vpop.f32.mrf.mxu0
    %v4027 = vadd.f32 %v4014, %v4026
    %v4028 = vpop.f32.mrf.mxu0
    %4029 = vdwg.mxu0
    %4030 = vmatpush.bf16.msra.mxu0 %v3162
    %4031 = vmatpush.bf16.msra.mxu0 %v3154
    %4032 = vmatpush.bf16.msra.mxu0 %v3146
    %4033 = vmatpush.bf16.msra.mxu0 %v3138
    %4034 = vmatpush.bf16.msra.mxu0 %v3130
    %4035 = vmatpush.bf16.msra.mxu0 %v3122
    %4036 = vmatpush.bf16.msra.mxu0 %v3114
    %4037 = vmatpush.bf16.msra.mxu0 %v3106
    %4038 = vmatmul.bf16.gmra.mxu0 %v1182
    %v4039 = vpop.f32.mrf.mxu0
    %v4040 = vadd.f32 %v4027, %v4039
    %v4041 = vpop.f32.mrf.mxu0
    %4042 = vdwg.mxu0
    %4043 = vmatpush.bf16.msra.mxu0 %v3226
    %4044 = vmatpush.bf16.msra.mxu0 %v3218
    %4045 = vmatpush.bf16.msra.mxu0 %v3210
    %4046 = vmatpush.bf16.msra.mxu0 %v3202
    %4047 = vmatpush.bf16.msra.mxu0 %v3194
    %4048 = vmatpush.bf16.msra.mxu0 %v3186
    %4049 = vmatpush.bf16.msra.mxu0 %v3178
    %4050 = vmatpush.bf16.msra.mxu0 %v3170
    %4051 = vmatmul.bf16.gmra.mxu0 %v1183
    %v4052 = vpop.f32.mrf.mxu0
    %v4053 = vadd.f32 %v4040, %v4052
    %v4054 = vpop.f32.mrf.mxu0
    %4055 = vdwg.mxu0
    %4056 = vmatpush.bf16.msra.mxu0 %v2779
    %4057 = vmatpush.bf16.msra.mxu0 %v2771
    %4058 = vmatpush.bf16.msra.mxu0 %v2763
    %4059 = vmatpush.bf16.msra.mxu0 %v2755
    %4060 = vmatpush.bf16.msra.mxu0 %v2747
    %4061 = vmatpush.bf16.msra.mxu0 %v2739
    %4062 = vmatpush.bf16.msra.mxu0 %v2731
    %4063 = vmatpush.bf16.msra.mxu0 %v2723
    %4064 = vmatmul.bf16.gmra.mxu0 %v1176
    %v4065 = vpop.f32.mrf.mxu0
    %v4066 = vadd.f32 %v1122, %v4065
    %v4067 = vpop.f32.mrf.mxu0
    %4068 = vdwg.mxu0
    %4069 = vmatpush.bf16.msra.mxu0 %v2843
    %4070 = vmatpush.bf16.msra.mxu0 %v2835
    %4071 = vmatpush.bf16.msra.mxu0 %v2827
    %4072 = vmatpush.bf16.msra.mxu0 %v2819
    %4073 = vmatpush.bf16.msra.mxu0 %v2811
    %4074 = vmatpush.bf16.msra.mxu0 %v2803
    %4075 = vmatpush.bf16.msra.mxu0 %v2795
    %4076 = vmatpush.bf16.msra.mxu0 %v2787
    %4077 = vmatmul.bf16.gmra.mxu0 %v1177
    %v4078 = vpop.f32.mrf.mxu0
    %v4079 = vadd.f32 %v4066, %v4078
    %v4080 = vpop.f32.mrf.mxu0
    %4081 = vdwg.mxu0
    %4082 = vmatpush.bf16.msra.mxu0 %v2907
    %4083 = vmatpush.bf16.msra.mxu0 %v2899
    %4084 = vmatpush.bf16.msra.mxu0 %v2891
    %4085 = vmatpush.bf16.msra.mxu0 %v2883
    %4086 = vmatpush.bf16.msra.mxu0 %v2875
    %4087 = vmatpush.bf16.msra.mxu0 %v2867
    %4088 = vmatpush.bf16.msra.mxu0 %v2859
    %4089 = vmatpush.bf16.msra.mxu0 %v2851
    %4090 = vmatmul.bf16.gmra.mxu0 %v1178
    %v4091 = vpop.f32.mrf.mxu0
    %v4092 = vadd.f32 %v4079, %v4091
    %v4093 = vpop.f32.mrf.mxu0
    %4094 = vdwg.mxu0
    %4095 = vmatpush.bf16.msra.mxu0 %v2971
    %4096 = vmatpush.bf16.msra.mxu0 %v2963
    %4097 = vmatpush.bf16.msra.mxu0 %v2955
    %4098 = vmatpush.bf16.msra.mxu0 %v2947
    %4099 = vmatpush.bf16.msra.mxu0 %v2939
    %4100 = vmatpush.bf16.msra.mxu0 %v2931
    %4101 = vmatpush.bf16.msra.mxu0 %v2923
    %4102 = vmatpush.bf16.msra.mxu0 %v2915
    %4103 = vmatmul.bf16.gmra.mxu0 %v1179
    %v4104 = vpop.f32.mrf.mxu0
    %v4105 = vadd.f32 %v4092, %v4104
    %v4106 = vpop.f32.mrf.mxu0
    %4107 = vdwg.mxu0
    %4108 = vmatpush.bf16.msra.mxu0 %v3035
    %4109 = vmatpush.bf16.msra.mxu0 %v3027
    %4110 = vmatpush.bf16.msra.mxu0 %v3019
    %4111 = vmatpush.bf16.msra.mxu0 %v3011
    %4112 = vmatpush.bf16.msra.mxu0 %v3003
    %4113 = vmatpush.bf16.msra.mxu0 %v2995
    %4114 = vmatpush.bf16.msra.mxu0 %v2987
    %4115 = vmatpush.bf16.msra.mxu0 %v2979
    %4116 = vmatmul.bf16.gmra.mxu0 %v1180
    %v4117 = vpop.f32.mrf.mxu0
    %v4118 = vadd.f32 %v4105, %v4117
    %v4119 = vpop.f32.mrf.mxu0
    %4120 = vdwg.mxu0
    %4121 = vmatpush.bf16.msra.mxu0 %v3099
    %4122 = vmatpush.bf16.msra.mxu0 %v3091
    %4123 = vmatpush.bf16.msra.mxu0 %v3083
    %4124 = vmatpush.bf16.msra.mxu0 %v3075
    %4125 = vmatpush.bf16.msra.mxu0 %v3067
    %4126 = vmatpush.bf16.msra.mxu0 %v3059
    %4127 = vmatpush.bf16.msra.mxu0 %v3051
    %4128 = vmatpush.bf16.msra.mxu0 %v3043
    %4129 = vmatmul.bf16.gmra.mxu0 %v1181
    %v4130 = vpop.f32.mrf.mxu0
    %v4131 = vadd.f32 %v4118, %v4130
    %v4132 = vpop.f32.mrf.mxu0
    %4133 = vdwg.mxu0
    %4134 = vmatpush.bf16.msra.mxu0 %v3163
    %4135 = vmatpush.bf16.msra.mxu0 %v3155
    %4136 = vmatpush.bf16.msra.mxu0 %v3147
    %4137 = vmatpush.bf16.msra.mxu0 %v3139
    %4138 = vmatpush.bf16.msra.mxu0 %v3131
    %4139 = vmatpush.bf16.msra.mxu0 %v3123
    %4140 = vmatpush.bf16.msra.mxu0 %v3115
    %4141 = vmatpush.bf16.msra.mxu0 %v3107
    %4142 = vmatmul.bf16.gmra.mxu0 %v1182
    %v4143 = vpop.f32.mrf.mxu0
    %v4144 = vadd.f32 %v4131, %v4143
    %v4145 = vpop.f32.mrf.mxu0
    %4146 = vdwg.mxu0
    %4147 = vmatpush.bf16.msra.mxu0 %v3227
    %4148 = vmatpush.bf16.msra.mxu0 %v3219
    %4149 = vmatpush.bf16.msra.mxu0 %v3211
    %4150 = vmatpush.bf16.msra.mxu0 %v3203
    %4151 = vmatpush.bf16.msra.mxu0 %v3195
    %4152 = vmatpush.bf16.msra.mxu0 %v3187
    %4153 = vmatpush.bf16.msra.mxu0 %v3179
    %4154 = vmatpush.bf16.msra.mxu0 %v3171
    %4155 = vmatmul.bf16.gmra.mxu0 %v1183
    %v4156 = vpop.f32.mrf.mxu0
    %v4157 = vadd.f32 %v4144, %v4156
    %v4158 = vpop.f32.mrf.mxu0
    %4159 = vdwg.mxu0
    %4160 = vmatpush.bf16.msra.mxu0 %v2780
    %4161 = vmatpush.bf16.msra.mxu0 %v2772
    %4162 = vmatpush.bf16.msra.mxu0 %v2764
    %4163 = vmatpush.bf16.msra.mxu0 %v2756
    %4164 = vmatpush.bf16.msra.mxu0 %v2748
    %4165 = vmatpush.bf16.msra.mxu0 %v2740
    %4166 = vmatpush.bf16.msra.mxu0 %v2732
    %4167 = vmatpush.bf16.msra.mxu0 %v2724
    %4168 = vmatmul.bf16.gmra.mxu0 %v1176
    %v4169 = vpop.f32.mrf.mxu0
    %v4170 = vadd.f32 %v1123, %v4169
    %v4171 = vpop.f32.mrf.mxu0
    %4172 = vdwg.mxu0
    %4173 = vmatpush.bf16.msra.mxu0 %v2844
    %4174 = vmatpush.bf16.msra.mxu0 %v2836
    %4175 = vmatpush.bf16.msra.mxu0 %v2828
    %4176 = vmatpush.bf16.msra.mxu0 %v2820
    %4177 = vmatpush.bf16.msra.mxu0 %v2812
    %4178 = vmatpush.bf16.msra.mxu0 %v2804
    %4179 = vmatpush.bf16.msra.mxu0 %v2796
    %4180 = vmatpush.bf16.msra.mxu0 %v2788
    %4181 = vmatmul.bf16.gmra.mxu0 %v1177
    %v4182 = vpop.f32.mrf.mxu0
    %v4183 = vadd.f32 %v4170, %v4182
    %v4184 = vpop.f32.mrf.mxu0
    %4185 = vdwg.mxu0
    %4186 = vmatpush.bf16.msra.mxu0 %v2908
    %4187 = vmatpush.bf16.msra.mxu0 %v2900
    %4188 = vmatpush.bf16.msra.mxu0 %v2892
    %4189 = vmatpush.bf16.msra.mxu0 %v2884
    %4190 = vmatpush.bf16.msra.mxu0 %v2876
    %4191 = vmatpush.bf16.msra.mxu0 %v2868
    %4192 = vmatpush.bf16.msra.mxu0 %v2860
    %4193 = vmatpush.bf16.msra.mxu0 %v2852
    %4194 = vmatmul.bf16.gmra.mxu0 %v1178
    %v4195 = vpop.f32.mrf.mxu0
    %v4196 = vadd.f32 %v4183, %v4195
    %v4197 = vpop.f32.mrf.mxu0
    %4198 = vdwg.mxu0
    %4199 = vmatpush.bf16.msra.mxu0 %v2972
    %4200 = vmatpush.bf16.msra.mxu0 %v2964
    %4201 = vmatpush.bf16.msra.mxu0 %v2956
    %4202 = vmatpush.bf16.msra.mxu0 %v2948
    %4203 = vmatpush.bf16.msra.mxu0 %v2940
    %4204 = vmatpush.bf16.msra.mxu0 %v2932
    %4205 = vmatpush.bf16.msra.mxu0 %v2924
    %4206 = vmatpush.bf16.msra.mxu0 %v2916
    %4207 = vmatmul.bf16.gmra.mxu0 %v1179
    %v4208 = vpop.f32.mrf.mxu0
    %v4209 = vadd.f32 %v4196, %v4208
    %v4210 = vpop.f32.mrf.mxu0
    %4211 = vdwg.mxu0
    %4212 = vmatpush.bf16.msra.mxu0 %v3036
    %4213 = vmatpush.bf16.msra.mxu0 %v3028
    %4214 = vmatpush.bf16.msra.mxu0 %v3020
    %4215 = vmatpush.bf16.msra.mxu0 %v3012
    %4216 = vmatpush.bf16.msra.mxu0 %v3004
    %4217 = vmatpush.bf16.msra.mxu0 %v2996
    %4218 = vmatpush.bf16.msra.mxu0 %v2988
    %4219 = vmatpush.bf16.msra.mxu0 %v2980
    %4220 = vmatmul.bf16.gmra.mxu0 %v1180
    %v4221 = vpop.f32.mrf.mxu0
    %v4222 = vadd.f32 %v4209, %v4221
    %v4223 = vpop.f32.mrf.mxu0
    %4224 = vdwg.mxu0
    %4225 = vmatpush.bf16.msra.mxu0 %v3100
    %4226 = vmatpush.bf16.msra.mxu0 %v3092
    %4227 = vmatpush.bf16.msra.mxu0 %v3084
    %4228 = vmatpush.bf16.msra.mxu0 %v3076
    %4229 = vmatpush.bf16.msra.mxu0 %v3068
    %4230 = vmatpush.bf16.msra.mxu0 %v3060
    %4231 = vmatpush.bf16.msra.mxu0 %v3052
    %4232 = vmatpush.bf16.msra.mxu0 %v3044
    %4233 = vmatmul.bf16.gmra.mxu0 %v1181
    %v4234 = vpop.f32.mrf.mxu0
    %v4235 = vadd.f32 %v4222, %v4234
    %v4236 = vpop.f32.mrf.mxu0
    %4237 = vdwg.mxu0
    %4238 = vmatpush.bf16.msra.mxu0 %v3164
    %4239 = vmatpush.bf16.msra.mxu0 %v3156
    %4240 = vmatpush.bf16.msra.mxu0 %v3148
    %4241 = vmatpush.bf16.msra.mxu0 %v3140
    %4242 = vmatpush.bf16.msra.mxu0 %v3132
    %4243 = vmatpush.bf16.msra.mxu0 %v3124
    %4244 = vmatpush.bf16.msra.mxu0 %v3116
    %4245 = vmatpush.bf16.msra.mxu0 %v3108
    %4246 = vmatmul.bf16.gmra.mxu0 %v1182
    %v4247 = vpop.f32.mrf.mxu0
    %v4248 = vadd.f32 %v4235, %v4247
    %v4249 = vpop.f32.mrf.mxu0
    %4250 = vdwg.mxu0
    %4251 = vmatpush.bf16.msra.mxu0 %v3228
    %4252 = vmatpush.bf16.msra.mxu0 %v3220
    %4253 = vmatpush.bf16.msra.mxu0 %v3212
    %4254 = vmatpush.bf16.msra.mxu0 %v3204
    %4255 = vmatpush.bf16.msra.mxu0 %v3196
    %4256 = vmatpush.bf16.msra.mxu0 %v3188
    %4257 = vmatpush.bf16.msra.mxu0 %v3180
    %4258 = vmatpush.bf16.msra.mxu0 %v3172
    %4259 = vmatmul.bf16.gmra.mxu0 %v1183
    %v4260 = vpop.f32.mrf.mxu0
    %v4261 = vadd.f32 %v4248, %v4260
    %v4262 = vpop.f32.mrf.mxu0
    %4263 = vdwg.mxu0
    %4264 = vmatpush.bf16.msra.mxu0 %v2781
    %4265 = vmatpush.bf16.msra.mxu0 %v2773
    %4266 = vmatpush.bf16.msra.mxu0 %v2765
    %4267 = vmatpush.bf16.msra.mxu0 %v2757
    %4268 = vmatpush.bf16.msra.mxu0 %v2749
    %4269 = vmatpush.bf16.msra.mxu0 %v2741
    %4270 = vmatpush.bf16.msra.mxu0 %v2733
    %4271 = vmatpush.bf16.msra.mxu0 %v2725
    %4272 = vmatmul.bf16.gmra.mxu0 %v1176
    %v4273 = vpop.f32.mrf.mxu0
    %v4274 = vadd.f32 %v1124, %v4273
    %v4275 = vpop.f32.mrf.mxu0
    %4276 = vdwg.mxu0
    %4277 = vmatpush.bf16.msra.mxu0 %v2845
    %4278 = vmatpush.bf16.msra.mxu0 %v2837
    %4279 = vmatpush.bf16.msra.mxu0 %v2829
    %4280 = vmatpush.bf16.msra.mxu0 %v2821
    %4281 = vmatpush.bf16.msra.mxu0 %v2813
    %4282 = vmatpush.bf16.msra.mxu0 %v2805
    %4283 = vmatpush.bf16.msra.mxu0 %v2797
    %4284 = vmatpush.bf16.msra.mxu0 %v2789
    %4285 = vmatmul.bf16.gmra.mxu0 %v1177
    %v4286 = vpop.f32.mrf.mxu0
    %v4287 = vadd.f32 %v4274, %v4286
    %v4288 = vpop.f32.mrf.mxu0
    %4289 = vdwg.mxu0
    %4290 = vmatpush.bf16.msra.mxu0 %v2909
    %4291 = vmatpush.bf16.msra.mxu0 %v2901
    %4292 = vmatpush.bf16.msra.mxu0 %v2893
    %4293 = vmatpush.bf16.msra.mxu0 %v2885
    %4294 = vmatpush.bf16.msra.mxu0 %v2877
    %4295 = vmatpush.bf16.msra.mxu0 %v2869
    %4296 = vmatpush.bf16.msra.mxu0 %v2861
    %4297 = vmatpush.bf16.msra.mxu0 %v2853
    %4298 = vmatmul.bf16.gmra.mxu0 %v1178
    %v4299 = vpop.f32.mrf.mxu0
    %v4300 = vadd.f32 %v4287, %v4299
    %v4301 = vpop.f32.mrf.mxu0
    %4302 = vdwg.mxu0
    %4303 = vmatpush.bf16.msra.mxu0 %v2973
    %4304 = vmatpush.bf16.msra.mxu0 %v2965
    %4305 = vmatpush.bf16.msra.mxu0 %v2957
    %4306 = vmatpush.bf16.msra.mxu0 %v2949
    %4307 = vmatpush.bf16.msra.mxu0 %v2941
    %4308 = vmatpush.bf16.msra.mxu0 %v2933
    %4309 = vmatpush.bf16.msra.mxu0 %v2925
    %4310 = vmatpush.bf16.msra.mxu0 %v2917
    %4311 = vmatmul.bf16.gmra.mxu0 %v1179
    %v4312 = vpop.f32.mrf.mxu0
    %v4313 = vadd.f32 %v4300, %v4312
    %v4314 = vpop.f32.mrf.mxu0
    %4315 = vdwg.mxu0
    %4316 = vmatpush.bf16.msra.mxu0 %v3037
    %4317 = vmatpush.bf16.msra.mxu0 %v3029
    %4318 = vmatpush.bf16.msra.mxu0 %v3021
    %4319 = vmatpush.bf16.msra.mxu0 %v3013
    %4320 = vmatpush.bf16.msra.mxu0 %v3005
    %4321 = vmatpush.bf16.msra.mxu0 %v2997
    %4322 = vmatpush.bf16.msra.mxu0 %v2989
    %4323 = vmatpush.bf16.msra.mxu0 %v2981
    %4324 = vmatmul.bf16.gmra.mxu0 %v1180
    %v4325 = vpop.f32.mrf.mxu0
    %v4326 = vadd.f32 %v4313, %v4325
    %v4327 = vpop.f32.mrf.mxu0
    %4328 = vdwg.mxu0
    %4329 = vmatpush.bf16.msra.mxu0 %v3101
    %4330 = vmatpush.bf16.msra.mxu0 %v3093
    %4331 = vmatpush.bf16.msra.mxu0 %v3085
    %4332 = vmatpush.bf16.msra.mxu0 %v3077
    %4333 = vmatpush.bf16.msra.mxu0 %v3069
    %4334 = vmatpush.bf16.msra.mxu0 %v3061
    %4335 = vmatpush.bf16.msra.mxu0 %v3053
    %4336 = vmatpush.bf16.msra.mxu0 %v3045
    %4337 = vmatmul.bf16.gmra.mxu0 %v1181
    %v4338 = vpop.f32.mrf.mxu0
    %v4339 = vadd.f32 %v4326, %v4338
    %v4340 = vpop.f32.mrf.mxu0
    %4341 = vdwg.mxu0
    %4342 = vmatpush.bf16.msra.mxu0 %v3165
    %4343 = vmatpush.bf16.msra.mxu0 %v3157
    %4344 = vmatpush.bf16.msra.mxu0 %v3149
    %4345 = vmatpush.bf16.msra.mxu0 %v3141
    %4346 = vmatpush.bf16.msra.mxu0 %v3133
    %4347 = vmatpush.bf16.msra.mxu0 %v3125
    %4348 = vmatpush.bf16.msra.mxu0 %v3117
    %4349 = vmatpush.bf16.msra.mxu0 %v3109
    %4350 = vmatmul.bf16.gmra.mxu0 %v1182
    %v4351 = vpop.f32.mrf.mxu0
    %v4352 = vadd.f32 %v4339, %v4351
    %v4353 = vpop.f32.mrf.mxu0
    %4354 = vdwg.mxu0
    %4355 = vmatpush.bf16.msra.mxu0 %v3229
    %4356 = vmatpush.bf16.msra.mxu0 %v3221
    %4357 = vmatpush.bf16.msra.mxu0 %v3213
    %4358 = vmatpush.bf16.msra.mxu0 %v3205
    %4359 = vmatpush.bf16.msra.mxu0 %v3197
    %4360 = vmatpush.bf16.msra.mxu0 %v3189
    %4361 = vmatpush.bf16.msra.mxu0 %v3181
    %4362 = vmatpush.bf16.msra.mxu0 %v3173
    %4363 = vmatmul.bf16.gmra.mxu0 %v1183
    %v4364 = vpop.f32.mrf.mxu0
    %v4365 = vadd.f32 %v4352, %v4364
    %v4366 = vpop.f32.mrf.mxu0
    %4367 = vdwg.mxu0
    %4368 = vmatpush.bf16.msra.mxu0 %v2782
    %4369 = vmatpush.bf16.msra.mxu0 %v2774
    %4370 = vmatpush.bf16.msra.mxu0 %v2766
    %4371 = vmatpush.bf16.msra.mxu0 %v2758
    %4372 = vmatpush.bf16.msra.mxu0 %v2750
    %4373 = vmatpush.bf16.msra.mxu0 %v2742
    %4374 = vmatpush.bf16.msra.mxu0 %v2734
    %4375 = vmatpush.bf16.msra.mxu0 %v2726
    %4376 = vmatmul.bf16.gmra.mxu0 %v1176
    %v4377 = vpop.f32.mrf.mxu0
    %v4378 = vadd.f32 %v1125, %v4377
    %v4379 = vpop.f32.mrf.mxu0
    %4380 = vdwg.mxu0
    %4381 = vmatpush.bf16.msra.mxu0 %v2846
    %4382 = vmatpush.bf16.msra.mxu0 %v2838
    %4383 = vmatpush.bf16.msra.mxu0 %v2830
    %4384 = vmatpush.bf16.msra.mxu0 %v2822
    %4385 = vmatpush.bf16.msra.mxu0 %v2814
    %4386 = vmatpush.bf16.msra.mxu0 %v2806
    %4387 = vmatpush.bf16.msra.mxu0 %v2798
    %4388 = vmatpush.bf16.msra.mxu0 %v2790
    %4389 = vmatmul.bf16.gmra.mxu0 %v1177
    %v4390 = vpop.f32.mrf.mxu0
    %v4391 = vadd.f32 %v4378, %v4390
    %v4392 = vpop.f32.mrf.mxu0
    %4393 = vdwg.mxu0
    %4394 = vmatpush.bf16.msra.mxu0 %v2910
    %4395 = vmatpush.bf16.msra.mxu0 %v2902
    %4396 = vmatpush.bf16.msra.mxu0 %v2894
    %4397 = vmatpush.bf16.msra.mxu0 %v2886
    %4398 = vmatpush.bf16.msra.mxu0 %v2878
    %4399 = vmatpush.bf16.msra.mxu0 %v2870
    %4400 = vmatpush.bf16.msra.mxu0 %v2862
    %4401 = vmatpush.bf16.msra.mxu0 %v2854
    %4402 = vmatmul.bf16.gmra.mxu0 %v1178
    %v4403 = vpop.f32.mrf.mxu0
    %v4404 = vadd.f32 %v4391, %v4403
    %v4405 = vpop.f32.mrf.mxu0
    %4406 = vdwg.mxu0
    %4407 = vmatpush.bf16.msra.mxu0 %v2974
    %4408 = vmatpush.bf16.msra.mxu0 %v2966
    %4409 = vmatpush.bf16.msra.mxu0 %v2958
    %4410 = vmatpush.bf16.msra.mxu0 %v2950
    %4411 = vmatpush.bf16.msra.mxu0 %v2942
    %4412 = vmatpush.bf16.msra.mxu0 %v2934
    %4413 = vmatpush.bf16.msra.mxu0 %v2926
    %4414 = vmatpush.bf16.msra.mxu0 %v2918
    %4415 = vmatmul.bf16.gmra.mxu0 %v1179
    %v4416 = vpop.f32.mrf.mxu0
    %v4417 = vadd.f32 %v4404, %v4416
    %v4418 = vpop.f32.mrf.mxu0
    %4419 = vdwg.mxu0
    %4420 = vmatpush.bf16.msra.mxu0 %v3038
    %4421 = vmatpush.bf16.msra.mxu0 %v3030
    %4422 = vmatpush.bf16.msra.mxu0 %v3022
    %4423 = vmatpush.bf16.msra.mxu0 %v3014
    %4424 = vmatpush.bf16.msra.mxu0 %v3006
    %4425 = vmatpush.bf16.msra.mxu0 %v2998
    %4426 = vmatpush.bf16.msra.mxu0 %v2990
    %4427 = vmatpush.bf16.msra.mxu0 %v2982
    %4428 = vmatmul.bf16.gmra.mxu0 %v1180
    %v4429 = vpop.f32.mrf.mxu0
    %v4430 = vadd.f32 %v4417, %v4429
    %v4431 = vpop.f32.mrf.mxu0
    %4432 = vdwg.mxu0
    %4433 = vmatpush.bf16.msra.mxu0 %v3102
    %4434 = vmatpush.bf16.msra.mxu0 %v3094
    %4435 = vmatpush.bf16.msra.mxu0 %v3086
    %4436 = vmatpush.bf16.msra.mxu0 %v3078
    %4437 = vmatpush.bf16.msra.mxu0 %v3070
    %4438 = vmatpush.bf16.msra.mxu0 %v3062
    %4439 = vmatpush.bf16.msra.mxu0 %v3054
    %4440 = vmatpush.bf16.msra.mxu0 %v3046
    %4441 = vmatmul.bf16.gmra.mxu0 %v1181
    %v4442 = vpop.f32.mrf.mxu0
    %v4443 = vadd.f32 %v4430, %v4442
    %v4444 = vpop.f32.mrf.mxu0
    %4445 = vdwg.mxu0
    %4446 = vmatpush.bf16.msra.mxu0 %v3166
    %4447 = vmatpush.bf16.msra.mxu0 %v3158
    %4448 = vmatpush.bf16.msra.mxu0 %v3150
    %4449 = vmatpush.bf16.msra.mxu0 %v3142
    %4450 = vmatpush.bf16.msra.mxu0 %v3134
    %4451 = vmatpush.bf16.msra.mxu0 %v3126
    %4452 = vmatpush.bf16.msra.mxu0 %v3118
    %4453 = vmatpush.bf16.msra.mxu0 %v3110
    %4454 = vmatmul.bf16.gmra.mxu0 %v1182
    %v4455 = vpop.f32.mrf.mxu0
    %v4456 = vadd.f32 %v4443, %v4455
    %v4457 = vpop.f32.mrf.mxu0
    %4458 = vdwg.mxu0
    %4459 = vmatpush.bf16.msra.mxu0 %v3230
    %4460 = vmatpush.bf16.msra.mxu0 %v3222
    %4461 = vmatpush.bf16.msra.mxu0 %v3214
    %4462 = vmatpush.bf16.msra.mxu0 %v3206
    %4463 = vmatpush.bf16.msra.mxu0 %v3198
    %4464 = vmatpush.bf16.msra.mxu0 %v3190
    %4465 = vmatpush.bf16.msra.mxu0 %v3182
    %4466 = vmatpush.bf16.msra.mxu0 %v3174
    %4467 = vmatmul.bf16.gmra.mxu0 %v1183
    %v4468 = vpop.f32.mrf.mxu0
    %v4469 = vadd.f32 %v4456, %v4468
    %v4470 = vpop.f32.mrf.mxu0
    %4471 = vdwg.mxu0
    %4472 = vmatpush.bf16.msra.mxu0 %v2783
    %4473 = vmatpush.bf16.msra.mxu0 %v2775
    %4474 = vmatpush.bf16.msra.mxu0 %v2767
    %4475 = vmatpush.bf16.msra.mxu0 %v2759
    %4476 = vmatpush.bf16.msra.mxu0 %v2751
    %4477 = vmatpush.bf16.msra.mxu0 %v2743
    %4478 = vmatpush.bf16.msra.mxu0 %v2735
    %4479 = vmatpush.bf16.msra.mxu0 %v2727
    %4480 = vmatmul.bf16.gmra.mxu0 %v1176
    %v4481 = vpop.f32.mrf.mxu0
    %v4482 = vadd.f32 %v1126, %v4481
    %v4483 = vpop.f32.mrf.mxu0
    %4484 = vdwg.mxu0
    %4485 = vmatpush.bf16.msra.mxu0 %v2847
    %4486 = vmatpush.bf16.msra.mxu0 %v2839
    %4487 = vmatpush.bf16.msra.mxu0 %v2831
    %4488 = vmatpush.bf16.msra.mxu0 %v2823
    %4489 = vmatpush.bf16.msra.mxu0 %v2815
    %4490 = vmatpush.bf16.msra.mxu0 %v2807
    %4491 = vmatpush.bf16.msra.mxu0 %v2799
    %4492 = vmatpush.bf16.msra.mxu0 %v2791
    %4493 = vmatmul.bf16.gmra.mxu0 %v1177
    %v4494 = vpop.f32.mrf.mxu0
    %v4495 = vadd.f32 %v4482, %v4494
    %v4496 = vpop.f32.mrf.mxu0
    %4497 = vdwg.mxu0
    %4498 = vmatpush.bf16.msra.mxu0 %v2911
    %4499 = vmatpush.bf16.msra.mxu0 %v2903
    %4500 = vmatpush.bf16.msra.mxu0 %v2895
    %4501 = vmatpush.bf16.msra.mxu0 %v2887
    %4502 = vmatpush.bf16.msra.mxu0 %v2879
    %4503 = vmatpush.bf16.msra.mxu0 %v2871
    %4504 = vmatpush.bf16.msra.mxu0 %v2863
    %4505 = vmatpush.bf16.msra.mxu0 %v2855
    %4506 = vmatmul.bf16.gmra.mxu0 %v1178
    %v4507 = vpop.f32.mrf.mxu0
    %v4508 = vadd.f32 %v4495, %v4507
    %v4509 = vpop.f32.mrf.mxu0
    %4510 = vdwg.mxu0
    %4511 = vmatpush.bf16.msra.mxu0 %v2975
    %4512 = vmatpush.bf16.msra.mxu0 %v2967
    %4513 = vmatpush.bf16.msra.mxu0 %v2959
    %4514 = vmatpush.bf16.msra.mxu0 %v2951
    %4515 = vmatpush.bf16.msra.mxu0 %v2943
    %4516 = vmatpush.bf16.msra.mxu0 %v2935
    %4517 = vmatpush.bf16.msra.mxu0 %v2927
    %4518 = vmatpush.bf16.msra.mxu0 %v2919
    %4519 = vmatmul.bf16.gmra.mxu0 %v1179
    %v4520 = vpop.f32.mrf.mxu0
    %v4521 = vadd.f32 %v4508, %v4520
    %v4522 = vpop.f32.mrf.mxu0
    %4523 = vdwg.mxu0
    %4524 = vmatpush.bf16.msra.mxu0 %v3039
    %4525 = vmatpush.bf16.msra.mxu0 %v3031
    %4526 = vmatpush.bf16.msra.mxu0 %v3023
    %4527 = vmatpush.bf16.msra.mxu0 %v3015
    %4528 = vmatpush.bf16.msra.mxu0 %v3007
    %4529 = vmatpush.bf16.msra.mxu0 %v2999
    %4530 = vmatpush.bf16.msra.mxu0 %v2991
    %4531 = vmatpush.bf16.msra.mxu0 %v2983
    %4532 = vmatmul.bf16.gmra.mxu0 %v1180
    %v4533 = vpop.f32.mrf.mxu0
    %v4534 = vadd.f32 %v4521, %v4533
    %v4535 = vpop.f32.mrf.mxu0
    %4536 = vdwg.mxu0
    %4537 = vmatpush.bf16.msra.mxu0 %v3103
    %4538 = vmatpush.bf16.msra.mxu0 %v3095
    %4539 = vmatpush.bf16.msra.mxu0 %v3087
    %4540 = vmatpush.bf16.msra.mxu0 %v3079
    %4541 = vmatpush.bf16.msra.mxu0 %v3071
    %4542 = vmatpush.bf16.msra.mxu0 %v3063
    %4543 = vmatpush.bf16.msra.mxu0 %v3055
    %4544 = vmatpush.bf16.msra.mxu0 %v3047
    %4545 = vmatmul.bf16.gmra.mxu0 %v1181
    %v4546 = vpop.f32.mrf.mxu0
    %v4547 = vadd.f32 %v4534, %v4546
    %v4548 = vpop.f32.mrf.mxu0
    %4549 = vdwg.mxu0
    %4550 = vmatpush.bf16.msra.mxu0 %v3167
    %4551 = vmatpush.bf16.msra.mxu0 %v3159
    %4552 = vmatpush.bf16.msra.mxu0 %v3151
    %4553 = vmatpush.bf16.msra.mxu0 %v3143
    %4554 = vmatpush.bf16.msra.mxu0 %v3135
    %4555 = vmatpush.bf16.msra.mxu0 %v3127
    %4556 = vmatpush.bf16.msra.mxu0 %v3119
    %4557 = vmatpush.bf16.msra.mxu0 %v3111
    %4558 = vmatmul.bf16.gmra.mxu0 %v1182
    %v4559 = vpop.f32.mrf.mxu0
    %v4560 = vadd.f32 %v4547, %v4559
    %v4561 = vpop.f32.mrf.mxu0
    %4562 = vdwg.mxu0
    %4563 = vmatpush.bf16.msra.mxu0 %v3231
    %4564 = vmatpush.bf16.msra.mxu0 %v3223
    %4565 = vmatpush.bf16.msra.mxu0 %v3215
    %4566 = vmatpush.bf16.msra.mxu0 %v3207
    %4567 = vmatpush.bf16.msra.mxu0 %v3199
    %4568 = vmatpush.bf16.msra.mxu0 %v3191
    %4569 = vmatpush.bf16.msra.mxu0 %v3183
    %4570 = vmatpush.bf16.msra.mxu0 %v3175
    %4571 = vmatmul.bf16.gmra.mxu0 %v1183
    %v4572 = vpop.f32.mrf.mxu0
    %v4573 = vadd.f32 %v4560, %v4572
    %v4574 = vpop.f32.mrf.mxu0
    %4575 = vdwg.mxu0
    %v4576 = vmax.f32 %v3845, 0.0
    %v4577 = vmax.f32 %v3949, 0.0
    %v4578 = vmax.f32 %v4053, 0.0
    %v4579 = vmax.f32 %v4157, 0.0
    %v4580 = vmax.f32 %v4261, 0.0
    %v4581 = vmax.f32 %v4365, 0.0
    %v4582 = vmax.f32 %v4469, 0.0
    %v4583 = vmax.f32 %v4573, 0.0
    %v4584 = vpack.c.bf16 %v4576, %v4576
    %v4585 = vpack.c.bf16 %v4577, %v4577
    %v4586 = vpack.c.bf16 %v4578, %v4578
    %v4587 = vpack.c.bf16 %v4579, %v4579
    %v4588 = vpack.c.bf16 %v4580, %v4580
    %v4589 = vpack.c.bf16 %v4581, %v4581
    %v4590 = vpack.c.bf16 %v4582, %v4582
    %v4591 = vpack.c.bf16 %v4583, %v4583
    %v5104 = vunpack.c.l.b16 %v605
    %v5105 = vunpack.c.h.b16 %v605
    %v5106 = vunpack.c.l.b16 %v606
    %v5107 = vunpack.c.h.b16 %v606
    %v5108 = vunpack.c.l.b16 %v607
    %v5109 = vunpack.c.h.b16 %v607
    %v5110 = vunpack.c.l.b16 %v608
    %v5111 = vunpack.c.h.b16 %v608
    %v5112 = vunpack.c.l.b16 %v609
    %v5113 = vunpack.c.h.b16 %v609
    %v5114 = vunpack.c.l.b16 %v610
    %v5115 = vunpack.c.h.b16 %v610
    %v5116 = vunpack.c.l.b16 %v611
    %v5117 = vunpack.c.h.b16 %v611
    %v5118 = vunpack.c.l.b16 %v612
    %v5119 = vunpack.c.h.b16 %v612
    %v5120 = vunpack.c.l.b16 %v613
    %v5121 = vunpack.c.h.b16 %v613
    %v5122 = vunpack.c.l.b16 %v614
    %v5123 = vunpack.c.h.b16 %v614
    %v5124 = vunpack.c.l.b16 %v615
    %v5125 = vunpack.c.h.b16 %v615
    %v5126 = vunpack.c.l.b16 %v616
    %v5127 = vunpack.c.h.b16 %v616
    %v5128 = vunpack.c.l.b16 %v617
    %v5129 = vunpack.c.h.b16 %v617
    %v5130 = vunpack.c.l.b16 %v618
    %v5131 = vunpack.c.h.b16 %v618
    %v5132 = vunpack.c.l.b16 %v619
    %v5133 = vunpack.c.h.b16 %v619
    %v5134 = vunpack.c.l.b16 %v620
    %v5135 = vunpack.c.h.b16 %v620
    %v5136 = vunpack.c.l.b16 %v621
    %v5137 = vunpack.c.h.b16 %v621
    %v5138 = vunpack.c.l.b16 %v622
    %v5139 = vunpack.c.h.b16 %v622
    %v5140 = vunpack.c.l.b16 %v623
    %v5141 = vunpack.c.h.b16 %v623
    %v5142 = vunpack.c.l.b16 %v624
    %v5143 = vunpack.c.h.b16 %v624
    %v5144 = vunpack.c.l.b16 %v625
    %v5145 = vunpack.c.h.b16 %v625
    %v5146 = vunpack.c.l.b16 %v626
    %v5147 = vunpack.c.h.b16 %v626
    %v5148 = vunpack.c.l.b16 %v627
    %v5149 = vunpack.c.h.b16 %v627
    %v5150 = vunpack.c.l.b16 %v628
    %v5151 = vunpack.c.h.b16 %v628
    %v5152 = vunpack.c.l.b16 %v629
    %v5153 = vunpack.c.h.b16 %v629
    %v5154 = vunpack.c.l.b16 %v630
    %v5155 = vunpack.c.h.b16 %v630
    %v5156 = vunpack.c.l.b16 %v631
    %v5157 = vunpack.c.h.b16 %v631
    %v5158 = vunpack.c.l.b16 %v632
    %v5159 = vunpack.c.h.b16 %v632
    %v5160 = vunpack.c.l.b16 %v633
    %v5161 = vunpack.c.h.b16 %v633
    %v5162 = vunpack.c.l.b16 %v634
    %v5163 = vunpack.c.h.b16 %v634
    %v5164 = vunpack.c.l.b16 %v635
    %v5165 = vunpack.c.h.b16 %v635
    %v5166 = vunpack.c.l.b16 %v636
    %v5167 = vunpack.c.h.b16 %v636
    %v5168 = vunpack.c.l.b16 %v637
    %v5169 = vunpack.c.h.b16 %v637
    %v5170 = vunpack.c.l.b16 %v638
    %v5171 = vunpack.c.h.b16 %v638
    %v5172 = vunpack.c.l.b16 %v639
    %v5173 = vunpack.c.h.b16 %v639
    %v5174 = vunpack.c.l.b16 %v640
    %v5175 = vunpack.c.h.b16 %v640
    %v5176 = vunpack.c.l.b16 %v641
    %v5177 = vunpack.c.h.b16 %v641
    %v5178 = vunpack.c.l.b16 %v642
    %v5179 = vunpack.c.h.b16 %v642
    %v5180 = vunpack.c.l.b16 %v643
    %v5181 = vunpack.c.h.b16 %v643
    %v5182 = vunpack.c.l.b16 %v644
    %v5183 = vunpack.c.h.b16 %v644
    %v5184 = vunpack.c.l.b16 %v645
    %v5185 = vunpack.c.h.b16 %v645
    %v5186 = vunpack.c.l.b16 %v646
    %v5187 = vunpack.c.h.b16 %v646
    %v5188 = vunpack.c.l.b16 %v647
    %v5189 = vunpack.c.h.b16 %v647
    %v5190 = vunpack.c.l.b16 %v648
    %v5191 = vunpack.c.h.b16 %v648
    %v5192 = vunpack.c.l.b16 %v649
    %v5193 = vunpack.c.h.b16 %v649
    %v5194 = vunpack.c.l.b16 %v650
    %v5195 = vunpack.c.h.b16 %v650
    %v5196 = vunpack.c.l.b16 %v651
    %v5197 = vunpack.c.h.b16 %v651
    %v5198 = vunpack.c.l.b16 %v652
    %v5199 = vunpack.c.h.b16 %v652
    %v5200 = vunpack.c.l.b16 %v653
    %v5201 = vunpack.c.h.b16 %v653
    %v5202 = vunpack.c.l.b16 %v654
    %v5203 = vunpack.c.h.b16 %v654
    %v5204 = vunpack.c.l.b16 %v655
    %v5205 = vunpack.c.h.b16 %v655
    %v5206 = vunpack.c.l.b16 %v656
    %v5207 = vunpack.c.h.b16 %v656
    %v5208 = vunpack.c.l.b16 %v657
    %v5209 = vunpack.c.h.b16 %v657
    %v5210 = vunpack.c.l.b16 %v658
    %v5211 = vunpack.c.h.b16 %v658
    %v5212 = vunpack.c.l.b16 %v659
    %v5213 = vunpack.c.h.b16 %v659
    %v5214 = vunpack.c.l.b16 %v660
    %v5215 = vunpack.c.h.b16 %v660
    %v5216 = vunpack.c.l.b16 %v661
    %v5217 = vunpack.c.h.b16 %v661
    %v5218 = vunpack.c.l.b16 %v662
    %v5219 = vunpack.c.h.b16 %v662
    %v5220 = vunpack.c.l.b16 %v663
    %v5221 = vunpack.c.h.b16 %v663
    %v5222 = vunpack.c.l.b16 %v664
    %v5223 = vunpack.c.h.b16 %v664
    %v5224 = vunpack.c.l.b16 %v665
    %v5225 = vunpack.c.h.b16 %v665
    %v5226 = vunpack.c.l.b16 %v666
    %v5227 = vunpack.c.h.b16 %v666
    %v5228 = vunpack.c.l.b16 %v667
    %v5229 = vunpack.c.h.b16 %v667
    %v5230 = vunpack.c.l.b16 %v668
    %v5231 = vunpack.c.h.b16 %v668
    %v5232 = vunpack.c.l.b16 %v669
    %v5233 = vunpack.c.h.b16 %v669
    %v5234 = vunpack.c.l.b16 %v670
    %v5235 = vunpack.c.h.b16 %v670
    %v5236 = vunpack.c.l.b16 %v671
    %v5237 = vunpack.c.h.b16 %v671
    %v5238 = vunpack.c.l.b16 %v672
    %v5239 = vunpack.c.h.b16 %v672
    %v5240 = vunpack.c.l.b16 %v673
    %v5241 = vunpack.c.h.b16 %v673
    %v5242 = vunpack.c.l.b16 %v674
    %v5243 = vunpack.c.h.b16 %v674
    %v5244 = vunpack.c.l.b16 %v675
    %v5245 = vunpack.c.h.b16 %v675
    %v5246 = vunpack.c.l.b16 %v676
    %v5247 = vunpack.c.h.b16 %v676
    %v5248 = vunpack.c.l.b16 %v677
    %v5249 = vunpack.c.h.b16 %v677
    %v5250 = vunpack.c.l.b16 %v678
    %v5251 = vunpack.c.h.b16 %v678
    %v5252 = vunpack.c.l.b16 %v679
    %v5253 = vunpack.c.h.b16 %v679
    %v5254 = vunpack.c.l.b16 %v680
    %v5255 = vunpack.c.h.b16 %v680
    %v5256 = vunpack.c.l.b16 %v681
    %v5257 = vunpack.c.h.b16 %v681
    %v5258 = vunpack.c.l.b16 %v682
    %v5259 = vunpack.c.h.b16 %v682
    %v5260 = vunpack.c.l.b16 %v683
    %v5261 = vunpack.c.h.b16 %v683
    %v5262 = vunpack.c.l.b16 %v684
    %v5263 = vunpack.c.h.b16 %v684
    %v5264 = vunpack.c.l.b16 %v685
    %v5265 = vunpack.c.h.b16 %v685
    %v5266 = vunpack.c.l.b16 %v686
    %v5267 = vunpack.c.h.b16 %v686
    %v5268 = vunpack.c.l.b16 %v687
    %v5269 = vunpack.c.h.b16 %v687
    %v5270 = vunpack.c.l.b16 %v688
    %v5271 = vunpack.c.h.b16 %v688
    %v5272 = vunpack.c.l.b16 %v689
    %v5273 = vunpack.c.h.b16 %v689
    %v5274 = vunpack.c.l.b16 %v690
    %v5275 = vunpack.c.h.b16 %v690
    %v5276 = vunpack.c.l.b16 %v691
    %v5277 = vunpack.c.h.b16 %v691
    %v5278 = vunpack.c.l.b16 %v692
    %v5279 = vunpack.c.h.b16 %v692
    %v5280 = vunpack.c.l.b16 %v693
    %v5281 = vunpack.c.h.b16 %v693
    %v5282 = vunpack.c.l.b16 %v694
    %v5283 = vunpack.c.h.b16 %v694
    %v5284 = vunpack.c.l.b16 %v695
    %v5285 = vunpack.c.h.b16 %v695
    %v5286 = vunpack.c.l.b16 %v696
    %v5287 = vunpack.c.h.b16 %v696
    %v5288 = vunpack.c.l.b16 %v697
    %v5289 = vunpack.c.h.b16 %v697
    %v5290 = vunpack.c.l.b16 %v698
    %v5291 = vunpack.c.h.b16 %v698
    %v5292 = vunpack.c.l.b16 %v699
    %v5293 = vunpack.c.h.b16 %v699
    %v5294 = vunpack.c.l.b16 %v700
    %v5295 = vunpack.c.h.b16 %v700
    %v5296 = vunpack.c.l.b16 %v701
    %v5297 = vunpack.c.h.b16 %v701
    %v5298 = vunpack.c.l.b16 %v702
    %v5299 = vunpack.c.h.b16 %v702
    %v5300 = vunpack.c.l.b16 %v703
    %v5301 = vunpack.c.h.b16 %v703
    %v5302 = vunpack.c.l.b16 %v704
    %v5303 = vunpack.c.h.b16 %v704
    %v5304 = vunpack.c.l.b16 %v705
    %v5305 = vunpack.c.h.b16 %v705
    %v5306 = vunpack.c.l.b16 %v706
    %v5307 = vunpack.c.h.b16 %v706
    %v5308 = vunpack.c.l.b16 %v707
    %v5309 = vunpack.c.h.b16 %v707
    %v5310 = vunpack.c.l.b16 %v708
    %v5311 = vunpack.c.h.b16 %v708
    %v5312 = vunpack.c.l.b16 %v709
    %v5313 = vunpack.c.h.b16 %v709
    %v5314 = vunpack.c.l.b16 %v710
    %v5315 = vunpack.c.h.b16 %v710
    %v5316 = vunpack.c.l.b16 %v711
    %v5317 = vunpack.c.h.b16 %v711
    %v5318 = vunpack.c.l.b16 %v712
    %v5319 = vunpack.c.h.b16 %v712
    %v5320 = vunpack.c.l.b16 %v713
    %v5321 = vunpack.c.h.b16 %v713
    %v5322 = vunpack.c.l.b16 %v714
    %v5323 = vunpack.c.h.b16 %v714
    %v5324 = vunpack.c.l.b16 %v715
    %v5325 = vunpack.c.h.b16 %v715
    %v5326 = vunpack.c.l.b16 %v716
    %v5327 = vunpack.c.h.b16 %v716
    %v5328 = vunpack.c.l.b16 %v717
    %v5329 = vunpack.c.h.b16 %v717
    %v5330 = vunpack.c.l.b16 %v718
    %v5331 = vunpack.c.h.b16 %v718
    %v5332 = vunpack.c.l.b16 %v719
    %v5333 = vunpack.c.h.b16 %v719
    %v5334 = vunpack.c.l.b16 %v720
    %v5335 = vunpack.c.h.b16 %v720
    %v5336 = vunpack.c.l.b16 %v721
    %v5337 = vunpack.c.h.b16 %v721
    %v5338 = vunpack.c.l.b16 %v722
    %v5339 = vunpack.c.h.b16 %v722
    %v5340 = vunpack.c.l.b16 %v723
    %v5341 = vunpack.c.h.b16 %v723
    %v5342 = vunpack.c.l.b16 %v724
    %v5343 = vunpack.c.h.b16 %v724
    %v5344 = vunpack.c.l.b16 %v725
    %v5345 = vunpack.c.h.b16 %v725
    %v5346 = vunpack.c.l.b16 %v726
    %v5347 = vunpack.c.h.b16 %v726
    %v5348 = vunpack.c.l.b16 %v727
    %v5349 = vunpack.c.h.b16 %v727
    %v5350 = vunpack.c.l.b16 %v728
    %v5351 = vunpack.c.h.b16 %v728
    %v5352 = vunpack.c.l.b16 %v729
    %v5353 = vunpack.c.h.b16 %v729
    %v5354 = vunpack.c.l.b16 %v730
    %v5355 = vunpack.c.h.b16 %v730
    %v5356 = vunpack.c.l.b16 %v731
    %v5357 = vunpack.c.h.b16 %v731
    %v5358 = vunpack.c.l.b16 %v732
    %v5359 = vunpack.c.h.b16 %v732
    %v5360 = vunpack.c.l.b16 %v733
    %v5361 = vunpack.c.h.b16 %v733
    %v5362 = vunpack.c.l.b16 %v734
    %v5363 = vunpack.c.h.b16 %v734
    %v5364 = vunpack.c.l.b16 %v735
    %v5365 = vunpack.c.h.b16 %v735
    %v5366 = vunpack.c.l.b16 %v736
    %v5367 = vunpack.c.h.b16 %v736
    %v5368 = vunpack.c.l.b16 %v737
    %v5369 = vunpack.c.h.b16 %v737
    %v5370 = vunpack.c.l.b16 %v738
    %v5371 = vunpack.c.h.b16 %v738
    %v5372 = vunpack.c.l.b16 %v739
    %v5373 = vunpack.c.h.b16 %v739
    %v5374 = vunpack.c.l.b16 %v740
    %v5375 = vunpack.c.h.b16 %v740
    %v5376 = vunpack.c.l.b16 %v741
    %v5377 = vunpack.c.h.b16 %v741
    %v5378 = vunpack.c.l.b16 %v742
    %v5379 = vunpack.c.h.b16 %v742
    %v5380 = vunpack.c.l.b16 %v743
    %v5381 = vunpack.c.h.b16 %v743
    %v5382 = vunpack.c.l.b16 %v744
    %v5383 = vunpack.c.h.b16 %v744
    %v5384 = vunpack.c.l.b16 %v745
    %v5385 = vunpack.c.h.b16 %v745
    %v5386 = vunpack.c.l.b16 %v746
    %v5387 = vunpack.c.h.b16 %v746
    %v5388 = vunpack.c.l.b16 %v747
    %v5389 = vunpack.c.h.b16 %v747
    %v5390 = vunpack.c.l.b16 %v748
    %v5391 = vunpack.c.h.b16 %v748
    %v5392 = vunpack.c.l.b16 %v749
    %v5393 = vunpack.c.h.b16 %v749
    %v5394 = vunpack.c.l.b16 %v750
    %v5395 = vunpack.c.h.b16 %v750
    %v5396 = vunpack.c.l.b16 %v751
    %v5397 = vunpack.c.h.b16 %v751
    %v5398 = vunpack.c.l.b16 %v752
    %v5399 = vunpack.c.h.b16 %v752
    %v5400 = vunpack.c.l.b16 %v753
    %v5401 = vunpack.c.h.b16 %v753
    %v5402 = vunpack.c.l.b16 %v754
    %v5403 = vunpack.c.h.b16 %v754
    %v5404 = vunpack.c.l.b16 %v755
    %v5405 = vunpack.c.h.b16 %v755
    %v5406 = vunpack.c.l.b16 %v756
    %v5407 = vunpack.c.h.b16 %v756
    %v5408 = vunpack.c.l.b16 %v757
    %v5409 = vunpack.c.h.b16 %v757
    %v5410 = vunpack.c.l.b16 %v758
    %v5411 = vunpack.c.h.b16 %v758
    %v5412 = vunpack.c.l.b16 %v759
    %v5413 = vunpack.c.h.b16 %v759
    %v5414 = vunpack.c.l.b16 %v760
    %v5415 = vunpack.c.h.b16 %v760
    %v5416 = vunpack.c.l.b16 %v761
    %v5417 = vunpack.c.h.b16 %v761
    %v5418 = vunpack.c.l.b16 %v762
    %v5419 = vunpack.c.h.b16 %v762
    %v5420 = vunpack.c.l.b16 %v763
    %v5421 = vunpack.c.h.b16 %v763
    %v5422 = vunpack.c.l.b16 %v764
    %v5423 = vunpack.c.h.b16 %v764
    %v5424 = vunpack.c.l.b16 %v765
    %v5425 = vunpack.c.h.b16 %v765
    %v5426 = vunpack.c.l.b16 %v766
    %v5427 = vunpack.c.h.b16 %v766
    %v5428 = vunpack.c.l.b16 %v767
    %v5429 = vunpack.c.h.b16 %v767
    %v5430 = vunpack.c.l.b16 %v768
    %v5431 = vunpack.c.h.b16 %v768
    %v5432 = vunpack.c.l.b16 %v769
    %v5433 = vunpack.c.h.b16 %v769
    %v5434 = vunpack.c.l.b16 %v770
    %v5435 = vunpack.c.h.b16 %v770
    %v5436 = vunpack.c.l.b16 %v771
    %v5437 = vunpack.c.h.b16 %v771
    %v5438 = vunpack.c.l.b16 %v772
    %v5439 = vunpack.c.h.b16 %v772
    %v5440 = vunpack.c.l.b16 %v773
    %v5441 = vunpack.c.h.b16 %v773
    %v5442 = vunpack.c.l.b16 %v774
    %v5443 = vunpack.c.h.b16 %v774
    %v5444 = vunpack.c.l.b16 %v775
    %v5445 = vunpack.c.h.b16 %v775
    %v5446 = vunpack.c.l.b16 %v776
    %v5447 = vunpack.c.h.b16 %v776
    %v5448 = vunpack.c.l.b16 %v777
    %v5449 = vunpack.c.h.b16 %v777
    %v5450 = vunpack.c.l.b16 %v778
    %v5451 = vunpack.c.h.b16 %v778
    %v5452 = vunpack.c.l.b16 %v779
    %v5453 = vunpack.c.h.b16 %v779
    %v5454 = vunpack.c.l.b16 %v780
    %v5455 = vunpack.c.h.b16 %v780
    %v5456 = vunpack.c.l.b16 %v781
    %v5457 = vunpack.c.h.b16 %v781
    %v5458 = vunpack.c.l.b16 %v782
    %v5459 = vunpack.c.h.b16 %v782
    %v5460 = vunpack.c.l.b16 %v783
    %v5461 = vunpack.c.h.b16 %v783
    %v5462 = vunpack.c.l.b16 %v784
    %v5463 = vunpack.c.h.b16 %v784
    %v5464 = vunpack.c.l.b16 %v785
    %v5465 = vunpack.c.h.b16 %v785
    %v5466 = vunpack.c.l.b16 %v786
    %v5467 = vunpack.c.h.b16 %v786
    %v5468 = vunpack.c.l.b16 %v787
    %v5469 = vunpack.c.h.b16 %v787
    %v5470 = vunpack.c.l.b16 %v788
    %v5471 = vunpack.c.h.b16 %v788
    %v5472 = vunpack.c.l.b16 %v789
    %v5473 = vunpack.c.h.b16 %v789
    %v5474 = vunpack.c.l.b16 %v790
    %v5475 = vunpack.c.h.b16 %v790
    %v5476 = vunpack.c.l.b16 %v791
    %v5477 = vunpack.c.h.b16 %v791
    %v5478 = vunpack.c.l.b16 %v792
    %v5479 = vunpack.c.h.b16 %v792
    %v5480 = vunpack.c.l.b16 %v793
    %v5481 = vunpack.c.h.b16 %v793
    %v5482 = vunpack.c.l.b16 %v794
    %v5483 = vunpack.c.h.b16 %v794
    %v5484 = vunpack.c.l.b16 %v795
    %v5485 = vunpack.c.h.b16 %v795
    %v5486 = vunpack.c.l.b16 %v796
    %v5487 = vunpack.c.h.b16 %v796
    %v5488 = vunpack.c.l.b16 %v797
    %v5489 = vunpack.c.h.b16 %v797
    %v5490 = vunpack.c.l.b16 %v798
    %v5491 = vunpack.c.h.b16 %v798
    %v5492 = vunpack.c.l.b16 %v799
    %v5493 = vunpack.c.h.b16 %v799
    %v5494 = vunpack.c.l.b16 %v800
    %v5495 = vunpack.c.h.b16 %v800
    %v5496 = vunpack.c.l.b16 %v801
    %v5497 = vunpack.c.h.b16 %v801
    %v5498 = vunpack.c.l.b16 %v802
    %v5499 = vunpack.c.h.b16 %v802
    %v5500 = vunpack.c.l.b16 %v803
    %v5501 = vunpack.c.h.b16 %v803
    %v5502 = vunpack.c.l.b16 %v804
    %v5503 = vunpack.c.h.b16 %v804
    %v5504 = vunpack.c.l.b16 %v805
    %v5505 = vunpack.c.h.b16 %v805
    %v5506 = vunpack.c.l.b16 %v806
    %v5507 = vunpack.c.h.b16 %v806
    %v5508 = vunpack.c.l.b16 %v807
    %v5509 = vunpack.c.h.b16 %v807
    %v5510 = vunpack.c.l.b16 %v808
    %v5511 = vunpack.c.h.b16 %v808
    %v5512 = vunpack.c.l.b16 %v809
    %v5513 = vunpack.c.h.b16 %v809
    %v5514 = vunpack.c.l.b16 %v810
    %v5515 = vunpack.c.h.b16 %v810
    %v5516 = vunpack.c.l.b16 %v811
    %v5517 = vunpack.c.h.b16 %v811
    %v5518 = vunpack.c.l.b16 %v812
    %v5519 = vunpack.c.h.b16 %v812
    %v5520 = vunpack.c.l.b16 %v813
    %v5521 = vunpack.c.h.b16 %v813
    %v5522 = vunpack.c.l.b16 %v814
    %v5523 = vunpack.c.h.b16 %v814
    %v5524 = vunpack.c.l.b16 %v815
    %v5525 = vunpack.c.h.b16 %v815
    %v5526 = vunpack.c.l.b16 %v816
    %v5527 = vunpack.c.h.b16 %v816
    %v5528 = vunpack.c.l.b16 %v817
    %v5529 = vunpack.c.h.b16 %v817
    %v5530 = vunpack.c.l.b16 %v818
    %v5531 = vunpack.c.h.b16 %v818
    %v5532 = vunpack.c.l.b16 %v819
    %v5533 = vunpack.c.h.b16 %v819
    %v5534 = vunpack.c.l.b16 %v820
    %v5535 = vunpack.c.h.b16 %v820
    %v5536 = vunpack.c.l.b16 %v821
    %v5537 = vunpack.c.h.b16 %v821
    %v5538 = vunpack.c.l.b16 %v822
    %v5539 = vunpack.c.h.b16 %v822
    %v5540 = vunpack.c.l.b16 %v823
    %v5541 = vunpack.c.h.b16 %v823
    %v5542 = vunpack.c.l.b16 %v824
    %v5543 = vunpack.c.h.b16 %v824
    %v5544 = vunpack.c.l.b16 %v825
    %v5545 = vunpack.c.h.b16 %v825
    %v5546 = vunpack.c.l.b16 %v826
    %v5547 = vunpack.c.h.b16 %v826
    %v5548 = vunpack.c.l.b16 %v827
    %v5549 = vunpack.c.h.b16 %v827
    %v5550 = vunpack.c.l.b16 %v828
    %v5551 = vunpack.c.h.b16 %v828
    %v5552 = vunpack.c.l.b16 %v829
    %v5553 = vunpack.c.h.b16 %v829
    %v5554 = vunpack.c.l.b16 %v830
    %v5555 = vunpack.c.h.b16 %v830
    %v5556 = vunpack.c.l.b16 %v831
    %v5557 = vunpack.c.h.b16 %v831
    %v5558 = vunpack.c.l.b16 %v832
    %v5559 = vunpack.c.h.b16 %v832
    %v5560 = vunpack.c.l.b16 %v833
    %v5561 = vunpack.c.h.b16 %v833
    %v5562 = vunpack.c.l.b16 %v834
    %v5563 = vunpack.c.h.b16 %v834
    %v5564 = vunpack.c.l.b16 %v835
    %v5565 = vunpack.c.h.b16 %v835
    %v5566 = vunpack.c.l.b16 %v836
    %v5567 = vunpack.c.h.b16 %v836
    %v5568 = vunpack.c.l.b16 %v837
    %v5569 = vunpack.c.h.b16 %v837
    %v5570 = vunpack.c.l.b16 %v838
    %v5571 = vunpack.c.h.b16 %v838
    %v5572 = vunpack.c.l.b16 %v839
    %v5573 = vunpack.c.h.b16 %v839
    %v5574 = vunpack.c.l.b16 %v840
    %v5575 = vunpack.c.h.b16 %v840
    %v5576 = vunpack.c.l.b16 %v841
    %v5577 = vunpack.c.h.b16 %v841
    %v5578 = vunpack.c.l.b16 %v842
    %v5579 = vunpack.c.h.b16 %v842
    %v5580 = vunpack.c.l.b16 %v843
    %v5581 = vunpack.c.h.b16 %v843
    %v5582 = vunpack.c.l.b16 %v844
    %v5583 = vunpack.c.h.b16 %v844
    %v5584 = vunpack.c.l.b16 %v845
    %v5585 = vunpack.c.h.b16 %v845
    %v5586 = vunpack.c.l.b16 %v846
    %v5587 = vunpack.c.h.b16 %v846
    %v5588 = vunpack.c.l.b16 %v847
    %v5589 = vunpack.c.h.b16 %v847
    %v5590 = vunpack.c.l.b16 %v848
    %v5591 = vunpack.c.h.b16 %v848
    %v5592 = vunpack.c.l.b16 %v849
    %v5593 = vunpack.c.h.b16 %v849
    %v5594 = vunpack.c.l.b16 %v850
    %v5595 = vunpack.c.h.b16 %v850
    %v5596 = vunpack.c.l.b16 %v851
    %v5597 = vunpack.c.h.b16 %v851
    %v5598 = vunpack.c.l.b16 %v852
    %v5599 = vunpack.c.h.b16 %v852
    %v5600 = vunpack.c.l.b16 %v853
    %v5601 = vunpack.c.h.b16 %v853
    %v5602 = vunpack.c.l.b16 %v854
    %v5603 = vunpack.c.h.b16 %v854
    %v5604 = vunpack.c.l.b16 %v855
    %v5605 = vunpack.c.h.b16 %v855
    %v5606 = vunpack.c.l.b16 %v856
    %v5607 = vunpack.c.h.b16 %v856
    %v5608 = vunpack.c.l.b16 %v857
    %v5609 = vunpack.c.h.b16 %v857
    %v5610 = vunpack.c.l.b16 %v858
    %v5611 = vunpack.c.h.b16 %v858
    %v5612 = vunpack.c.l.b16 %v859
    %v5613 = vunpack.c.h.b16 %v859
    %v5614 = vunpack.c.l.b16 %v860
    %v5615 = vunpack.c.h.b16 %v860
    %v5616 = vunpack.c.l.b16 %v861
    %v5617 = vunpack.c.h.b16 %v861
    %v5618 = vunpack.c.l.b16 %v862
    %v5619 = vunpack.c.h.b16 %v862
    %v5620 = vunpack.c.l.b16 %v863
    %v5621 = vunpack.c.h.b16 %v863
    %v5622 = vunpack.c.l.b16 %v864
    %v5623 = vunpack.c.h.b16 %v864
    %v5624 = vunpack.c.l.b16 %v865
    %v5625 = vunpack.c.h.b16 %v865
    %v5626 = vunpack.c.l.b16 %v866
    %v5627 = vunpack.c.h.b16 %v866
    %v5628 = vunpack.c.l.b16 %v867
    %v5629 = vunpack.c.h.b16 %v867
    %v5630 = vunpack.c.l.b16 %v868
    %v5631 = vunpack.c.h.b16 %v868
    %v5632 = vunpack.c.l.b16 %v869
    %v5633 = vunpack.c.h.b16 %v869
    %v5634 = vunpack.c.l.b16 %v870
    %v5635 = vunpack.c.h.b16 %v870
    %v5636 = vunpack.c.l.b16 %v871
    %v5637 = vunpack.c.h.b16 %v871
    %v5638 = vunpack.c.l.b16 %v872
    %v5639 = vunpack.c.h.b16 %v872
    %v5640 = vunpack.c.l.b16 %v873
    %v5641 = vunpack.c.h.b16 %v873
    %v5642 = vunpack.c.l.b16 %v874
    %v5643 = vunpack.c.h.b16 %v874
    %v5644 = vunpack.c.l.b16 %v875
    %v5645 = vunpack.c.h.b16 %v875
    %v5646 = vunpack.c.l.b16 %v876
    %v5647 = vunpack.c.h.b16 %v876
    %v5648 = vunpack.c.l.b16 %v877
    %v5649 = vunpack.c.h.b16 %v877
    %v5650 = vunpack.c.l.b16 %v878
    %v5651 = vunpack.c.h.b16 %v878
    %v5652 = vunpack.c.l.b16 %v879
    %v5653 = vunpack.c.h.b16 %v879
    %v5654 = vunpack.c.l.b16 %v880
    %v5655 = vunpack.c.h.b16 %v880
    %v5656 = vunpack.c.l.b16 %v881
    %v5657 = vunpack.c.h.b16 %v881
    %v5658 = vunpack.c.l.b16 %v882
    %v5659 = vunpack.c.h.b16 %v882
    %v5660 = vunpack.c.l.b16 %v883
    %v5661 = vunpack.c.h.b16 %v883
    %v5662 = vunpack.c.l.b16 %v884
    %v5663 = vunpack.c.h.b16 %v884
    %v5664 = vunpack.c.l.b16 %v885
    %v5665 = vunpack.c.h.b16 %v885
    %v5666 = vunpack.c.l.b16 %v886
    %v5667 = vunpack.c.h.b16 %v886
    %v5668 = vunpack.c.l.b16 %v887
    %v5669 = vunpack.c.h.b16 %v887
    %v5670 = vunpack.c.l.b16 %v888
    %v5671 = vunpack.c.h.b16 %v888
    %v5672 = vunpack.c.l.b16 %v889
    %v5673 = vunpack.c.h.b16 %v889
    %v5674 = vunpack.c.l.b16 %v890
    %v5675 = vunpack.c.h.b16 %v890
    %v5676 = vunpack.c.l.b16 %v891
    %v5677 = vunpack.c.h.b16 %v891
    %v5678 = vunpack.c.l.b16 %v892
    %v5679 = vunpack.c.h.b16 %v892
    %v5680 = vunpack.c.l.b16 %v893
    %v5681 = vunpack.c.h.b16 %v893
    %v5682 = vunpack.c.l.b16 %v894
    %v5683 = vunpack.c.h.b16 %v894
    %v5684 = vunpack.c.l.b16 %v895
    %v5685 = vunpack.c.h.b16 %v895
    %v5686 = vunpack.c.l.b16 %v896
    %v5687 = vunpack.c.h.b16 %v896
    %v5688 = vunpack.c.l.b16 %v897
    %v5689 = vunpack.c.h.b16 %v897
    %v5690 = vunpack.c.l.b16 %v898
    %v5691 = vunpack.c.h.b16 %v898
    %v5692 = vunpack.c.l.b16 %v899
    %v5693 = vunpack.c.h.b16 %v899
    %v5694 = vunpack.c.l.b16 %v900
    %v5695 = vunpack.c.h.b16 %v900
    %v5696 = vunpack.c.l.b16 %v901
    %v5697 = vunpack.c.h.b16 %v901
    %v5698 = vunpack.c.l.b16 %v902
    %v5699 = vunpack.c.h.b16 %v902
    %v5700 = vunpack.c.l.b16 %v903
    %v5701 = vunpack.c.h.b16 %v903
    %v5702 = vunpack.c.l.b16 %v904
    %v5703 = vunpack.c.h.b16 %v904
    %v5704 = vunpack.c.l.b16 %v905
    %v5705 = vunpack.c.h.b16 %v905
    %v5706 = vunpack.c.l.b16 %v906
    %v5707 = vunpack.c.h.b16 %v906
    %v5708 = vunpack.c.l.b16 %v907
    %v5709 = vunpack.c.h.b16 %v907
    %v5710 = vunpack.c.l.b16 %v908
    %v5711 = vunpack.c.h.b16 %v908
    %v5712 = vunpack.c.l.b16 %v909
    %v5713 = vunpack.c.h.b16 %v909
    %v5714 = vunpack.c.l.b16 %v910
    %v5715 = vunpack.c.h.b16 %v910
    %v5716 = vunpack.c.l.b16 %v911
    %v5717 = vunpack.c.h.b16 %v911
    %v5718 = vunpack.c.l.b16 %v912
    %v5719 = vunpack.c.h.b16 %v912
    %v5720 = vunpack.c.l.b16 %v913
    %v5721 = vunpack.c.h.b16 %v913
    %v5722 = vunpack.c.l.b16 %v914
    %v5723 = vunpack.c.h.b16 %v914
    %v5724 = vunpack.c.l.b16 %v915
    %v5725 = vunpack.c.h.b16 %v915
    %v5726 = vunpack.c.l.b16 %v916
    %v5727 = vunpack.c.h.b16 %v916
    %v5728 = vunpack.c.l.b16 %v917
    %v5729 = vunpack.c.h.b16 %v917
    %v5730 = vunpack.c.l.b16 %v918
    %v5731 = vunpack.c.h.b16 %v918
    %v5732 = vunpack.c.l.b16 %v919
    %v5733 = vunpack.c.h.b16 %v919
    %v5734 = vunpack.c.l.b16 %v920
    %v5735 = vunpack.c.h.b16 %v920
    %v5736 = vunpack.c.l.b16 %v921
    %v5737 = vunpack.c.h.b16 %v921
    %v5738 = vunpack.c.l.b16 %v922
    %v5739 = vunpack.c.h.b16 %v922
    %v5740 = vunpack.c.l.b16 %v923
    %v5741 = vunpack.c.h.b16 %v923
    %v5742 = vunpack.c.l.b16 %v924
    %v5743 = vunpack.c.h.b16 %v924
    %v5744 = vunpack.c.l.b16 %v925
    %v5745 = vunpack.c.h.b16 %v925
    %v5746 = vunpack.c.l.b16 %v926
    %v5747 = vunpack.c.h.b16 %v926
    %v5748 = vunpack.c.l.b16 %v927
    %v5749 = vunpack.c.h.b16 %v927
    %v5750 = vunpack.c.l.b16 %v928
    %v5751 = vunpack.c.h.b16 %v928
    %v5752 = vunpack.c.l.b16 %v929
    %v5753 = vunpack.c.h.b16 %v929
    %v5754 = vunpack.c.l.b16 %v930
    %v5755 = vunpack.c.h.b16 %v930
    %v5756 = vunpack.c.l.b16 %v931
    %v5757 = vunpack.c.h.b16 %v931
    %v5758 = vunpack.c.l.b16 %v932
    %v5759 = vunpack.c.h.b16 %v932
    %v5760 = vunpack.c.l.b16 %v933
    %v5761 = vunpack.c.h.b16 %v933
    %v5762 = vunpack.c.l.b16 %v934
    %v5763 = vunpack.c.h.b16 %v934
    %v5764 = vunpack.c.l.b16 %v935
    %v5765 = vunpack.c.h.b16 %v935
    %v5766 = vunpack.c.l.b16 %v936
    %v5767 = vunpack.c.h.b16 %v936
    %v5768 = vunpack.c.l.b16 %v937
    %v5769 = vunpack.c.h.b16 %v937
    %v5770 = vunpack.c.l.b16 %v938
    %v5771 = vunpack.c.h.b16 %v938
    %v5772 = vunpack.c.l.b16 %v939
    %v5773 = vunpack.c.h.b16 %v939
    %v5774 = vunpack.c.l.b16 %v940
    %v5775 = vunpack.c.h.b16 %v940
    %v5776 = vunpack.c.l.b16 %v941
    %v5777 = vunpack.c.h.b16 %v941
    %v5778 = vunpack.c.l.b16 %v942
    %v5779 = vunpack.c.h.b16 %v942
    %v5780 = vunpack.c.l.b16 %v943
    %v5781 = vunpack.c.h.b16 %v943
    %v5782 = vunpack.c.l.b16 %v944
    %v5783 = vunpack.c.h.b16 %v944
    %v5784 = vunpack.c.l.b16 %v945
    %v5785 = vunpack.c.h.b16 %v945
    %v5786 = vunpack.c.l.b16 %v946
    %v5787 = vunpack.c.h.b16 %v946
    %v5788 = vunpack.c.l.b16 %v947
    %v5789 = vunpack.c.h.b16 %v947
    %v5790 = vunpack.c.l.b16 %v948
    %v5791 = vunpack.c.h.b16 %v948
    %v5792 = vunpack.c.l.b16 %v949
    %v5793 = vunpack.c.h.b16 %v949
    %v5794 = vunpack.c.l.b16 %v950
    %v5795 = vunpack.c.h.b16 %v950
    %v5796 = vunpack.c.l.b16 %v951
    %v5797 = vunpack.c.h.b16 %v951
    %v5798 = vunpack.c.l.b16 %v952
    %v5799 = vunpack.c.h.b16 %v952
    %v5800 = vunpack.c.l.b16 %v953
    %v5801 = vunpack.c.h.b16 %v953
    %v5802 = vunpack.c.l.b16 %v954
    %v5803 = vunpack.c.h.b16 %v954
    %v5804 = vunpack.c.l.b16 %v955
    %v5805 = vunpack.c.h.b16 %v955
    %v5806 = vunpack.c.l.b16 %v956
    %v5807 = vunpack.c.h.b16 %v956
    %v5808 = vunpack.c.l.b16 %v957
    %v5809 = vunpack.c.h.b16 %v957
    %v5810 = vunpack.c.l.b16 %v958
    %v5811 = vunpack.c.h.b16 %v958
    %v5812 = vunpack.c.l.b16 %v959
    %v5813 = vunpack.c.h.b16 %v959
    %v5814 = vunpack.c.l.b16 %v960
    %v5815 = vunpack.c.h.b16 %v960
    %v5816 = vunpack.c.l.b16 %v961
    %v5817 = vunpack.c.h.b16 %v961
    %v5818 = vunpack.c.l.b16 %v962
    %v5819 = vunpack.c.h.b16 %v962
    %v5820 = vunpack.c.l.b16 %v963
    %v5821 = vunpack.c.h.b16 %v963
    %v5822 = vunpack.c.l.b16 %v964
    %v5823 = vunpack.c.h.b16 %v964
    %v5824 = vunpack.c.l.b16 %v965
    %v5825 = vunpack.c.h.b16 %v965
    %v5826 = vunpack.c.l.b16 %v966
    %v5827 = vunpack.c.h.b16 %v966
    %v5828 = vunpack.c.l.b16 %v967
    %v5829 = vunpack.c.h.b16 %v967
    %v5830 = vunpack.c.l.b16 %v968
    %v5831 = vunpack.c.h.b16 %v968
    %v5832 = vunpack.c.l.b16 %v969
    %v5833 = vunpack.c.h.b16 %v969
    %v5834 = vunpack.c.l.b16 %v970
    %v5835 = vunpack.c.h.b16 %v970
    %v5836 = vunpack.c.l.b16 %v971
    %v5837 = vunpack.c.h.b16 %v971
    %v5838 = vunpack.c.l.b16 %v972
    %v5839 = vunpack.c.h.b16 %v972
    %v5840 = vunpack.c.l.b16 %v973
    %v5841 = vunpack.c.h.b16 %v973
    %v5842 = vunpack.c.l.b16 %v974
    %v5843 = vunpack.c.h.b16 %v974
    %v5844 = vunpack.c.l.b16 %v975
    %v5845 = vunpack.c.h.b16 %v975
    %v5846 = vunpack.c.l.b16 %v976
    %v5847 = vunpack.c.h.b16 %v976
    %v5848 = vunpack.c.l.b16 %v977
    %v5849 = vunpack.c.h.b16 %v977
    %v5850 = vunpack.c.l.b16 %v978
    %v5851 = vunpack.c.h.b16 %v978
    %v5852 = vunpack.c.l.b16 %v979
    %v5853 = vunpack.c.h.b16 %v979
    %v5854 = vunpack.c.l.b16 %v980
    %v5855 = vunpack.c.h.b16 %v980
    %v5856 = vunpack.c.l.b16 %v981
    %v5857 = vunpack.c.h.b16 %v981
    %v5858 = vunpack.c.l.b16 %v982
    %v5859 = vunpack.c.h.b16 %v982
    %v5860 = vunpack.c.l.b16 %v983
    %v5861 = vunpack.c.h.b16 %v983
    %v5862 = vunpack.c.l.b16 %v984
    %v5863 = vunpack.c.h.b16 %v984
    %v5864 = vunpack.c.l.b16 %v985
    %v5865 = vunpack.c.h.b16 %v985
    %v5866 = vunpack.c.l.b16 %v986
    %v5867 = vunpack.c.h.b16 %v986
    %v5868 = vunpack.c.l.b16 %v987
    %v5869 = vunpack.c.h.b16 %v987
    %v5870 = vunpack.c.l.b16 %v988
    %v5871 = vunpack.c.h.b16 %v988
    %v5872 = vunpack.c.l.b16 %v989
    %v5873 = vunpack.c.h.b16 %v989
    %v5874 = vunpack.c.l.b16 %v990
    %v5875 = vunpack.c.h.b16 %v990
    %v5876 = vunpack.c.l.b16 %v991
    %v5877 = vunpack.c.h.b16 %v991
    %v5878 = vunpack.c.l.b16 %v992
    %v5879 = vunpack.c.h.b16 %v992
    %v5880 = vunpack.c.l.b16 %v993
    %v5881 = vunpack.c.h.b16 %v993
    %v5882 = vunpack.c.l.b16 %v994
    %v5883 = vunpack.c.h.b16 %v994
    %v5884 = vunpack.c.l.b16 %v995
    %v5885 = vunpack.c.h.b16 %v995
    %v5886 = vunpack.c.l.b16 %v996
    %v5887 = vunpack.c.h.b16 %v996
    %v5888 = vunpack.c.l.b16 %v997
    %v5889 = vunpack.c.h.b16 %v997
    %v5890 = vunpack.c.l.b16 %v998
    %v5891 = vunpack.c.h.b16 %v998
    %v5892 = vunpack.c.l.b16 %v999
    %v5893 = vunpack.c.h.b16 %v999
    %v5894 = vunpack.c.l.b16 %v1000
    %v5895 = vunpack.c.h.b16 %v1000
    %v5896 = vunpack.c.l.b16 %v1001
    %v5897 = vunpack.c.h.b16 %v1001
    %v5898 = vunpack.c.l.b16 %v1002
    %v5899 = vunpack.c.h.b16 %v1002
    %v5900 = vunpack.c.l.b16 %v1003
    %v5901 = vunpack.c.h.b16 %v1003
    %v5902 = vunpack.c.l.b16 %v1004
    %v5903 = vunpack.c.h.b16 %v1004
    %v5904 = vunpack.c.l.b16 %v1005
    %v5905 = vunpack.c.h.b16 %v1005
    %v5906 = vunpack.c.l.b16 %v1006
    %v5907 = vunpack.c.h.b16 %v1006
    %v5908 = vunpack.c.l.b16 %v1007
    %v5909 = vunpack.c.h.b16 %v1007
    %v5910 = vunpack.c.l.b16 %v1008
    %v5911 = vunpack.c.h.b16 %v1008
    %v5912 = vunpack.c.l.b16 %v1009
    %v5913 = vunpack.c.h.b16 %v1009
    %v5914 = vunpack.c.l.b16 %v1010
    %v5915 = vunpack.c.h.b16 %v1010
    %v5916 = vunpack.c.l.b16 %v1011
    %v5917 = vunpack.c.h.b16 %v1011
    %v5918 = vunpack.c.l.b16 %v1012
    %v5919 = vunpack.c.h.b16 %v1012
    %v5920 = vunpack.c.l.b16 %v1013
    %v5921 = vunpack.c.h.b16 %v1013
    %v5922 = vunpack.c.l.b16 %v1014
    %v5923 = vunpack.c.h.b16 %v1014
    %v5924 = vunpack.c.l.b16 %v1015
    %v5925 = vunpack.c.h.b16 %v1015
    %v5926 = vunpack.c.l.b16 %v1016
    %v5927 = vunpack.c.h.b16 %v1016
    %v5928 = vunpack.c.l.b16 %v1017
    %v5929 = vunpack.c.h.b16 %v1017
    %v5930 = vunpack.c.l.b16 %v1018
    %v5931 = vunpack.c.h.b16 %v1018
    %v5932 = vunpack.c.l.b16 %v1019
    %v5933 = vunpack.c.h.b16 %v1019
    %v5934 = vunpack.c.l.b16 %v1020
    %v5935 = vunpack.c.h.b16 %v1020
    %v5936 = vunpack.c.l.b16 %v1021
    %v5937 = vunpack.c.h.b16 %v1021
    %v5938 = vunpack.c.l.b16 %v1022
    %v5939 = vunpack.c.h.b16 %v1022
    %v5940 = vunpack.c.l.b16 %v1023
    %v5941 = vunpack.c.h.b16 %v1023
    %v5942 = vunpack.c.l.b16 %v1024
    %v5943 = vunpack.c.h.b16 %v1024
    %v5944 = vunpack.c.l.b16 %v1025
    %v5945 = vunpack.c.h.b16 %v1025
    %v5946 = vunpack.c.l.b16 %v1026
    %v5947 = vunpack.c.h.b16 %v1026
    %v5948 = vunpack.c.l.b16 %v1027
    %v5949 = vunpack.c.h.b16 %v1027
    %v5950 = vunpack.c.l.b16 %v1028
    %v5951 = vunpack.c.h.b16 %v1028
    %v5952 = vunpack.c.l.b16 %v1029
    %v5953 = vunpack.c.h.b16 %v1029
    %v5954 = vunpack.c.l.b16 %v1030
    %v5955 = vunpack.c.h.b16 %v1030
    %v5956 = vunpack.c.l.b16 %v1031
    %v5957 = vunpack.c.h.b16 %v1031
    %v5958 = vunpack.c.l.b16 %v1032
    %v5959 = vunpack.c.h.b16 %v1032
    %v5960 = vunpack.c.l.b16 %v1033
    %v5961 = vunpack.c.h.b16 %v1033
    %v5962 = vunpack.c.l.b16 %v1034
    %v5963 = vunpack.c.h.b16 %v1034
    %v5964 = vunpack.c.l.b16 %v1035
    %v5965 = vunpack.c.h.b16 %v1035
    %v5966 = vunpack.c.l.b16 %v1036
    %v5967 = vunpack.c.h.b16 %v1036
    %v5968 = vunpack.c.l.b16 %v1037
    %v5969 = vunpack.c.h.b16 %v1037
    %v5970 = vunpack.c.l.b16 %v1038
    %v5971 = vunpack.c.h.b16 %v1038
    %v5972 = vunpack.c.l.b16 %v1039
    %v5973 = vunpack.c.h.b16 %v1039
    %v5974 = vunpack.c.l.b16 %v1040
    %v5975 = vunpack.c.h.b16 %v1040
    %v5976 = vunpack.c.l.b16 %v1041
    %v5977 = vunpack.c.h.b16 %v1041
    %v5978 = vunpack.c.l.b16 %v1042
    %v5979 = vunpack.c.h.b16 %v1042
    %v5980 = vunpack.c.l.b16 %v1043
    %v5981 = vunpack.c.h.b16 %v1043
    %v5982 = vunpack.c.l.b16 %v1044
    %v5983 = vunpack.c.h.b16 %v1044
    %v5984 = vunpack.c.l.b16 %v1045
    %v5985 = vunpack.c.h.b16 %v1045
    %v5986 = vunpack.c.l.b16 %v1046
    %v5987 = vunpack.c.h.b16 %v1046
    %v5988 = vunpack.c.l.b16 %v1047
    %v5989 = vunpack.c.h.b16 %v1047
    %v5990 = vunpack.c.l.b16 %v1048
    %v5991 = vunpack.c.h.b16 %v1048
    %v5992 = vunpack.c.l.b16 %v1049
    %v5993 = vunpack.c.h.b16 %v1049
    %v5994 = vunpack.c.l.b16 %v1050
    %v5995 = vunpack.c.h.b16 %v1050
    %v5996 = vunpack.c.l.b16 %v1051
    %v5997 = vunpack.c.h.b16 %v1051
    %v5998 = vunpack.c.l.b16 %v1052
    %v5999 = vunpack.c.h.b16 %v1052
    %v6000 = vunpack.c.l.b16 %v1053
    %v6001 = vunpack.c.h.b16 %v1053
    %v6002 = vunpack.c.l.b16 %v1054
    %v6003 = vunpack.c.h.b16 %v1054
    %v6004 = vunpack.c.l.b16 %v1055
    %v6005 = vunpack.c.h.b16 %v1055
    %v6006 = vunpack.c.l.b16 %v1056
    %v6007 = vunpack.c.h.b16 %v1056
    %v6008 = vunpack.c.l.b16 %v1057
    %v6009 = vunpack.c.h.b16 %v1057
    %v6010 = vunpack.c.l.b16 %v1058
    %v6011 = vunpack.c.h.b16 %v1058
    %v6012 = vunpack.c.l.b16 %v1059
    %v6013 = vunpack.c.h.b16 %v1059
    %v6014 = vunpack.c.l.b16 %v1060
    %v6015 = vunpack.c.h.b16 %v1060
    %v6016 = vunpack.c.l.b16 %v1061
    %v6017 = vunpack.c.h.b16 %v1061
    %v6018 = vunpack.c.l.b16 %v1062
    %v6019 = vunpack.c.h.b16 %v1062
    %v6020 = vunpack.c.l.b16 %v1063
    %v6021 = vunpack.c.h.b16 %v1063
    %v6022 = vunpack.c.l.b16 %v1064
    %v6023 = vunpack.c.h.b16 %v1064
    %v6024 = vunpack.c.l.b16 %v1065
    %v6025 = vunpack.c.h.b16 %v1065
    %v6026 = vunpack.c.l.b16 %v1066
    %v6027 = vunpack.c.h.b16 %v1066
    %v6028 = vunpack.c.l.b16 %v1067
    %v6029 = vunpack.c.h.b16 %v1067
    %v6030 = vunpack.c.l.b16 %v1068
    %v6031 = vunpack.c.h.b16 %v1068
    %v6032 = vunpack.c.l.b16 %v1069
    %v6033 = vunpack.c.h.b16 %v1069
    %v6034 = vunpack.c.l.b16 %v1070
    %v6035 = vunpack.c.h.b16 %v1070
    %v6036 = vunpack.c.l.b16 %v1071
    %v6037 = vunpack.c.h.b16 %v1071
    %v6038 = vunpack.c.l.b16 %v1072
    %v6039 = vunpack.c.h.b16 %v1072
    %v6040 = vunpack.c.l.b16 %v1073
    %v6041 = vunpack.c.h.b16 %v1073
    %v6042 = vunpack.c.l.b16 %v1074
    %v6043 = vunpack.c.h.b16 %v1074
    %v6044 = vunpack.c.l.b16 %v1075
    %v6045 = vunpack.c.h.b16 %v1075
    %v6046 = vunpack.c.l.b16 %v1076
    %v6047 = vunpack.c.h.b16 %v1076
    %v6048 = vunpack.c.l.b16 %v1077
    %v6049 = vunpack.c.h.b16 %v1077
    %v6050 = vunpack.c.l.b16 %v1078
    %v6051 = vunpack.c.h.b16 %v1078
    %v6052 = vunpack.c.l.b16 %v1079
    %v6053 = vunpack.c.h.b16 %v1079
    %v6054 = vunpack.c.l.b16 %v1080
    %v6055 = vunpack.c.h.b16 %v1080
    %v6056 = vunpack.c.l.b16 %v1081
    %v6057 = vunpack.c.h.b16 %v1081
    %v6058 = vunpack.c.l.b16 %v1082
    %v6059 = vunpack.c.h.b16 %v1082
    %v6060 = vunpack.c.l.b16 %v1083
    %v6061 = vunpack.c.h.b16 %v1083
    %v6062 = vunpack.c.l.b16 %v1084
    %v6063 = vunpack.c.h.b16 %v1084
    %v6064 = vunpack.c.l.b16 %v1085
    %v6065 = vunpack.c.h.b16 %v1085
    %v6066 = vunpack.c.l.b16 %v1086
    %v6067 = vunpack.c.h.b16 %v1086
    %v6068 = vunpack.c.l.b16 %v1087
    %v6069 = vunpack.c.h.b16 %v1087
    %v6070 = vunpack.c.l.b16 %v1088
    %v6071 = vunpack.c.h.b16 %v1088
    %v6072 = vunpack.c.l.b16 %v1089
    %v6073 = vunpack.c.h.b16 %v1089
    %v6074 = vunpack.c.l.b16 %v1090
    %v6075 = vunpack.c.h.b16 %v1090
    %v6076 = vunpack.c.l.b16 %v1091
    %v6077 = vunpack.c.h.b16 %v1091
    %v6078 = vunpack.c.l.b16 %v1092
    %v6079 = vunpack.c.h.b16 %v1092
    %v6080 = vunpack.c.l.b16 %v1093
    %v6081 = vunpack.c.h.b16 %v1093
    %v6082 = vunpack.c.l.b16 %v1094
    %v6083 = vunpack.c.h.b16 %v1094
    %v6084 = vunpack.c.l.b16 %v1095
    %v6085 = vunpack.c.h.b16 %v1095
    %v6086 = vunpack.c.l.b16 %v1096
    %v6087 = vunpack.c.h.b16 %v1096
    %v6088 = vunpack.c.l.b16 %v1097
    %v6089 = vunpack.c.h.b16 %v1097
    %v6090 = vunpack.c.l.b16 %v1098
    %v6091 = vunpack.c.h.b16 %v1098
    %v6092 = vunpack.c.l.b16 %v1099
    %v6093 = vunpack.c.h.b16 %v1099
    %v6094 = vunpack.c.l.b16 %v1100
    %v6095 = vunpack.c.h.b16 %v1100
    %v6096 = vunpack.c.l.b16 %v1101
    %v6097 = vunpack.c.h.b16 %v1101
    %v6098 = vunpack.c.l.b16 %v1102
    %v6099 = vunpack.c.h.b16 %v1102
    %v6100 = vunpack.c.l.b16 %v1103
    %v6101 = vunpack.c.h.b16 %v1103
    %v6102 = vunpack.c.l.b16 %v1104
    %v6103 = vunpack.c.h.b16 %v1104
    %v6104 = vunpack.c.l.b16 %v1105
    %v6105 = vunpack.c.h.b16 %v1105
    %v6106 = vunpack.c.l.b16 %v1106
    %v6107 = vunpack.c.h.b16 %v1106
    %v6108 = vunpack.c.l.b16 %v1107
    %v6109 = vunpack.c.h.b16 %v1107
    %v6110 = vunpack.c.l.b16 %v1108
    %v6111 = vunpack.c.h.b16 %v1108
    %v6112 = vunpack.c.l.b16 %v1109
    %v6113 = vunpack.c.h.b16 %v1109
    %v6114 = vunpack.c.l.b16 %v1110
    %v6115 = vunpack.c.h.b16 %v1110
    %v6116 = vunpack.c.l.b16 %v1111
    %v6117 = vunpack.c.h.b16 %v1111
    %v6118 = vunpack.c.l.b16 %v1112
    %v6119 = vunpack.c.h.b16 %v1112
    %v6120 = vunpack.c.l.b16 %v1113
    %v6121 = vunpack.c.h.b16 %v1113
    %v6122 = vunpack.c.l.b16 %v1114
    %v6123 = vunpack.c.h.b16 %v1114
    %v6124 = vunpack.c.l.b16 %v1115
    %v6125 = vunpack.c.h.b16 %v1115
    %v6126 = vunpack.c.l.b16 %v1116
    %v6127 = vunpack.c.h.b16 %v1116
    %v6128 = vpack.c.b16 %v5112, %v5104
    %v6129 = vpack.c.b16 %v5113, %v5105
    %v6130 = vpack.c.b16 %v5114, %v5106
    %v6131 = vpack.c.b16 %v5115, %v5107
    %v6132 = vpack.c.b16 %v5116, %v5108
    %v6133 = vpack.c.b16 %v5117, %v5109
    %v6134 = vpack.c.b16 %v5118, %v5110
    %v6135 = vpack.c.b16 %v5119, %v5111
    %v6136 = vpack.c.b16 %v5128, %v5120
    %v6137 = vpack.c.b16 %v5129, %v5121
    %v6138 = vpack.c.b16 %v5130, %v5122
    %v6139 = vpack.c.b16 %v5131, %v5123
    %v6140 = vpack.c.b16 %v5132, %v5124
    %v6141 = vpack.c.b16 %v5133, %v5125
    %v6142 = vpack.c.b16 %v5134, %v5126
    %v6143 = vpack.c.b16 %v5135, %v5127
    %v6144 = vpack.c.b16 %v5144, %v5136
    %v6145 = vpack.c.b16 %v5145, %v5137
    %v6146 = vpack.c.b16 %v5146, %v5138
    %v6147 = vpack.c.b16 %v5147, %v5139
    %v6148 = vpack.c.b16 %v5148, %v5140
    %v6149 = vpack.c.b16 %v5149, %v5141
    %v6150 = vpack.c.b16 %v5150, %v5142
    %v6151 = vpack.c.b16 %v5151, %v5143
    %v6152 = vpack.c.b16 %v5160, %v5152
    %v6153 = vpack.c.b16 %v5161, %v5153
    %v6154 = vpack.c.b16 %v5162, %v5154
    %v6155 = vpack.c.b16 %v5163, %v5155
    %v6156 = vpack.c.b16 %v5164, %v5156
    %v6157 = vpack.c.b16 %v5165, %v5157
    %v6158 = vpack.c.b16 %v5166, %v5158
    %v6159 = vpack.c.b16 %v5167, %v5159
    %v6160 = vpack.c.b16 %v5176, %v5168
    %v6161 = vpack.c.b16 %v5177, %v5169
    %v6162 = vpack.c.b16 %v5178, %v5170
    %v6163 = vpack.c.b16 %v5179, %v5171
    %v6164 = vpack.c.b16 %v5180, %v5172
    %v6165 = vpack.c.b16 %v5181, %v5173
    %v6166 = vpack.c.b16 %v5182, %v5174
    %v6167 = vpack.c.b16 %v5183, %v5175
    %v6168 = vpack.c.b16 %v5192, %v5184
    %v6169 = vpack.c.b16 %v5193, %v5185
    %v6170 = vpack.c.b16 %v5194, %v5186
    %v6171 = vpack.c.b16 %v5195, %v5187
    %v6172 = vpack.c.b16 %v5196, %v5188
    %v6173 = vpack.c.b16 %v5197, %v5189
    %v6174 = vpack.c.b16 %v5198, %v5190
    %v6175 = vpack.c.b16 %v5199, %v5191
    %v6176 = vpack.c.b16 %v5208, %v5200
    %v6177 = vpack.c.b16 %v5209, %v5201
    %v6178 = vpack.c.b16 %v5210, %v5202
    %v6179 = vpack.c.b16 %v5211, %v5203
    %v6180 = vpack.c.b16 %v5212, %v5204
    %v6181 = vpack.c.b16 %v5213, %v5205
    %v6182 = vpack.c.b16 %v5214, %v5206
    %v6183 = vpack.c.b16 %v5215, %v5207
    %v6184 = vpack.c.b16 %v5224, %v5216
    %v6185 = vpack.c.b16 %v5225, %v5217
    %v6186 = vpack.c.b16 %v5226, %v5218
    %v6187 = vpack.c.b16 %v5227, %v5219
    %v6188 = vpack.c.b16 %v5228, %v5220
    %v6189 = vpack.c.b16 %v5229, %v5221
    %v6190 = vpack.c.b16 %v5230, %v5222
    %v6191 = vpack.c.b16 %v5231, %v5223
    %v6192 = vpack.c.b16 %v5240, %v5232
    %v6193 = vpack.c.b16 %v5241, %v5233
    %v6194 = vpack.c.b16 %v5242, %v5234
    %v6195 = vpack.c.b16 %v5243, %v5235
    %v6196 = vpack.c.b16 %v5244, %v5236
    %v6197 = vpack.c.b16 %v5245, %v5237
    %v6198 = vpack.c.b16 %v5246, %v5238
    %v6199 = vpack.c.b16 %v5247, %v5239
    %v6200 = vpack.c.b16 %v5256, %v5248
    %v6201 = vpack.c.b16 %v5257, %v5249
    %v6202 = vpack.c.b16 %v5258, %v5250
    %v6203 = vpack.c.b16 %v5259, %v5251
    %v6204 = vpack.c.b16 %v5260, %v5252
    %v6205 = vpack.c.b16 %v5261, %v5253
    %v6206 = vpack.c.b16 %v5262, %v5254
    %v6207 = vpack.c.b16 %v5263, %v5255
    %v6208 = vpack.c.b16 %v5272, %v5264
    %v6209 = vpack.c.b16 %v5273, %v5265
    %v6210 = vpack.c.b16 %v5274, %v5266
    %v6211 = vpack.c.b16 %v5275, %v5267
    %v6212 = vpack.c.b16 %v5276, %v5268
    %v6213 = vpack.c.b16 %v5277, %v5269
    %v6214 = vpack.c.b16 %v5278, %v5270
    %v6215 = vpack.c.b16 %v5279, %v5271
    %v6216 = vpack.c.b16 %v5288, %v5280
    %v6217 = vpack.c.b16 %v5289, %v5281
    %v6218 = vpack.c.b16 %v5290, %v5282
    %v6219 = vpack.c.b16 %v5291, %v5283
    %v6220 = vpack.c.b16 %v5292, %v5284
    %v6221 = vpack.c.b16 %v5293, %v5285
    %v6222 = vpack.c.b16 %v5294, %v5286
    %v6223 = vpack.c.b16 %v5295, %v5287
    %v6224 = vpack.c.b16 %v5304, %v5296
    %v6225 = vpack.c.b16 %v5305, %v5297
    %v6226 = vpack.c.b16 %v5306, %v5298
    %v6227 = vpack.c.b16 %v5307, %v5299
    %v6228 = vpack.c.b16 %v5308, %v5300
    %v6229 = vpack.c.b16 %v5309, %v5301
    %v6230 = vpack.c.b16 %v5310, %v5302
    %v6231 = vpack.c.b16 %v5311, %v5303
    %v6232 = vpack.c.b16 %v5320, %v5312
    %v6233 = vpack.c.b16 %v5321, %v5313
    %v6234 = vpack.c.b16 %v5322, %v5314
    %v6235 = vpack.c.b16 %v5323, %v5315
    %v6236 = vpack.c.b16 %v5324, %v5316
    %v6237 = vpack.c.b16 %v5325, %v5317
    %v6238 = vpack.c.b16 %v5326, %v5318
    %v6239 = vpack.c.b16 %v5327, %v5319
    %v6240 = vpack.c.b16 %v5336, %v5328
    %v6241 = vpack.c.b16 %v5337, %v5329
    %v6242 = vpack.c.b16 %v5338, %v5330
    %v6243 = vpack.c.b16 %v5339, %v5331
    %v6244 = vpack.c.b16 %v5340, %v5332
    %v6245 = vpack.c.b16 %v5341, %v5333
    %v6246 = vpack.c.b16 %v5342, %v5334
    %v6247 = vpack.c.b16 %v5343, %v5335
    %v6248 = vpack.c.b16 %v5352, %v5344
    %v6249 = vpack.c.b16 %v5353, %v5345
    %v6250 = vpack.c.b16 %v5354, %v5346
    %v6251 = vpack.c.b16 %v5355, %v5347
    %v6252 = vpack.c.b16 %v5356, %v5348
    %v6253 = vpack.c.b16 %v5357, %v5349
    %v6254 = vpack.c.b16 %v5358, %v5350
    %v6255 = vpack.c.b16 %v5359, %v5351
    %v6256 = vpack.c.b16 %v5368, %v5360
    %v6257 = vpack.c.b16 %v5369, %v5361
    %v6258 = vpack.c.b16 %v5370, %v5362
    %v6259 = vpack.c.b16 %v5371, %v5363
    %v6260 = vpack.c.b16 %v5372, %v5364
    %v6261 = vpack.c.b16 %v5373, %v5365
    %v6262 = vpack.c.b16 %v5374, %v5366
    %v6263 = vpack.c.b16 %v5375, %v5367
    %v6264 = vpack.c.b16 %v5384, %v5376
    %v6265 = vpack.c.b16 %v5385, %v5377
    %v6266 = vpack.c.b16 %v5386, %v5378
    %v6267 = vpack.c.b16 %v5387, %v5379
    %v6268 = vpack.c.b16 %v5388, %v5380
    %v6269 = vpack.c.b16 %v5389, %v5381
    %v6270 = vpack.c.b16 %v5390, %v5382
    %v6271 = vpack.c.b16 %v5391, %v5383
    %v6272 = vpack.c.b16 %v5400, %v5392
    %v6273 = vpack.c.b16 %v5401, %v5393
    %v6274 = vpack.c.b16 %v5402, %v5394
    %v6275 = vpack.c.b16 %v5403, %v5395
    %v6276 = vpack.c.b16 %v5404, %v5396
    %v6277 = vpack.c.b16 %v5405, %v5397
    %v6278 = vpack.c.b16 %v5406, %v5398
    %v6279 = vpack.c.b16 %v5407, %v5399
    %v6280 = vpack.c.b16 %v5416, %v5408
    %v6281 = vpack.c.b16 %v5417, %v5409
    %v6282 = vpack.c.b16 %v5418, %v5410
    %v6283 = vpack.c.b16 %v5419, %v5411
    %v6284 = vpack.c.b16 %v5420, %v5412
    %v6285 = vpack.c.b16 %v5421, %v5413
    %v6286 = vpack.c.b16 %v5422, %v5414
    %v6287 = vpack.c.b16 %v5423, %v5415
    %v6288 = vpack.c.b16 %v5432, %v5424
    %v6289 = vpack.c.b16 %v5433, %v5425
    %v6290 = vpack.c.b16 %v5434, %v5426
    %v6291 = vpack.c.b16 %v5435, %v5427
    %v6292 = vpack.c.b16 %v5436, %v5428
    %v6293 = vpack.c.b16 %v5437, %v5429
    %v6294 = vpack.c.b16 %v5438, %v5430
    %v6295 = vpack.c.b16 %v5439, %v5431
    %v6296 = vpack.c.b16 %v5448, %v5440
    %v6297 = vpack.c.b16 %v5449, %v5441
    %v6298 = vpack.c.b16 %v5450, %v5442
    %v6299 = vpack.c.b16 %v5451, %v5443
    %v6300 = vpack.c.b16 %v5452, %v5444
    %v6301 = vpack.c.b16 %v5453, %v5445
    %v6302 = vpack.c.b16 %v5454, %v5446
    %v6303 = vpack.c.b16 %v5455, %v5447
    %v6304 = vpack.c.b16 %v5464, %v5456
    %v6305 = vpack.c.b16 %v5465, %v5457
    %v6306 = vpack.c.b16 %v5466, %v5458
    %v6307 = vpack.c.b16 %v5467, %v5459
    %v6308 = vpack.c.b16 %v5468, %v5460
    %v6309 = vpack.c.b16 %v5469, %v5461
    %v6310 = vpack.c.b16 %v5470, %v5462
    %v6311 = vpack.c.b16 %v5471, %v5463
    %v6312 = vpack.c.b16 %v5480, %v5472
    %v6313 = vpack.c.b16 %v5481, %v5473
    %v6314 = vpack.c.b16 %v5482, %v5474
    %v6315 = vpack.c.b16 %v5483, %v5475
    %v6316 = vpack.c.b16 %v5484, %v5476
    %v6317 = vpack.c.b16 %v5485, %v5477
    %v6318 = vpack.c.b16 %v5486, %v5478
    %v6319 = vpack.c.b16 %v5487, %v5479
    %v6320 = vpack.c.b16 %v5496, %v5488
    %v6321 = vpack.c.b16 %v5497, %v5489
    %v6322 = vpack.c.b16 %v5498, %v5490
    %v6323 = vpack.c.b16 %v5499, %v5491
    %v6324 = vpack.c.b16 %v5500, %v5492
    %v6325 = vpack.c.b16 %v5501, %v5493
    %v6326 = vpack.c.b16 %v5502, %v5494
    %v6327 = vpack.c.b16 %v5503, %v5495
    %v6328 = vpack.c.b16 %v5512, %v5504
    %v6329 = vpack.c.b16 %v5513, %v5505
    %v6330 = vpack.c.b16 %v5514, %v5506
    %v6331 = vpack.c.b16 %v5515, %v5507
    %v6332 = vpack.c.b16 %v5516, %v5508
    %v6333 = vpack.c.b16 %v5517, %v5509
    %v6334 = vpack.c.b16 %v5518, %v5510
    %v6335 = vpack.c.b16 %v5519, %v5511
    %v6336 = vpack.c.b16 %v5528, %v5520
    %v6337 = vpack.c.b16 %v5529, %v5521
    %v6338 = vpack.c.b16 %v5530, %v5522
    %v6339 = vpack.c.b16 %v5531, %v5523
    %v6340 = vpack.c.b16 %v5532, %v5524
    %v6341 = vpack.c.b16 %v5533, %v5525
    %v6342 = vpack.c.b16 %v5534, %v5526
    %v6343 = vpack.c.b16 %v5535, %v5527
    %v6344 = vpack.c.b16 %v5544, %v5536
    %v6345 = vpack.c.b16 %v5545, %v5537
    %v6346 = vpack.c.b16 %v5546, %v5538
    %v6347 = vpack.c.b16 %v5547, %v5539
    %v6348 = vpack.c.b16 %v5548, %v5540
    %v6349 = vpack.c.b16 %v5549, %v5541
    %v6350 = vpack.c.b16 %v5550, %v5542
    %v6351 = vpack.c.b16 %v5551, %v5543
    %v6352 = vpack.c.b16 %v5560, %v5552
    %v6353 = vpack.c.b16 %v5561, %v5553
    %v6354 = vpack.c.b16 %v5562, %v5554
    %v6355 = vpack.c.b16 %v5563, %v5555
    %v6356 = vpack.c.b16 %v5564, %v5556
    %v6357 = vpack.c.b16 %v5565, %v5557
    %v6358 = vpack.c.b16 %v5566, %v5558
    %v6359 = vpack.c.b16 %v5567, %v5559
    %v6360 = vpack.c.b16 %v5576, %v5568
    %v6361 = vpack.c.b16 %v5577, %v5569
    %v6362 = vpack.c.b16 %v5578, %v5570
    %v6363 = vpack.c.b16 %v5579, %v5571
    %v6364 = vpack.c.b16 %v5580, %v5572
    %v6365 = vpack.c.b16 %v5581, %v5573
    %v6366 = vpack.c.b16 %v5582, %v5574
    %v6367 = vpack.c.b16 %v5583, %v5575
    %v6368 = vpack.c.b16 %v5592, %v5584
    %v6369 = vpack.c.b16 %v5593, %v5585
    %v6370 = vpack.c.b16 %v5594, %v5586
    %v6371 = vpack.c.b16 %v5595, %v5587
    %v6372 = vpack.c.b16 %v5596, %v5588
    %v6373 = vpack.c.b16 %v5597, %v5589
    %v6374 = vpack.c.b16 %v5598, %v5590
    %v6375 = vpack.c.b16 %v5599, %v5591
    %v6376 = vpack.c.b16 %v5608, %v5600
    %v6377 = vpack.c.b16 %v5609, %v5601
    %v6378 = vpack.c.b16 %v5610, %v5602
    %v6379 = vpack.c.b16 %v5611, %v5603
    %v6380 = vpack.c.b16 %v5612, %v5604
    %v6381 = vpack.c.b16 %v5613, %v5605
    %v6382 = vpack.c.b16 %v5614, %v5606
    %v6383 = vpack.c.b16 %v5615, %v5607
    %v6384 = vpack.c.b16 %v5624, %v5616
    %v6385 = vpack.c.b16 %v5625, %v5617
    %v6386 = vpack.c.b16 %v5626, %v5618
    %v6387 = vpack.c.b16 %v5627, %v5619
    %v6388 = vpack.c.b16 %v5628, %v5620
    %v6389 = vpack.c.b16 %v5629, %v5621
    %v6390 = vpack.c.b16 %v5630, %v5622
    %v6391 = vpack.c.b16 %v5631, %v5623
    %v6392 = vpack.c.b16 %v5640, %v5632
    %v6393 = vpack.c.b16 %v5641, %v5633
    %v6394 = vpack.c.b16 %v5642, %v5634
    %v6395 = vpack.c.b16 %v5643, %v5635
    %v6396 = vpack.c.b16 %v5644, %v5636
    %v6397 = vpack.c.b16 %v5645, %v5637
    %v6398 = vpack.c.b16 %v5646, %v5638
    %v6399 = vpack.c.b16 %v5647, %v5639
    %v6400 = vpack.c.b16 %v5656, %v5648
    %v6401 = vpack.c.b16 %v5657, %v5649
    %v6402 = vpack.c.b16 %v5658, %v5650
    %v6403 = vpack.c.b16 %v5659, %v5651
    %v6404 = vpack.c.b16 %v5660, %v5652
    %v6405 = vpack.c.b16 %v5661, %v5653
    %v6406 = vpack.c.b16 %v5662, %v5654
    %v6407 = vpack.c.b16 %v5663, %v5655
    %v6408 = vpack.c.b16 %v5672, %v5664
    %v6409 = vpack.c.b16 %v5673, %v5665
    %v6410 = vpack.c.b16 %v5674, %v5666
    %v6411 = vpack.c.b16 %v5675, %v5667
    %v6412 = vpack.c.b16 %v5676, %v5668
    %v6413 = vpack.c.b16 %v5677, %v5669
    %v6414 = vpack.c.b16 %v5678, %v5670
    %v6415 = vpack.c.b16 %v5679, %v5671
    %v6416 = vpack.c.b16 %v5688, %v5680
    %v6417 = vpack.c.b16 %v5689, %v5681
    %v6418 = vpack.c.b16 %v5690, %v5682
    %v6419 = vpack.c.b16 %v5691, %v5683
    %v6420 = vpack.c.b16 %v5692, %v5684
    %v6421 = vpack.c.b16 %v5693, %v5685
    %v6422 = vpack.c.b16 %v5694, %v5686
    %v6423 = vpack.c.b16 %v5695, %v5687
    %v6424 = vpack.c.b16 %v5704, %v5696
    %v6425 = vpack.c.b16 %v5705, %v5697
    %v6426 = vpack.c.b16 %v5706, %v5698
    %v6427 = vpack.c.b16 %v5707, %v5699
    %v6428 = vpack.c.b16 %v5708, %v5700
    %v6429 = vpack.c.b16 %v5709, %v5701
    %v6430 = vpack.c.b16 %v5710, %v5702
    %v6431 = vpack.c.b16 %v5711, %v5703
    %v6432 = vpack.c.b16 %v5720, %v5712
    %v6433 = vpack.c.b16 %v5721, %v5713
    %v6434 = vpack.c.b16 %v5722, %v5714
    %v6435 = vpack.c.b16 %v5723, %v5715
    %v6436 = vpack.c.b16 %v5724, %v5716
    %v6437 = vpack.c.b16 %v5725, %v5717
    %v6438 = vpack.c.b16 %v5726, %v5718
    %v6439 = vpack.c.b16 %v5727, %v5719
    %v6440 = vpack.c.b16 %v5736, %v5728
    %v6441 = vpack.c.b16 %v5737, %v5729
    %v6442 = vpack.c.b16 %v5738, %v5730
    %v6443 = vpack.c.b16 %v5739, %v5731
    %v6444 = vpack.c.b16 %v5740, %v5732
    %v6445 = vpack.c.b16 %v5741, %v5733
    %v6446 = vpack.c.b16 %v5742, %v5734
    %v6447 = vpack.c.b16 %v5743, %v5735
    %v6448 = vpack.c.b16 %v5752, %v5744
    %v6449 = vpack.c.b16 %v5753, %v5745
    %v6450 = vpack.c.b16 %v5754, %v5746
    %v6451 = vpack.c.b16 %v5755, %v5747
    %v6452 = vpack.c.b16 %v5756, %v5748
    %v6453 = vpack.c.b16 %v5757, %v5749
    %v6454 = vpack.c.b16 %v5758, %v5750
    %v6455 = vpack.c.b16 %v5759, %v5751
    %v6456 = vpack.c.b16 %v5768, %v5760
    %v6457 = vpack.c.b16 %v5769, %v5761
    %v6458 = vpack.c.b16 %v5770, %v5762
    %v6459 = vpack.c.b16 %v5771, %v5763
    %v6460 = vpack.c.b16 %v5772, %v5764
    %v6461 = vpack.c.b16 %v5773, %v5765
    %v6462 = vpack.c.b16 %v5774, %v5766
    %v6463 = vpack.c.b16 %v5775, %v5767
    %v6464 = vpack.c.b16 %v5784, %v5776
    %v6465 = vpack.c.b16 %v5785, %v5777
    %v6466 = vpack.c.b16 %v5786, %v5778
    %v6467 = vpack.c.b16 %v5787, %v5779
    %v6468 = vpack.c.b16 %v5788, %v5780
    %v6469 = vpack.c.b16 %v5789, %v5781
    %v6470 = vpack.c.b16 %v5790, %v5782
    %v6471 = vpack.c.b16 %v5791, %v5783
    %v6472 = vpack.c.b16 %v5800, %v5792
    %v6473 = vpack.c.b16 %v5801, %v5793
    %v6474 = vpack.c.b16 %v5802, %v5794
    %v6475 = vpack.c.b16 %v5803, %v5795
    %v6476 = vpack.c.b16 %v5804, %v5796
    %v6477 = vpack.c.b16 %v5805, %v5797
    %v6478 = vpack.c.b16 %v5806, %v5798
    %v6479 = vpack.c.b16 %v5807, %v5799
    %v6480 = vpack.c.b16 %v5816, %v5808
    %v6481 = vpack.c.b16 %v5817, %v5809
    %v6482 = vpack.c.b16 %v5818, %v5810
    %v6483 = vpack.c.b16 %v5819, %v5811
    %v6484 = vpack.c.b16 %v5820, %v5812
    %v6485 = vpack.c.b16 %v5821, %v5813
    %v6486 = vpack.c.b16 %v5822, %v5814
    %v6487 = vpack.c.b16 %v5823, %v5815
    %v6488 = vpack.c.b16 %v5832, %v5824
    %v6489 = vpack.c.b16 %v5833, %v5825
    %v6490 = vpack.c.b16 %v5834, %v5826
    %v6491 = vpack.c.b16 %v5835, %v5827
    %v6492 = vpack.c.b16 %v5836, %v5828
    %v6493 = vpack.c.b16 %v5837, %v5829
    %v6494 = vpack.c.b16 %v5838, %v5830
    %v6495 = vpack.c.b16 %v5839, %v5831
    %v6496 = vpack.c.b16 %v5848, %v5840
    %v6497 = vpack.c.b16 %v5849, %v5841
    %v6498 = vpack.c.b16 %v5850, %v5842
    %v6499 = vpack.c.b16 %v5851, %v5843
    %v6500 = vpack.c.b16 %v5852, %v5844
    %v6501 = vpack.c.b16 %v5853, %v5845
    %v6502 = vpack.c.b16 %v5854, %v5846
    %v6503 = vpack.c.b16 %v5855, %v5847
    %v6504 = vpack.c.b16 %v5864, %v5856
    %v6505 = vpack.c.b16 %v5865, %v5857
    %v6506 = vpack.c.b16 %v5866, %v5858
    %v6507 = vpack.c.b16 %v5867, %v5859
    %v6508 = vpack.c.b16 %v5868, %v5860
    %v6509 = vpack.c.b16 %v5869, %v5861
    %v6510 = vpack.c.b16 %v5870, %v5862
    %v6511 = vpack.c.b16 %v5871, %v5863
    %v6512 = vpack.c.b16 %v5880, %v5872
    %v6513 = vpack.c.b16 %v5881, %v5873
    %v6514 = vpack.c.b16 %v5882, %v5874
    %v6515 = vpack.c.b16 %v5883, %v5875
    %v6516 = vpack.c.b16 %v5884, %v5876
    %v6517 = vpack.c.b16 %v5885, %v5877
    %v6518 = vpack.c.b16 %v5886, %v5878
    %v6519 = vpack.c.b16 %v5887, %v5879
    %v6520 = vpack.c.b16 %v5896, %v5888
    %v6521 = vpack.c.b16 %v5897, %v5889
    %v6522 = vpack.c.b16 %v5898, %v5890
    %v6523 = vpack.c.b16 %v5899, %v5891
    %v6524 = vpack.c.b16 %v5900, %v5892
    %v6525 = vpack.c.b16 %v5901, %v5893
    %v6526 = vpack.c.b16 %v5902, %v5894
    %v6527 = vpack.c.b16 %v5903, %v5895
    %v6528 = vpack.c.b16 %v5912, %v5904
    %v6529 = vpack.c.b16 %v5913, %v5905
    %v6530 = vpack.c.b16 %v5914, %v5906
    %v6531 = vpack.c.b16 %v5915, %v5907
    %v6532 = vpack.c.b16 %v5916, %v5908
    %v6533 = vpack.c.b16 %v5917, %v5909
    %v6534 = vpack.c.b16 %v5918, %v5910
    %v6535 = vpack.c.b16 %v5919, %v5911
    %v6536 = vpack.c.b16 %v5928, %v5920
    %v6537 = vpack.c.b16 %v5929, %v5921
    %v6538 = vpack.c.b16 %v5930, %v5922
    %v6539 = vpack.c.b16 %v5931, %v5923
    %v6540 = vpack.c.b16 %v5932, %v5924
    %v6541 = vpack.c.b16 %v5933, %v5925
    %v6542 = vpack.c.b16 %v5934, %v5926
    %v6543 = vpack.c.b16 %v5935, %v5927
    %v6544 = vpack.c.b16 %v5944, %v5936
    %v6545 = vpack.c.b16 %v5945, %v5937
    %v6546 = vpack.c.b16 %v5946, %v5938
    %v6547 = vpack.c.b16 %v5947, %v5939
    %v6548 = vpack.c.b16 %v5948, %v5940
    %v6549 = vpack.c.b16 %v5949, %v5941
    %v6550 = vpack.c.b16 %v5950, %v5942
    %v6551 = vpack.c.b16 %v5951, %v5943
    %v6552 = vpack.c.b16 %v5960, %v5952
    %v6553 = vpack.c.b16 %v5961, %v5953
    %v6554 = vpack.c.b16 %v5962, %v5954
    %v6555 = vpack.c.b16 %v5963, %v5955
    %v6556 = vpack.c.b16 %v5964, %v5956
    %v6557 = vpack.c.b16 %v5965, %v5957
    %v6558 = vpack.c.b16 %v5966, %v5958
    %v6559 = vpack.c.b16 %v5967, %v5959
    %v6560 = vpack.c.b16 %v5976, %v5968
    %v6561 = vpack.c.b16 %v5977, %v5969
    %v6562 = vpack.c.b16 %v5978, %v5970
    %v6563 = vpack.c.b16 %v5979, %v5971
    %v6564 = vpack.c.b16 %v5980, %v5972
    %v6565 = vpack.c.b16 %v5981, %v5973
    %v6566 = vpack.c.b16 %v5982, %v5974
    %v6567 = vpack.c.b16 %v5983, %v5975
    %v6568 = vpack.c.b16 %v5992, %v5984
    %v6569 = vpack.c.b16 %v5993, %v5985
    %v6570 = vpack.c.b16 %v5994, %v5986
    %v6571 = vpack.c.b16 %v5995, %v5987
    %v6572 = vpack.c.b16 %v5996, %v5988
    %v6573 = vpack.c.b16 %v5997, %v5989
    %v6574 = vpack.c.b16 %v5998, %v5990
    %v6575 = vpack.c.b16 %v5999, %v5991
    %v6576 = vpack.c.b16 %v6008, %v6000
    %v6577 = vpack.c.b16 %v6009, %v6001
    %v6578 = vpack.c.b16 %v6010, %v6002
    %v6579 = vpack.c.b16 %v6011, %v6003
    %v6580 = vpack.c.b16 %v6012, %v6004
    %v6581 = vpack.c.b16 %v6013, %v6005
    %v6582 = vpack.c.b16 %v6014, %v6006
    %v6583 = vpack.c.b16 %v6015, %v6007
    %v6584 = vpack.c.b16 %v6024, %v6016
    %v6585 = vpack.c.b16 %v6025, %v6017
    %v6586 = vpack.c.b16 %v6026, %v6018
    %v6587 = vpack.c.b16 %v6027, %v6019
    %v6588 = vpack.c.b16 %v6028, %v6020
    %v6589 = vpack.c.b16 %v6029, %v6021
    %v6590 = vpack.c.b16 %v6030, %v6022
    %v6591 = vpack.c.b16 %v6031, %v6023
    %v6592 = vpack.c.b16 %v6040, %v6032
    %v6593 = vpack.c.b16 %v6041, %v6033
    %v6594 = vpack.c.b16 %v6042, %v6034
    %v6595 = vpack.c.b16 %v6043, %v6035
    %v6596 = vpack.c.b16 %v6044, %v6036
    %v6597 = vpack.c.b16 %v6045, %v6037
    %v6598 = vpack.c.b16 %v6046, %v6038
    %v6599 = vpack.c.b16 %v6047, %v6039
    %v6600 = vpack.c.b16 %v6056, %v6048
    %v6601 = vpack.c.b16 %v6057, %v6049
    %v6602 = vpack.c.b16 %v6058, %v6050
    %v6603 = vpack.c.b16 %v6059, %v6051
    %v6604 = vpack.c.b16 %v6060, %v6052
    %v6605 = vpack.c.b16 %v6061, %v6053
    %v6606 = vpack.c.b16 %v6062, %v6054
    %v6607 = vpack.c.b16 %v6063, %v6055
    %v6608 = vpack.c.b16 %v6072, %v6064
    %v6609 = vpack.c.b16 %v6073, %v6065
    %v6610 = vpack.c.b16 %v6074, %v6066
    %v6611 = vpack.c.b16 %v6075, %v6067
    %v6612 = vpack.c.b16 %v6076, %v6068
    %v6613 = vpack.c.b16 %v6077, %v6069
    %v6614 = vpack.c.b16 %v6078, %v6070
    %v6615 = vpack.c.b16 %v6079, %v6071
    %v6616 = vpack.c.b16 %v6088, %v6080
    %v6617 = vpack.c.b16 %v6089, %v6081
    %v6618 = vpack.c.b16 %v6090, %v6082
    %v6619 = vpack.c.b16 %v6091, %v6083
    %v6620 = vpack.c.b16 %v6092, %v6084
    %v6621 = vpack.c.b16 %v6093, %v6085
    %v6622 = vpack.c.b16 %v6094, %v6086
    %v6623 = vpack.c.b16 %v6095, %v6087
    %v6624 = vpack.c.b16 %v6104, %v6096
    %v6625 = vpack.c.b16 %v6105, %v6097
    %v6626 = vpack.c.b16 %v6106, %v6098
    %v6627 = vpack.c.b16 %v6107, %v6099
    %v6628 = vpack.c.b16 %v6108, %v6100
    %v6629 = vpack.c.b16 %v6109, %v6101
    %v6630 = vpack.c.b16 %v6110, %v6102
    %v6631 = vpack.c.b16 %v6111, %v6103
    %v6632 = vpack.c.b16 %v6120, %v6112
    %v6633 = vpack.c.b16 %v6121, %v6113
    %v6634 = vpack.c.b16 %v6122, %v6114
    %v6635 = vpack.c.b16 %v6123, %v6115
    %v6636 = vpack.c.b16 %v6124, %v6116
    %v6637 = vpack.c.b16 %v6125, %v6117
    %v6638 = vpack.c.b16 %v6126, %v6118
    %v6639 = vpack.c.b16 %v6127, %v6119
    %7152 = vmatpush.bf16.msra.mxu0 %v6184
    %7153 = vmatpush.bf16.msra.mxu0 %v6176
    %7154 = vmatpush.bf16.msra.mxu0 %v6168
    %7155 = vmatpush.bf16.msra.mxu0 %v6160
    %7156 = vmatpush.bf16.msra.mxu0 %v6152
    %7157 = vmatpush.bf16.msra.mxu0 %v6144
    %7158 = vmatpush.bf16.msra.mxu0 %v6136
    %7159 = vmatpush.bf16.msra.mxu0 %v6128
    %7160 = vmatmul.bf16.gmra.mxu0 %v4584
    %v7161 = vpop.f32.mrf.mxu0
    %v7162 = vadd.f32 %v1137, %v7161
    %v7163 = vpop.f32.mrf.mxu0
    %7164 = vdwg.mxu0
    %7165 = vmatpush.bf16.msra.mxu0 %v6248
    %7166 = vmatpush.bf16.msra.mxu0 %v6240
    %7167 = vmatpush.bf16.msra.mxu0 %v6232
    %7168 = vmatpush.bf16.msra.mxu0 %v6224
    %7169 = vmatpush.bf16.msra.mxu0 %v6216
    %7170 = vmatpush.bf16.msra.mxu0 %v6208
    %7171 = vmatpush.bf16.msra.mxu0 %v6200
    %7172 = vmatpush.bf16.msra.mxu0 %v6192
    %7173 = vmatmul.bf16.gmra.mxu0 %v4585
    %v7174 = vpop.f32.mrf.mxu0
    %v7175 = vadd.f32 %v7162, %v7174
    %v7176 = vpop.f32.mrf.mxu0
    %7177 = vdwg.mxu0
    %7178 = vmatpush.bf16.msra.mxu0 %v6312
    %7179 = vmatpush.bf16.msra.mxu0 %v6304
    %7180 = vmatpush.bf16.msra.mxu0 %v6296
    %7181 = vmatpush.bf16.msra.mxu0 %v6288
    %7182 = vmatpush.bf16.msra.mxu0 %v6280
    %7183 = vmatpush.bf16.msra.mxu0 %v6272
    %7184 = vmatpush.bf16.msra.mxu0 %v6264
    %7185 = vmatpush.bf16.msra.mxu0 %v6256
    %7186 = vmatmul.bf16.gmra.mxu0 %v4586
    %v7187 = vpop.f32.mrf.mxu0
    %v7188 = vadd.f32 %v7175, %v7187
    %v7189 = vpop.f32.mrf.mxu0
    %7190 = vdwg.mxu0
    %7191 = vmatpush.bf16.msra.mxu0 %v6376
    %7192 = vmatpush.bf16.msra.mxu0 %v6368
    %7193 = vmatpush.bf16.msra.mxu0 %v6360
    %7194 = vmatpush.bf16.msra.mxu0 %v6352
    %7195 = vmatpush.bf16.msra.mxu0 %v6344
    %7196 = vmatpush.bf16.msra.mxu0 %v6336
    %7197 = vmatpush.bf16.msra.mxu0 %v6328
    %7198 = vmatpush.bf16.msra.mxu0 %v6320
    %7199 = vmatmul.bf16.gmra.mxu0 %v4587
    %v7200 = vpop.f32.mrf.mxu0
    %v7201 = vadd.f32 %v7188, %v7200
    %v7202 = vpop.f32.mrf.mxu0
    %7203 = vdwg.mxu0
    %7204 = vmatpush.bf16.msra.mxu0 %v6440
    %7205 = vmatpush.bf16.msra.mxu0 %v6432
    %7206 = vmatpush.bf16.msra.mxu0 %v6424
    %7207 = vmatpush.bf16.msra.mxu0 %v6416
    %7208 = vmatpush.bf16.msra.mxu0 %v6408
    %7209 = vmatpush.bf16.msra.mxu0 %v6400
    %7210 = vmatpush.bf16.msra.mxu0 %v6392
    %7211 = vmatpush.bf16.msra.mxu0 %v6384
    %7212 = vmatmul.bf16.gmra.mxu0 %v4588
    %v7213 = vpop.f32.mrf.mxu0
    %v7214 = vadd.f32 %v7201, %v7213
    %v7215 = vpop.f32.mrf.mxu0
    %7216 = vdwg.mxu0
    %7217 = vmatpush.bf16.msra.mxu0 %v6504
    %7218 = vmatpush.bf16.msra.mxu0 %v6496
    %7219 = vmatpush.bf16.msra.mxu0 %v6488
    %7220 = vmatpush.bf16.msra.mxu0 %v6480
    %7221 = vmatpush.bf16.msra.mxu0 %v6472
    %7222 = vmatpush.bf16.msra.mxu0 %v6464
    %7223 = vmatpush.bf16.msra.mxu0 %v6456
    %7224 = vmatpush.bf16.msra.mxu0 %v6448
    %7225 = vmatmul.bf16.gmra.mxu0 %v4589
    %v7226 = vpop.f32.mrf.mxu0
    %v7227 = vadd.f32 %v7214, %v7226
    %v7228 = vpop.f32.mrf.mxu0
    %7229 = vdwg.mxu0
    %7230 = vmatpush.bf16.msra.mxu0 %v6568
    %7231 = vmatpush.bf16.msra.mxu0 %v6560
    %7232 = vmatpush.bf16.msra.mxu0 %v6552
    %7233 = vmatpush.bf16.msra.mxu0 %v6544
    %7234 = vmatpush.bf16.msra.mxu0 %v6536
    %7235 = vmatpush.bf16.msra.mxu0 %v6528
    %7236 = vmatpush.bf16.msra.mxu0 %v6520
    %7237 = vmatpush.bf16.msra.mxu0 %v6512
    %7238 = vmatmul.bf16.gmra.mxu0 %v4590
    %v7239 = vpop.f32.mrf.mxu0
    %v7240 = vadd.f32 %v7227, %v7239
    %v7241 = vpop.f32.mrf.mxu0
    %7242 = vdwg.mxu0
    %7243 = vmatpush.bf16.msra.mxu0 %v6632
    %7244 = vmatpush.bf16.msra.mxu0 %v6624
    %7245 = vmatpush.bf16.msra.mxu0 %v6616
    %7246 = vmatpush.bf16.msra.mxu0 %v6608
    %7247 = vmatpush.bf16.msra.mxu0 %v6600
    %7248 = vmatpush.bf16.msra.mxu0 %v6592
    %7249 = vmatpush.bf16.msra.mxu0 %v6584
    %7250 = vmatpush.bf16.msra.mxu0 %v6576
    %7251 = vmatmul.bf16.gmra.mxu0 %v4591
    %v7252 = vpop.f32.mrf.mxu0
    %v7253 = vadd.f32 %v7240, %v7252
    %v7254 = vpop.f32.mrf.mxu0
    %7255 = vdwg.mxu0
    %7256 = vmatpush.bf16.msra.mxu0 %v6185
    %7257 = vmatpush.bf16.msra.mxu0 %v6177
    %7258 = vmatpush.bf16.msra.mxu0 %v6169
    %7259 = vmatpush.bf16.msra.mxu0 %v6161
    %7260 = vmatpush.bf16.msra.mxu0 %v6153
    %7261 = vmatpush.bf16.msra.mxu0 %v6145
    %7262 = vmatpush.bf16.msra.mxu0 %v6137
    %7263 = vmatpush.bf16.msra.mxu0 %v6129
    %7264 = vmatmul.bf16.gmra.mxu0 %v4584
    %v7265 = vpop.f32.mrf.mxu0
    %v7266 = vadd.f32 %v1138, %v7265
    %v7267 = vpop.f32.mrf.mxu0
    %7268 = vdwg.mxu0
    %7269 = vmatpush.bf16.msra.mxu0 %v6249
    %7270 = vmatpush.bf16.msra.mxu0 %v6241
    %7271 = vmatpush.bf16.msra.mxu0 %v6233
    %7272 = vmatpush.bf16.msra.mxu0 %v6225
    %7273 = vmatpush.bf16.msra.mxu0 %v6217
    %7274 = vmatpush.bf16.msra.mxu0 %v6209
    %7275 = vmatpush.bf16.msra.mxu0 %v6201
    %7276 = vmatpush.bf16.msra.mxu0 %v6193
    %7277 = vmatmul.bf16.gmra.mxu0 %v4585
    %v7278 = vpop.f32.mrf.mxu0
    %v7279 = vadd.f32 %v7266, %v7278
    %v7280 = vpop.f32.mrf.mxu0
    %7281 = vdwg.mxu0
    %7282 = vmatpush.bf16.msra.mxu0 %v6313
    %7283 = vmatpush.bf16.msra.mxu0 %v6305
    %7284 = vmatpush.bf16.msra.mxu0 %v6297
    %7285 = vmatpush.bf16.msra.mxu0 %v6289
    %7286 = vmatpush.bf16.msra.mxu0 %v6281
    %7287 = vmatpush.bf16.msra.mxu0 %v6273
    %7288 = vmatpush.bf16.msra.mxu0 %v6265
    %7289 = vmatpush.bf16.msra.mxu0 %v6257
    %7290 = vmatmul.bf16.gmra.mxu0 %v4586
    %v7291 = vpop.f32.mrf.mxu0
    %v7292 = vadd.f32 %v7279, %v7291
    %v7293 = vpop.f32.mrf.mxu0
    %7294 = vdwg.mxu0
    %7295 = vmatpush.bf16.msra.mxu0 %v6377
    %7296 = vmatpush.bf16.msra.mxu0 %v6369
    %7297 = vmatpush.bf16.msra.mxu0 %v6361
    %7298 = vmatpush.bf16.msra.mxu0 %v6353
    %7299 = vmatpush.bf16.msra.mxu0 %v6345
    %7300 = vmatpush.bf16.msra.mxu0 %v6337
    %7301 = vmatpush.bf16.msra.mxu0 %v6329
    %7302 = vmatpush.bf16.msra.mxu0 %v6321
    %7303 = vmatmul.bf16.gmra.mxu0 %v4587
    %v7304 = vpop.f32.mrf.mxu0
    %v7305 = vadd.f32 %v7292, %v7304
    %v7306 = vpop.f32.mrf.mxu0
    %7307 = vdwg.mxu0
    %7308 = vmatpush.bf16.msra.mxu0 %v6441
    %7309 = vmatpush.bf16.msra.mxu0 %v6433
    %7310 = vmatpush.bf16.msra.mxu0 %v6425
    %7311 = vmatpush.bf16.msra.mxu0 %v6417
    %7312 = vmatpush.bf16.msra.mxu0 %v6409
    %7313 = vmatpush.bf16.msra.mxu0 %v6401
    %7314 = vmatpush.bf16.msra.mxu0 %v6393
    %7315 = vmatpush.bf16.msra.mxu0 %v6385
    %7316 = vmatmul.bf16.gmra.mxu0 %v4588
    %v7317 = vpop.f32.mrf.mxu0
    %v7318 = vadd.f32 %v7305, %v7317
    %v7319 = vpop.f32.mrf.mxu0
    %7320 = vdwg.mxu0
    %7321 = vmatpush.bf16.msra.mxu0 %v6505
    %7322 = vmatpush.bf16.msra.mxu0 %v6497
    %7323 = vmatpush.bf16.msra.mxu0 %v6489
    %7324 = vmatpush.bf16.msra.mxu0 %v6481
    %7325 = vmatpush.bf16.msra.mxu0 %v6473
    %7326 = vmatpush.bf16.msra.mxu0 %v6465
    %7327 = vmatpush.bf16.msra.mxu0 %v6457
    %7328 = vmatpush.bf16.msra.mxu0 %v6449
    %7329 = vmatmul.bf16.gmra.mxu0 %v4589
    %v7330 = vpop.f32.mrf.mxu0
    %v7331 = vadd.f32 %v7318, %v7330
    %v7332 = vpop.f32.mrf.mxu0
    %7333 = vdwg.mxu0
    %7334 = vmatpush.bf16.msra.mxu0 %v6569
    %7335 = vmatpush.bf16.msra.mxu0 %v6561
    %7336 = vmatpush.bf16.msra.mxu0 %v6553
    %7337 = vmatpush.bf16.msra.mxu0 %v6545
    %7338 = vmatpush.bf16.msra.mxu0 %v6537
    %7339 = vmatpush.bf16.msra.mxu0 %v6529
    %7340 = vmatpush.bf16.msra.mxu0 %v6521
    %7341 = vmatpush.bf16.msra.mxu0 %v6513
    %7342 = vmatmul.bf16.gmra.mxu0 %v4590
    %v7343 = vpop.f32.mrf.mxu0
    %v7344 = vadd.f32 %v7331, %v7343
    %v7345 = vpop.f32.mrf.mxu0
    %7346 = vdwg.mxu0
    %7347 = vmatpush.bf16.msra.mxu0 %v6633
    %7348 = vmatpush.bf16.msra.mxu0 %v6625
    %7349 = vmatpush.bf16.msra.mxu0 %v6617
    %7350 = vmatpush.bf16.msra.mxu0 %v6609
    %7351 = vmatpush.bf16.msra.mxu0 %v6601
    %7352 = vmatpush.bf16.msra.mxu0 %v6593
    %7353 = vmatpush.bf16.msra.mxu0 %v6585
    %7354 = vmatpush.bf16.msra.mxu0 %v6577
    %7355 = vmatmul.bf16.gmra.mxu0 %v4591
    %v7356 = vpop.f32.mrf.mxu0
    %v7357 = vadd.f32 %v7344, %v7356
    %v7358 = vpop.f32.mrf.mxu0
    %7359 = vdwg.mxu0
    %7360 = vmatpush.bf16.msra.mxu0 %v6186
    %7361 = vmatpush.bf16.msra.mxu0 %v6178
    %7362 = vmatpush.bf16.msra.mxu0 %v6170
    %7363 = vmatpush.bf16.msra.mxu0 %v6162
    %7364 = vmatpush.bf16.msra.mxu0 %v6154
    %7365 = vmatpush.bf16.msra.mxu0 %v6146
    %7366 = vmatpush.bf16.msra.mxu0 %v6138
    %7367 = vmatpush.bf16.msra.mxu0 %v6130
    %7368 = vmatmul.bf16.gmra.mxu0 %v4584
    %v7369 = vpop.f32.mrf.mxu0
    %v7370 = vadd.f32 %v1139, %v7369
    %v7371 = vpop.f32.mrf.mxu0
    %7372 = vdwg.mxu0
    %7373 = vmatpush.bf16.msra.mxu0 %v6250
    %7374 = vmatpush.bf16.msra.mxu0 %v6242
    %7375 = vmatpush.bf16.msra.mxu0 %v6234
    %7376 = vmatpush.bf16.msra.mxu0 %v6226
    %7377 = vmatpush.bf16.msra.mxu0 %v6218
    %7378 = vmatpush.bf16.msra.mxu0 %v6210
    %7379 = vmatpush.bf16.msra.mxu0 %v6202
    %7380 = vmatpush.bf16.msra.mxu0 %v6194
    %7381 = vmatmul.bf16.gmra.mxu0 %v4585
    %v7382 = vpop.f32.mrf.mxu0
    %v7383 = vadd.f32 %v7370, %v7382
    %v7384 = vpop.f32.mrf.mxu0
    %7385 = vdwg.mxu0
    %7386 = vmatpush.bf16.msra.mxu0 %v6314
    %7387 = vmatpush.bf16.msra.mxu0 %v6306
    %7388 = vmatpush.bf16.msra.mxu0 %v6298
    %7389 = vmatpush.bf16.msra.mxu0 %v6290
    %7390 = vmatpush.bf16.msra.mxu0 %v6282
    %7391 = vmatpush.bf16.msra.mxu0 %v6274
    %7392 = vmatpush.bf16.msra.mxu0 %v6266
    %7393 = vmatpush.bf16.msra.mxu0 %v6258
    %7394 = vmatmul.bf16.gmra.mxu0 %v4586
    %v7395 = vpop.f32.mrf.mxu0
    %v7396 = vadd.f32 %v7383, %v7395
    %v7397 = vpop.f32.mrf.mxu0
    %7398 = vdwg.mxu0
    %7399 = vmatpush.bf16.msra.mxu0 %v6378
    %7400 = vmatpush.bf16.msra.mxu0 %v6370
    %7401 = vmatpush.bf16.msra.mxu0 %v6362
    %7402 = vmatpush.bf16.msra.mxu0 %v6354
    %7403 = vmatpush.bf16.msra.mxu0 %v6346
    %7404 = vmatpush.bf16.msra.mxu0 %v6338
    %7405 = vmatpush.bf16.msra.mxu0 %v6330
    %7406 = vmatpush.bf16.msra.mxu0 %v6322
    %7407 = vmatmul.bf16.gmra.mxu0 %v4587
    %v7408 = vpop.f32.mrf.mxu0
    %v7409 = vadd.f32 %v7396, %v7408
    %v7410 = vpop.f32.mrf.mxu0
    %7411 = vdwg.mxu0
    %7412 = vmatpush.bf16.msra.mxu0 %v6442
    %7413 = vmatpush.bf16.msra.mxu0 %v6434
    %7414 = vmatpush.bf16.msra.mxu0 %v6426
    %7415 = vmatpush.bf16.msra.mxu0 %v6418
    %7416 = vmatpush.bf16.msra.mxu0 %v6410
    %7417 = vmatpush.bf16.msra.mxu0 %v6402
    %7418 = vmatpush.bf16.msra.mxu0 %v6394
    %7419 = vmatpush.bf16.msra.mxu0 %v6386
    %7420 = vmatmul.bf16.gmra.mxu0 %v4588
    %v7421 = vpop.f32.mrf.mxu0
    %v7422 = vadd.f32 %v7409, %v7421
    %v7423 = vpop.f32.mrf.mxu0
    %7424 = vdwg.mxu0
    %7425 = vmatpush.bf16.msra.mxu0 %v6506
    %7426 = vmatpush.bf16.msra.mxu0 %v6498
    %7427 = vmatpush.bf16.msra.mxu0 %v6490
    %7428 = vmatpush.bf16.msra.mxu0 %v6482
    %7429 = vmatpush.bf16.msra.mxu0 %v6474
    %7430 = vmatpush.bf16.msra.mxu0 %v6466
    %7431 = vmatpush.bf16.msra.mxu0 %v6458
    %7432 = vmatpush.bf16.msra.mxu0 %v6450
    %7433 = vmatmul.bf16.gmra.mxu0 %v4589
    %v7434 = vpop.f32.mrf.mxu0
    %v7435 = vadd.f32 %v7422, %v7434
    %v7436 = vpop.f32.mrf.mxu0
    %7437 = vdwg.mxu0
    %7438 = vmatpush.bf16.msra.mxu0 %v6570
    %7439 = vmatpush.bf16.msra.mxu0 %v6562
    %7440 = vmatpush.bf16.msra.mxu0 %v6554
    %7441 = vmatpush.bf16.msra.mxu0 %v6546
    %7442 = vmatpush.bf16.msra.mxu0 %v6538
    %7443 = vmatpush.bf16.msra.mxu0 %v6530
    %7444 = vmatpush.bf16.msra.mxu0 %v6522
    %7445 = vmatpush.bf16.msra.mxu0 %v6514
    %7446 = vmatmul.bf16.gmra.mxu0 %v4590
    %v7447 = vpop.f32.mrf.mxu0
    %v7448 = vadd.f32 %v7435, %v7447
    %v7449 = vpop.f32.mrf.mxu0
    %7450 = vdwg.mxu0
    %7451 = vmatpush.bf16.msra.mxu0 %v6634
    %7452 = vmatpush.bf16.msra.mxu0 %v6626
    %7453 = vmatpush.bf16.msra.mxu0 %v6618
    %7454 = vmatpush.bf16.msra.mxu0 %v6610
    %7455 = vmatpush.bf16.msra.mxu0 %v6602
    %7456 = vmatpush.bf16.msra.mxu0 %v6594
    %7457 = vmatpush.bf16.msra.mxu0 %v6586
    %7458 = vmatpush.bf16.msra.mxu0 %v6578
    %7459 = vmatmul.bf16.gmra.mxu0 %v4591
    %v7460 = vpop.f32.mrf.mxu0
    %v7461 = vadd.f32 %v7448, %v7460
    %v7462 = vpop.f32.mrf.mxu0
    %7463 = vdwg.mxu0
    %7464 = vmatpush.bf16.msra.mxu0 %v6187
    %7465 = vmatpush.bf16.msra.mxu0 %v6179
    %7466 = vmatpush.bf16.msra.mxu0 %v6171
    %7467 = vmatpush.bf16.msra.mxu0 %v6163
    %7468 = vmatpush.bf16.msra.mxu0 %v6155
    %7469 = vmatpush.bf16.msra.mxu0 %v6147
    %7470 = vmatpush.bf16.msra.mxu0 %v6139
    %7471 = vmatpush.bf16.msra.mxu0 %v6131
    %7472 = vmatmul.bf16.gmra.mxu0 %v4584
    %v7473 = vpop.f32.mrf.mxu0
    %v7474 = vadd.f32 %v1140, %v7473
    %v7475 = vpop.f32.mrf.mxu0
    %7476 = vdwg.mxu0
    %7477 = vmatpush.bf16.msra.mxu0 %v6251
    %7478 = vmatpush.bf16.msra.mxu0 %v6243
    %7479 = vmatpush.bf16.msra.mxu0 %v6235
    %7480 = vmatpush.bf16.msra.mxu0 %v6227
    %7481 = vmatpush.bf16.msra.mxu0 %v6219
    %7482 = vmatpush.bf16.msra.mxu0 %v6211
    %7483 = vmatpush.bf16.msra.mxu0 %v6203
    %7484 = vmatpush.bf16.msra.mxu0 %v6195
    %7485 = vmatmul.bf16.gmra.mxu0 %v4585
    %v7486 = vpop.f32.mrf.mxu0
    %v7487 = vadd.f32 %v7474, %v7486
    %v7488 = vpop.f32.mrf.mxu0
    %7489 = vdwg.mxu0
    %7490 = vmatpush.bf16.msra.mxu0 %v6315
    %7491 = vmatpush.bf16.msra.mxu0 %v6307
    %7492 = vmatpush.bf16.msra.mxu0 %v6299
    %7493 = vmatpush.bf16.msra.mxu0 %v6291
    %7494 = vmatpush.bf16.msra.mxu0 %v6283
    %7495 = vmatpush.bf16.msra.mxu0 %v6275
    %7496 = vmatpush.bf16.msra.mxu0 %v6267
    %7497 = vmatpush.bf16.msra.mxu0 %v6259
    %7498 = vmatmul.bf16.gmra.mxu0 %v4586
    %v7499 = vpop.f32.mrf.mxu0
    %v7500 = vadd.f32 %v7487, %v7499
    %v7501 = vpop.f32.mrf.mxu0
    %7502 = vdwg.mxu0
    %7503 = vmatpush.bf16.msra.mxu0 %v6379
    %7504 = vmatpush.bf16.msra.mxu0 %v6371
    %7505 = vmatpush.bf16.msra.mxu0 %v6363
    %7506 = vmatpush.bf16.msra.mxu0 %v6355
    %7507 = vmatpush.bf16.msra.mxu0 %v6347
    %7508 = vmatpush.bf16.msra.mxu0 %v6339
    %7509 = vmatpush.bf16.msra.mxu0 %v6331
    %7510 = vmatpush.bf16.msra.mxu0 %v6323
    %7511 = vmatmul.bf16.gmra.mxu0 %v4587
    %v7512 = vpop.f32.mrf.mxu0
    %v7513 = vadd.f32 %v7500, %v7512
    %v7514 = vpop.f32.mrf.mxu0
    %7515 = vdwg.mxu0
    %7516 = vmatpush.bf16.msra.mxu0 %v6443
    %7517 = vmatpush.bf16.msra.mxu0 %v6435
    %7518 = vmatpush.bf16.msra.mxu0 %v6427
    %7519 = vmatpush.bf16.msra.mxu0 %v6419
    %7520 = vmatpush.bf16.msra.mxu0 %v6411
    %7521 = vmatpush.bf16.msra.mxu0 %v6403
    %7522 = vmatpush.bf16.msra.mxu0 %v6395
    %7523 = vmatpush.bf16.msra.mxu0 %v6387
    %7524 = vmatmul.bf16.gmra.mxu0 %v4588
    %v7525 = vpop.f32.mrf.mxu0
    %v7526 = vadd.f32 %v7513, %v7525
    %v7527 = vpop.f32.mrf.mxu0
    %7528 = vdwg.mxu0
    %7529 = vmatpush.bf16.msra.mxu0 %v6507
    %7530 = vmatpush.bf16.msra.mxu0 %v6499
    %7531 = vmatpush.bf16.msra.mxu0 %v6491
    %7532 = vmatpush.bf16.msra.mxu0 %v6483
    %7533 = vmatpush.bf16.msra.mxu0 %v6475
    %7534 = vmatpush.bf16.msra.mxu0 %v6467
    %7535 = vmatpush.bf16.msra.mxu0 %v6459
    %7536 = vmatpush.bf16.msra.mxu0 %v6451
    %7537 = vmatmul.bf16.gmra.mxu0 %v4589
    %v7538 = vpop.f32.mrf.mxu0
    %v7539 = vadd.f32 %v7526, %v7538
    %v7540 = vpop.f32.mrf.mxu0
    %7541 = vdwg.mxu0
    %7542 = vmatpush.bf16.msra.mxu0 %v6571
    %7543 = vmatpush.bf16.msra.mxu0 %v6563
    %7544 = vmatpush.bf16.msra.mxu0 %v6555
    %7545 = vmatpush.bf16.msra.mxu0 %v6547
    %7546 = vmatpush.bf16.msra.mxu0 %v6539
    %7547 = vmatpush.bf16.msra.mxu0 %v6531
    %7548 = vmatpush.bf16.msra.mxu0 %v6523
    %7549 = vmatpush.bf16.msra.mxu0 %v6515
    %7550 = vmatmul.bf16.gmra.mxu0 %v4590
    %v7551 = vpop.f32.mrf.mxu0
    %v7552 = vadd.f32 %v7539, %v7551
    %v7553 = vpop.f32.mrf.mxu0
    %7554 = vdwg.mxu0
    %7555 = vmatpush.bf16.msra.mxu0 %v6635
    %7556 = vmatpush.bf16.msra.mxu0 %v6627
    %7557 = vmatpush.bf16.msra.mxu0 %v6619
    %7558 = vmatpush.bf16.msra.mxu0 %v6611
    %7559 = vmatpush.bf16.msra.mxu0 %v6603
    %7560 = vmatpush.bf16.msra.mxu0 %v6595
    %7561 = vmatpush.bf16.msra.mxu0 %v6587
    %7562 = vmatpush.bf16.msra.mxu0 %v6579
    %7563 = vmatmul.bf16.gmra.mxu0 %v4591
    %v7564 = vpop.f32.mrf.mxu0
    %v7565 = vadd.f32 %v7552, %v7564
    %v7566 = vpop.f32.mrf.mxu0
    %7567 = vdwg.mxu0
    %7568 = vmatpush.bf16.msra.mxu0 %v6188
    %7569 = vmatpush.bf16.msra.mxu0 %v6180
    %7570 = vmatpush.bf16.msra.mxu0 %v6172
    %7571 = vmatpush.bf16.msra.mxu0 %v6164
    %7572 = vmatpush.bf16.msra.mxu0 %v6156
    %7573 = vmatpush.bf16.msra.mxu0 %v6148
    %7574 = vmatpush.bf16.msra.mxu0 %v6140
    %7575 = vmatpush.bf16.msra.mxu0 %v6132
    %7576 = vmatmul.bf16.gmra.mxu0 %v4584
    %v7577 = vpop.f32.mrf.mxu0
    %v7578 = vadd.f32 %v1141, %v7577
    %v7579 = vpop.f32.mrf.mxu0
    %7580 = vdwg.mxu0
    %7581 = vmatpush.bf16.msra.mxu0 %v6252
    %7582 = vmatpush.bf16.msra.mxu0 %v6244
    %7583 = vmatpush.bf16.msra.mxu0 %v6236
    %7584 = vmatpush.bf16.msra.mxu0 %v6228
    %7585 = vmatpush.bf16.msra.mxu0 %v6220
    %7586 = vmatpush.bf16.msra.mxu0 %v6212
    %7587 = vmatpush.bf16.msra.mxu0 %v6204
    %7588 = vmatpush.bf16.msra.mxu0 %v6196
    %7589 = vmatmul.bf16.gmra.mxu0 %v4585
    %v7590 = vpop.f32.mrf.mxu0
    %v7591 = vadd.f32 %v7578, %v7590
    %v7592 = vpop.f32.mrf.mxu0
    %7593 = vdwg.mxu0
    %7594 = vmatpush.bf16.msra.mxu0 %v6316
    %7595 = vmatpush.bf16.msra.mxu0 %v6308
    %7596 = vmatpush.bf16.msra.mxu0 %v6300
    %7597 = vmatpush.bf16.msra.mxu0 %v6292
    %7598 = vmatpush.bf16.msra.mxu0 %v6284
    %7599 = vmatpush.bf16.msra.mxu0 %v6276
    %7600 = vmatpush.bf16.msra.mxu0 %v6268
    %7601 = vmatpush.bf16.msra.mxu0 %v6260
    %7602 = vmatmul.bf16.gmra.mxu0 %v4586
    %v7603 = vpop.f32.mrf.mxu0
    %v7604 = vadd.f32 %v7591, %v7603
    %v7605 = vpop.f32.mrf.mxu0
    %7606 = vdwg.mxu0
    %7607 = vmatpush.bf16.msra.mxu0 %v6380
    %7608 = vmatpush.bf16.msra.mxu0 %v6372
    %7609 = vmatpush.bf16.msra.mxu0 %v6364
    %7610 = vmatpush.bf16.msra.mxu0 %v6356
    %7611 = vmatpush.bf16.msra.mxu0 %v6348
    %7612 = vmatpush.bf16.msra.mxu0 %v6340
    %7613 = vmatpush.bf16.msra.mxu0 %v6332
    %7614 = vmatpush.bf16.msra.mxu0 %v6324
    %7615 = vmatmul.bf16.gmra.mxu0 %v4587
    %v7616 = vpop.f32.mrf.mxu0
    %v7617 = vadd.f32 %v7604, %v7616
    %v7618 = vpop.f32.mrf.mxu0
    %7619 = vdwg.mxu0
    %7620 = vmatpush.bf16.msra.mxu0 %v6444
    %7621 = vmatpush.bf16.msra.mxu0 %v6436
    %7622 = vmatpush.bf16.msra.mxu0 %v6428
    %7623 = vmatpush.bf16.msra.mxu0 %v6420
    %7624 = vmatpush.bf16.msra.mxu0 %v6412
    %7625 = vmatpush.bf16.msra.mxu0 %v6404
    %7626 = vmatpush.bf16.msra.mxu0 %v6396
    %7627 = vmatpush.bf16.msra.mxu0 %v6388
    %7628 = vmatmul.bf16.gmra.mxu0 %v4588
    %v7629 = vpop.f32.mrf.mxu0
    %v7630 = vadd.f32 %v7617, %v7629
    %v7631 = vpop.f32.mrf.mxu0
    %7632 = vdwg.mxu0
    %7633 = vmatpush.bf16.msra.mxu0 %v6508
    %7634 = vmatpush.bf16.msra.mxu0 %v6500
    %7635 = vmatpush.bf16.msra.mxu0 %v6492
    %7636 = vmatpush.bf16.msra.mxu0 %v6484
    %7637 = vmatpush.bf16.msra.mxu0 %v6476
    %7638 = vmatpush.bf16.msra.mxu0 %v6468
    %7639 = vmatpush.bf16.msra.mxu0 %v6460
    %7640 = vmatpush.bf16.msra.mxu0 %v6452
    %7641 = vmatmul.bf16.gmra.mxu0 %v4589
    %v7642 = vpop.f32.mrf.mxu0
    %v7643 = vadd.f32 %v7630, %v7642
    %v7644 = vpop.f32.mrf.mxu0
    %7645 = vdwg.mxu0
    %7646 = vmatpush.bf16.msra.mxu0 %v6572
    %7647 = vmatpush.bf16.msra.mxu0 %v6564
    %7648 = vmatpush.bf16.msra.mxu0 %v6556
    %7649 = vmatpush.bf16.msra.mxu0 %v6548
    %7650 = vmatpush.bf16.msra.mxu0 %v6540
    %7651 = vmatpush.bf16.msra.mxu0 %v6532
    %7652 = vmatpush.bf16.msra.mxu0 %v6524
    %7653 = vmatpush.bf16.msra.mxu0 %v6516
    %7654 = vmatmul.bf16.gmra.mxu0 %v4590
    %v7655 = vpop.f32.mrf.mxu0
    %v7656 = vadd.f32 %v7643, %v7655
    %v7657 = vpop.f32.mrf.mxu0
    %7658 = vdwg.mxu0
    %7659 = vmatpush.bf16.msra.mxu0 %v6636
    %7660 = vmatpush.bf16.msra.mxu0 %v6628
    %7661 = vmatpush.bf16.msra.mxu0 %v6620
    %7662 = vmatpush.bf16.msra.mxu0 %v6612
    %7663 = vmatpush.bf16.msra.mxu0 %v6604
    %7664 = vmatpush.bf16.msra.mxu0 %v6596
    %7665 = vmatpush.bf16.msra.mxu0 %v6588
    %7666 = vmatpush.bf16.msra.mxu0 %v6580
    %7667 = vmatmul.bf16.gmra.mxu0 %v4591
    %v7668 = vpop.f32.mrf.mxu0
    %v7669 = vadd.f32 %v7656, %v7668
    %v7670 = vpop.f32.mrf.mxu0
    %7671 = vdwg.mxu0
    %7672 = vmatpush.bf16.msra.mxu0 %v6189
    %7673 = vmatpush.bf16.msra.mxu0 %v6181
    %7674 = vmatpush.bf16.msra.mxu0 %v6173
    %7675 = vmatpush.bf16.msra.mxu0 %v6165
    %7676 = vmatpush.bf16.msra.mxu0 %v6157
    %7677 = vmatpush.bf16.msra.mxu0 %v6149
    %7678 = vmatpush.bf16.msra.mxu0 %v6141
    %7679 = vmatpush.bf16.msra.mxu0 %v6133
    %7680 = vmatmul.bf16.gmra.mxu0 %v4584
    %v7681 = vpop.f32.mrf.mxu0
    %v7682 = vadd.f32 %v1142, %v7681
    %v7683 = vpop.f32.mrf.mxu0
    %7684 = vdwg.mxu0
    %7685 = vmatpush.bf16.msra.mxu0 %v6253
    %7686 = vmatpush.bf16.msra.mxu0 %v6245
    %7687 = vmatpush.bf16.msra.mxu0 %v6237
    %7688 = vmatpush.bf16.msra.mxu0 %v6229
    %7689 = vmatpush.bf16.msra.mxu0 %v6221
    %7690 = vmatpush.bf16.msra.mxu0 %v6213
    %7691 = vmatpush.bf16.msra.mxu0 %v6205
    %7692 = vmatpush.bf16.msra.mxu0 %v6197
    %7693 = vmatmul.bf16.gmra.mxu0 %v4585
    %v7694 = vpop.f32.mrf.mxu0
    %v7695 = vadd.f32 %v7682, %v7694
    %v7696 = vpop.f32.mrf.mxu0
    %7697 = vdwg.mxu0
    %7698 = vmatpush.bf16.msra.mxu0 %v6317
    %7699 = vmatpush.bf16.msra.mxu0 %v6309
    %7700 = vmatpush.bf16.msra.mxu0 %v6301
    %7701 = vmatpush.bf16.msra.mxu0 %v6293
    %7702 = vmatpush.bf16.msra.mxu0 %v6285
    %7703 = vmatpush.bf16.msra.mxu0 %v6277
    %7704 = vmatpush.bf16.msra.mxu0 %v6269
    %7705 = vmatpush.bf16.msra.mxu0 %v6261
    %7706 = vmatmul.bf16.gmra.mxu0 %v4586
    %v7707 = vpop.f32.mrf.mxu0
    %v7708 = vadd.f32 %v7695, %v7707
    %v7709 = vpop.f32.mrf.mxu0
    %7710 = vdwg.mxu0
    %7711 = vmatpush.bf16.msra.mxu0 %v6381
    %7712 = vmatpush.bf16.msra.mxu0 %v6373
    %7713 = vmatpush.bf16.msra.mxu0 %v6365
    %7714 = vmatpush.bf16.msra.mxu0 %v6357
    %7715 = vmatpush.bf16.msra.mxu0 %v6349
    %7716 = vmatpush.bf16.msra.mxu0 %v6341
    %7717 = vmatpush.bf16.msra.mxu0 %v6333
    %7718 = vmatpush.bf16.msra.mxu0 %v6325
    %7719 = vmatmul.bf16.gmra.mxu0 %v4587
    %v7720 = vpop.f32.mrf.mxu0
    %v7721 = vadd.f32 %v7708, %v7720
    %v7722 = vpop.f32.mrf.mxu0
    %7723 = vdwg.mxu0
    %7724 = vmatpush.bf16.msra.mxu0 %v6445
    %7725 = vmatpush.bf16.msra.mxu0 %v6437
    %7726 = vmatpush.bf16.msra.mxu0 %v6429
    %7727 = vmatpush.bf16.msra.mxu0 %v6421
    %7728 = vmatpush.bf16.msra.mxu0 %v6413
    %7729 = vmatpush.bf16.msra.mxu0 %v6405
    %7730 = vmatpush.bf16.msra.mxu0 %v6397
    %7731 = vmatpush.bf16.msra.mxu0 %v6389
    %7732 = vmatmul.bf16.gmra.mxu0 %v4588
    %v7733 = vpop.f32.mrf.mxu0
    %v7734 = vadd.f32 %v7721, %v7733
    %v7735 = vpop.f32.mrf.mxu0
    %7736 = vdwg.mxu0
    %7737 = vmatpush.bf16.msra.mxu0 %v6509
    %7738 = vmatpush.bf16.msra.mxu0 %v6501
    %7739 = vmatpush.bf16.msra.mxu0 %v6493
    %7740 = vmatpush.bf16.msra.mxu0 %v6485
    %7741 = vmatpush.bf16.msra.mxu0 %v6477
    %7742 = vmatpush.bf16.msra.mxu0 %v6469
    %7743 = vmatpush.bf16.msra.mxu0 %v6461
    %7744 = vmatpush.bf16.msra.mxu0 %v6453
    %7745 = vmatmul.bf16.gmra.mxu0 %v4589
    %v7746 = vpop.f32.mrf.mxu0
    %v7747 = vadd.f32 %v7734, %v7746
    %v7748 = vpop.f32.mrf.mxu0
    %7749 = vdwg.mxu0
    %7750 = vmatpush.bf16.msra.mxu0 %v6573
    %7751 = vmatpush.bf16.msra.mxu0 %v6565
    %7752 = vmatpush.bf16.msra.mxu0 %v6557
    %7753 = vmatpush.bf16.msra.mxu0 %v6549
    %7754 = vmatpush.bf16.msra.mxu0 %v6541
    %7755 = vmatpush.bf16.msra.mxu0 %v6533
    %7756 = vmatpush.bf16.msra.mxu0 %v6525
    %7757 = vmatpush.bf16.msra.mxu0 %v6517
    %7758 = vmatmul.bf16.gmra.mxu0 %v4590
    %v7759 = vpop.f32.mrf.mxu0
    %v7760 = vadd.f32 %v7747, %v7759
    %v7761 = vpop.f32.mrf.mxu0
    %7762 = vdwg.mxu0
    %7763 = vmatpush.bf16.msra.mxu0 %v6637
    %7764 = vmatpush.bf16.msra.mxu0 %v6629
    %7765 = vmatpush.bf16.msra.mxu0 %v6621
    %7766 = vmatpush.bf16.msra.mxu0 %v6613
    %7767 = vmatpush.bf16.msra.mxu0 %v6605
    %7768 = vmatpush.bf16.msra.mxu0 %v6597
    %7769 = vmatpush.bf16.msra.mxu0 %v6589
    %7770 = vmatpush.bf16.msra.mxu0 %v6581
    %7771 = vmatmul.bf16.gmra.mxu0 %v4591
    %v7772 = vpop.f32.mrf.mxu0
    %v7773 = vadd.f32 %v7760, %v7772
    %v7774 = vpop.f32.mrf.mxu0
    %7775 = vdwg.mxu0
    %7776 = vmatpush.bf16.msra.mxu0 %v6190
    %7777 = vmatpush.bf16.msra.mxu0 %v6182
    %7778 = vmatpush.bf16.msra.mxu0 %v6174
    %7779 = vmatpush.bf16.msra.mxu0 %v6166
    %7780 = vmatpush.bf16.msra.mxu0 %v6158
    %7781 = vmatpush.bf16.msra.mxu0 %v6150
    %7782 = vmatpush.bf16.msra.mxu0 %v6142
    %7783 = vmatpush.bf16.msra.mxu0 %v6134
    %7784 = vmatmul.bf16.gmra.mxu0 %v4584
    %v7785 = vpop.f32.mrf.mxu0
    %v7786 = vadd.f32 %v1143, %v7785
    %v7787 = vpop.f32.mrf.mxu0
    %7788 = vdwg.mxu0
    %7789 = vmatpush.bf16.msra.mxu0 %v6254
    %7790 = vmatpush.bf16.msra.mxu0 %v6246
    %7791 = vmatpush.bf16.msra.mxu0 %v6238
    %7792 = vmatpush.bf16.msra.mxu0 %v6230
    %7793 = vmatpush.bf16.msra.mxu0 %v6222
    %7794 = vmatpush.bf16.msra.mxu0 %v6214
    %7795 = vmatpush.bf16.msra.mxu0 %v6206
    %7796 = vmatpush.bf16.msra.mxu0 %v6198
    %7797 = vmatmul.bf16.gmra.mxu0 %v4585
    %v7798 = vpop.f32.mrf.mxu0
    %v7799 = vadd.f32 %v7786, %v7798
    %v7800 = vpop.f32.mrf.mxu0
    %7801 = vdwg.mxu0
    %7802 = vmatpush.bf16.msra.mxu0 %v6318
    %7803 = vmatpush.bf16.msra.mxu0 %v6310
    %7804 = vmatpush.bf16.msra.mxu0 %v6302
    %7805 = vmatpush.bf16.msra.mxu0 %v6294
    %7806 = vmatpush.bf16.msra.mxu0 %v6286
    %7807 = vmatpush.bf16.msra.mxu0 %v6278
    %7808 = vmatpush.bf16.msra.mxu0 %v6270
    %7809 = vmatpush.bf16.msra.mxu0 %v6262
    %7810 = vmatmul.bf16.gmra.mxu0 %v4586
    %v7811 = vpop.f32.mrf.mxu0
    %v7812 = vadd.f32 %v7799, %v7811
    %v7813 = vpop.f32.mrf.mxu0
    %7814 = vdwg.mxu0
    %7815 = vmatpush.bf16.msra.mxu0 %v6382
    %7816 = vmatpush.bf16.msra.mxu0 %v6374
    %7817 = vmatpush.bf16.msra.mxu0 %v6366
    %7818 = vmatpush.bf16.msra.mxu0 %v6358
    %7819 = vmatpush.bf16.msra.mxu0 %v6350
    %7820 = vmatpush.bf16.msra.mxu0 %v6342
    %7821 = vmatpush.bf16.msra.mxu0 %v6334
    %7822 = vmatpush.bf16.msra.mxu0 %v6326
    %7823 = vmatmul.bf16.gmra.mxu0 %v4587
    %v7824 = vpop.f32.mrf.mxu0
    %v7825 = vadd.f32 %v7812, %v7824
    %v7826 = vpop.f32.mrf.mxu0
    %7827 = vdwg.mxu0
    %7828 = vmatpush.bf16.msra.mxu0 %v6446
    %7829 = vmatpush.bf16.msra.mxu0 %v6438
    %7830 = vmatpush.bf16.msra.mxu0 %v6430
    %7831 = vmatpush.bf16.msra.mxu0 %v6422
    %7832 = vmatpush.bf16.msra.mxu0 %v6414
    %7833 = vmatpush.bf16.msra.mxu0 %v6406
    %7834 = vmatpush.bf16.msra.mxu0 %v6398
    %7835 = vmatpush.bf16.msra.mxu0 %v6390
    %7836 = vmatmul.bf16.gmra.mxu0 %v4588
    %v7837 = vpop.f32.mrf.mxu0
    %v7838 = vadd.f32 %v7825, %v7837
    %v7839 = vpop.f32.mrf.mxu0
    %7840 = vdwg.mxu0
    %7841 = vmatpush.bf16.msra.mxu0 %v6510
    %7842 = vmatpush.bf16.msra.mxu0 %v6502
    %7843 = vmatpush.bf16.msra.mxu0 %v6494
    %7844 = vmatpush.bf16.msra.mxu0 %v6486
    %7845 = vmatpush.bf16.msra.mxu0 %v6478
    %7846 = vmatpush.bf16.msra.mxu0 %v6470
    %7847 = vmatpush.bf16.msra.mxu0 %v6462
    %7848 = vmatpush.bf16.msra.mxu0 %v6454
    %7849 = vmatmul.bf16.gmra.mxu0 %v4589
    %v7850 = vpop.f32.mrf.mxu0
    %v7851 = vadd.f32 %v7838, %v7850
    %v7852 = vpop.f32.mrf.mxu0
    %7853 = vdwg.mxu0
    %7854 = vmatpush.bf16.msra.mxu0 %v6574
    %7855 = vmatpush.bf16.msra.mxu0 %v6566
    %7856 = vmatpush.bf16.msra.mxu0 %v6558
    %7857 = vmatpush.bf16.msra.mxu0 %v6550
    %7858 = vmatpush.bf16.msra.mxu0 %v6542
    %7859 = vmatpush.bf16.msra.mxu0 %v6534
    %7860 = vmatpush.bf16.msra.mxu0 %v6526
    %7861 = vmatpush.bf16.msra.mxu0 %v6518
    %7862 = vmatmul.bf16.gmra.mxu0 %v4590
    %v7863 = vpop.f32.mrf.mxu0
    %v7864 = vadd.f32 %v7851, %v7863
    %v7865 = vpop.f32.mrf.mxu0
    %7866 = vdwg.mxu0
    %7867 = vmatpush.bf16.msra.mxu0 %v6638
    %7868 = vmatpush.bf16.msra.mxu0 %v6630
    %7869 = vmatpush.bf16.msra.mxu0 %v6622
    %7870 = vmatpush.bf16.msra.mxu0 %v6614
    %7871 = vmatpush.bf16.msra.mxu0 %v6606
    %7872 = vmatpush.bf16.msra.mxu0 %v6598
    %7873 = vmatpush.bf16.msra.mxu0 %v6590
    %7874 = vmatpush.bf16.msra.mxu0 %v6582
    %7875 = vmatmul.bf16.gmra.mxu0 %v4591
    %v7876 = vpop.f32.mrf.mxu0
    %v7877 = vadd.f32 %v7864, %v7876
    %v7878 = vpop.f32.mrf.mxu0
    %7879 = vdwg.mxu0
    %7880 = vmatpush.bf16.msra.mxu0 %v6191
    %7881 = vmatpush.bf16.msra.mxu0 %v6183
    %7882 = vmatpush.bf16.msra.mxu0 %v6175
    %7883 = vmatpush.bf16.msra.mxu0 %v6167
    %7884 = vmatpush.bf16.msra.mxu0 %v6159
    %7885 = vmatpush.bf16.msra.mxu0 %v6151
    %7886 = vmatpush.bf16.msra.mxu0 %v6143
    %7887 = vmatpush.bf16.msra.mxu0 %v6135
    %7888 = vmatmul.bf16.gmra.mxu0 %v4584
    %v7889 = vpop.f32.mrf.mxu0
    %v7890 = vadd.f32 %v1144, %v7889
    %v7891 = vpop.f32.mrf.mxu0
    %7892 = vdwg.mxu0
    %7893 = vmatpush.bf16.msra.mxu0 %v6255
    %7894 = vmatpush.bf16.msra.mxu0 %v6247
    %7895 = vmatpush.bf16.msra.mxu0 %v6239
    %7896 = vmatpush.bf16.msra.mxu0 %v6231
    %7897 = vmatpush.bf16.msra.mxu0 %v6223
    %7898 = vmatpush.bf16.msra.mxu0 %v6215
    %7899 = vmatpush.bf16.msra.mxu0 %v6207
    %7900 = vmatpush.bf16.msra.mxu0 %v6199
    %7901 = vmatmul.bf16.gmra.mxu0 %v4585
    %v7902 = vpop.f32.mrf.mxu0
    %v7903 = vadd.f32 %v7890, %v7902
    %v7904 = vpop.f32.mrf.mxu0
    %7905 = vdwg.mxu0
    %7906 = vmatpush.bf16.msra.mxu0 %v6319
    %7907 = vmatpush.bf16.msra.mxu0 %v6311
    %7908 = vmatpush.bf16.msra.mxu0 %v6303
    %7909 = vmatpush.bf16.msra.mxu0 %v6295
    %7910 = vmatpush.bf16.msra.mxu0 %v6287
    %7911 = vmatpush.bf16.msra.mxu0 %v6279
    %7912 = vmatpush.bf16.msra.mxu0 %v6271
    %7913 = vmatpush.bf16.msra.mxu0 %v6263
    %7914 = vmatmul.bf16.gmra.mxu0 %v4586
    %v7915 = vpop.f32.mrf.mxu0
    %v7916 = vadd.f32 %v7903, %v7915
    %v7917 = vpop.f32.mrf.mxu0
    %7918 = vdwg.mxu0
    %7919 = vmatpush.bf16.msra.mxu0 %v6383
    %7920 = vmatpush.bf16.msra.mxu0 %v6375
    %7921 = vmatpush.bf16.msra.mxu0 %v6367
    %7922 = vmatpush.bf16.msra.mxu0 %v6359
    %7923 = vmatpush.bf16.msra.mxu0 %v6351
    %7924 = vmatpush.bf16.msra.mxu0 %v6343
    %7925 = vmatpush.bf16.msra.mxu0 %v6335
    %7926 = vmatpush.bf16.msra.mxu0 %v6327
    %7927 = vmatmul.bf16.gmra.mxu0 %v4587
    %v7928 = vpop.f32.mrf.mxu0
    %v7929 = vadd.f32 %v7916, %v7928
    %v7930 = vpop.f32.mrf.mxu0
    %7931 = vdwg.mxu0
    %7932 = vmatpush.bf16.msra.mxu0 %v6447
    %7933 = vmatpush.bf16.msra.mxu0 %v6439
    %7934 = vmatpush.bf16.msra.mxu0 %v6431
    %7935 = vmatpush.bf16.msra.mxu0 %v6423
    %7936 = vmatpush.bf16.msra.mxu0 %v6415
    %7937 = vmatpush.bf16.msra.mxu0 %v6407
    %7938 = vmatpush.bf16.msra.mxu0 %v6399
    %7939 = vmatpush.bf16.msra.mxu0 %v6391
    %7940 = vmatmul.bf16.gmra.mxu0 %v4588
    %v7941 = vpop.f32.mrf.mxu0
    %v7942 = vadd.f32 %v7929, %v7941
    %v7943 = vpop.f32.mrf.mxu0
    %7944 = vdwg.mxu0
    %7945 = vmatpush.bf16.msra.mxu0 %v6511
    %7946 = vmatpush.bf16.msra.mxu0 %v6503
    %7947 = vmatpush.bf16.msra.mxu0 %v6495
    %7948 = vmatpush.bf16.msra.mxu0 %v6487
    %7949 = vmatpush.bf16.msra.mxu0 %v6479
    %7950 = vmatpush.bf16.msra.mxu0 %v6471
    %7951 = vmatpush.bf16.msra.mxu0 %v6463
    %7952 = vmatpush.bf16.msra.mxu0 %v6455
    %7953 = vmatmul.bf16.gmra.mxu0 %v4589
    %v7954 = vpop.f32.mrf.mxu0
    %v7955 = vadd.f32 %v7942, %v7954
    %v7956 = vpop.f32.mrf.mxu0
    %7957 = vdwg.mxu0
    %7958 = vmatpush.bf16.msra.mxu0 %v6575
    %7959 = vmatpush.bf16.msra.mxu0 %v6567
    %7960 = vmatpush.bf16.msra.mxu0 %v6559
    %7961 = vmatpush.bf16.msra.mxu0 %v6551
    %7962 = vmatpush.bf16.msra.mxu0 %v6543
    %7963 = vmatpush.bf16.msra.mxu0 %v6535
    %7964 = vmatpush.bf16.msra.mxu0 %v6527
    %7965 = vmatpush.bf16.msra.mxu0 %v6519
    %7966 = vmatmul.bf16.gmra.mxu0 %v4590
    %v7967 = vpop.f32.mrf.mxu0
    %v7968 = vadd.f32 %v7955, %v7967
    %v7969 = vpop.f32.mrf.mxu0
    %7970 = vdwg.mxu0
    %7971 = vmatpush.bf16.msra.mxu0 %v6639
    %7972 = vmatpush.bf16.msra.mxu0 %v6631
    %7973 = vmatpush.bf16.msra.mxu0 %v6623
    %7974 = vmatpush.bf16.msra.mxu0 %v6615
    %7975 = vmatpush.bf16.msra.mxu0 %v6607
    %7976 = vmatpush.bf16.msra.mxu0 %v6599
    %7977 = vmatpush.bf16.msra.mxu0 %v6591
    %7978 = vmatpush.bf16.msra.mxu0 %v6583
    %7979 = vmatmul.bf16.gmra.mxu0 %v4591
    %v7980 = vpop.f32.mrf.mxu0
    %v7981 = vadd.f32 %v7968, %v7980
    %v7982 = vpop.f32.mrf.mxu0
    %7983 = vdwg.mxu0
    %v7984 = vmul.f32 %v7253, 0.33333334
    %v7985 = vmul.f32 %v7357, 0.33333334
    %v7986 = vmul.f32 %v7461, 0.33333334
    %v7987 = vmul.f32 %v7565, 0.33333334
    %v7988 = vmul.f32 %v7669, 0.33333334
    %v7989 = vmul.f32 %v7773, 0.33333334
    %v7990 = vmul.f32 %v7877, 0.33333334
    %v7991 = vmul.f32 %v7981, 0.33333334
    %v8000 = vrot.slane %v7985, 6
    %v8001 = vrot.slane %v7986, 4
    %v8002 = vrot.slane %v7987, 2
    %v8003 = vrot.slane %v7989, 6
    %v8004 = vrot.slane %v7990, 4
    %v8005 = vrot.slane %v7991, 2
    %vm8006 = vcmask 1041408
    %v8007 = vsel %vm8006, %v7984, %v8000
    %vm8008 = vcmask 1045508
    %v8009 = vsel %vm8008, %v8001, %v8002
    %vm8010 = vcmask 1043456
    %v8011 = vsel %vm8010, %v8007, %v8009
    %v8012 = vsel %vm8006, %v7988, %v8003
    %v8013 = vsel %vm8008, %v8004, %v8005
    %v8014 = vsel %vm8010, %v8012, %v8013
    %v8017 = vadd.f32 %v1153, %v8011
    %v8018 = vadd.f32 %v1154, %v8014
    %8021 = vst [vmem:[#allocation1] ss:$4 sm:$0xff] %v8017
    %s8022 = scalar_lea.vmem [#allocation1], 32
    %8023 = vst [vmem:[%s8022] ss:$4 sm:$0xff] %v8018
    %v8024 = vld.sshfl [vmem:[#allocation1] sm:$0xff pattern:$0x73625140]
    %v8025 = vld.sshfl [vmem:[#allocation1 + $0x8] sm:$0xff pattern:$0x73625140]
    %v8026 = vld.sshfl [vmem:[#allocation1 + $0x10] sm:$0xff pattern:$0x73625140]
    %v8027 = vld.sshfl [vmem:[#allocation1 + $0x18] sm:$0xff pattern:$0x73625140]
    %v8028 = vld.sshfl [vmem:[#allocation1 + $0x20] sm:$0xff pattern:$0x73625140]
    %v8029 = vld.sshfl [vmem:[#allocation1 + $0x28] sm:$0xff pattern:$0x73625140]
    %v8030 = vld.sshfl [vmem:[#allocation1 + $0x30] sm:$0xff pattern:$0x73625140]
    %v8031 = vld.sshfl [vmem:[#allocation1 + $0x38] sm:$0xff pattern:$0x73625140]
    %v8040 = vpack.c.bf16 %v8024, %v8024
    %v8041 = vpack.c.bf16 %v8025, %v8025
    %v8042 = vpack.c.bf16 %v8026, %v8026
    %v8043 = vpack.c.bf16 %v8027, %v8027
    %v8044 = vpack.c.bf16 %v8028, %v8028
    %v8045 = vpack.c.bf16 %v8029, %v8029
    %v8046 = vpack.c.bf16 %v8030, %v8030
    %v8047 = vpack.c.bf16 %v8031, %v8031
    %8048 = vmatpush.bf16.msra.mxu0 %v2776
    %8049 = vmatpush.bf16.msra.mxu0 %v2768
    %8050 = vmatpush.bf16.msra.mxu0 %v2760
    %8051 = vmatpush.bf16.msra.mxu0 %v2752
    %8052 = vmatpush.bf16.msra.mxu0 %v2744
    %8053 = vmatpush.bf16.msra.mxu0 %v2736
    %8054 = vmatpush.bf16.msra.mxu0 %v2728
    %8055 = vmatpush.bf16.msra.mxu0 %v2720
    %8056 = vmatmul.bf16.gmra.mxu0 %v8040
    %v8057 = vpop.f32.mrf.mxu0
    %v8058 = vadd.f32 %v1119, %v8057
    %v8059 = vpop.f32.mrf.mxu0
    %8060 = vdwg.mxu0
    %8061 = vmatpush.bf16.msra.mxu0 %v2840
    %8062 = vmatpush.bf16.msra.mxu0 %v2832
    %8063 = vmatpush.bf16.msra.mxu0 %v2824
    %8064 = vmatpush.bf16.msra.mxu0 %v2816
    %8065 = vmatpush.bf16.msra.mxu0 %v2808
    %8066 = vmatpush.bf16.msra.mxu0 %v2800
    %8067 = vmatpush.bf16.msra.mxu0 %v2792
    %8068 = vmatpush.bf16.msra.mxu0 %v2784
    %8069 = vmatmul.bf16.gmra.mxu0 %v8041
    %v8070 = vpop.f32.mrf.mxu0
    %v8071 = vadd.f32 %v8058, %v8070
    %v8072 = vpop.f32.mrf.mxu0
    %8073 = vdwg.mxu0
    %8074 = vmatpush.bf16.msra.mxu0 %v2904
    %8075 = vmatpush.bf16.msra.mxu0 %v2896
    %8076 = vmatpush.bf16.msra.mxu0 %v2888
    %8077 = vmatpush.bf16.msra.mxu0 %v2880
    %8078 = vmatpush.bf16.msra.mxu0 %v2872
    %8079 = vmatpush.bf16.msra.mxu0 %v2864
    %8080 = vmatpush.bf16.msra.mxu0 %v2856
    %8081 = vmatpush.bf16.msra.mxu0 %v2848
    %8082 = vmatmul.bf16.gmra.mxu0 %v8042
    %v8083 = vpop.f32.mrf.mxu0
    %v8084 = vadd.f32 %v8071, %v8083
    %v8085 = vpop.f32.mrf.mxu0
    %8086 = vdwg.mxu0
    %8087 = vmatpush.bf16.msra.mxu0 %v2968
    %8088 = vmatpush.bf16.msra.mxu0 %v2960
    %8089 = vmatpush.bf16.msra.mxu0 %v2952
    %8090 = vmatpush.bf16.msra.mxu0 %v2944
    %8091 = vmatpush.bf16.msra.mxu0 %v2936
    %8092 = vmatpush.bf16.msra.mxu0 %v2928
    %8093 = vmatpush.bf16.msra.mxu0 %v2920
    %8094 = vmatpush.bf16.msra.mxu0 %v2912
    %8095 = vmatmul.bf16.gmra.mxu0 %v8043
    %v8096 = vpop.f32.mrf.mxu0
    %v8097 = vadd.f32 %v8084, %v8096
    %v8098 = vpop.f32.mrf.mxu0
    %8099 = vdwg.mxu0
    %8100 = vmatpush.bf16.msra.mxu0 %v3032
    %8101 = vmatpush.bf16.msra.mxu0 %v3024
    %8102 = vmatpush.bf16.msra.mxu0 %v3016
    %8103 = vmatpush.bf16.msra.mxu0 %v3008
    %8104 = vmatpush.bf16.msra.mxu0 %v3000
    %8105 = vmatpush.bf16.msra.mxu0 %v2992
    %8106 = vmatpush.bf16.msra.mxu0 %v2984
    %8107 = vmatpush.bf16.msra.mxu0 %v2976
    %8108 = vmatmul.bf16.gmra.mxu0 %v8044
    %v8109 = vpop.f32.mrf.mxu0
    %v8110 = vadd.f32 %v8097, %v8109
    %v8111 = vpop.f32.mrf.mxu0
    %8112 = vdwg.mxu0
    %8113 = vmatpush.bf16.msra.mxu0 %v3096
    %8114 = vmatpush.bf16.msra.mxu0 %v3088
    %8115 = vmatpush.bf16.msra.mxu0 %v3080
    %8116 = vmatpush.bf16.msra.mxu0 %v3072
    %8117 = vmatpush.bf16.msra.mxu0 %v3064
    %8118 = vmatpush.bf16.msra.mxu0 %v3056
    %8119 = vmatpush.bf16.msra.mxu0 %v3048
    %8120 = vmatpush.bf16.msra.mxu0 %v3040
    %8121 = vmatmul.bf16.gmra.mxu0 %v8045
    %v8122 = vpop.f32.mrf.mxu0
    %v8123 = vadd.f32 %v8110, %v8122
    %v8124 = vpop.f32.mrf.mxu0
    %8125 = vdwg.mxu0
    %8126 = vmatpush.bf16.msra.mxu0 %v3160
    %8127 = vmatpush.bf16.msra.mxu0 %v3152
    %8128 = vmatpush.bf16.msra.mxu0 %v3144
    %8129 = vmatpush.bf16.msra.mxu0 %v3136
    %8130 = vmatpush.bf16.msra.mxu0 %v3128
    %8131 = vmatpush.bf16.msra.mxu0 %v3120
    %8132 = vmatpush.bf16.msra.mxu0 %v3112
    %8133 = vmatpush.bf16.msra.mxu0 %v3104
    %8134 = vmatmul.bf16.gmra.mxu0 %v8046
    %v8135 = vpop.f32.mrf.mxu0
    %v8136 = vadd.f32 %v8123, %v8135
    %v8137 = vpop.f32.mrf.mxu0
    %8138 = vdwg.mxu0
    %8139 = vmatpush.bf16.msra.mxu0 %v3224
    %8140 = vmatpush.bf16.msra.mxu0 %v3216
    %8141 = vmatpush.bf16.msra.mxu0 %v3208
    %8142 = vmatpush.bf16.msra.mxu0 %v3200
    %8143 = vmatpush.bf16.msra.mxu0 %v3192
    %8144 = vmatpush.bf16.msra.mxu0 %v3184
    %8145 = vmatpush.bf16.msra.mxu0 %v3176
    %8146 = vmatpush.bf16.msra.mxu0 %v3168
    %8147 = vmatmul.bf16.gmra.mxu0 %v8047
    %v8148 = vpop.f32.mrf.mxu0
    %v8149 = vadd.f32 %v8136, %v8148
    %v8150 = vpop.f32.mrf.mxu0
    %8151 = vdwg.mxu0
    %8152 = vmatpush.bf16.msra.mxu0 %v2777
    %8153 = vmatpush.bf16.msra.mxu0 %v2769
    %8154 = vmatpush.bf16.msra.mxu0 %v2761
    %8155 = vmatpush.bf16.msra.mxu0 %v2753
    %8156 = vmatpush.bf16.msra.mxu0 %v2745
    %8157 = vmatpush.bf16.msra.mxu0 %v2737
    %8158 = vmatpush.bf16.msra.mxu0 %v2729
    %8159 = vmatpush.bf16.msra.mxu0 %v2721
    %8160 = vmatmul.bf16.gmra.mxu0 %v8040
    %v8161 = vpop.f32.mrf.mxu0
    %v8162 = vadd.f32 %v1120, %v8161
    %v8163 = vpop.f32.mrf.mxu0
    %8164 = vdwg.mxu0
    %8165 = vmatpush.bf16.msra.mxu0 %v2841
    %8166 = vmatpush.bf16.msra.mxu0 %v2833
    %8167 = vmatpush.bf16.msra.mxu0 %v2825
    %8168 = vmatpush.bf16.msra.mxu0 %v2817
    %8169 = vmatpush.bf16.msra.mxu0 %v2809
    %8170 = vmatpush.bf16.msra.mxu0 %v2801
    %8171 = vmatpush.bf16.msra.mxu0 %v2793
    %8172 = vmatpush.bf16.msra.mxu0 %v2785
    %8173 = vmatmul.bf16.gmra.mxu0 %v8041
    %v8174 = vpop.f32.mrf.mxu0
    %v8175 = vadd.f32 %v8162, %v8174
    %v8176 = vpop.f32.mrf.mxu0
    %8177 = vdwg.mxu0
    %8178 = vmatpush.bf16.msra.mxu0 %v2905
    %8179 = vmatpush.bf16.msra.mxu0 %v2897
    %8180 = vmatpush.bf16.msra.mxu0 %v2889
    %8181 = vmatpush.bf16.msra.mxu0 %v2881
    %8182 = vmatpush.bf16.msra.mxu0 %v2873
    %8183 = vmatpush.bf16.msra.mxu0 %v2865
    %8184 = vmatpush.bf16.msra.mxu0 %v2857
    %8185 = vmatpush.bf16.msra.mxu0 %v2849
    %8186 = vmatmul.bf16.gmra.mxu0 %v8042
    %v8187 = vpop.f32.mrf.mxu0
    %v8188 = vadd.f32 %v8175, %v8187
    %v8189 = vpop.f32.mrf.mxu0
    %8190 = vdwg.mxu0
    %8191 = vmatpush.bf16.msra.mxu0 %v2969
    %8192 = vmatpush.bf16.msra.mxu0 %v2961
    %8193 = vmatpush.bf16.msra.mxu0 %v2953
    %8194 = vmatpush.bf16.msra.mxu0 %v2945
    %8195 = vmatpush.bf16.msra.mxu0 %v2937
    %8196 = vmatpush.bf16.msra.mxu0 %v2929
    %8197 = vmatpush.bf16.msra.mxu0 %v2921
    %8198 = vmatpush.bf16.msra.mxu0 %v2913
    %8199 = vmatmul.bf16.gmra.mxu0 %v8043
    %v8200 = vpop.f32.mrf.mxu0
    %v8201 = vadd.f32 %v8188, %v8200
    %v8202 = vpop.f32.mrf.mxu0
    %8203 = vdwg.mxu0
    %8204 = vmatpush.bf16.msra.mxu0 %v3033
    %8205 = vmatpush.bf16.msra.mxu0 %v3025
    %8206 = vmatpush.bf16.msra.mxu0 %v3017
    %8207 = vmatpush.bf16.msra.mxu0 %v3009
    %8208 = vmatpush.bf16.msra.mxu0 %v3001
    %8209 = vmatpush.bf16.msra.mxu0 %v2993
    %8210 = vmatpush.bf16.msra.mxu0 %v2985
    %8211 = vmatpush.bf16.msra.mxu0 %v2977
    %8212 = vmatmul.bf16.gmra.mxu0 %v8044
    %v8213 = vpop.f32.mrf.mxu0
    %v8214 = vadd.f32 %v8201, %v8213
    %v8215 = vpop.f32.mrf.mxu0
    %8216 = vdwg.mxu0
    %8217 = vmatpush.bf16.msra.mxu0 %v3097
    %8218 = vmatpush.bf16.msra.mxu0 %v3089
    %8219 = vmatpush.bf16.msra.mxu0 %v3081
    %8220 = vmatpush.bf16.msra.mxu0 %v3073
    %8221 = vmatpush.bf16.msra.mxu0 %v3065
    %8222 = vmatpush.bf16.msra.mxu0 %v3057
    %8223 = vmatpush.bf16.msra.mxu0 %v3049
    %8224 = vmatpush.bf16.msra.mxu0 %v3041
    %8225 = vmatmul.bf16.gmra.mxu0 %v8045
    %v8226 = vpop.f32.mrf.mxu0
    %v8227 = vadd.f32 %v8214, %v8226
    %v8228 = vpop.f32.mrf.mxu0
    %8229 = vdwg.mxu0
    %8230 = vmatpush.bf16.msra.mxu0 %v3161
    %8231 = vmatpush.bf16.msra.mxu0 %v3153
    %8232 = vmatpush.bf16.msra.mxu0 %v3145
    %8233 = vmatpush.bf16.msra.mxu0 %v3137
    %8234 = vmatpush.bf16.msra.mxu0 %v3129
    %8235 = vmatpush.bf16.msra.mxu0 %v3121
    %8236 = vmatpush.bf16.msra.mxu0 %v3113
    %8237 = vmatpush.bf16.msra.mxu0 %v3105
    %8238 = vmatmul.bf16.gmra.mxu0 %v8046
    %v8239 = vpop.f32.mrf.mxu0
    %v8240 = vadd.f32 %v8227, %v8239
    %v8241 = vpop.f32.mrf.mxu0
    %8242 = vdwg.mxu0
    %8243 = vmatpush.bf16.msra.mxu0 %v3225
    %8244 = vmatpush.bf16.msra.mxu0 %v3217
    %8245 = vmatpush.bf16.msra.mxu0 %v3209
    %8246 = vmatpush.bf16.msra.mxu0 %v3201
    %8247 = vmatpush.bf16.msra.mxu0 %v3193
    %8248 = vmatpush.bf16.msra.mxu0 %v3185
    %8249 = vmatpush.bf16.msra.mxu0 %v3177
    %8250 = vmatpush.bf16.msra.mxu0 %v3169
    %8251 = vmatmul.bf16.gmra.mxu0 %v8047
    %v8252 = vpop.f32.mrf.mxu0
    %v8253 = vadd.f32 %v8240, %v8252
    %v8254 = vpop.f32.mrf.mxu0
    %8255 = vdwg.mxu0
    %8256 = vmatpush.bf16.msra.mxu0 %v2778
    %8257 = vmatpush.bf16.msra.mxu0 %v2770
    %8258 = vmatpush.bf16.msra.mxu0 %v2762
    %8259 = vmatpush.bf16.msra.mxu0 %v2754
    %8260 = vmatpush.bf16.msra.mxu0 %v2746
    %8261 = vmatpush.bf16.msra.mxu0 %v2738
    %8262 = vmatpush.bf16.msra.mxu0 %v2730
    %8263 = vmatpush.bf16.msra.mxu0 %v2722
    %8264 = vmatmul.bf16.gmra.mxu0 %v8040
    %v8265 = vpop.f32.mrf.mxu0
    %v8266 = vadd.f32 %v1121, %v8265
    %v8267 = vpop.f32.mrf.mxu0
    %8268 = vdwg.mxu0
    %8269 = vmatpush.bf16.msra.mxu0 %v2842
    %8270 = vmatpush.bf16.msra.mxu0 %v2834
    %8271 = vmatpush.bf16.msra.mxu0 %v2826
    %8272 = vmatpush.bf16.msra.mxu0 %v2818
    %8273 = vmatpush.bf16.msra.mxu0 %v2810
    %8274 = vmatpush.bf16.msra.mxu0 %v2802
    %8275 = vmatpush.bf16.msra.mxu0 %v2794
    %8276 = vmatpush.bf16.msra.mxu0 %v2786
    %8277 = vmatmul.bf16.gmra.mxu0 %v8041
    %v8278 = vpop.f32.mrf.mxu0
    %v8279 = vadd.f32 %v8266, %v8278
    %v8280 = vpop.f32.mrf.mxu0
    %8281 = vdwg.mxu0
    %8282 = vmatpush.bf16.msra.mxu0 %v2906
    %8283 = vmatpush.bf16.msra.mxu0 %v2898
    %8284 = vmatpush.bf16.msra.mxu0 %v2890
    %8285 = vmatpush.bf16.msra.mxu0 %v2882
    %8286 = vmatpush.bf16.msra.mxu0 %v2874
    %8287 = vmatpush.bf16.msra.mxu0 %v2866
    %8288 = vmatpush.bf16.msra.mxu0 %v2858
    %8289 = vmatpush.bf16.msra.mxu0 %v2850
    %8290 = vmatmul.bf16.gmra.mxu0 %v8042
    %v8291 = vpop.f32.mrf.mxu0
    %v8292 = vadd.f32 %v8279, %v8291
    %v8293 = vpop.f32.mrf.mxu0
    %8294 = vdwg.mxu0
    %8295 = vmatpush.bf16.msra.mxu0 %v2970
    %8296 = vmatpush.bf16.msra.mxu0 %v2962
    %8297 = vmatpush.bf16.msra.mxu0 %v2954
    %8298 = vmatpush.bf16.msra.mxu0 %v2946
    %8299 = vmatpush.bf16.msra.mxu0 %v2938
    %8300 = vmatpush.bf16.msra.mxu0 %v2930
    %8301 = vmatpush.bf16.msra.mxu0 %v2922
    %8302 = vmatpush.bf16.msra.mxu0 %v2914
    %8303 = vmatmul.bf16.gmra.mxu0 %v8043
    %v8304 = vpop.f32.mrf.mxu0
    %v8305 = vadd.f32 %v8292, %v8304
    %v8306 = vpop.f32.mrf.mxu0
    %8307 = vdwg.mxu0
    %8308 = vmatpush.bf16.msra.mxu0 %v3034
    %8309 = vmatpush.bf16.msra.mxu0 %v3026
    %8310 = vmatpush.bf16.msra.mxu0 %v3018
    %8311 = vmatpush.bf16.msra.mxu0 %v3010
    %8312 = vmatpush.bf16.msra.mxu0 %v3002
    %8313 = vmatpush.bf16.msra.mxu0 %v2994
    %8314 = vmatpush.bf16.msra.mxu0 %v2986
    %8315 = vmatpush.bf16.msra.mxu0 %v2978
    %8316 = vmatmul.bf16.gmra.mxu0 %v8044
    %v8317 = vpop.f32.mrf.mxu0
    %v8318 = vadd.f32 %v8305, %v8317
    %v8319 = vpop.f32.mrf.mxu0
    %8320 = vdwg.mxu0
    %8321 = vmatpush.bf16.msra.mxu0 %v3098
    %8322 = vmatpush.bf16.msra.mxu0 %v3090
    %8323 = vmatpush.bf16.msra.mxu0 %v3082
    %8324 = vmatpush.bf16.msra.mxu0 %v3074
    %8325 = vmatpush.bf16.msra.mxu0 %v3066
    %8326 = vmatpush.bf16.msra.mxu0 %v3058
    %8327 = vmatpush.bf16.msra.mxu0 %v3050
    %8328 = vmatpush.bf16.msra.mxu0 %v3042
    %8329 = vmatmul.bf16.gmra.mxu0 %v8045
    %v8330 = vpop.f32.mrf.mxu0
    %v8331 = vadd.f32 %v8318, %v8330
    %v8332 = vpop.f32.mrf.mxu0
    %8333 = vdwg.mxu0
    %8334 = vmatpush.bf16.msra.mxu0 %v3162
    %8335 = vmatpush.bf16.msra.mxu0 %v3154
    %8336 = vmatpush.bf16.msra.mxu0 %v3146
    %8337 = vmatpush.bf16.msra.mxu0 %v3138
    %8338 = vmatpush.bf16.msra.mxu0 %v3130
    %8339 = vmatpush.bf16.msra.mxu0 %v3122
    %8340 = vmatpush.bf16.msra.mxu0 %v3114
    %8341 = vmatpush.bf16.msra.mxu0 %v3106
    %8342 = vmatmul.bf16.gmra.mxu0 %v8046
    %v8343 = vpop.f32.mrf.mxu0
    %v8344 = vadd.f32 %v8331, %v8343
    %v8345 = vpop.f32.mrf.mxu0
    %8346 = vdwg.mxu0
    %8347 = vmatpush.bf16.msra.mxu0 %v3226
    %8348 = vmatpush.bf16.msra.mxu0 %v3218
    %8349 = vmatpush.bf16.msra.mxu0 %v3210
    %8350 = vmatpush.bf16.msra.mxu0 %v3202
    %8351 = vmatpush.bf16.msra.mxu0 %v3194
    %8352 = vmatpush.bf16.msra.mxu0 %v3186
    %8353 = vmatpush.bf16.msra.mxu0 %v3178
    %8354 = vmatpush.bf16.msra.mxu0 %v3170
    %8355 = vmatmul.bf16.gmra.mxu0 %v8047
    %v8356 = vpop.f32.mrf.mxu0
    %v8357 = vadd.f32 %v8344, %v8356
    %v8358 = vpop.f32.mrf.mxu0
    %8359 = vdwg.mxu0
    %8360 = vmatpush.bf16.msra.mxu0 %v2779
    %8361 = vmatpush.bf16.msra.mxu0 %v2771
    %8362 = vmatpush.bf16.msra.mxu0 %v2763
    %8363 = vmatpush.bf16.msra.mxu0 %v2755
    %8364 = vmatpush.bf16.msra.mxu0 %v2747
    %8365 = vmatpush.bf16.msra.mxu0 %v2739
    %8366 = vmatpush.bf16.msra.mxu0 %v2731
    %8367 = vmatpush.bf16.msra.mxu0 %v2723
    %8368 = vmatmul.bf16.gmra.mxu0 %v8040
    %v8369 = vpop.f32.mrf.mxu0
    %v8370 = vadd.f32 %v1122, %v8369
    %v8371 = vpop.f32.mrf.mxu0
    %8372 = vdwg.mxu0
    %8373 = vmatpush.bf16.msra.mxu0 %v2843
    %8374 = vmatpush.bf16.msra.mxu0 %v2835
    %8375 = vmatpush.bf16.msra.mxu0 %v2827
    %8376 = vmatpush.bf16.msra.mxu0 %v2819
    %8377 = vmatpush.bf16.msra.mxu0 %v2811
    %8378 = vmatpush.bf16.msra.mxu0 %v2803
    %8379 = vmatpush.bf16.msra.mxu0 %v2795
    %8380 = vmatpush.bf16.msra.mxu0 %v2787
    %8381 = vmatmul.bf16.gmra.mxu0 %v8041
    %v8382 = vpop.f32.mrf.mxu0
    %v8383 = vadd.f32 %v8370, %v8382
    %v8384 = vpop.f32.mrf.mxu0
    %8385 = vdwg.mxu0
    %8386 = vmatpush.bf16.msra.mxu0 %v2907
    %8387 = vmatpush.bf16.msra.mxu0 %v2899
    %8388 = vmatpush.bf16.msra.mxu0 %v2891
    %8389 = vmatpush.bf16.msra.mxu0 %v2883
    %8390 = vmatpush.bf16.msra.mxu0 %v2875
    %8391 = vmatpush.bf16.msra.mxu0 %v2867
    %8392 = vmatpush.bf16.msra.mxu0 %v2859
    %8393 = vmatpush.bf16.msra.mxu0 %v2851
    %8394 = vmatmul.bf16.gmra.mxu0 %v8042
    %v8395 = vpop.f32.mrf.mxu0
    %v8396 = vadd.f32 %v8383, %v8395
    %v8397 = vpop.f32.mrf.mxu0
    %8398 = vdwg.mxu0
    %8399 = vmatpush.bf16.msra.mxu0 %v2971
    %8400 = vmatpush.bf16.msra.mxu0 %v2963
    %8401 = vmatpush.bf16.msra.mxu0 %v2955
    %8402 = vmatpush.bf16.msra.mxu0 %v2947
    %8403 = vmatpush.bf16.msra.mxu0 %v2939
    %8404 = vmatpush.bf16.msra.mxu0 %v2931
    %8405 = vmatpush.bf16.msra.mxu0 %v2923
    %8406 = vmatpush.bf16.msra.mxu0 %v2915
    %8407 = vmatmul.bf16.gmra.mxu0 %v8043
    %v8408 = vpop.f32.mrf.mxu0
    %v8409 = vadd.f32 %v8396, %v8408
    %v8410 = vpop.f32.mrf.mxu0
    %8411 = vdwg.mxu0
    %8412 = vmatpush.bf16.msra.mxu0 %v3035
    %8413 = vmatpush.bf16.msra.mxu0 %v3027
    %8414 = vmatpush.bf16.msra.mxu0 %v3019
    %8415 = vmatpush.bf16.msra.mxu0 %v3011
    %8416 = vmatpush.bf16.msra.mxu0 %v3003
    %8417 = vmatpush.bf16.msra.mxu0 %v2995
    %8418 = vmatpush.bf16.msra.mxu0 %v2987
    %8419 = vmatpush.bf16.msra.mxu0 %v2979
    %8420 = vmatmul.bf16.gmra.mxu0 %v8044
    %v8421 = vpop.f32.mrf.mxu0
    %v8422 = vadd.f32 %v8409, %v8421
    %v8423 = vpop.f32.mrf.mxu0
    %8424 = vdwg.mxu0
    %8425 = vmatpush.bf16.msra.mxu0 %v3099
    %8426 = vmatpush.bf16.msra.mxu0 %v3091
    %8427 = vmatpush.bf16.msra.mxu0 %v3083
    %8428 = vmatpush.bf16.msra.mxu0 %v3075
    %8429 = vmatpush.bf16.msra.mxu0 %v3067
    %8430 = vmatpush.bf16.msra.mxu0 %v3059
    %8431 = vmatpush.bf16.msra.mxu0 %v3051
    %8432 = vmatpush.bf16.msra.mxu0 %v3043
    %8433 = vmatmul.bf16.gmra.mxu0 %v8045
    %v8434 = vpop.f32.mrf.mxu0
    %v8435 = vadd.f32 %v8422, %v8434
    %v8436 = vpop.f32.mrf.mxu0
    %8437 = vdwg.mxu0
    %8438 = vmatpush.bf16.msra.mxu0 %v3163
    %8439 = vmatpush.bf16.msra.mxu0 %v3155
    %8440 = vmatpush.bf16.msra.mxu0 %v3147
    %8441 = vmatpush.bf16.msra.mxu0 %v3139
    %8442 = vmatpush.bf16.msra.mxu0 %v3131
    %8443 = vmatpush.bf16.msra.mxu0 %v3123
    %8444 = vmatpush.bf16.msra.mxu0 %v3115
    %8445 = vmatpush.bf16.msra.mxu0 %v3107
    %8446 = vmatmul.bf16.gmra.mxu0 %v8046
    %v8447 = vpop.f32.mrf.mxu0
    %v8448 = vadd.f32 %v8435, %v8447
    %v8449 = vpop.f32.mrf.mxu0
    %8450 = vdwg.mxu0
    %8451 = vmatpush.bf16.msra.mxu0 %v3227
    %8452 = vmatpush.bf16.msra.mxu0 %v3219
    %8453 = vmatpush.bf16.msra.mxu0 %v3211
    %8454 = vmatpush.bf16.msra.mxu0 %v3203
    %8455 = vmatpush.bf16.msra.mxu0 %v3195
    %8456 = vmatpush.bf16.msra.mxu0 %v3187
    %8457 = vmatpush.bf16.msra.mxu0 %v3179
    %8458 = vmatpush.bf16.msra.mxu0 %v3171
    %8459 = vmatmul.bf16.gmra.mxu0 %v8047
    %v8460 = vpop.f32.mrf.mxu0
    %v8461 = vadd.f32 %v8448, %v8460
    %v8462 = vpop.f32.mrf.mxu0
    %8463 = vdwg.mxu0
    %8464 = vmatpush.bf16.msra.mxu0 %v2780
    %8465 = vmatpush.bf16.msra.mxu0 %v2772
    %8466 = vmatpush.bf16.msra.mxu0 %v2764
    %8467 = vmatpush.bf16.msra.mxu0 %v2756
    %8468 = vmatpush.bf16.msra.mxu0 %v2748
    %8469 = vmatpush.bf16.msra.mxu0 %v2740
    %8470 = vmatpush.bf16.msra.mxu0 %v2732
    %8471 = vmatpush.bf16.msra.mxu0 %v2724
    %8472 = vmatmul.bf16.gmra.mxu0 %v8040
    %v8473 = vpop.f32.mrf.mxu0
    %v8474 = vadd.f32 %v1123, %v8473
    %v8475 = vpop.f32.mrf.mxu0
    %8476 = vdwg.mxu0
    %8477 = vmatpush.bf16.msra.mxu0 %v2844
    %8478 = vmatpush.bf16.msra.mxu0 %v2836
    %8479 = vmatpush.bf16.msra.mxu0 %v2828
    %8480 = vmatpush.bf16.msra.mxu0 %v2820
    %8481 = vmatpush.bf16.msra.mxu0 %v2812
    %8482 = vmatpush.bf16.msra.mxu0 %v2804
    %8483 = vmatpush.bf16.msra.mxu0 %v2796
    %8484 = vmatpush.bf16.msra.mxu0 %v2788
    %8485 = vmatmul.bf16.gmra.mxu0 %v8041
    %v8486 = vpop.f32.mrf.mxu0
    %v8487 = vadd.f32 %v8474, %v8486
    %v8488 = vpop.f32.mrf.mxu0
    %8489 = vdwg.mxu0
    %8490 = vmatpush.bf16.msra.mxu0 %v2908
    %8491 = vmatpush.bf16.msra.mxu0 %v2900
    %8492 = vmatpush.bf16.msra.mxu0 %v2892
    %8493 = vmatpush.bf16.msra.mxu0 %v2884
    %8494 = vmatpush.bf16.msra.mxu0 %v2876
    %8495 = vmatpush.bf16.msra.mxu0 %v2868
    %8496 = vmatpush.bf16.msra.mxu0 %v2860
    %8497 = vmatpush.bf16.msra.mxu0 %v2852
    %8498 = vmatmul.bf16.gmra.mxu0 %v8042
    %v8499 = vpop.f32.mrf.mxu0
    %v8500 = vadd.f32 %v8487, %v8499
    %v8501 = vpop.f32.mrf.mxu0
    %8502 = vdwg.mxu0
    %8503 = vmatpush.bf16.msra.mxu0 %v2972
    %8504 = vmatpush.bf16.msra.mxu0 %v2964
    %8505 = vmatpush.bf16.msra.mxu0 %v2956
    %8506 = vmatpush.bf16.msra.mxu0 %v2948
    %8507 = vmatpush.bf16.msra.mxu0 %v2940
    %8508 = vmatpush.bf16.msra.mxu0 %v2932
    %8509 = vmatpush.bf16.msra.mxu0 %v2924
    %8510 = vmatpush.bf16.msra.mxu0 %v2916
    %8511 = vmatmul.bf16.gmra.mxu0 %v8043
    %v8512 = vpop.f32.mrf.mxu0
    %v8513 = vadd.f32 %v8500, %v8512
    %v8514 = vpop.f32.mrf.mxu0
    %8515 = vdwg.mxu0
    %8516 = vmatpush.bf16.msra.mxu0 %v3036
    %8517 = vmatpush.bf16.msra.mxu0 %v3028
    %8518 = vmatpush.bf16.msra.mxu0 %v3020
    %8519 = vmatpush.bf16.msra.mxu0 %v3012
    %8520 = vmatpush.bf16.msra.mxu0 %v3004
    %8521 = vmatpush.bf16.msra.mxu0 %v2996
    %8522 = vmatpush.bf16.msra.mxu0 %v2988
    %8523 = vmatpush.bf16.msra.mxu0 %v2980
    %8524 = vmatmul.bf16.gmra.mxu0 %v8044
    %v8525 = vpop.f32.mrf.mxu0
    %v8526 = vadd.f32 %v8513, %v8525
    %v8527 = vpop.f32.mrf.mxu0
    %8528 = vdwg.mxu0
    %8529 = vmatpush.bf16.msra.mxu0 %v3100
    %8530 = vmatpush.bf16.msra.mxu0 %v3092
    %8531 = vmatpush.bf16.msra.mxu0 %v3084
    %8532 = vmatpush.bf16.msra.mxu0 %v3076
    %8533 = vmatpush.bf16.msra.mxu0 %v3068
    %8534 = vmatpush.bf16.msra.mxu0 %v3060
    %8535 = vmatpush.bf16.msra.mxu0 %v3052
    %8536 = vmatpush.bf16.msra.mxu0 %v3044
    %8537 = vmatmul.bf16.gmra.mxu0 %v8045
    %v8538 = vpop.f32.mrf.mxu0
    %v8539 = vadd.f32 %v8526, %v8538
    %v8540 = vpop.f32.mrf.mxu0
    %8541 = vdwg.mxu0
    %8542 = vmatpush.bf16.msra.mxu0 %v3164
    %8543 = vmatpush.bf16.msra.mxu0 %v3156
    %8544 = vmatpush.bf16.msra.mxu0 %v3148
    %8545 = vmatpush.bf16.msra.mxu0 %v3140
    %8546 = vmatpush.bf16.msra.mxu0 %v3132
    %8547 = vmatpush.bf16.msra.mxu0 %v3124
    %8548 = vmatpush.bf16.msra.mxu0 %v3116
    %8549 = vmatpush.bf16.msra.mxu0 %v3108
    %8550 = vmatmul.bf16.gmra.mxu0 %v8046
    %v8551 = vpop.f32.mrf.mxu0
    %v8552 = vadd.f32 %v8539, %v8551
    %v8553 = vpop.f32.mrf.mxu0
    %8554 = vdwg.mxu0
    %8555 = vmatpush.bf16.msra.mxu0 %v3228
    %8556 = vmatpush.bf16.msra.mxu0 %v3220
    %8557 = vmatpush.bf16.msra.mxu0 %v3212
    %8558 = vmatpush.bf16.msra.mxu0 %v3204
    %8559 = vmatpush.bf16.msra.mxu0 %v3196
    %8560 = vmatpush.bf16.msra.mxu0 %v3188
    %8561 = vmatpush.bf16.msra.mxu0 %v3180
    %8562 = vmatpush.bf16.msra.mxu0 %v3172
    %8563 = vmatmul.bf16.gmra.mxu0 %v8047
    %v8564 = vpop.f32.mrf.mxu0
    %v8565 = vadd.f32 %v8552, %v8564
    %v8566 = vpop.f32.mrf.mxu0
    %8567 = vdwg.mxu0
    %8568 = vmatpush.bf16.msra.mxu0 %v2781
    %8569 = vmatpush.bf16.msra.mxu0 %v2773
    %8570 = vmatpush.bf16.msra.mxu0 %v2765
    %8571 = vmatpush.bf16.msra.mxu0 %v2757
    %8572 = vmatpush.bf16.msra.mxu0 %v2749
    %8573 = vmatpush.bf16.msra.mxu0 %v2741
    %8574 = vmatpush.bf16.msra.mxu0 %v2733
    %8575 = vmatpush.bf16.msra.mxu0 %v2725
    %8576 = vmatmul.bf16.gmra.mxu0 %v8040
    %v8577 = vpop.f32.mrf.mxu0
    %v8578 = vadd.f32 %v1124, %v8577
    %v8579 = vpop.f32.mrf.mxu0
    %8580 = vdwg.mxu0
    %8581 = vmatpush.bf16.msra.mxu0 %v2845
    %8582 = vmatpush.bf16.msra.mxu0 %v2837
    %8583 = vmatpush.bf16.msra.mxu0 %v2829
    %8584 = vmatpush.bf16.msra.mxu0 %v2821
    %8585 = vmatpush.bf16.msra.mxu0 %v2813
    %8586 = vmatpush.bf16.msra.mxu0 %v2805
    %8587 = vmatpush.bf16.msra.mxu0 %v2797
    %8588 = vmatpush.bf16.msra.mxu0 %v2789
    %8589 = vmatmul.bf16.gmra.mxu0 %v8041
    %v8590 = vpop.f32.mrf.mxu0
    %v8591 = vadd.f32 %v8578, %v8590
    %v8592 = vpop.f32.mrf.mxu0
    %8593 = vdwg.mxu0
    %8594 = vmatpush.bf16.msra.mxu0 %v2909
    %8595 = vmatpush.bf16.msra.mxu0 %v2901
    %8596 = vmatpush.bf16.msra.mxu0 %v2893
    %8597 = vmatpush.bf16.msra.mxu0 %v2885
    %8598 = vmatpush.bf16.msra.mxu0 %v2877
    %8599 = vmatpush.bf16.msra.mxu0 %v2869
    %8600 = vmatpush.bf16.msra.mxu0 %v2861
    %8601 = vmatpush.bf16.msra.mxu0 %v2853
    %8602 = vmatmul.bf16.gmra.mxu0 %v8042
    %v8603 = vpop.f32.mrf.mxu0
    %v8604 = vadd.f32 %v8591, %v8603
    %v8605 = vpop.f32.mrf.mxu0
    %8606 = vdwg.mxu0
    %8607 = vmatpush.bf16.msra.mxu0 %v2973
    %8608 = vmatpush.bf16.msra.mxu0 %v2965
    %8609 = vmatpush.bf16.msra.mxu0 %v2957
    %8610 = vmatpush.bf16.msra.mxu0 %v2949
    %8611 = vmatpush.bf16.msra.mxu0 %v2941
    %8612 = vmatpush.bf16.msra.mxu0 %v2933
    %8613 = vmatpush.bf16.msra.mxu0 %v2925
    %8614 = vmatpush.bf16.msra.mxu0 %v2917
    %8615 = vmatmul.bf16.gmra.mxu0 %v8043
    %v8616 = vpop.f32.mrf.mxu0
    %v8617 = vadd.f32 %v8604, %v8616
    %v8618 = vpop.f32.mrf.mxu0
    %8619 = vdwg.mxu0
    %8620 = vmatpush.bf16.msra.mxu0 %v3037
    %8621 = vmatpush.bf16.msra.mxu0 %v3029
    %8622 = vmatpush.bf16.msra.mxu0 %v3021
    %8623 = vmatpush.bf16.msra.mxu0 %v3013
    %8624 = vmatpush.bf16.msra.mxu0 %v3005
    %8625 = vmatpush.bf16.msra.mxu0 %v2997
    %8626 = vmatpush.bf16.msra.mxu0 %v2989
    %8627 = vmatpush.bf16.msra.mxu0 %v2981
    %8628 = vmatmul.bf16.gmra.mxu0 %v8044
    %v8629 = vpop.f32.mrf.mxu0
    %v8630 = vadd.f32 %v8617, %v8629
    %v8631 = vpop.f32.mrf.mxu0
    %8632 = vdwg.mxu0
    %8633 = vmatpush.bf16.msra.mxu0 %v3101
    %8634 = vmatpush.bf16.msra.mxu0 %v3093
    %8635 = vmatpush.bf16.msra.mxu0 %v3085
    %8636 = vmatpush.bf16.msra.mxu0 %v3077
    %8637 = vmatpush.bf16.msra.mxu0 %v3069
    %8638 = vmatpush.bf16.msra.mxu0 %v3061
    %8639 = vmatpush.bf16.msra.mxu0 %v3053
    %8640 = vmatpush.bf16.msra.mxu0 %v3045
    %8641 = vmatmul.bf16.gmra.mxu0 %v8045
    %v8642 = vpop.f32.mrf.mxu0
    %v8643 = vadd.f32 %v8630, %v8642
    %v8644 = vpop.f32.mrf.mxu0
    %8645 = vdwg.mxu0
    %8646 = vmatpush.bf16.msra.mxu0 %v3165
    %8647 = vmatpush.bf16.msra.mxu0 %v3157
    %8648 = vmatpush.bf16.msra.mxu0 %v3149
    %8649 = vmatpush.bf16.msra.mxu0 %v3141
    %8650 = vmatpush.bf16.msra.mxu0 %v3133
    %8651 = vmatpush.bf16.msra.mxu0 %v3125
    %8652 = vmatpush.bf16.msra.mxu0 %v3117
    %8653 = vmatpush.bf16.msra.mxu0 %v3109
    %8654 = vmatmul.bf16.gmra.mxu0 %v8046
    %v8655 = vpop.f32.mrf.mxu0
    %v8656 = vadd.f32 %v8643, %v8655
    %v8657 = vpop.f32.mrf.mxu0
    %8658 = vdwg.mxu0
    %8659 = vmatpush.bf16.msra.mxu0 %v3229
    %8660 = vmatpush.bf16.msra.mxu0 %v3221
    %8661 = vmatpush.bf16.msra.mxu0 %v3213
    %8662 = vmatpush.bf16.msra.mxu0 %v3205
    %8663 = vmatpush.bf16.msra.mxu0 %v3197
    %8664 = vmatpush.bf16.msra.mxu0 %v3189
    %8665 = vmatpush.bf16.msra.mxu0 %v3181
    %8666 = vmatpush.bf16.msra.mxu0 %v3173
    %8667 = vmatmul.bf16.gmra.mxu0 %v8047
    %v8668 = vpop.f32.mrf.mxu0
    %v8669 = vadd.f32 %v8656, %v8668
    %v8670 = vpop.f32.mrf.mxu0
    %8671 = vdwg.mxu0
    %8672 = vmatpush.bf16.msra.mxu0 %v2782
    %8673 = vmatpush.bf16.msra.mxu0 %v2774
    %8674 = vmatpush.bf16.msra.mxu0 %v2766
    %8675 = vmatpush.bf16.msra.mxu0 %v2758
    %8676 = vmatpush.bf16.msra.mxu0 %v2750
    %8677 = vmatpush.bf16.msra.mxu0 %v2742
    %8678 = vmatpush.bf16.msra.mxu0 %v2734
    %8679 = vmatpush.bf16.msra.mxu0 %v2726
    %8680 = vmatmul.bf16.gmra.mxu0 %v8040
    %v8681 = vpop.f32.mrf.mxu0
    %v8682 = vadd.f32 %v1125, %v8681
    %v8683 = vpop.f32.mrf.mxu0
    %8684 = vdwg.mxu0
    %8685 = vmatpush.bf16.msra.mxu0 %v2846
    %8686 = vmatpush.bf16.msra.mxu0 %v2838
    %8687 = vmatpush.bf16.msra.mxu0 %v2830
    %8688 = vmatpush.bf16.msra.mxu0 %v2822
    %8689 = vmatpush.bf16.msra.mxu0 %v2814
    %8690 = vmatpush.bf16.msra.mxu0 %v2806
    %8691 = vmatpush.bf16.msra.mxu0 %v2798
    %8692 = vmatpush.bf16.msra.mxu0 %v2790
    %8693 = vmatmul.bf16.gmra.mxu0 %v8041
    %v8694 = vpop.f32.mrf.mxu0
    %v8695 = vadd.f32 %v8682, %v8694
    %v8696 = vpop.f32.mrf.mxu0
    %8697 = vdwg.mxu0
    %8698 = vmatpush.bf16.msra.mxu0 %v2910
    %8699 = vmatpush.bf16.msra.mxu0 %v2902
    %8700 = vmatpush.bf16.msra.mxu0 %v2894
    %8701 = vmatpush.bf16.msra.mxu0 %v2886
    %8702 = vmatpush.bf16.msra.mxu0 %v2878
    %8703 = vmatpush.bf16.msra.mxu0 %v2870
    %8704 = vmatpush.bf16.msra.mxu0 %v2862
    %8705 = vmatpush.bf16.msra.mxu0 %v2854
    %8706 = vmatmul.bf16.gmra.mxu0 %v8042
    %v8707 = vpop.f32.mrf.mxu0
    %v8708 = vadd.f32 %v8695, %v8707
    %v8709 = vpop.f32.mrf.mxu0
    %8710 = vdwg.mxu0
    %8711 = vmatpush.bf16.msra.mxu0 %v2974
    %8712 = vmatpush.bf16.msra.mxu0 %v2966
    %8713 = vmatpush.bf16.msra.mxu0 %v2958
    %8714 = vmatpush.bf16.msra.mxu0 %v2950
    %8715 = vmatpush.bf16.msra.mxu0 %v2942
    %8716 = vmatpush.bf16.msra.mxu0 %v2934
    %8717 = vmatpush.bf16.msra.mxu0 %v2926
    %8718 = vmatpush.bf16.msra.mxu0 %v2918
    %8719 = vmatmul.bf16.gmra.mxu0 %v8043
    %v8720 = vpop.f32.mrf.mxu0
    %v8721 = vadd.f32 %v8708, %v8720
    %v8722 = vpop.f32.mrf.mxu0
    %8723 = vdwg.mxu0
    %8724 = vmatpush.bf16.msra.mxu0 %v3038
    %8725 = vmatpush.bf16.msra.mxu0 %v3030
    %8726 = vmatpush.bf16.msra.mxu0 %v3022
    %8727 = vmatpush.bf16.msra.mxu0 %v3014
    %8728 = vmatpush.bf16.msra.mxu0 %v3006
    %8729 = vmatpush.bf16.msra.mxu0 %v2998
    %8730 = vmatpush.bf16.msra.mxu0 %v2990
    %8731 = vmatpush.bf16.msra.mxu0 %v2982
    %8732 = vmatmul.bf16.gmra.mxu0 %v8044
    %v8733 = vpop.f32.mrf.mxu0
    %v8734 = vadd.f32 %v8721, %v8733
    %v8735 = vpop.f32.mrf.mxu0
    %8736 = vdwg.mxu0
    %8737 = vmatpush.bf16.msra.mxu0 %v3102
    %8738 = vmatpush.bf16.msra.mxu0 %v3094
    %8739 = vmatpush.bf16.msra.mxu0 %v3086
    %8740 = vmatpush.bf16.msra.mxu0 %v3078
    %8741 = vmatpush.bf16.msra.mxu0 %v3070
    %8742 = vmatpush.bf16.msra.mxu0 %v3062
    %8743 = vmatpush.bf16.msra.mxu0 %v3054
    %8744 = vmatpush.bf16.msra.mxu0 %v3046
    %8745 = vmatmul.bf16.gmra.mxu0 %v8045
    %v8746 = vpop.f32.mrf.mxu0
    %v8747 = vadd.f32 %v8734, %v8746
    %v8748 = vpop.f32.mrf.mxu0
    %8749 = vdwg.mxu0
    %8750 = vmatpush.bf16.msra.mxu0 %v3166
    %8751 = vmatpush.bf16.msra.mxu0 %v3158
    %8752 = vmatpush.bf16.msra.mxu0 %v3150
    %8753 = vmatpush.bf16.msra.mxu0 %v3142
    %8754 = vmatpush.bf16.msra.mxu0 %v3134
    %8755 = vmatpush.bf16.msra.mxu0 %v3126
    %8756 = vmatpush.bf16.msra.mxu0 %v3118
    %8757 = vmatpush.bf16.msra.mxu0 %v3110
    %8758 = vmatmul.bf16.gmra.mxu0 %v8046
    %v8759 = vpop.f32.mrf.mxu0
    %v8760 = vadd.f32 %v8747, %v8759
    %v8761 = vpop.f32.mrf.mxu0
    %8762 = vdwg.mxu0
    %8763 = vmatpush.bf16.msra.mxu0 %v3230
    %8764 = vmatpush.bf16.msra.mxu0 %v3222
    %8765 = vmatpush.bf16.msra.mxu0 %v3214
    %8766 = vmatpush.bf16.msra.mxu0 %v3206
    %8767 = vmatpush.bf16.msra.mxu0 %v3198
    %8768 = vmatpush.bf16.msra.mxu0 %v3190
    %8769 = vmatpush.bf16.msra.mxu0 %v3182
    %8770 = vmatpush.bf16.msra.mxu0 %v3174
    %8771 = vmatmul.bf16.gmra.mxu0 %v8047
    %v8772 = vpop.f32.mrf.mxu0
    %v8773 = vadd.f32 %v8760, %v8772
    %v8774 = vpop.f32.mrf.mxu0
    %8775 = vdwg.mxu0
    %8776 = vmatpush.bf16.msra.mxu0 %v2783
    %8777 = vmatpush.bf16.msra.mxu0 %v2775
    %8778 = vmatpush.bf16.msra.mxu0 %v2767
    %8779 = vmatpush.bf16.msra.mxu0 %v2759
    %8780 = vmatpush.bf16.msra.mxu0 %v2751
    %8781 = vmatpush.bf16.msra.mxu0 %v2743
    %8782 = vmatpush.bf16.msra.mxu0 %v2735
    %8783 = vmatpush.bf16.msra.mxu0 %v2727
    %8784 = vmatmul.bf16.gmra.mxu0 %v8040
    %v8785 = vpop.f32.mrf.mxu0
    %v8786 = vadd.f32 %v1126, %v8785
    %v8787 = vpop.f32.mrf.mxu0
    %8788 = vdwg.mxu0
    %8789 = vmatpush.bf16.msra.mxu0 %v2847
    %8790 = vmatpush.bf16.msra.mxu0 %v2839
    %8791 = vmatpush.bf16.msra.mxu0 %v2831
    %8792 = vmatpush.bf16.msra.mxu0 %v2823
    %8793 = vmatpush.bf16.msra.mxu0 %v2815
    %8794 = vmatpush.bf16.msra.mxu0 %v2807
    %8795 = vmatpush.bf16.msra.mxu0 %v2799
    %8796 = vmatpush.bf16.msra.mxu0 %v2791
    %8797 = vmatmul.bf16.gmra.mxu0 %v8041
    %v8798 = vpop.f32.mrf.mxu0
    %v8799 = vadd.f32 %v8786, %v8798
    %v8800 = vpop.f32.mrf.mxu0
    %8801 = vdwg.mxu0
    %8802 = vmatpush.bf16.msra.mxu0 %v2911
    %8803 = vmatpush.bf16.msra.mxu0 %v2903
    %8804 = vmatpush.bf16.msra.mxu0 %v2895
    %8805 = vmatpush.bf16.msra.mxu0 %v2887
    %8806 = vmatpush.bf16.msra.mxu0 %v2879
    %8807 = vmatpush.bf16.msra.mxu0 %v2871
    %8808 = vmatpush.bf16.msra.mxu0 %v2863
    %8809 = vmatpush.bf16.msra.mxu0 %v2855
    %8810 = vmatmul.bf16.gmra.mxu0 %v8042
    %v8811 = vpop.f32.mrf.mxu0
    %v8812 = vadd.f32 %v8799, %v8811
    %v8813 = vpop.f32.mrf.mxu0
    %8814 = vdwg.mxu0
    %8815 = vmatpush.bf16.msra.mxu0 %v2975
    %8816 = vmatpush.bf16.msra.mxu0 %v2967
    %8817 = vmatpush.bf16.msra.mxu0 %v2959
    %8818 = vmatpush.bf16.msra.mxu0 %v2951
    %8819 = vmatpush.bf16.msra.mxu0 %v2943
    %8820 = vmatpush.bf16.msra.mxu0 %v2935
    %8821 = vmatpush.bf16.msra.mxu0 %v2927
    %8822 = vmatpush.bf16.msra.mxu0 %v2919
    %8823 = vmatmul.bf16.gmra.mxu0 %v8043
    %v8824 = vpop.f32.mrf.mxu0
    %v8825 = vadd.f32 %v8812, %v8824
    %v8826 = vpop.f32.mrf.mxu0
    %8827 = vdwg.mxu0
    %8828 = vmatpush.bf16.msra.mxu0 %v3039
    %8829 = vmatpush.bf16.msra.mxu0 %v3031
    %8830 = vmatpush.bf16.msra.mxu0 %v3023
    %8831 = vmatpush.bf16.msra.mxu0 %v3015
    %8832 = vmatpush.bf16.msra.mxu0 %v3007
    %8833 = vmatpush.bf16.msra.mxu0 %v2999
    %8834 = vmatpush.bf16.msra.mxu0 %v2991
    %8835 = vmatpush.bf16.msra.mxu0 %v2983
    %8836 = vmatmul.bf16.gmra.mxu0 %v8044
    %v8837 = vpop.f32.mrf.mxu0
    %v8838 = vadd.f32 %v8825, %v8837
    %v8839 = vpop.f32.mrf.mxu0
    %8840 = vdwg.mxu0
    %8841 = vmatpush.bf16.msra.mxu0 %v3103
    %8842 = vmatpush.bf16.msra.mxu0 %v3095
    %8843 = vmatpush.bf16.msra.mxu0 %v3087
    %8844 = vmatpush.bf16.msra.mxu0 %v3079
    %8845 = vmatpush.bf16.msra.mxu0 %v3071
    %8846 = vmatpush.bf16.msra.mxu0 %v3063
    %8847 = vmatpush.bf16.msra.mxu0 %v3055
    %8848 = vmatpush.bf16.msra.mxu0 %v3047
    %8849 = vmatmul.bf16.gmra.mxu0 %v8045
    %v8850 = vpop.f32.mrf.mxu0
    %v8851 = vadd.f32 %v8838, %v8850
    %v8852 = vpop.f32.mrf.mxu0
    %8853 = vdwg.mxu0
    %8854 = vmatpush.bf16.msra.mxu0 %v3167
    %8855 = vmatpush.bf16.msra.mxu0 %v3159
    %8856 = vmatpush.bf16.msra.mxu0 %v3151
    %8857 = vmatpush.bf16.msra.mxu0 %v3143
    %8858 = vmatpush.bf16.msra.mxu0 %v3135
    %8859 = vmatpush.bf16.msra.mxu0 %v3127
    %8860 = vmatpush.bf16.msra.mxu0 %v3119
    %8861 = vmatpush.bf16.msra.mxu0 %v3111
    %8862 = vmatmul.bf16.gmra.mxu0 %v8046
    %v8863 = vpop.f32.mrf.mxu0
    %v8864 = vadd.f32 %v8851, %v8863
    %v8865 = vpop.f32.mrf.mxu0
    %8866 = vdwg.mxu0
    %8867 = vmatpush.bf16.msra.mxu0 %v3231
    %8868 = vmatpush.bf16.msra.mxu0 %v3223
    %8869 = vmatpush.bf16.msra.mxu0 %v3215
    %8870 = vmatpush.bf16.msra.mxu0 %v3207
    %8871 = vmatpush.bf16.msra.mxu0 %v3199
    %8872 = vmatpush.bf16.msra.mxu0 %v3191
    %8873 = vmatpush.bf16.msra.mxu0 %v3183
    %8874 = vmatpush.bf16.msra.mxu0 %v3175
    %8875 = vmatmul.bf16.gmra.mxu0 %v8047
    %v8876 = vpop.f32.mrf.mxu0
    %v8877 = vadd.f32 %v8864, %v8876
    %v8878 = vpop.f32.mrf.mxu0
    %8879 = vdwg.mxu0
    %v8880 = vmax.f32 %v8149, 0.0
    %v8881 = vmax.f32 %v8253, 0.0
    %v8882 = vmax.f32 %v8357, 0.0
    %v8883 = vmax.f32 %v8461, 0.0
    %v8884 = vmax.f32 %v8565, 0.0
    %v8885 = vmax.f32 %v8669, 0.0
    %v8886 = vmax.f32 %v8773, 0.0
    %v8887 = vmax.f32 %v8877, 0.0
    %v8888 = vpack.c.bf16 %v8880, %v8880
    %v8889 = vpack.c.bf16 %v8881, %v8881
    %v8890 = vpack.c.bf16 %v8882, %v8882
    %v8891 = vpack.c.bf16 %v8883, %v8883
    %v8892 = vpack.c.bf16 %v8884, %v8884
    %v8893 = vpack.c.bf16 %v8885, %v8885
    %v8894 = vpack.c.bf16 %v8886, %v8886
    %v8895 = vpack.c.bf16 %v8887, %v8887
    %8896 = vmatpush.bf16.msra.mxu0 %v6184
    %8897 = vmatpush.bf16.msra.mxu0 %v6176
    %8898 = vmatpush.bf16.msra.mxu0 %v6168
    %8899 = vmatpush.bf16.msra.mxu0 %v6160
    %8900 = vmatpush.bf16.msra.mxu0 %v6152
    %8901 = vmatpush.bf16.msra.mxu0 %v6144
    %8902 = vmatpush.bf16.msra.mxu0 %v6136
    %8903 = vmatpush.bf16.msra.mxu0 %v6128
    %8904 = vmatmul.bf16.gmra.mxu0 %v8888
    %v8905 = vpop.f32.mrf.mxu0
    %v8906 = vadd.f32 %v1137, %v8905
    %v8907 = vpop.f32.mrf.mxu0
    %8908 = vdwg.mxu0
    %8909 = vmatpush.bf16.msra.mxu0 %v6248
    %8910 = vmatpush.bf16.msra.mxu0 %v6240
    %8911 = vmatpush.bf16.msra.mxu0 %v6232
    %8912 = vmatpush.bf16.msra.mxu0 %v6224
    %8913 = vmatpush.bf16.msra.mxu0 %v6216
    %8914 = vmatpush.bf16.msra.mxu0 %v6208
    %8915 = vmatpush.bf16.msra.mxu0 %v6200
    %8916 = vmatpush.bf16.msra.mxu0 %v6192
    %8917 = vmatmul.bf16.gmra.mxu0 %v8889
    %v8918 = vpop.f32.mrf.mxu0
    %v8919 = vadd.f32 %v8906, %v8918
    %v8920 = vpop.f32.mrf.mxu0
    %8921 = vdwg.mxu0
    %8922 = vmatpush.bf16.msra.mxu0 %v6312
    %8923 = vmatpush.bf16.msra.mxu0 %v6304
    %8924 = vmatpush.bf16.msra.mxu0 %v6296
    %8925 = vmatpush.bf16.msra.mxu0 %v6288
    %8926 = vmatpush.bf16.msra.mxu0 %v6280
    %8927 = vmatpush.bf16.msra.mxu0 %v6272
    %8928 = vmatpush.bf16.msra.mxu0 %v6264
    %8929 = vmatpush.bf16.msra.mxu0 %v6256
    %8930 = vmatmul.bf16.gmra.mxu0 %v8890
    %v8931 = vpop.f32.mrf.mxu0
    %v8932 = vadd.f32 %v8919, %v8931
    %v8933 = vpop.f32.mrf.mxu0
    %8934 = vdwg.mxu0
    %8935 = vmatpush.bf16.msra.mxu0 %v6376
    %8936 = vmatpush.bf16.msra.mxu0 %v6368
    %8937 = vmatpush.bf16.msra.mxu0 %v6360
    %8938 = vmatpush.bf16.msra.mxu0 %v6352
    %8939 = vmatpush.bf16.msra.mxu0 %v6344
    %8940 = vmatpush.bf16.msra.mxu0 %v6336
    %8941 = vmatpush.bf16.msra.mxu0 %v6328
    %8942 = vmatpush.bf16.msra.mxu0 %v6320
    %8943 = vmatmul.bf16.gmra.mxu0 %v8891
    %v8944 = vpop.f32.mrf.mxu0
    %v8945 = vadd.f32 %v8932, %v8944
    %v8946 = vpop.f32.mrf.mxu0
    %8947 = vdwg.mxu0
    %8948 = vmatpush.bf16.msra.mxu0 %v6440
    %8949 = vmatpush.bf16.msra.mxu0 %v6432
    %8950 = vmatpush.bf16.msra.mxu0 %v6424
    %8951 = vmatpush.bf16.msra.mxu0 %v6416
    %8952 = vmatpush.bf16.msra.mxu0 %v6408
    %8953 = vmatpush.bf16.msra.mxu0 %v6400
    %8954 = vmatpush.bf16.msra.mxu0 %v6392
    %8955 = vmatpush.bf16.msra.mxu0 %v6384
    %8956 = vmatmul.bf16.gmra.mxu0 %v8892
    %v8957 = vpop.f32.mrf.mxu0
    %v8958 = vadd.f32 %v8945, %v8957
    %v8959 = vpop.f32.mrf.mxu0
    %8960 = vdwg.mxu0
    %8961 = vmatpush.bf16.msra.mxu0 %v6504
    %8962 = vmatpush.bf16.msra.mxu0 %v6496
    %8963 = vmatpush.bf16.msra.mxu0 %v6488
    %8964 = vmatpush.bf16.msra.mxu0 %v6480
    %8965 = vmatpush.bf16.msra.mxu0 %v6472
    %8966 = vmatpush.bf16.msra.mxu0 %v6464
    %8967 = vmatpush.bf16.msra.mxu0 %v6456
    %8968 = vmatpush.bf16.msra.mxu0 %v6448
    %8969 = vmatmul.bf16.gmra.mxu0 %v8893
    %v8970 = vpop.f32.mrf.mxu0
    %v8971 = vadd.f32 %v8958, %v8970
    %v8972 = vpop.f32.mrf.mxu0
    %8973 = vdwg.mxu0
    %8974 = vmatpush.bf16.msra.mxu0 %v6568
    %8975 = vmatpush.bf16.msra.mxu0 %v6560
    %8976 = vmatpush.bf16.msra.mxu0 %v6552
    %8977 = vmatpush.bf16.msra.mxu0 %v6544
    %8978 = vmatpush.bf16.msra.mxu0 %v6536
    %8979 = vmatpush.bf16.msra.mxu0 %v6528
    %8980 = vmatpush.bf16.msra.mxu0 %v6520
    %8981 = vmatpush.bf16.msra.mxu0 %v6512
    %8982 = vmatmul.bf16.gmra.mxu0 %v8894
    %v8983 = vpop.f32.mrf.mxu0
    %v8984 = vadd.f32 %v8971, %v8983
    %v8985 = vpop.f32.mrf.mxu0
    %8986 = vdwg.mxu0
    %8987 = vmatpush.bf16.msra.mxu0 %v6632
    %8988 = vmatpush.bf16.msra.mxu0 %v6624
    %8989 = vmatpush.bf16.msra.mxu0 %v6616
    %8990 = vmatpush.bf16.msra.mxu0 %v6608
    %8991 = vmatpush.bf16.msra.mxu0 %v6600
    %8992 = vmatpush.bf16.msra.mxu0 %v6592
    %8993 = vmatpush.bf16.msra.mxu0 %v6584
    %8994 = vmatpush.bf16.msra.mxu0 %v6576
    %8995 = vmatmul.bf16.gmra.mxu0 %v8895
    %v8996 = vpop.f32.mrf.mxu0
    %v8997 = vadd.f32 %v8984, %v8996
    %v8998 = vpop.f32.mrf.mxu0
    %8999 = vdwg.mxu0
    %9000 = vmatpush.bf16.msra.mxu0 %v6185
    %9001 = vmatpush.bf16.msra.mxu0 %v6177
    %9002 = vmatpush.bf16.msra.mxu0 %v6169
    %9003 = vmatpush.bf16.msra.mxu0 %v6161
    %9004 = vmatpush.bf16.msra.mxu0 %v6153
    %9005 = vmatpush.bf16.msra.mxu0 %v6145
    %9006 = vmatpush.bf16.msra.mxu0 %v6137
    %9007 = vmatpush.bf16.msra.mxu0 %v6129
    %9008 = vmatmul.bf16.gmra.mxu0 %v8888
    %v9009 = vpop.f32.mrf.mxu0
    %v9010 = vadd.f32 %v1138, %v9009
    %v9011 = vpop.f32.mrf.mxu0
    %9012 = vdwg.mxu0
    %9013 = vmatpush.bf16.msra.mxu0 %v6249
    %9014 = vmatpush.bf16.msra.mxu0 %v6241
    %9015 = vmatpush.bf16.msra.mxu0 %v6233
    %9016 = vmatpush.bf16.msra.mxu0 %v6225
    %9017 = vmatpush.bf16.msra.mxu0 %v6217
    %9018 = vmatpush.bf16.msra.mxu0 %v6209
    %9019 = vmatpush.bf16.msra.mxu0 %v6201
    %9020 = vmatpush.bf16.msra.mxu0 %v6193
    %9021 = vmatmul.bf16.gmra.mxu0 %v8889
    %v9022 = vpop.f32.mrf.mxu0
    %v9023 = vadd.f32 %v9010, %v9022
    %v9024 = vpop.f32.mrf.mxu0
    %9025 = vdwg.mxu0
    %9026 = vmatpush.bf16.msra.mxu0 %v6313
    %9027 = vmatpush.bf16.msra.mxu0 %v6305
    %9028 = vmatpush.bf16.msra.mxu0 %v6297
    %9029 = vmatpush.bf16.msra.mxu0 %v6289
    %9030 = vmatpush.bf16.msra.mxu0 %v6281
    %9031 = vmatpush.bf16.msra.mxu0 %v6273
    %9032 = vmatpush.bf16.msra.mxu0 %v6265
    %9033 = vmatpush.bf16.msra.mxu0 %v6257
    %9034 = vmatmul.bf16.gmra.mxu0 %v8890
    %v9035 = vpop.f32.mrf.mxu0
    %v9036 = vadd.f32 %v9023, %v9035
    %v9037 = vpop.f32.mrf.mxu0
    %9038 = vdwg.mxu0
    %9039 = vmatpush.bf16.msra.mxu0 %v6377
    %9040 = vmatpush.bf16.msra.mxu0 %v6369
    %9041 = vmatpush.bf16.msra.mxu0 %v6361
    %9042 = vmatpush.bf16.msra.mxu0 %v6353
    %9043 = vmatpush.bf16.msra.mxu0 %v6345
    %9044 = vmatpush.bf16.msra.mxu0 %v6337
    %9045 = vmatpush.bf16.msra.mxu0 %v6329
    %9046 = vmatpush.bf16.msra.mxu0 %v6321
    %9047 = vmatmul.bf16.gmra.mxu0 %v8891
    %v9048 = vpop.f32.mrf.mxu0
    %v9049 = vadd.f32 %v9036, %v9048
    %v9050 = vpop.f32.mrf.mxu0
    %9051 = vdwg.mxu0
    %9052 = vmatpush.bf16.msra.mxu0 %v6441
    %9053 = vmatpush.bf16.msra.mxu0 %v6433
    %9054 = vmatpush.bf16.msra.mxu0 %v6425
    %9055 = vmatpush.bf16.msra.mxu0 %v6417
    %9056 = vmatpush.bf16.msra.mxu0 %v6409
    %9057 = vmatpush.bf16.msra.mxu0 %v6401
    %9058 = vmatpush.bf16.msra.mxu0 %v6393
    %9059 = vmatpush.bf16.msra.mxu0 %v6385
    %9060 = vmatmul.bf16.gmra.mxu0 %v8892
    %v9061 = vpop.f32.mrf.mxu0
    %v9062 = vadd.f32 %v9049, %v9061
    %v9063 = vpop.f32.mrf.mxu0
    %9064 = vdwg.mxu0
    %9065 = vmatpush.bf16.msra.mxu0 %v6505
    %9066 = vmatpush.bf16.msra.mxu0 %v6497
    %9067 = vmatpush.bf16.msra.mxu0 %v6489
    %9068 = vmatpush.bf16.msra.mxu0 %v6481
    %9069 = vmatpush.bf16.msra.mxu0 %v6473
    %9070 = vmatpush.bf16.msra.mxu0 %v6465
    %9071 = vmatpush.bf16.msra.mxu0 %v6457
    %9072 = vmatpush.bf16.msra.mxu0 %v6449
    %9073 = vmatmul.bf16.gmra.mxu0 %v8893
    %v9074 = vpop.f32.mrf.mxu0
    %v9075 = vadd.f32 %v9062, %v9074
    %v9076 = vpop.f32.mrf.mxu0
    %9077 = vdwg.mxu0
    %9078 = vmatpush.bf16.msra.mxu0 %v6569
    %9079 = vmatpush.bf16.msra.mxu0 %v6561
    %9080 = vmatpush.bf16.msra.mxu0 %v6553
    %9081 = vmatpush.bf16.msra.mxu0 %v6545
    %9082 = vmatpush.bf16.msra.mxu0 %v6537
    %9083 = vmatpush.bf16.msra.mxu0 %v6529
    %9084 = vmatpush.bf16.msra.mxu0 %v6521
    %9085 = vmatpush.bf16.msra.mxu0 %v6513
    %9086 = vmatmul.bf16.gmra.mxu0 %v8894
    %v9087 = vpop.f32.mrf.mxu0
    %v9088 = vadd.f32 %v9075, %v9087
    %v9089 = vpop.f32.mrf.mxu0
    %9090 = vdwg.mxu0
    %9091 = vmatpush.bf16.msra.mxu0 %v6633
    %9092 = vmatpush.bf16.msra.mxu0 %v6625
    %9093 = vmatpush.bf16.msra.mxu0 %v6617
    %9094 = vmatpush.bf16.msra.mxu0 %v6609
    %9095 = vmatpush.bf16.msra.mxu0 %v6601
    %9096 = vmatpush.bf16.msra.mxu0 %v6593
    %9097 = vmatpush.bf16.msra.mxu0 %v6585
    %9098 = vmatpush.bf16.msra.mxu0 %v6577
    %9099 = vmatmul.bf16.gmra.mxu0 %v8895
    %v9100 = vpop.f32.mrf.mxu0
    %v9101 = vadd.f32 %v9088, %v9100
    %v9102 = vpop.f32.mrf.mxu0
    %9103 = vdwg.mxu0
    %9104 = vmatpush.bf16.msra.mxu0 %v6186
    %9105 = vmatpush.bf16.msra.mxu0 %v6178
    %9106 = vmatpush.bf16.msra.mxu0 %v6170
    %9107 = vmatpush.bf16.msra.mxu0 %v6162
    %9108 = vmatpush.bf16.msra.mxu0 %v6154
    %9109 = vmatpush.bf16.msra.mxu0 %v6146
    %9110 = vmatpush.bf16.msra.mxu0 %v6138
    %9111 = vmatpush.bf16.msra.mxu0 %v6130
    %9112 = vmatmul.bf16.gmra.mxu0 %v8888
    %v9113 = vpop.f32.mrf.mxu0
    %v9114 = vadd.f32 %v1139, %v9113
    %v9115 = vpop.f32.mrf.mxu0
    %9116 = vdwg.mxu0
    %9117 = vmatpush.bf16.msra.mxu0 %v6250
    %9118 = vmatpush.bf16.msra.mxu0 %v6242
    %9119 = vmatpush.bf16.msra.mxu0 %v6234
    %9120 = vmatpush.bf16.msra.mxu0 %v6226
    %9121 = vmatpush.bf16.msra.mxu0 %v6218
    %9122 = vmatpush.bf16.msra.mxu0 %v6210
    %9123 = vmatpush.bf16.msra.mxu0 %v6202
    %9124 = vmatpush.bf16.msra.mxu0 %v6194
    %9125 = vmatmul.bf16.gmra.mxu0 %v8889
    %v9126 = vpop.f32.mrf.mxu0
    %v9127 = vadd.f32 %v9114, %v9126
    %v9128 = vpop.f32.mrf.mxu0
    %9129 = vdwg.mxu0
    %9130 = vmatpush.bf16.msra.mxu0 %v6314
    %9131 = vmatpush.bf16.msra.mxu0 %v6306
    %9132 = vmatpush.bf16.msra.mxu0 %v6298
    %9133 = vmatpush.bf16.msra.mxu0 %v6290
    %9134 = vmatpush.bf16.msra.mxu0 %v6282
    %9135 = vmatpush.bf16.msra.mxu0 %v6274
    %9136 = vmatpush.bf16.msra.mxu0 %v6266
    %9137 = vmatpush.bf16.msra.mxu0 %v6258
    %9138 = vmatmul.bf16.gmra.mxu0 %v8890
    %v9139 = vpop.f32.mrf.mxu0
    %v9140 = vadd.f32 %v9127, %v9139
    %v9141 = vpop.f32.mrf.mxu0
    %9142 = vdwg.mxu0
    %9143 = vmatpush.bf16.msra.mxu0 %v6378
    %9144 = vmatpush.bf16.msra.mxu0 %v6370
    %9145 = vmatpush.bf16.msra.mxu0 %v6362
    %9146 = vmatpush.bf16.msra.mxu0 %v6354
    %9147 = vmatpush.bf16.msra.mxu0 %v6346
    %9148 = vmatpush.bf16.msra.mxu0 %v6338
    %9149 = vmatpush.bf16.msra.mxu0 %v6330
    %9150 = vmatpush.bf16.msra.mxu0 %v6322
    %9151 = vmatmul.bf16.gmra.mxu0 %v8891
    %v9152 = vpop.f32.mrf.mxu0
    %v9153 = vadd.f32 %v9140, %v9152
    %v9154 = vpop.f32.mrf.mxu0
    %9155 = vdwg.mxu0
    %9156 = vmatpush.bf16.msra.mxu0 %v6442
    %9157 = vmatpush.bf16.msra.mxu0 %v6434
    %9158 = vmatpush.bf16.msra.mxu0 %v6426
    %9159 = vmatpush.bf16.msra.mxu0 %v6418
    %9160 = vmatpush.bf16.msra.mxu0 %v6410
    %9161 = vmatpush.bf16.msra.mxu0 %v6402
    %9162 = vmatpush.bf16.msra.mxu0 %v6394
    %9163 = vmatpush.bf16.msra.mxu0 %v6386
    %9164 = vmatmul.bf16.gmra.mxu0 %v8892
    %v9165 = vpop.f32.mrf.mxu0
    %v9166 = vadd.f32 %v9153, %v9165
    %v9167 = vpop.f32.mrf.mxu0
    %9168 = vdwg.mxu0
    %9169 = vmatpush.bf16.msra.mxu0 %v6506
    %9170 = vmatpush.bf16.msra.mxu0 %v6498
    %9171 = vmatpush.bf16.msra.mxu0 %v6490
    %9172 = vmatpush.bf16.msra.mxu0 %v6482
    %9173 = vmatpush.bf16.msra.mxu0 %v6474
    %9174 = vmatpush.bf16.msra.mxu0 %v6466
    %9175 = vmatpush.bf16.msra.mxu0 %v6458
    %9176 = vmatpush.bf16.msra.mxu0 %v6450
    %9177 = vmatmul.bf16.gmra.mxu0 %v8893
    %v9178 = vpop.f32.mrf.mxu0
    %v9179 = vadd.f32 %v9166, %v9178
    %v9180 = vpop.f32.mrf.mxu0
    %9181 = vdwg.mxu0
    %9182 = vmatpush.bf16.msra.mxu0 %v6570
    %9183 = vmatpush.bf16.msra.mxu0 %v6562
    %9184 = vmatpush.bf16.msra.mxu0 %v6554
    %9185 = vmatpush.bf16.msra.mxu0 %v6546
    %9186 = vmatpush.bf16.msra.mxu0 %v6538
    %9187 = vmatpush.bf16.msra.mxu0 %v6530
    %9188 = vmatpush.bf16.msra.mxu0 %v6522
    %9189 = vmatpush.bf16.msra.mxu0 %v6514
    %9190 = vmatmul.bf16.gmra.mxu0 %v8894
    %v9191 = vpop.f32.mrf.mxu0
    %v9192 = vadd.f32 %v9179, %v9191
    %v9193 = vpop.f32.mrf.mxu0
    %9194 = vdwg.mxu0
    %9195 = vmatpush.bf16.msra.mxu0 %v6634
    %9196 = vmatpush.bf16.msra.mxu0 %v6626
    %9197 = vmatpush.bf16.msra.mxu0 %v6618
    %9198 = vmatpush.bf16.msra.mxu0 %v6610
    %9199 = vmatpush.bf16.msra.mxu0 %v6602
    %9200 = vmatpush.bf16.msra.mxu0 %v6594
    %9201 = vmatpush.bf16.msra.mxu0 %v6586
    %9202 = vmatpush.bf16.msra.mxu0 %v6578
    %9203 = vmatmul.bf16.gmra.mxu0 %v8895
    %v9204 = vpop.f32.mrf.mxu0
    %v9205 = vadd.f32 %v9192, %v9204
    %v9206 = vpop.f32.mrf.mxu0
    %9207 = vdwg.mxu0
    %9208 = vmatpush.bf16.msra.mxu0 %v6187
    %9209 = vmatpush.bf16.msra.mxu0 %v6179
    %9210 = vmatpush.bf16.msra.mxu0 %v6171
    %9211 = vmatpush.bf16.msra.mxu0 %v6163
    %9212 = vmatpush.bf16.msra.mxu0 %v6155
    %9213 = vmatpush.bf16.msra.mxu0 %v6147
    %9214 = vmatpush.bf16.msra.mxu0 %v6139
    %9215 = vmatpush.bf16.msra.mxu0 %v6131
    %9216 = vmatmul.bf16.gmra.mxu0 %v8888
    %v9217 = vpop.f32.mrf.mxu0
    %v9218 = vadd.f32 %v1140, %v9217
    %v9219 = vpop.f32.mrf.mxu0
    %9220 = vdwg.mxu0
    %9221 = vmatpush.bf16.msra.mxu0 %v6251
    %9222 = vmatpush.bf16.msra.mxu0 %v6243
    %9223 = vmatpush.bf16.msra.mxu0 %v6235
    %9224 = vmatpush.bf16.msra.mxu0 %v6227
    %9225 = vmatpush.bf16.msra.mxu0 %v6219
    %9226 = vmatpush.bf16.msra.mxu0 %v6211
    %9227 = vmatpush.bf16.msra.mxu0 %v6203
    %9228 = vmatpush.bf16.msra.mxu0 %v6195
    %9229 = vmatmul.bf16.gmra.mxu0 %v8889
    %v9230 = vpop.f32.mrf.mxu0
    %v9231 = vadd.f32 %v9218, %v9230
    %v9232 = vpop.f32.mrf.mxu0
    %9233 = vdwg.mxu0
    %9234 = vmatpush.bf16.msra.mxu0 %v6315
    %9235 = vmatpush.bf16.msra.mxu0 %v6307
    %9236 = vmatpush.bf16.msra.mxu0 %v6299
    %9237 = vmatpush.bf16.msra.mxu0 %v6291
    %9238 = vmatpush.bf16.msra.mxu0 %v6283
    %9239 = vmatpush.bf16.msra.mxu0 %v6275
    %9240 = vmatpush.bf16.msra.mxu0 %v6267
    %9241 = vmatpush.bf16.msra.mxu0 %v6259
    %9242 = vmatmul.bf16.gmra.mxu0 %v8890
    %v9243 = vpop.f32.mrf.mxu0
    %v9244 = vadd.f32 %v9231, %v9243
    %v9245 = vpop.f32.mrf.mxu0
    %9246 = vdwg.mxu0
    %9247 = vmatpush.bf16.msra.mxu0 %v6379
    %9248 = vmatpush.bf16.msra.mxu0 %v6371
    %9249 = vmatpush.bf16.msra.mxu0 %v6363
    %9250 = vmatpush.bf16.msra.mxu0 %v6355
    %9251 = vmatpush.bf16.msra.mxu0 %v6347
    %9252 = vmatpush.bf16.msra.mxu0 %v6339
    %9253 = vmatpush.bf16.msra.mxu0 %v6331
    %9254 = vmatpush.bf16.msra.mxu0 %v6323
    %9255 = vmatmul.bf16.gmra.mxu0 %v8891
    %v9256 = vpop.f32.mrf.mxu0
    %v9257 = vadd.f32 %v9244, %v9256
    %v9258 = vpop.f32.mrf.mxu0
    %9259 = vdwg.mxu0
    %9260 = vmatpush.bf16.msra.mxu0 %v6443
    %9261 = vmatpush.bf16.msra.mxu0 %v6435
    %9262 = vmatpush.bf16.msra.mxu0 %v6427
    %9263 = vmatpush.bf16.msra.mxu0 %v6419
    %9264 = vmatpush.bf16.msra.mxu0 %v6411
    %9265 = vmatpush.bf16.msra.mxu0 %v6403
    %9266 = vmatpush.bf16.msra.mxu0 %v6395
    %9267 = vmatpush.bf16.msra.mxu0 %v6387
    %9268 = vmatmul.bf16.gmra.mxu0 %v8892
    %v9269 = vpop.f32.mrf.mxu0
    %v9270 = vadd.f32 %v9257, %v9269
    %v9271 = vpop.f32.mrf.mxu0
    %9272 = vdwg.mxu0
    %9273 = vmatpush.bf16.msra.mxu0 %v6507
    %9274 = vmatpush.bf16.msra.mxu0 %v6499
    %9275 = vmatpush.bf16.msra.mxu0 %v6491
    %9276 = vmatpush.bf16.msra.mxu0 %v6483
    %9277 = vmatpush.bf16.msra.mxu0 %v6475
    %9278 = vmatpush.bf16.msra.mxu0 %v6467
    %9279 = vmatpush.bf16.msra.mxu0 %v6459
    %9280 = vmatpush.bf16.msra.mxu0 %v6451
    %9281 = vmatmul.bf16.gmra.mxu0 %v8893
    %v9282 = vpop.f32.mrf.mxu0
    %v9283 = vadd.f32 %v9270, %v9282
    %v9284 = vpop.f32.mrf.mxu0
    %9285 = vdwg.mxu0
    %9286 = vmatpush.bf16.msra.mxu0 %v6571
    %9287 = vmatpush.bf16.msra.mxu0 %v6563
    %9288 = vmatpush.bf16.msra.mxu0 %v6555
    %9289 = vmatpush.bf16.msra.mxu0 %v6547
    %9290 = vmatpush.bf16.msra.mxu0 %v6539
    %9291 = vmatpush.bf16.msra.mxu0 %v6531
    %9292 = vmatpush.bf16.msra.mxu0 %v6523
    %9293 = vmatpush.bf16.msra.mxu0 %v6515
    %9294 = vmatmul.bf16.gmra.mxu0 %v8894
    %v9295 = vpop.f32.mrf.mxu0
    %v9296 = vadd.f32 %v9283, %v9295
    %v9297 = vpop.f32.mrf.mxu0
    %9298 = vdwg.mxu0
    %9299 = vmatpush.bf16.msra.mxu0 %v6635
    %9300 = vmatpush.bf16.msra.mxu0 %v6627
    %9301 = vmatpush.bf16.msra.mxu0 %v6619
    %9302 = vmatpush.bf16.msra.mxu0 %v6611
    %9303 = vmatpush.bf16.msra.mxu0 %v6603
    %9304 = vmatpush.bf16.msra.mxu0 %v6595
    %9305 = vmatpush.bf16.msra.mxu0 %v6587
    %9306 = vmatpush.bf16.msra.mxu0 %v6579
    %9307 = vmatmul.bf16.gmra.mxu0 %v8895
    %v9308 = vpop.f32.mrf.mxu0
    %v9309 = vadd.f32 %v9296, %v9308
    %v9310 = vpop.f32.mrf.mxu0
    %9311 = vdwg.mxu0
    %9312 = vmatpush.bf16.msra.mxu0 %v6188
    %9313 = vmatpush.bf16.msra.mxu0 %v6180
    %9314 = vmatpush.bf16.msra.mxu0 %v6172
    %9315 = vmatpush.bf16.msra.mxu0 %v6164
    %9316 = vmatpush.bf16.msra.mxu0 %v6156
    %9317 = vmatpush.bf16.msra.mxu0 %v6148
    %9318 = vmatpush.bf16.msra.mxu0 %v6140
    %9319 = vmatpush.bf16.msra.mxu0 %v6132
    %9320 = vmatmul.bf16.gmra.mxu0 %v8888
    %v9321 = vpop.f32.mrf.mxu0
    %v9322 = vadd.f32 %v1141, %v9321
    %v9323 = vpop.f32.mrf.mxu0
    %9324 = vdwg.mxu0
    %9325 = vmatpush.bf16.msra.mxu0 %v6252
    %9326 = vmatpush.bf16.msra.mxu0 %v6244
    %9327 = vmatpush.bf16.msra.mxu0 %v6236
    %9328 = vmatpush.bf16.msra.mxu0 %v6228
    %9329 = vmatpush.bf16.msra.mxu0 %v6220
    %9330 = vmatpush.bf16.msra.mxu0 %v6212
    %9331 = vmatpush.bf16.msra.mxu0 %v6204
    %9332 = vmatpush.bf16.msra.mxu0 %v6196
    %9333 = vmatmul.bf16.gmra.mxu0 %v8889
    %v9334 = vpop.f32.mrf.mxu0
    %v9335 = vadd.f32 %v9322, %v9334
    %v9336 = vpop.f32.mrf.mxu0
    %9337 = vdwg.mxu0
    %9338 = vmatpush.bf16.msra.mxu0 %v6316
    %9339 = vmatpush.bf16.msra.mxu0 %v6308
    %9340 = vmatpush.bf16.msra.mxu0 %v6300
    %9341 = vmatpush.bf16.msra.mxu0 %v6292
    %9342 = vmatpush.bf16.msra.mxu0 %v6284
    %9343 = vmatpush.bf16.msra.mxu0 %v6276
    %9344 = vmatpush.bf16.msra.mxu0 %v6268
    %9345 = vmatpush.bf16.msra.mxu0 %v6260
    %9346 = vmatmul.bf16.gmra.mxu0 %v8890
    %v9347 = vpop.f32.mrf.mxu0
    %v9348 = vadd.f32 %v9335, %v9347
    %v9349 = vpop.f32.mrf.mxu0
    %9350 = vdwg.mxu0
    %9351 = vmatpush.bf16.msra.mxu0 %v6380
    %9352 = vmatpush.bf16.msra.mxu0 %v6372
    %9353 = vmatpush.bf16.msra.mxu0 %v6364
    %9354 = vmatpush.bf16.msra.mxu0 %v6356
    %9355 = vmatpush.bf16.msra.mxu0 %v6348
    %9356 = vmatpush.bf16.msra.mxu0 %v6340
    %9357 = vmatpush.bf16.msra.mxu0 %v6332
    %9358 = vmatpush.bf16.msra.mxu0 %v6324
    %9359 = vmatmul.bf16.gmra.mxu0 %v8891
    %v9360 = vpop.f32.mrf.mxu0
    %v9361 = vadd.f32 %v9348, %v9360
    %v9362 = vpop.f32.mrf.mxu0
    %9363 = vdwg.mxu0
    %9364 = vmatpush.bf16.msra.mxu0 %v6444
    %9365 = vmatpush.bf16.msra.mxu0 %v6436
    %9366 = vmatpush.bf16.msra.mxu0 %v6428
    %9367 = vmatpush.bf16.msra.mxu0 %v6420
    %9368 = vmatpush.bf16.msra.mxu0 %v6412
    %9369 = vmatpush.bf16.msra.mxu0 %v6404
    %9370 = vmatpush.bf16.msra.mxu0 %v6396
    %9371 = vmatpush.bf16.msra.mxu0 %v6388
    %9372 = vmatmul.bf16.gmra.mxu0 %v8892
    %v9373 = vpop.f32.mrf.mxu0
    %v9374 = vadd.f32 %v9361, %v9373
    %v9375 = vpop.f32.mrf.mxu0
    %9376 = vdwg.mxu0
    %9377 = vmatpush.bf16.msra.mxu0 %v6508
    %9378 = vmatpush.bf16.msra.mxu0 %v6500
    %9379 = vmatpush.bf16.msra.mxu0 %v6492
    %9380 = vmatpush.bf16.msra.mxu0 %v6484
    %9381 = vmatpush.bf16.msra.mxu0 %v6476
    %9382 = vmatpush.bf16.msra.mxu0 %v6468
    %9383 = vmatpush.bf16.msra.mxu0 %v6460
    %9384 = vmatpush.bf16.msra.mxu0 %v6452
    %9385 = vmatmul.bf16.gmra.mxu0 %v8893
    %v9386 = vpop.f32.mrf.mxu0
    %v9387 = vadd.f32 %v9374, %v9386
    %v9388 = vpop.f32.mrf.mxu0
    %9389 = vdwg.mxu0
    %9390 = vmatpush.bf16.msra.mxu0 %v6572
    %9391 = vmatpush.bf16.msra.mxu0 %v6564
    %9392 = vmatpush.bf16.msra.mxu0 %v6556
    %9393 = vmatpush.bf16.msra.mxu0 %v6548
    %9394 = vmatpush.bf16.msra.mxu0 %v6540
    %9395 = vmatpush.bf16.msra.mxu0 %v6532
    %9396 = vmatpush.bf16.msra.mxu0 %v6524
    %9397 = vmatpush.bf16.msra.mxu0 %v6516
    %9398 = vmatmul.bf16.gmra.mxu0 %v8894
    %v9399 = vpop.f32.mrf.mxu0
    %v9400 = vadd.f32 %v9387, %v9399
    %v9401 = vpop.f32.mrf.mxu0
    %9402 = vdwg.mxu0
    %9403 = vmatpush.bf16.msra.mxu0 %v6636
    %9404 = vmatpush.bf16.msra.mxu0 %v6628
    %9405 = vmatpush.bf16.msra.mxu0 %v6620
    %9406 = vmatpush.bf16.msra.mxu0 %v6612
    %9407 = vmatpush.bf16.msra.mxu0 %v6604
    %9408 = vmatpush.bf16.msra.mxu0 %v6596
    %9409 = vmatpush.bf16.msra.mxu0 %v6588
    %9410 = vmatpush.bf16.msra.mxu0 %v6580
    %9411 = vmatmul.bf16.gmra.mxu0 %v8895
    %v9412 = vpop.f32.mrf.mxu0
    %v9413 = vadd.f32 %v9400, %v9412
    %v9414 = vpop.f32.mrf.mxu0
    %9415 = vdwg.mxu0
    %9416 = vmatpush.bf16.msra.mxu0 %v6189
    %9417 = vmatpush.bf16.msra.mxu0 %v6181
    %9418 = vmatpush.bf16.msra.mxu0 %v6173
    %9419 = vmatpush.bf16.msra.mxu0 %v6165
    %9420 = vmatpush.bf16.msra.mxu0 %v6157
    %9421 = vmatpush.bf16.msra.mxu0 %v6149
    %9422 = vmatpush.bf16.msra.mxu0 %v6141
    %9423 = vmatpush.bf16.msra.mxu0 %v6133
    %9424 = vmatmul.bf16.gmra.mxu0 %v8888
    %v9425 = vpop.f32.mrf.mxu0
    %v9426 = vadd.f32 %v1142, %v9425
    %v9427 = vpop.f32.mrf.mxu0
    %9428 = vdwg.mxu0
    %9429 = vmatpush.bf16.msra.mxu0 %v6253
    %9430 = vmatpush.bf16.msra.mxu0 %v6245
    %9431 = vmatpush.bf16.msra.mxu0 %v6237
    %9432 = vmatpush.bf16.msra.mxu0 %v6229
    %9433 = vmatpush.bf16.msra.mxu0 %v6221
    %9434 = vmatpush.bf16.msra.mxu0 %v6213
    %9435 = vmatpush.bf16.msra.mxu0 %v6205
    %9436 = vmatpush.bf16.msra.mxu0 %v6197
    %9437 = vmatmul.bf16.gmra.mxu0 %v8889
    %v9438 = vpop.f32.mrf.mxu0
    %v9439 = vadd.f32 %v9426, %v9438
    %v9440 = vpop.f32.mrf.mxu0
    %9441 = vdwg.mxu0
    %9442 = vmatpush.bf16.msra.mxu0 %v6317
    %9443 = vmatpush.bf16.msra.mxu0 %v6309
    %9444 = vmatpush.bf16.msra.mxu0 %v6301
    %9445 = vmatpush.bf16.msra.mxu0 %v6293
    %9446 = vmatpush.bf16.msra.mxu0 %v6285
    %9447 = vmatpush.bf16.msra.mxu0 %v6277
    %9448 = vmatpush.bf16.msra.mxu0 %v6269
    %9449 = vmatpush.bf16.msra.mxu0 %v6261
    %9450 = vmatmul.bf16.gmra.mxu0 %v8890
    %v9451 = vpop.f32.mrf.mxu0
    %v9452 = vadd.f32 %v9439, %v9451
    %v9453 = vpop.f32.mrf.mxu0
    %9454 = vdwg.mxu0
    %9455 = vmatpush.bf16.msra.mxu0 %v6381
    %9456 = vmatpush.bf16.msra.mxu0 %v6373
    %9457 = vmatpush.bf16.msra.mxu0 %v6365
    %9458 = vmatpush.bf16.msra.mxu0 %v6357
    %9459 = vmatpush.bf16.msra.mxu0 %v6349
    %9460 = vmatpush.bf16.msra.mxu0 %v6341
    %9461 = vmatpush.bf16.msra.mxu0 %v6333
    %9462 = vmatpush.bf16.msra.mxu0 %v6325
    %9463 = vmatmul.bf16.gmra.mxu0 %v8891
    %v9464 = vpop.f32.mrf.mxu0
    %v9465 = vadd.f32 %v9452, %v9464
    %v9466 = vpop.f32.mrf.mxu0
    %9467 = vdwg.mxu0
    %9468 = vmatpush.bf16.msra.mxu0 %v6445
    %9469 = vmatpush.bf16.msra.mxu0 %v6437
    %9470 = vmatpush.bf16.msra.mxu0 %v6429
    %9471 = vmatpush.bf16.msra.mxu0 %v6421
    %9472 = vmatpush.bf16.msra.mxu0 %v6413
    %9473 = vmatpush.bf16.msra.mxu0 %v6405
    %9474 = vmatpush.bf16.msra.mxu0 %v6397
    %9475 = vmatpush.bf16.msra.mxu0 %v6389
    %9476 = vmatmul.bf16.gmra.mxu0 %v8892
    %v9477 = vpop.f32.mrf.mxu0
    %v9478 = vadd.f32 %v9465, %v9477
    %v9479 = vpop.f32.mrf.mxu0
    %9480 = vdwg.mxu0
    %9481 = vmatpush.bf16.msra.mxu0 %v6509
    %9482 = vmatpush.bf16.msra.mxu0 %v6501
    %9483 = vmatpush.bf16.msra.mxu0 %v6493
    %9484 = vmatpush.bf16.msra.mxu0 %v6485
    %9485 = vmatpush.bf16.msra.mxu0 %v6477
    %9486 = vmatpush.bf16.msra.mxu0 %v6469
    %9487 = vmatpush.bf16.msra.mxu0 %v6461
    %9488 = vmatpush.bf16.msra.mxu0 %v6453
    %9489 = vmatmul.bf16.gmra.mxu0 %v8893
    %v9490 = vpop.f32.mrf.mxu0
    %v9491 = vadd.f32 %v9478, %v9490
    %v9492 = vpop.f32.mrf.mxu0
    %9493 = vdwg.mxu0
    %9494 = vmatpush.bf16.msra.mxu0 %v6573
    %9495 = vmatpush.bf16.msra.mxu0 %v6565
    %9496 = vmatpush.bf16.msra.mxu0 %v6557
    %9497 = vmatpush.bf16.msra.mxu0 %v6549
    %9498 = vmatpush.bf16.msra.mxu0 %v6541
    %9499 = vmatpush.bf16.msra.mxu0 %v6533
    %9500 = vmatpush.bf16.msra.mxu0 %v6525
    %9501 = vmatpush.bf16.msra.mxu0 %v6517
    %9502 = vmatmul.bf16.gmra.mxu0 %v8894
    %v9503 = vpop.f32.mrf.mxu0
    %v9504 = vadd.f32 %v9491, %v9503
    %v9505 = vpop.f32.mrf.mxu0
    %9506 = vdwg.mxu0
    %9507 = vmatpush.bf16.msra.mxu0 %v6637
    %9508 = vmatpush.bf16.msra.mxu0 %v6629
    %9509 = vmatpush.bf16.msra.mxu0 %v6621
    %9510 = vmatpush.bf16.msra.mxu0 %v6613
    %9511 = vmatpush.bf16.msra.mxu0 %v6605
    %9512 = vmatpush.bf16.msra.mxu0 %v6597
    %9513 = vmatpush.bf16.msra.mxu0 %v6589
    %9514 = vmatpush.bf16.msra.mxu0 %v6581
    %9515 = vmatmul.bf16.gmra.mxu0 %v8895
    %v9516 = vpop.f32.mrf.mxu0
    %v9517 = vadd.f32 %v9504, %v9516
    %v9518 = vpop.f32.mrf.mxu0
    %9519 = vdwg.mxu0
    %9520 = vmatpush.bf16.msra.mxu0 %v6190
    %9521 = vmatpush.bf16.msra.mxu0 %v6182
    %9522 = vmatpush.bf16.msra.mxu0 %v6174
    %9523 = vmatpush.bf16.msra.mxu0 %v6166
    %9524 = vmatpush.bf16.msra.mxu0 %v6158
    %9525 = vmatpush.bf16.msra.mxu0 %v6150
    %9526 = vmatpush.bf16.msra.mxu0 %v6142
    %9527 = vmatpush.bf16.msra.mxu0 %v6134
    %9528 = vmatmul.bf16.gmra.mxu0 %v8888
    %v9529 = vpop.f32.mrf.mxu0
    %v9530 = vadd.f32 %v1143, %v9529
    %v9531 = vpop.f32.mrf.mxu0
    %9532 = vdwg.mxu0
    %9533 = vmatpush.bf16.msra.mxu0 %v6254
    %9534 = vmatpush.bf16.msra.mxu0 %v6246
    %9535 = vmatpush.bf16.msra.mxu0 %v6238
    %9536 = vmatpush.bf16.msra.mxu0 %v6230
    %9537 = vmatpush.bf16.msra.mxu0 %v6222
    %9538 = vmatpush.bf16.msra.mxu0 %v6214
    %9539 = vmatpush.bf16.msra.mxu0 %v6206
    %9540 = vmatpush.bf16.msra.mxu0 %v6198
    %9541 = vmatmul.bf16.gmra.mxu0 %v8889
    %v9542 = vpop.f32.mrf.mxu0
    %v9543 = vadd.f32 %v9530, %v9542
    %v9544 = vpop.f32.mrf.mxu0
    %9545 = vdwg.mxu0
    %9546 = vmatpush.bf16.msra.mxu0 %v6318
    %9547 = vmatpush.bf16.msra.mxu0 %v6310
    %9548 = vmatpush.bf16.msra.mxu0 %v6302
    %9549 = vmatpush.bf16.msra.mxu0 %v6294
    %9550 = vmatpush.bf16.msra.mxu0 %v6286
    %9551 = vmatpush.bf16.msra.mxu0 %v6278
    %9552 = vmatpush.bf16.msra.mxu0 %v6270
    %9553 = vmatpush.bf16.msra.mxu0 %v6262
    %9554 = vmatmul.bf16.gmra.mxu0 %v8890
    %v9555 = vpop.f32.mrf.mxu0
    %v9556 = vadd.f32 %v9543, %v9555
    %v9557 = vpop.f32.mrf.mxu0
    %9558 = vdwg.mxu0
    %9559 = vmatpush.bf16.msra.mxu0 %v6382
    %9560 = vmatpush.bf16.msra.mxu0 %v6374
    %9561 = vmatpush.bf16.msra.mxu0 %v6366
    %9562 = vmatpush.bf16.msra.mxu0 %v6358
    %9563 = vmatpush.bf16.msra.mxu0 %v6350
    %9564 = vmatpush.bf16.msra.mxu0 %v6342
    %9565 = vmatpush.bf16.msra.mxu0 %v6334
    %9566 = vmatpush.bf16.msra.mxu0 %v6326
    %9567 = vmatmul.bf16.gmra.mxu0 %v8891
    %v9568 = vpop.f32.mrf.mxu0
    %v9569 = vadd.f32 %v9556, %v9568
    %v9570 = vpop.f32.mrf.mxu0
    %9571 = vdwg.mxu0
    %9572 = vmatpush.bf16.msra.mxu0 %v6446
    %9573 = vmatpush.bf16.msra.mxu0 %v6438
    %9574 = vmatpush.bf16.msra.mxu0 %v6430
    %9575 = vmatpush.bf16.msra.mxu0 %v6422
    %9576 = vmatpush.bf16.msra.mxu0 %v6414
    %9577 = vmatpush.bf16.msra.mxu0 %v6406
    %9578 = vmatpush.bf16.msra.mxu0 %v6398
    %9579 = vmatpush.bf16.msra.mxu0 %v6390
    %9580 = vmatmul.bf16.gmra.mxu0 %v8892
    %v9581 = vpop.f32.mrf.mxu0
    %v9582 = vadd.f32 %v9569, %v9581
    %v9583 = vpop.f32.mrf.mxu0
    %9584 = vdwg.mxu0
    %9585 = vmatpush.bf16.msra.mxu0 %v6510
    %9586 = vmatpush.bf16.msra.mxu0 %v6502
    %9587 = vmatpush.bf16.msra.mxu0 %v6494
    %9588 = vmatpush.bf16.msra.mxu0 %v6486
    %9589 = vmatpush.bf16.msra.mxu0 %v6478
    %9590 = vmatpush.bf16.msra.mxu0 %v6470
    %9591 = vmatpush.bf16.msra.mxu0 %v6462
    %9592 = vmatpush.bf16.msra.mxu0 %v6454
    %9593 = vmatmul.bf16.gmra.mxu0 %v8893
    %v9594 = vpop.f32.mrf.mxu0
    %v9595 = vadd.f32 %v9582, %v9594
    %v9596 = vpop.f32.mrf.mxu0
    %9597 = vdwg.mxu0
    %9598 = vmatpush.bf16.msra.mxu0 %v6574
    %9599 = vmatpush.bf16.msra.mxu0 %v6566
    %9600 = vmatpush.bf16.msra.mxu0 %v6558
    %9601 = vmatpush.bf16.msra.mxu0 %v6550
    %9602 = vmatpush.bf16.msra.mxu0 %v6542
    %9603 = vmatpush.bf16.msra.mxu0 %v6534
    %9604 = vmatpush.bf16.msra.mxu0 %v6526
    %9605 = vmatpush.bf16.msra.mxu0 %v6518
    %9606 = vmatmul.bf16.gmra.mxu0 %v8894
    %v9607 = vpop.f32.mrf.mxu0
    %v9608 = vadd.f32 %v9595, %v9607
    %v9609 = vpop.f32.mrf.mxu0
    %9610 = vdwg.mxu0
    %9611 = vmatpush.bf16.msra.mxu0 %v6638
    %9612 = vmatpush.bf16.msra.mxu0 %v6630
    %9613 = vmatpush.bf16.msra.mxu0 %v6622
    %9614 = vmatpush.bf16.msra.mxu0 %v6614
    %9615 = vmatpush.bf16.msra.mxu0 %v6606
    %9616 = vmatpush.bf16.msra.mxu0 %v6598
    %9617 = vmatpush.bf16.msra.mxu0 %v6590
    %9618 = vmatpush.bf16.msra.mxu0 %v6582
    %9619 = vmatmul.bf16.gmra.mxu0 %v8895
    %v9620 = vpop.f32.mrf.mxu0
    %v9621 = vadd.f32 %v9608, %v9620
    %v9622 = vpop.f32.mrf.mxu0
    %9623 = vdwg.mxu0
    %9624 = vmatpush.bf16.msra.mxu0 %v6191
    %9625 = vmatpush.bf16.msra.mxu0 %v6183
    %9626 = vmatpush.bf16.msra.mxu0 %v6175
    %9627 = vmatpush.bf16.msra.mxu0 %v6167
    %9628 = vmatpush.bf16.msra.mxu0 %v6159
    %9629 = vmatpush.bf16.msra.mxu0 %v6151
    %9630 = vmatpush.bf16.msra.mxu0 %v6143
    %9631 = vmatpush.bf16.msra.mxu0 %v6135
    %9632 = vmatmul.bf16.gmra.mxu0 %v8888
    %v9633 = vpop.f32.mrf.mxu0
    %v9634 = vadd.f32 %v1144, %v9633
    %v9635 = vpop.f32.mrf.mxu0
    %9636 = vdwg.mxu0
    %9637 = vmatpush.bf16.msra.mxu0 %v6255
    %9638 = vmatpush.bf16.msra.mxu0 %v6247
    %9639 = vmatpush.bf16.msra.mxu0 %v6239
    %9640 = vmatpush.bf16.msra.mxu0 %v6231
    %9641 = vmatpush.bf16.msra.mxu0 %v6223
    %9642 = vmatpush.bf16.msra.mxu0 %v6215
    %9643 = vmatpush.bf16.msra.mxu0 %v6207
    %9644 = vmatpush.bf16.msra.mxu0 %v6199
    %9645 = vmatmul.bf16.gmra.mxu0 %v8889
    %v9646 = vpop.f32.mrf.mxu0
    %v9647 = vadd.f32 %v9634, %v9646
    %v9648 = vpop.f32.mrf.mxu0
    %9649 = vdwg.mxu0
    %9650 = vmatpush.bf16.msra.mxu0 %v6319
    %9651 = vmatpush.bf16.msra.mxu0 %v6311
    %9652 = vmatpush.bf16.msra.mxu0 %v6303
    %9653 = vmatpush.bf16.msra.mxu0 %v6295
    %9654 = vmatpush.bf16.msra.mxu0 %v6287
    %9655 = vmatpush.bf16.msra.mxu0 %v6279
    %9656 = vmatpush.bf16.msra.mxu0 %v6271
    %9657 = vmatpush.bf16.msra.mxu0 %v6263
    %9658 = vmatmul.bf16.gmra.mxu0 %v8890
    %v9659 = vpop.f32.mrf.mxu0
    %v9660 = vadd.f32 %v9647, %v9659
    %v9661 = vpop.f32.mrf.mxu0
    %9662 = vdwg.mxu0
    %9663 = vmatpush.bf16.msra.mxu0 %v6383
    %9664 = vmatpush.bf16.msra.mxu0 %v6375
    %9665 = vmatpush.bf16.msra.mxu0 %v6367
    %9666 = vmatpush.bf16.msra.mxu0 %v6359
    %9667 = vmatpush.bf16.msra.mxu0 %v6351
    %9668 = vmatpush.bf16.msra.mxu0 %v6343
    %9669 = vmatpush.bf16.msra.mxu0 %v6335
    %9670 = vmatpush.bf16.msra.mxu0 %v6327
    %9671 = vmatmul.bf16.gmra.mxu0 %v8891
    %v9672 = vpop.f32.mrf.mxu0
    %v9673 = vadd.f32 %v9660, %v9672
    %v9674 = vpop.f32.mrf.mxu0
    %9675 = vdwg.mxu0
    %9676 = vmatpush.bf16.msra.mxu0 %v6447
    %9677 = vmatpush.bf16.msra.mxu0 %v6439
    %9678 = vmatpush.bf16.msra.mxu0 %v6431
    %9679 = vmatpush.bf16.msra.mxu0 %v6423
    %9680 = vmatpush.bf16.msra.mxu0 %v6415
    %9681 = vmatpush.bf16.msra.mxu0 %v6407
    %9682 = vmatpush.bf16.msra.mxu0 %v6399
    %9683 = vmatpush.bf16.msra.mxu0 %v6391
    %9684 = vmatmul.bf16.gmra.mxu0 %v8892
    %v9685 = vpop.f32.mrf.mxu0
    %v9686 = vadd.f32 %v9673, %v9685
    %v9687 = vpop.f32.mrf.mxu0
    %9688 = vdwg.mxu0
    %9689 = vmatpush.bf16.msra.mxu0 %v6511
    %9690 = vmatpush.bf16.msra.mxu0 %v6503
    %9691 = vmatpush.bf16.msra.mxu0 %v6495
    %9692 = vmatpush.bf16.msra.mxu0 %v6487
    %9693 = vmatpush.bf16.msra.mxu0 %v6479
    %9694 = vmatpush.bf16.msra.mxu0 %v6471
    %9695 = vmatpush.bf16.msra.mxu0 %v6463
    %9696 = vmatpush.bf16.msra.mxu0 %v6455
    %9697 = vmatmul.bf16.gmra.mxu0 %v8893
    %v9698 = vpop.f32.mrf.mxu0
    %v9699 = vadd.f32 %v9686, %v9698
    %v9700 = vpop.f32.mrf.mxu0
    %9701 = vdwg.mxu0
    %9702 = vmatpush.bf16.msra.mxu0 %v6575
    %9703 = vmatpush.bf16.msra.mxu0 %v6567
    %9704 = vmatpush.bf16.msra.mxu0 %v6559
    %9705 = vmatpush.bf16.msra.mxu0 %v6551
    %9706 = vmatpush.bf16.msra.mxu0 %v6543
    %9707 = vmatpush.bf16.msra.mxu0 %v6535
    %9708 = vmatpush.bf16.msra.mxu0 %v6527
    %9709 = vmatpush.bf16.msra.mxu0 %v6519
    %9710 = vmatmul.bf16.gmra.mxu0 %v8894
    %v9711 = vpop.f32.mrf.mxu0
    %v9712 = vadd.f32 %v9699, %v9711
    %v9713 = vpop.f32.mrf.mxu0
    %9714 = vdwg.mxu0
    %9715 = vmatpush.bf16.msra.mxu0 %v6639
    %9716 = vmatpush.bf16.msra.mxu0 %v6631
    %9717 = vmatpush.bf16.msra.mxu0 %v6623
    %9718 = vmatpush.bf16.msra.mxu0 %v6615
    %9719 = vmatpush.bf16.msra.mxu0 %v6607
    %9720 = vmatpush.bf16.msra.mxu0 %v6599
    %9721 = vmatpush.bf16.msra.mxu0 %v6591
    %9722 = vmatpush.bf16.msra.mxu0 %v6583
    %9723 = vmatmul.bf16.gmra.mxu0 %v8895
    %v9724 = vpop.f32.mrf.mxu0
    %v9725 = vadd.f32 %v9712, %v9724
    %v9726 = vpop.f32.mrf.mxu0
    %9727 = vdwg.mxu0
    %v9728 = vsub.f32 %v8997, %v7984
    %v9729 = vsub.f32 %v9101, %v7985
    %v9730 = vsub.f32 %v9205, %v7986
    %v9731 = vsub.f32 %v9309, %v7987
    %v9732 = vsub.f32 %v9413, %v7988
    %v9733 = vsub.f32 %v9517, %v7989
    %v9734 = vsub.f32 %v9621, %v7990
    %v9735 = vsub.f32 %v9725, %v7991
    %v9744 = vrot.slane %v9729, 6
    %v9745 = vrot.slane %v9730, 4
    %v9746 = vrot.slane %v9731, 2
    %v9747 = vrot.slane %v9733, 6
    %v9748 = vrot.slane %v9734, 4
    %v9749 = vrot.slane %v9735, 2
    %v9750 = vsel %vm8006, %v9728, %v9744
    %v9751 = vsel %vm8008, %v9745, %v9746
    %v9752 = vsel %vm8010, %v9750, %v9751
    %v9753 = vsel %vm8006, %v9732, %v9747
    %v9754 = vsel %vm8008, %v9748, %v9749
    %v9755 = vsel %vm8010, %v9753, %v9754
    %v9758 = vadd.f32 %v1153, %v9752
    %v9759 = vadd.f32 %v1154, %v9755
    %9762 = vst [vmem:[#allocation1] ss:$4 sm:$0xff] %v9758
    %s9763 = scalar_lea.vmem [#allocation1], 32
    %9764 = vst [vmem:[%s9763] ss:$4 sm:$0xff] %v9759
    %v9765 = vld.sshfl [vmem:[#allocation1] sm:$0xff pattern:$0x73625140]
    %v9766 = vld.sshfl [vmem:[#allocation1 + $0x8] sm:$0xff pattern:$0x73625140]
    %v9767 = vld.sshfl [vmem:[#allocation1 + $0x10] sm:$0xff pattern:$0x73625140]
    %v9768 = vld.sshfl [vmem:[#allocation1 + $0x18] sm:$0xff pattern:$0x73625140]
    %v9769 = vld.sshfl [vmem:[#allocation1 + $0x20] sm:$0xff pattern:$0x73625140]
    %v9770 = vld.sshfl [vmem:[#allocation1 + $0x28] sm:$0xff pattern:$0x73625140]
    %v9771 = vld.sshfl [vmem:[#allocation1 + $0x30] sm:$0xff pattern:$0x73625140]
    %v9772 = vld.sshfl [vmem:[#allocation1 + $0x38] sm:$0xff pattern:$0x73625140]
    %v9781 = vpack.c.bf16 %v9765, %v9765
    %v9782 = vpack.c.bf16 %v9766, %v9766
    %v9783 = vpack.c.bf16 %v9767, %v9767
    %v9784 = vpack.c.bf16 %v9768, %v9768
    %v9785 = vpack.c.bf16 %v9769, %v9769
    %v9786 = vpack.c.bf16 %v9770, %v9770
    %v9787 = vpack.c.bf16 %v9771, %v9771
    %v9788 = vpack.c.bf16 %v9772, %v9772
    %9789 = vmatpush.bf16.msra.mxu0 %v2776
    %9790 = vmatpush.bf16.msra.mxu0 %v2768
    %9791 = vmatpush.bf16.msra.mxu0 %v2760
    %9792 = vmatpush.bf16.msra.mxu0 %v2752
    %9793 = vmatpush.bf16.msra.mxu0 %v2744
    %9794 = vmatpush.bf16.msra.mxu0 %v2736
    %9795 = vmatpush.bf16.msra.mxu0 %v2728
    %9796 = vmatpush.bf16.msra.mxu0 %v2720
    %9797 = vmatmul.bf16.gmra.mxu0 %v9781
    %v9798 = vpop.f32.mrf.mxu0
    %v9799 = vadd.f32 %v1119, %v9798
    %v9800 = vpop.f32.mrf.mxu0
    %9801 = vdwg.mxu0
    %9802 = vmatpush.bf16.msra.mxu0 %v2840
    %9803 = vmatpush.bf16.msra.mxu0 %v2832
    %9804 = vmatpush.bf16.msra.mxu0 %v2824
    %9805 = vmatpush.bf16.msra.mxu0 %v2816
    %9806 = vmatpush.bf16.msra.mxu0 %v2808
    %9807 = vmatpush.bf16.msra.mxu0 %v2800
    %9808 = vmatpush.bf16.msra.mxu0 %v2792
    %9809 = vmatpush.bf16.msra.mxu0 %v2784
    %9810 = vmatmul.bf16.gmra.mxu0 %v9782
    %v9811 = vpop.f32.mrf.mxu0
    %v9812 = vadd.f32 %v9799, %v9811
    %v9813 = vpop.f32.mrf.mxu0
    %9814 = vdwg.mxu0
    %9815 = vmatpush.bf16.msra.mxu0 %v2904
    %9816 = vmatpush.bf16.msra.mxu0 %v2896
    %9817 = vmatpush.bf16.msra.mxu0 %v2888
    %9818 = vmatpush.bf16.msra.mxu0 %v2880
    %9819 = vmatpush.bf16.msra.mxu0 %v2872
    %9820 = vmatpush.bf16.msra.mxu0 %v2864
    %9821 = vmatpush.bf16.msra.mxu0 %v2856
    %9822 = vmatpush.bf16.msra.mxu0 %v2848
    %9823 = vmatmul.bf16.gmra.mxu0 %v9783
    %v9824 = vpop.f32.mrf.mxu0
    %v9825 = vadd.f32 %v9812, %v9824
    %v9826 = vpop.f32.mrf.mxu0
    %9827 = vdwg.mxu0
    %9828 = vmatpush.bf16.msra.mxu0 %v2968
    %9829 = vmatpush.bf16.msra.mxu0 %v2960
    %9830 = vmatpush.bf16.msra.mxu0 %v2952
    %9831 = vmatpush.bf16.msra.mxu0 %v2944
    %9832 = vmatpush.bf16.msra.mxu0 %v2936
    %9833 = vmatpush.bf16.msra.mxu0 %v2928
    %9834 = vmatpush.bf16.msra.mxu0 %v2920
    %9835 = vmatpush.bf16.msra.mxu0 %v2912
    %9836 = vmatmul.bf16.gmra.mxu0 %v9784
    %v9837 = vpop.f32.mrf.mxu0
    %v9838 = vadd.f32 %v9825, %v9837
    %v9839 = vpop.f32.mrf.mxu0
    %9840 = vdwg.mxu0
    %9841 = vmatpush.bf16.msra.mxu0 %v3032
    %9842 = vmatpush.bf16.msra.mxu0 %v3024
    %9843 = vmatpush.bf16.msra.mxu0 %v3016
    %9844 = vmatpush.bf16.msra.mxu0 %v3008
    %9845 = vmatpush.bf16.msra.mxu0 %v3000
    %9846 = vmatpush.bf16.msra.mxu0 %v2992
    %9847 = vmatpush.bf16.msra.mxu0 %v2984
    %9848 = vmatpush.bf16.msra.mxu0 %v2976
    %9849 = vmatmul.bf16.gmra.mxu0 %v9785
    %v9850 = vpop.f32.mrf.mxu0
    %v9851 = vadd.f32 %v9838, %v9850
    %v9852 = vpop.f32.mrf.mxu0
    %9853 = vdwg.mxu0
    %9854 = vmatpush.bf16.msra.mxu0 %v3096
    %9855 = vmatpush.bf16.msra.mxu0 %v3088
    %9856 = vmatpush.bf16.msra.mxu0 %v3080
    %9857 = vmatpush.bf16.msra.mxu0 %v3072
    %9858 = vmatpush.bf16.msra.mxu0 %v3064
    %9859 = vmatpush.bf16.msra.mxu0 %v3056
    %9860 = vmatpush.bf16.msra.mxu0 %v3048
    %9861 = vmatpush.bf16.msra.mxu0 %v3040
    %9862 = vmatmul.bf16.gmra.mxu0 %v9786
    %v9863 = vpop.f32.mrf.mxu0
    %v9864 = vadd.f32 %v9851, %v9863
    %v9865 = vpop.f32.mrf.mxu0
    %9866 = vdwg.mxu0
    %9867 = vmatpush.bf16.msra.mxu0 %v3160
    %9868 = vmatpush.bf16.msra.mxu0 %v3152
    %9869 = vmatpush.bf16.msra.mxu0 %v3144
    %9870 = vmatpush.bf16.msra.mxu0 %v3136
    %9871 = vmatpush.bf16.msra.mxu0 %v3128
    %9872 = vmatpush.bf16.msra.mxu0 %v3120
    %9873 = vmatpush.bf16.msra.mxu0 %v3112
    %9874 = vmatpush.bf16.msra.mxu0 %v3104
    %9875 = vmatmul.bf16.gmra.mxu0 %v9787
    %v9876 = vpop.f32.mrf.mxu0
    %v9877 = vadd.f32 %v9864, %v9876
    %v9878 = vpop.f32.mrf.mxu0
    %9879 = vdwg.mxu0
    %9880 = vmatpush.bf16.msra.mxu0 %v3224
    %9881 = vmatpush.bf16.msra.mxu0 %v3216
    %9882 = vmatpush.bf16.msra.mxu0 %v3208
    %9883 = vmatpush.bf16.msra.mxu0 %v3200
    %9884 = vmatpush.bf16.msra.mxu0 %v3192
    %9885 = vmatpush.bf16.msra.mxu0 %v3184
    %9886 = vmatpush.bf16.msra.mxu0 %v3176
    %9887 = vmatpush.bf16.msra.mxu0 %v3168
    %9888 = vmatmul.bf16.gmra.mxu0 %v9788
    %v9889 = vpop.f32.mrf.mxu0
    %v9890 = vadd.f32 %v9877, %v9889
    %v9891 = vpop.f32.mrf.mxu0
    %9892 = vdwg.mxu0
    %9893 = vmatpush.bf16.msra.mxu0 %v2777
    %9894 = vmatpush.bf16.msra.mxu0 %v2769
    %9895 = vmatpush.bf16.msra.mxu0 %v2761
    %9896 = vmatpush.bf16.msra.mxu0 %v2753
    %9897 = vmatpush.bf16.msra.mxu0 %v2745
    %9898 = vmatpush.bf16.msra.mxu0 %v2737
    %9899 = vmatpush.bf16.msra.mxu0 %v2729
    %9900 = vmatpush.bf16.msra.mxu0 %v2721
    %9901 = vmatmul.bf16.gmra.mxu0 %v9781
    %v9902 = vpop.f32.mrf.mxu0
    %v9903 = vadd.f32 %v1120, %v9902
    %v9904 = vpop.f32.mrf.mxu0
    %9905 = vdwg.mxu0
    %9906 = vmatpush.bf16.msra.mxu0 %v2841
    %9907 = vmatpush.bf16.msra.mxu0 %v2833
    %9908 = vmatpush.bf16.msra.mxu0 %v2825
    %9909 = vmatpush.bf16.msra.mxu0 %v2817
    %9910 = vmatpush.bf16.msra.mxu0 %v2809
    %9911 = vmatpush.bf16.msra.mxu0 %v2801
    %9912 = vmatpush.bf16.msra.mxu0 %v2793
    %9913 = vmatpush.bf16.msra.mxu0 %v2785
    %9914 = vmatmul.bf16.gmra.mxu0 %v9782
    %v9915 = vpop.f32.mrf.mxu0
    %v9916 = vadd.f32 %v9903, %v9915
    %v9917 = vpop.f32.mrf.mxu0
    %9918 = vdwg.mxu0
    %9919 = vmatpush.bf16.msra.mxu0 %v2905
    %9920 = vmatpush.bf16.msra.mxu0 %v2897
    %9921 = vmatpush.bf16.msra.mxu0 %v2889
    %9922 = vmatpush.bf16.msra.mxu0 %v2881
    %9923 = vmatpush.bf16.msra.mxu0 %v2873
    %9924 = vmatpush.bf16.msra.mxu0 %v2865
    %9925 = vmatpush.bf16.msra.mxu0 %v2857
    %9926 = vmatpush.bf16.msra.mxu0 %v2849
    %9927 = vmatmul.bf16.gmra.mxu0 %v9783
    %v9928 = vpop.f32.mrf.mxu0
    %v9929 = vadd.f32 %v9916, %v9928
    %v9930 = vpop.f32.mrf.mxu0
    %9931 = vdwg.mxu0
    %9932 = vmatpush.bf16.msra.mxu0 %v2969
    %9933 = vmatpush.bf16.msra.mxu0 %v2961
    %9934 = vmatpush.bf16.msra.mxu0 %v2953
    %9935 = vmatpush.bf16.msra.mxu0 %v2945
    %9936 = vmatpush.bf16.msra.mxu0 %v2937
    %9937 = vmatpush.bf16.msra.mxu0 %v2929
    %9938 = vmatpush.bf16.msra.mxu0 %v2921
    %9939 = vmatpush.bf16.msra.mxu0 %v2913
    %9940 = vmatmul.bf16.gmra.mxu0 %v9784
    %v9941 = vpop.f32.mrf.mxu0
    %v9942 = vadd.f32 %v9929, %v9941
    %v9943 = vpop.f32.mrf.mxu0
    %9944 = vdwg.mxu0
    %9945 = vmatpush.bf16.msra.mxu0 %v3033
    %9946 = vmatpush.bf16.msra.mxu0 %v3025
    %9947 = vmatpush.bf16.msra.mxu0 %v3017
    %9948 = vmatpush.bf16.msra.mxu0 %v3009
    %9949 = vmatpush.bf16.msra.mxu0 %v3001
    %9950 = vmatpush.bf16.msra.mxu0 %v2993
    %9951 = vmatpush.bf16.msra.mxu0 %v2985
    %9952 = vmatpush.bf16.msra.mxu0 %v2977
    %9953 = vmatmul.bf16.gmra.mxu0 %v9785
    %v9954 = vpop.f32.mrf.mxu0
    %v9955 = vadd.f32 %v9942, %v9954
    %v9956 = vpop.f32.mrf.mxu0
    %9957 = vdwg.mxu0
    %9958 = vmatpush.bf16.msra.mxu0 %v3097
    %9959 = vmatpush.bf16.msra.mxu0 %v3089
    %9960 = vmatpush.bf16.msra.mxu0 %v3081
    %9961 = vmatpush.bf16.msra.mxu0 %v3073
    %9962 = vmatpush.bf16.msra.mxu0 %v3065
    %9963 = vmatpush.bf16.msra.mxu0 %v3057
    %9964 = vmatpush.bf16.msra.mxu0 %v3049
    %9965 = vmatpush.bf16.msra.mxu0 %v3041
    %9966 = vmatmul.bf16.gmra.mxu0 %v9786
    %v9967 = vpop.f32.mrf.mxu0
    %v9968 = vadd.f32 %v9955, %v9967
    %v9969 = vpop.f32.mrf.mxu0
    %9970 = vdwg.mxu0
    %9971 = vmatpush.bf16.msra.mxu0 %v3161
    %9972 = vmatpush.bf16.msra.mxu0 %v3153
    %9973 = vmatpush.bf16.msra.mxu0 %v3145
    %9974 = vmatpush.bf16.msra.mxu0 %v3137
    %9975 = vmatpush.bf16.msra.mxu0 %v3129
    %9976 = vmatpush.bf16.msra.mxu0 %v3121
    %9977 = vmatpush.bf16.msra.mxu0 %v3113
    %9978 = vmatpush.bf16.msra.mxu0 %v3105
    %9979 = vmatmul.bf16.gmra.mxu0 %v9787
    %v9980 = vpop.f32.mrf.mxu0
    %v9981 = vadd.f32 %v9968, %v9980
    %v9982 = vpop.f32.mrf.mxu0
    %9983 = vdwg.mxu0
    %9984 = vmatpush.bf16.msra.mxu0 %v3225
    %9985 = vmatpush.bf16.msra.mxu0 %v3217
    %9986 = vmatpush.bf16.msra.mxu0 %v3209
    %9987 = vmatpush.bf16.msra.mxu0 %v3201
    %9988 = vmatpush.bf16.msra.mxu0 %v3193
    %9989 = vmatpush.bf16.msra.mxu0 %v3185
    %9990 = vmatpush.bf16.msra.mxu0 %v3177
    %9991 = vmatpush.bf16.msra.mxu0 %v3169
    %9992 = vmatmul.bf16.gmra.mxu0 %v9788
    %v9993 = vpop.f32.mrf.mxu0
    %v9994 = vadd.f32 %v9981, %v9993
    %v9995 = vpop.f32.mrf.mxu0
    %9996 = vdwg.mxu0
    %9997 = vmatpush.bf16.msra.mxu0 %v2778
    %9998 = vmatpush.bf16.msra.mxu0 %v2770
    %9999 = vmatpush.bf16.msra.mxu0 %v2762
    %10000 = vmatpush.bf16.msra.mxu0 %v2754
    %10001 = vmatpush.bf16.msra.mxu0 %v2746
    %10002 = vmatpush.bf16.msra.mxu0 %v2738
    %10003 = vmatpush.bf16.msra.mxu0 %v2730
    %10004 = vmatpush.bf16.msra.mxu0 %v2722
    %10005 = vmatmul.bf16.gmra.mxu0 %v9781
    %v10006 = vpop.f32.mrf.mxu0
    %v10007 = vadd.f32 %v1121, %v10006
    %v10008 = vpop.f32.mrf.mxu0
    %10009 = vdwg.mxu0
    %10010 = vmatpush.bf16.msra.mxu0 %v2842
    %10011 = vmatpush.bf16.msra.mxu0 %v2834
    %10012 = vmatpush.bf16.msra.mxu0 %v2826
    %10013 = vmatpush.bf16.msra.mxu0 %v2818
    %10014 = vmatpush.bf16.msra.mxu0 %v2810
    %10015 = vmatpush.bf16.msra.mxu0 %v2802
    %10016 = vmatpush.bf16.msra.mxu0 %v2794
    %10017 = vmatpush.bf16.msra.mxu0 %v2786
    %10018 = vmatmul.bf16.gmra.mxu0 %v9782
    %v10019 = vpop.f32.mrf.mxu0
    %v10020 = vadd.f32 %v10007, %v10019
    %v10021 = vpop.f32.mrf.mxu0
    %10022 = vdwg.mxu0
    %10023 = vmatpush.bf16.msra.mxu0 %v2906
    %10024 = vmatpush.bf16.msra.mxu0 %v2898
    %10025 = vmatpush.bf16.msra.mxu0 %v2890
    %10026 = vmatpush.bf16.msra.mxu0 %v2882
    %10027 = vmatpush.bf16.msra.mxu0 %v2874
    %10028 = vmatpush.bf16.msra.mxu0 %v2866
    %10029 = vmatpush.bf16.msra.mxu0 %v2858
    %10030 = vmatpush.bf16.msra.mxu0 %v2850
    %10031 = vmatmul.bf16.gmra.mxu0 %v9783
    %v10032 = vpop.f32.mrf.mxu0
    %v10033 = vadd.f32 %v10020, %v10032
    %v10034 = vpop.f32.mrf.mxu0
    %10035 = vdwg.mxu0
    %10036 = vmatpush.bf16.msra.mxu0 %v2970
    %10037 = vmatpush.bf16.msra.mxu0 %v2962
    %10038 = vmatpush.bf16.msra.mxu0 %v2954
    %10039 = vmatpush.bf16.msra.mxu0 %v2946
    %10040 = vmatpush.bf16.msra.mxu0 %v2938
    %10041 = vmatpush.bf16.msra.mxu0 %v2930
    %10042 = vmatpush.bf16.msra.mxu0 %v2922
    %10043 = vmatpush.bf16.msra.mxu0 %v2914
    %10044 = vmatmul.bf16.gmra.mxu0 %v9784
    %v10045 = vpop.f32.mrf.mxu0
    %v10046 = vadd.f32 %v10033, %v10045
    %v10047 = vpop.f32.mrf.mxu0
    %10048 = vdwg.mxu0
    %10049 = vmatpush.bf16.msra.mxu0 %v3034
    %10050 = vmatpush.bf16.msra.mxu0 %v3026
    %10051 = vmatpush.bf16.msra.mxu0 %v3018
    %10052 = vmatpush.bf16.msra.mxu0 %v3010
    %10053 = vmatpush.bf16.msra.mxu0 %v3002
    %10054 = vmatpush.bf16.msra.mxu0 %v2994
    %10055 = vmatpush.bf16.msra.mxu0 %v2986
    %10056 = vmatpush.bf16.msra.mxu0 %v2978
    %10057 = vmatmul.bf16.gmra.mxu0 %v9785
    %v10058 = vpop.f32.mrf.mxu0
    %v10059 = vadd.f32 %v10046, %v10058
    %v10060 = vpop.f32.mrf.mxu0
    %10061 = vdwg.mxu0
    %10062 = vmatpush.bf16.msra.mxu0 %v3098
    %10063 = vmatpush.bf16.msra.mxu0 %v3090
    %10064 = vmatpush.bf16.msra.mxu0 %v3082
    %10065 = vmatpush.bf16.msra.mxu0 %v3074
    %10066 = vmatpush.bf16.msra.mxu0 %v3066
    %10067 = vmatpush.bf16.msra.mxu0 %v3058
    %10068 = vmatpush.bf16.msra.mxu0 %v3050
    %10069 = vmatpush.bf16.msra.mxu0 %v3042
    %10070 = vmatmul.bf16.gmra.mxu0 %v9786
    %v10071 = vpop.f32.mrf.mxu0
    %v10072 = vadd.f32 %v10059, %v10071
    %v10073 = vpop.f32.mrf.mxu0
    %10074 = vdwg.mxu0
    %10075 = vmatpush.bf16.msra.mxu0 %v3162
    %10076 = vmatpush.bf16.msra.mxu0 %v3154
    %10077 = vmatpush.bf16.msra.mxu0 %v3146
    %10078 = vmatpush.bf16.msra.mxu0 %v3138
    %10079 = vmatpush.bf16.msra.mxu0 %v3130
    %10080 = vmatpush.bf16.msra.mxu0 %v3122
    %10081 = vmatpush.bf16.msra.mxu0 %v3114
    %10082 = vmatpush.bf16.msra.mxu0 %v3106
    %10083 = vmatmul.bf16.gmra.mxu0 %v9787
    %v10084 = vpop.f32.mrf.mxu0
    %v10085 = vadd.f32 %v10072, %v10084
    %v10086 = vpop.f32.mrf.mxu0
    %10087 = vdwg.mxu0
    %10088 = vmatpush.bf16.msra.mxu0 %v3226
    %10089 = vmatpush.bf16.msra.mxu0 %v3218
    %10090 = vmatpush.bf16.msra.mxu0 %v3210
    %10091 = vmatpush.bf16.msra.mxu0 %v3202
    %10092 = vmatpush.bf16.msra.mxu0 %v3194
    %10093 = vmatpush.bf16.msra.mxu0 %v3186
    %10094 = vmatpush.bf16.msra.mxu0 %v3178
    %10095 = vmatpush.bf16.msra.mxu0 %v3170
    %10096 = vmatmul.bf16.gmra.mxu0 %v9788
    %v10097 = vpop.f32.mrf.mxu0
    %v10098 = vadd.f32 %v10085, %v10097
    %v10099 = vpop.f32.mrf.mxu0
    %10100 = vdwg.mxu0
    %10101 = vmatpush.bf16.msra.mxu0 %v2779
    %10102 = vmatpush.bf16.msra.mxu0 %v2771
    %10103 = vmatpush.bf16.msra.mxu0 %v2763
    %10104 = vmatpush.bf16.msra.mxu0 %v2755
    %10105 = vmatpush.bf16.msra.mxu0 %v2747
    %10106 = vmatpush.bf16.msra.mxu0 %v2739
    %10107 = vmatpush.bf16.msra.mxu0 %v2731
    %10108 = vmatpush.bf16.msra.mxu0 %v2723
    %10109 = vmatmul.bf16.gmra.mxu0 %v9781
    %v10110 = vpop.f32.mrf.mxu0
    %v10111 = vadd.f32 %v1122, %v10110
    %v10112 = vpop.f32.mrf.mxu0
    %10113 = vdwg.mxu0
    %10114 = vmatpush.bf16.msra.mxu0 %v2843
    %10115 = vmatpush.bf16.msra.mxu0 %v2835
    %10116 = vmatpush.bf16.msra.mxu0 %v2827
    %10117 = vmatpush.bf16.msra.mxu0 %v2819
    %10118 = vmatpush.bf16.msra.mxu0 %v2811
    %10119 = vmatpush.bf16.msra.mxu0 %v2803
    %10120 = vmatpush.bf16.msra.mxu0 %v2795
    %10121 = vmatpush.bf16.msra.mxu0 %v2787
    %10122 = vmatmul.bf16.gmra.mxu0 %v9782
    %v10123 = vpop.f32.mrf.mxu0
    %v10124 = vadd.f32 %v10111, %v10123
    %v10125 = vpop.f32.mrf.mxu0
    %10126 = vdwg.mxu0
    %10127 = vmatpush.bf16.msra.mxu0 %v2907
    %10128 = vmatpush.bf16.msra.mxu0 %v2899
    %10129 = vmatpush.bf16.msra.mxu0 %v2891
    %10130 = vmatpush.bf16.msra.mxu0 %v2883
    %10131 = vmatpush.bf16.msra.mxu0 %v2875
    %10132 = vmatpush.bf16.msra.mxu0 %v2867
    %10133 = vmatpush.bf16.msra.mxu0 %v2859
    %10134 = vmatpush.bf16.msra.mxu0 %v2851
    %10135 = vmatmul.bf16.gmra.mxu0 %v9783
    %v10136 = vpop.f32.mrf.mxu0
    %v10137 = vadd.f32 %v10124, %v10136
    %v10138 = vpop.f32.mrf.mxu0
    %10139 = vdwg.mxu0
    %10140 = vmatpush.bf16.msra.mxu0 %v2971
    %10141 = vmatpush.bf16.msra.mxu0 %v2963
    %10142 = vmatpush.bf16.msra.mxu0 %v2955
    %10143 = vmatpush.bf16.msra.mxu0 %v2947
    %10144 = vmatpush.bf16.msra.mxu0 %v2939
    %10145 = vmatpush.bf16.msra.mxu0 %v2931
    %10146 = vmatpush.bf16.msra.mxu0 %v2923
    %10147 = vmatpush.bf16.msra.mxu0 %v2915
    %10148 = vmatmul.bf16.gmra.mxu0 %v9784
    %v10149 = vpop.f32.mrf.mxu0
    %v10150 = vadd.f32 %v10137, %v10149
    %v10151 = vpop.f32.mrf.mxu0
    %10152 = vdwg.mxu0
    %10153 = vmatpush.bf16.msra.mxu0 %v3035
    %10154 = vmatpush.bf16.msra.mxu0 %v3027
    %10155 = vmatpush.bf16.msra.mxu0 %v3019
    %10156 = vmatpush.bf16.msra.mxu0 %v3011
    %10157 = vmatpush.bf16.msra.mxu0 %v3003
    %10158 = vmatpush.bf16.msra.mxu0 %v2995
    %10159 = vmatpush.bf16.msra.mxu0 %v2987
    %10160 = vmatpush.bf16.msra.mxu0 %v2979
    %10161 = vmatmul.bf16.gmra.mxu0 %v9785
    %v10162 = vpop.f32.mrf.mxu0
    %v10163 = vadd.f32 %v10150, %v10162
    %v10164 = vpop.f32.mrf.mxu0
    %10165 = vdwg.mxu0
    %10166 = vmatpush.bf16.msra.mxu0 %v3099
    %10167 = vmatpush.bf16.msra.mxu0 %v3091
    %10168 = vmatpush.bf16.msra.mxu0 %v3083
    %10169 = vmatpush.bf16.msra.mxu0 %v3075
    %10170 = vmatpush.bf16.msra.mxu0 %v3067
    %10171 = vmatpush.bf16.msra.mxu0 %v3059
    %10172 = vmatpush.bf16.msra.mxu0 %v3051
    %10173 = vmatpush.bf16.msra.mxu0 %v3043
    %10174 = vmatmul.bf16.gmra.mxu0 %v9786
    %v10175 = vpop.f32.mrf.mxu0
    %v10176 = vadd.f32 %v10163, %v10175
    %v10177 = vpop.f32.mrf.mxu0
    %10178 = vdwg.mxu0
    %10179 = vmatpush.bf16.msra.mxu0 %v3163
    %10180 = vmatpush.bf16.msra.mxu0 %v3155
    %10181 = vmatpush.bf16.msra.mxu0 %v3147
    %10182 = vmatpush.bf16.msra.mxu0 %v3139
    %10183 = vmatpush.bf16.msra.mxu0 %v3131
    %10184 = vmatpush.bf16.msra.mxu0 %v3123
    %10185 = vmatpush.bf16.msra.mxu0 %v3115
    %10186 = vmatpush.bf16.msra.mxu0 %v3107
    %10187 = vmatmul.bf16.gmra.mxu0 %v9787
    %v10188 = vpop.f32.mrf.mxu0
    %v10189 = vadd.f32 %v10176, %v10188
    %v10190 = vpop.f32.mrf.mxu0
    %10191 = vdwg.mxu0
    %10192 = vmatpush.bf16.msra.mxu0 %v3227
    %10193 = vmatpush.bf16.msra.mxu0 %v3219
    %10194 = vmatpush.bf16.msra.mxu0 %v3211
    %10195 = vmatpush.bf16.msra.mxu0 %v3203
    %10196 = vmatpush.bf16.msra.mxu0 %v3195
    %10197 = vmatpush.bf16.msra.mxu0 %v3187
    %10198 = vmatpush.bf16.msra.mxu0 %v3179
    %10199 = vmatpush.bf16.msra.mxu0 %v3171
    %10200 = vmatmul.bf16.gmra.mxu0 %v9788
    %v10201 = vpop.f32.mrf.mxu0
    %v10202 = vadd.f32 %v10189, %v10201
    %v10203 = vpop.f32.mrf.mxu0
    %10204 = vdwg.mxu0
    %10205 = vmatpush.bf16.msra.mxu0 %v2780
    %10206 = vmatpush.bf16.msra.mxu0 %v2772
    %10207 = vmatpush.bf16.msra.mxu0 %v2764
    %10208 = vmatpush.bf16.msra.mxu0 %v2756
    %10209 = vmatpush.bf16.msra.mxu0 %v2748
    %10210 = vmatpush.bf16.msra.mxu0 %v2740
    %10211 = vmatpush.bf16.msra.mxu0 %v2732
    %10212 = vmatpush.bf16.msra.mxu0 %v2724
    %10213 = vmatmul.bf16.gmra.mxu0 %v9781
    %v10214 = vpop.f32.mrf.mxu0
    %v10215 = vadd.f32 %v1123, %v10214
    %v10216 = vpop.f32.mrf.mxu0
    %10217 = vdwg.mxu0
    %10218 = vmatpush.bf16.msra.mxu0 %v2844
    %10219 = vmatpush.bf16.msra.mxu0 %v2836
    %10220 = vmatpush.bf16.msra.mxu0 %v2828
    %10221 = vmatpush.bf16.msra.mxu0 %v2820
    %10222 = vmatpush.bf16.msra.mxu0 %v2812
    %10223 = vmatpush.bf16.msra.mxu0 %v2804
    %10224 = vmatpush.bf16.msra.mxu0 %v2796
    %10225 = vmatpush.bf16.msra.mxu0 %v2788
    %10226 = vmatmul.bf16.gmra.mxu0 %v9782
    %v10227 = vpop.f32.mrf.mxu0
    %v10228 = vadd.f32 %v10215, %v10227
    %v10229 = vpop.f32.mrf.mxu0
    %10230 = vdwg.mxu0
    %10231 = vmatpush.bf16.msra.mxu0 %v2908
    %10232 = vmatpush.bf16.msra.mxu0 %v2900
    %10233 = vmatpush.bf16.msra.mxu0 %v2892
    %10234 = vmatpush.bf16.msra.mxu0 %v2884
    %10235 = vmatpush.bf16.msra.mxu0 %v2876
    %10236 = vmatpush.bf16.msra.mxu0 %v2868
    %10237 = vmatpush.bf16.msra.mxu0 %v2860
    %10238 = vmatpush.bf16.msra.mxu0 %v2852
    %10239 = vmatmul.bf16.gmra.mxu0 %v9783
    %v10240 = vpop.f32.mrf.mxu0
    %v10241 = vadd.f32 %v10228, %v10240
    %v10242 = vpop.f32.mrf.mxu0
    %10243 = vdwg.mxu0
    %10244 = vmatpush.bf16.msra.mxu0 %v2972
    %10245 = vmatpush.bf16.msra.mxu0 %v2964
    %10246 = vmatpush.bf16.msra.mxu0 %v2956
    %10247 = vmatpush.bf16.msra.mxu0 %v2948
    %10248 = vmatpush.bf16.msra.mxu0 %v2940
    %10249 = vmatpush.bf16.msra.mxu0 %v2932
    %10250 = vmatpush.bf16.msra.mxu0 %v2924
    %10251 = vmatpush.bf16.msra.mxu0 %v2916
    %10252 = vmatmul.bf16.gmra.mxu0 %v9784
    %v10253 = vpop.f32.mrf.mxu0
    %v10254 = vadd.f32 %v10241, %v10253
    %v10255 = vpop.f32.mrf.mxu0
    %10256 = vdwg.mxu0
    %10257 = vmatpush.bf16.msra.mxu0 %v3036
    %10258 = vmatpush.bf16.msra.mxu0 %v3028
    %10259 = vmatpush.bf16.msra.mxu0 %v3020
    %10260 = vmatpush.bf16.msra.mxu0 %v3012
    %10261 = vmatpush.bf16.msra.mxu0 %v3004
    %10262 = vmatpush.bf16.msra.mxu0 %v2996
    %10263 = vmatpush.bf16.msra.mxu0 %v2988
    %10264 = vmatpush.bf16.msra.mxu0 %v2980
    %10265 = vmatmul.bf16.gmra.mxu0 %v9785
    %v10266 = vpop.f32.mrf.mxu0
    %v10267 = vadd.f32 %v10254, %v10266
    %v10268 = vpop.f32.mrf.mxu0
    %10269 = vdwg.mxu0
    %10270 = vmatpush.bf16.msra.mxu0 %v3100
    %10271 = vmatpush.bf16.msra.mxu0 %v3092
    %10272 = vmatpush.bf16.msra.mxu0 %v3084
    %10273 = vmatpush.bf16.msra.mxu0 %v3076
    %10274 = vmatpush.bf16.msra.mxu0 %v3068
    %10275 = vmatpush.bf16.msra.mxu0 %v3060
    %10276 = vmatpush.bf16.msra.mxu0 %v3052
    %10277 = vmatpush.bf16.msra.mxu0 %v3044
    %10278 = vmatmul.bf16.gmra.mxu0 %v9786
    %v10279 = vpop.f32.mrf.mxu0
    %v10280 = vadd.f32 %v10267, %v10279
    %v10281 = vpop.f32.mrf.mxu0
    %10282 = vdwg.mxu0
    %10283 = vmatpush.bf16.msra.mxu0 %v3164
    %10284 = vmatpush.bf16.msra.mxu0 %v3156
    %10285 = vmatpush.bf16.msra.mxu0 %v3148
    %10286 = vmatpush.bf16.msra.mxu0 %v3140
    %10287 = vmatpush.bf16.msra.mxu0 %v3132
    %10288 = vmatpush.bf16.msra.mxu0 %v3124
    %10289 = vmatpush.bf16.msra.mxu0 %v3116
    %10290 = vmatpush.bf16.msra.mxu0 %v3108
    %10291 = vmatmul.bf16.gmra.mxu0 %v9787
    %v10292 = vpop.f32.mrf.mxu0
    %v10293 = vadd.f32 %v10280, %v10292
    %v10294 = vpop.f32.mrf.mxu0
    %10295 = vdwg.mxu0
    %10296 = vmatpush.bf16.msra.mxu0 %v3228
    %10297 = vmatpush.bf16.msra.mxu0 %v3220
    %10298 = vmatpush.bf16.msra.mxu0 %v3212
    %10299 = vmatpush.bf16.msra.mxu0 %v3204
    %10300 = vmatpush.bf16.msra.mxu0 %v3196
    %10301 = vmatpush.bf16.msra.mxu0 %v3188
    %10302 = vmatpush.bf16.msra.mxu0 %v3180
    %10303 = vmatpush.bf16.msra.mxu0 %v3172
    %10304 = vmatmul.bf16.gmra.mxu0 %v9788
    %v10305 = vpop.f32.mrf.mxu0
    %v10306 = vadd.f32 %v10293, %v10305
    %v10307 = vpop.f32.mrf.mxu0
    %10308 = vdwg.mxu0
    %10309 = vmatpush.bf16.msra.mxu0 %v2781
    %10310 = vmatpush.bf16.msra.mxu0 %v2773
    %10311 = vmatpush.bf16.msra.mxu0 %v2765
    %10312 = vmatpush.bf16.msra.mxu0 %v2757
    %10313 = vmatpush.bf16.msra.mxu0 %v2749
    %10314 = vmatpush.bf16.msra.mxu0 %v2741
    %10315 = vmatpush.bf16.msra.mxu0 %v2733
    %10316 = vmatpush.bf16.msra.mxu0 %v2725
    %10317 = vmatmul.bf16.gmra.mxu0 %v9781
    %v10318 = vpop.f32.mrf.mxu0
    %v10319 = vadd.f32 %v1124, %v10318
    %v10320 = vpop.f32.mrf.mxu0
    %10321 = vdwg.mxu0
    %10322 = vmatpush.bf16.msra.mxu0 %v2845
    %10323 = vmatpush.bf16.msra.mxu0 %v2837
    %10324 = vmatpush.bf16.msra.mxu0 %v2829
    %10325 = vmatpush.bf16.msra.mxu0 %v2821
    %10326 = vmatpush.bf16.msra.mxu0 %v2813
    %10327 = vmatpush.bf16.msra.mxu0 %v2805
    %10328 = vmatpush.bf16.msra.mxu0 %v2797
    %10329 = vmatpush.bf16.msra.mxu0 %v2789
    %10330 = vmatmul.bf16.gmra.mxu0 %v9782
    %v10331 = vpop.f32.mrf.mxu0
    %v10332 = vadd.f32 %v10319, %v10331
    %v10333 = vpop.f32.mrf.mxu0
    %10334 = vdwg.mxu0
    %10335 = vmatpush.bf16.msra.mxu0 %v2909
    %10336 = vmatpush.bf16.msra.mxu0 %v2901
    %10337 = vmatpush.bf16.msra.mxu0 %v2893
    %10338 = vmatpush.bf16.msra.mxu0 %v2885
    %10339 = vmatpush.bf16.msra.mxu0 %v2877
    %10340 = vmatpush.bf16.msra.mxu0 %v2869
    %10341 = vmatpush.bf16.msra.mxu0 %v2861
    %10342 = vmatpush.bf16.msra.mxu0 %v2853
    %10343 = vmatmul.bf16.gmra.mxu0 %v9783
    %v10344 = vpop.f32.mrf.mxu0
    %v10345 = vadd.f32 %v10332, %v10344
    %v10346 = vpop.f32.mrf.mxu0
    %10347 = vdwg.mxu0
    %10348 = vmatpush.bf16.msra.mxu0 %v2973
    %10349 = vmatpush.bf16.msra.mxu0 %v2965
    %10350 = vmatpush.bf16.msra.mxu0 %v2957
    %10351 = vmatpush.bf16.msra.mxu0 %v2949
    %10352 = vmatpush.bf16.msra.mxu0 %v2941
    %10353 = vmatpush.bf16.msra.mxu0 %v2933
    %10354 = vmatpush.bf16.msra.mxu0 %v2925
    %10355 = vmatpush.bf16.msra.mxu0 %v2917
    %10356 = vmatmul.bf16.gmra.mxu0 %v9784
    %v10357 = vpop.f32.mrf.mxu0
    %v10358 = vadd.f32 %v10345, %v10357
    %v10359 = vpop.f32.mrf.mxu0
    %10360 = vdwg.mxu0
    %10361 = vmatpush.bf16.msra.mxu0 %v3037
    %10362 = vmatpush.bf16.msra.mxu0 %v3029
    %10363 = vmatpush.bf16.msra.mxu0 %v3021
    %10364 = vmatpush.bf16.msra.mxu0 %v3013
    %10365 = vmatpush.bf16.msra.mxu0 %v3005
    %10366 = vmatpush.bf16.msra.mxu0 %v2997
    %10367 = vmatpush.bf16.msra.mxu0 %v2989
    %10368 = vmatpush.bf16.msra.mxu0 %v2981
    %10369 = vmatmul.bf16.gmra.mxu0 %v9785
    %v10370 = vpop.f32.mrf.mxu0
    %v10371 = vadd.f32 %v10358, %v10370
    %v10372 = vpop.f32.mrf.mxu0
    %10373 = vdwg.mxu0
    %10374 = vmatpush.bf16.msra.mxu0 %v3101
    %10375 = vmatpush.bf16.msra.mxu0 %v3093
    %10376 = vmatpush.bf16.msra.mxu0 %v3085
    %10377 = vmatpush.bf16.msra.mxu0 %v3077
    %10378 = vmatpush.bf16.msra.mxu0 %v3069
    %10379 = vmatpush.bf16.msra.mxu0 %v3061
    %10380 = vmatpush.bf16.msra.mxu0 %v3053
    %10381 = vmatpush.bf16.msra.mxu0 %v3045
    %10382 = vmatmul.bf16.gmra.mxu0 %v9786
    %v10383 = vpop.f32.mrf.mxu0
    %v10384 = vadd.f32 %v10371, %v10383
    %v10385 = vpop.f32.mrf.mxu0
    %10386 = vdwg.mxu0
    %10387 = vmatpush.bf16.msra.mxu0 %v3165
    %10388 = vmatpush.bf16.msra.mxu0 %v3157
    %10389 = vmatpush.bf16.msra.mxu0 %v3149
    %10390 = vmatpush.bf16.msra.mxu0 %v3141
    %10391 = vmatpush.bf16.msra.mxu0 %v3133
    %10392 = vmatpush.bf16.msra.mxu0 %v3125
    %10393 = vmatpush.bf16.msra.mxu0 %v3117
    %10394 = vmatpush.bf16.msra.mxu0 %v3109
    %10395 = vmatmul.bf16.gmra.mxu0 %v9787
    %v10396 = vpop.f32.mrf.mxu0
    %v10397 = vadd.f32 %v10384, %v10396
    %v10398 = vpop.f32.mrf.mxu0
    %10399 = vdwg.mxu0
    %10400 = vmatpush.bf16.msra.mxu0 %v3229
    %10401 = vmatpush.bf16.msra.mxu0 %v3221
    %10402 = vmatpush.bf16.msra.mxu0 %v3213
    %10403 = vmatpush.bf16.msra.mxu0 %v3205
    %10404 = vmatpush.bf16.msra.mxu0 %v3197
    %10405 = vmatpush.bf16.msra.mxu0 %v3189
    %10406 = vmatpush.bf16.msra.mxu0 %v3181
    %10407 = vmatpush.bf16.msra.mxu0 %v3173
    %10408 = vmatmul.bf16.gmra.mxu0 %v9788
    %v10409 = vpop.f32.mrf.mxu0
    %v10410 = vadd.f32 %v10397, %v10409
    %v10411 = vpop.f32.mrf.mxu0
    %10412 = vdwg.mxu0
    %10413 = vmatpush.bf16.msra.mxu0 %v2782
    %10414 = vmatpush.bf16.msra.mxu0 %v2774
    %10415 = vmatpush.bf16.msra.mxu0 %v2766
    %10416 = vmatpush.bf16.msra.mxu0 %v2758
    %10417 = vmatpush.bf16.msra.mxu0 %v2750
    %10418 = vmatpush.bf16.msra.mxu0 %v2742
    %10419 = vmatpush.bf16.msra.mxu0 %v2734
    %10420 = vmatpush.bf16.msra.mxu0 %v2726
    %10421 = vmatmul.bf16.gmra.mxu0 %v9781
    %v10422 = vpop.f32.mrf.mxu0
    %v10423 = vadd.f32 %v1125, %v10422
    %v10424 = vpop.f32.mrf.mxu0
    %10425 = vdwg.mxu0
    %10426 = vmatpush.bf16.msra.mxu0 %v2846
    %10427 = vmatpush.bf16.msra.mxu0 %v2838
    %10428 = vmatpush.bf16.msra.mxu0 %v2830
    %10429 = vmatpush.bf16.msra.mxu0 %v2822
    %10430 = vmatpush.bf16.msra.mxu0 %v2814
    %10431 = vmatpush.bf16.msra.mxu0 %v2806
    %10432 = vmatpush.bf16.msra.mxu0 %v2798
    %10433 = vmatpush.bf16.msra.mxu0 %v2790
    %10434 = vmatmul.bf16.gmra.mxu0 %v9782
    %v10435 = vpop.f32.mrf.mxu0
    %v10436 = vadd.f32 %v10423, %v10435
    %v10437 = vpop.f32.mrf.mxu0
    %10438 = vdwg.mxu0
    %10439 = vmatpush.bf16.msra.mxu0 %v2910
    %10440 = vmatpush.bf16.msra.mxu0 %v2902
    %10441 = vmatpush.bf16.msra.mxu0 %v2894
    %10442 = vmatpush.bf16.msra.mxu0 %v2886
    %10443 = vmatpush.bf16.msra.mxu0 %v2878
    %10444 = vmatpush.bf16.msra.mxu0 %v2870
    %10445 = vmatpush.bf16.msra.mxu0 %v2862
    %10446 = vmatpush.bf16.msra.mxu0 %v2854
    %10447 = vmatmul.bf16.gmra.mxu0 %v9783
    %v10448 = vpop.f32.mrf.mxu0
    %v10449 = vadd.f32 %v10436, %v10448
    %v10450 = vpop.f32.mrf.mxu0
    %10451 = vdwg.mxu0
    %10452 = vmatpush.bf16.msra.mxu0 %v2974
    %10453 = vmatpush.bf16.msra.mxu0 %v2966
    %10454 = vmatpush.bf16.msra.mxu0 %v2958
    %10455 = vmatpush.bf16.msra.mxu0 %v2950
    %10456 = vmatpush.bf16.msra.mxu0 %v2942
    %10457 = vmatpush.bf16.msra.mxu0 %v2934
    %10458 = vmatpush.bf16.msra.mxu0 %v2926
    %10459 = vmatpush.bf16.msra.mxu0 %v2918
    %10460 = vmatmul.bf16.gmra.mxu0 %v9784
    %v10461 = vpop.f32.mrf.mxu0
    %v10462 = vadd.f32 %v10449, %v10461
    %v10463 = vpop.f32.mrf.mxu0
    %10464 = vdwg.mxu0
    %10465 = vmatpush.bf16.msra.mxu0 %v3038
    %10466 = vmatpush.bf16.msra.mxu0 %v3030
    %10467 = vmatpush.bf16.msra.mxu0 %v3022
    %10468 = vmatpush.bf16.msra.mxu0 %v3014
    %10469 = vmatpush.bf16.msra.mxu0 %v3006
    %10470 = vmatpush.bf16.msra.mxu0 %v2998
    %10471 = vmatpush.bf16.msra.mxu0 %v2990
    %10472 = vmatpush.bf16.msra.mxu0 %v2982
    %10473 = vmatmul.bf16.gmra.mxu0 %v9785
    %v10474 = vpop.f32.mrf.mxu0
    %v10475 = vadd.f32 %v10462, %v10474
    %v10476 = vpop.f32.mrf.mxu0
    %10477 = vdwg.mxu0
    %10478 = vmatpush.bf16.msra.mxu0 %v3102
    %10479 = vmatpush.bf16.msra.mxu0 %v3094
    %10480 = vmatpush.bf16.msra.mxu0 %v3086
    %10481 = vmatpush.bf16.msra.mxu0 %v3078
    %10482 = vmatpush.bf16.msra.mxu0 %v3070
    %10483 = vmatpush.bf16.msra.mxu0 %v3062
    %10484 = vmatpush.bf16.msra.mxu0 %v3054
    %10485 = vmatpush.bf16.msra.mxu0 %v3046
    %10486 = vmatmul.bf16.gmra.mxu0 %v9786
    %v10487 = vpop.f32.mrf.mxu0
    %v10488 = vadd.f32 %v10475, %v10487
    %v10489 = vpop.f32.mrf.mxu0
    %10490 = vdwg.mxu0
    %10491 = vmatpush.bf16.msra.mxu0 %v3166
    %10492 = vmatpush.bf16.msra.mxu0 %v3158
    %10493 = vmatpush.bf16.msra.mxu0 %v3150
    %10494 = vmatpush.bf16.msra.mxu0 %v3142
    %10495 = vmatpush.bf16.msra.mxu0 %v3134
    %10496 = vmatpush.bf16.msra.mxu0 %v3126
    %10497 = vmatpush.bf16.msra.mxu0 %v3118
    %10498 = vmatpush.bf16.msra.mxu0 %v3110
    %10499 = vmatmul.bf16.gmra.mxu0 %v9787
    %v10500 = vpop.f32.mrf.mxu0
    %v10501 = vadd.f32 %v10488, %v10500
    %v10502 = vpop.f32.mrf.mxu0
    %10503 = vdwg.mxu0
    %10504 = vmatpush.bf16.msra.mxu0 %v3230
    %10505 = vmatpush.bf16.msra.mxu0 %v3222
    %10506 = vmatpush.bf16.msra.mxu0 %v3214
    %10507 = vmatpush.bf16.msra.mxu0 %v3206
    %10508 = vmatpush.bf16.msra.mxu0 %v3198
    %10509 = vmatpush.bf16.msra.mxu0 %v3190
    %10510 = vmatpush.bf16.msra.mxu0 %v3182
    %10511 = vmatpush.bf16.msra.mxu0 %v3174
    %10512 = vmatmul.bf16.gmra.mxu0 %v9788
    %v10513 = vpop.f32.mrf.mxu0
    %v10514 = vadd.f32 %v10501, %v10513
    %v10515 = vpop.f32.mrf.mxu0
    %10516 = vdwg.mxu0
    %10517 = vmatpush.bf16.msra.mxu0 %v2783
    %10518 = vmatpush.bf16.msra.mxu0 %v2775
    %10519 = vmatpush.bf16.msra.mxu0 %v2767
    %10520 = vmatpush.bf16.msra.mxu0 %v2759
    %10521 = vmatpush.bf16.msra.mxu0 %v2751
    %10522 = vmatpush.bf16.msra.mxu0 %v2743
    %10523 = vmatpush.bf16.msra.mxu0 %v2735
    %10524 = vmatpush.bf16.msra.mxu0 %v2727
    %10525 = vmatmul.bf16.gmra.mxu0 %v9781
    %v10526 = vpop.f32.mrf.mxu0
    %v10527 = vadd.f32 %v1126, %v10526
    %v10528 = vpop.f32.mrf.mxu0
    %10529 = vdwg.mxu0
    %10530 = vmatpush.bf16.msra.mxu0 %v2847
    %10531 = vmatpush.bf16.msra.mxu0 %v2839
    %10532 = vmatpush.bf16.msra.mxu0 %v2831
    %10533 = vmatpush.bf16.msra.mxu0 %v2823
    %10534 = vmatpush.bf16.msra.mxu0 %v2815
    %10535 = vmatpush.bf16.msra.mxu0 %v2807
    %10536 = vmatpush.bf16.msra.mxu0 %v2799
    %10537 = vmatpush.bf16.msra.mxu0 %v2791
    %10538 = vmatmul.bf16.gmra.mxu0 %v9782
    %v10539 = vpop.f32.mrf.mxu0
    %v10540 = vadd.f32 %v10527, %v10539
    %v10541 = vpop.f32.mrf.mxu0
    %10542 = vdwg.mxu0
    %10543 = vmatpush.bf16.msra.mxu0 %v2911
    %10544 = vmatpush.bf16.msra.mxu0 %v2903
    %10545 = vmatpush.bf16.msra.mxu0 %v2895
    %10546 = vmatpush.bf16.msra.mxu0 %v2887
    %10547 = vmatpush.bf16.msra.mxu0 %v2879
    %10548 = vmatpush.bf16.msra.mxu0 %v2871
    %10549 = vmatpush.bf16.msra.mxu0 %v2863
    %10550 = vmatpush.bf16.msra.mxu0 %v2855
    %10551 = vmatmul.bf16.gmra.mxu0 %v9783
    %v10552 = vpop.f32.mrf.mxu0
    %v10553 = vadd.f32 %v10540, %v10552
    %v10554 = vpop.f32.mrf.mxu0
    %10555 = vdwg.mxu0
    %10556 = vmatpush.bf16.msra.mxu0 %v2975
    %10557 = vmatpush.bf16.msra.mxu0 %v2967
    %10558 = vmatpush.bf16.msra.mxu0 %v2959
    %10559 = vmatpush.bf16.msra.mxu0 %v2951
    %10560 = vmatpush.bf16.msra.mxu0 %v2943
    %10561 = vmatpush.bf16.msra.mxu0 %v2935
    %10562 = vmatpush.bf16.msra.mxu0 %v2927
    %10563 = vmatpush.bf16.msra.mxu0 %v2919
    %10564 = vmatmul.bf16.gmra.mxu0 %v9784
    %v10565 = vpop.f32.mrf.mxu0
    %v10566 = vadd.f32 %v10553, %v10565
    %v10567 = vpop.f32.mrf.mxu0
    %10568 = vdwg.mxu0
    %10569 = vmatpush.bf16.msra.mxu0 %v3039
    %10570 = vmatpush.bf16.msra.mxu0 %v3031
    %10571 = vmatpush.bf16.msra.mxu0 %v3023
    %10572 = vmatpush.bf16.msra.mxu0 %v3015
    %10573 = vmatpush.bf16.msra.mxu0 %v3007
    %10574 = vmatpush.bf16.msra.mxu0 %v2999
    %10575 = vmatpush.bf16.msra.mxu0 %v2991
    %10576 = vmatpush.bf16.msra.mxu0 %v2983
    %10577 = vmatmul.bf16.gmra.mxu0 %v9785
    %v10578 = vpop.f32.mrf.mxu0
    %v10579 = vadd.f32 %v10566, %v10578
    %v10580 = vpop.f32.mrf.mxu0
    %10581 = vdwg.mxu0
    %10582 = vmatpush.bf16.msra.mxu0 %v3103
    %10583 = vmatpush.bf16.msra.mxu0 %v3095
    %10584 = vmatpush.bf16.msra.mxu0 %v3087
    %10585 = vmatpush.bf16.msra.mxu0 %v3079
    %10586 = vmatpush.bf16.msra.mxu0 %v3071
    %10587 = vmatpush.bf16.msra.mxu0 %v3063
    %10588 = vmatpush.bf16.msra.mxu0 %v3055
    %10589 = vmatpush.bf16.msra.mxu0 %v3047
    %10590 = vmatmul.bf16.gmra.mxu0 %v9786
    %v10591 = vpop.f32.mrf.mxu0
    %v10592 = vadd.f32 %v10579, %v10591
    %v10593 = vpop.f32.mrf.mxu0
    %10594 = vdwg.mxu0
    %10595 = vmatpush.bf16.msra.mxu0 %v3167
    %10596 = vmatpush.bf16.msra.mxu0 %v3159
    %10597 = vmatpush.bf16.msra.mxu0 %v3151
    %10598 = vmatpush.bf16.msra.mxu0 %v3143
    %10599 = vmatpush.bf16.msra.mxu0 %v3135
    %10600 = vmatpush.bf16.msra.mxu0 %v3127
    %10601 = vmatpush.bf16.msra.mxu0 %v3119
    %10602 = vmatpush.bf16.msra.mxu0 %v3111
    %10603 = vmatmul.bf16.gmra.mxu0 %v9787
    %v10604 = vpop.f32.mrf.mxu0
    %v10605 = vadd.f32 %v10592, %v10604
    %v10606 = vpop.f32.mrf.mxu0
    %10607 = vdwg.mxu0
    %10608 = vmatpush.bf16.msra.mxu0 %v3231
    %10609 = vmatpush.bf16.msra.mxu0 %v3223
    %10610 = vmatpush.bf16.msra.mxu0 %v3215
    %10611 = vmatpush.bf16.msra.mxu0 %v3207
    %10612 = vmatpush.bf16.msra.mxu0 %v3199
    %10613 = vmatpush.bf16.msra.mxu0 %v3191
    %10614 = vmatpush.bf16.msra.mxu0 %v3183
    %10615 = vmatpush.bf16.msra.mxu0 %v3175
    %10616 = vmatmul.bf16.gmra.mxu0 %v9788
    %v10617 = vpop.f32.mrf.mxu0
    %v10618 = vadd.f32 %v10605, %v10617
    %v10619 = vpop.f32.mrf.mxu0
    %10620 = vdwg.mxu0
    %v10621 = vmax.f32 %v9890, 0.0
    %v10622 = vmax.f32 %v9994, 0.0
    %v10623 = vmax.f32 %v10098, 0.0
    %v10624 = vmax.f32 %v10202, 0.0
    %v10625 = vmax.f32 %v10306, 0.0
    %v10626 = vmax.f32 %v10410, 0.0
    %v10627 = vmax.f32 %v10514, 0.0
    %v10628 = vmax.f32 %v10618, 0.0
    %v10629 = vpack.c.bf16 %v10621, %v10621
    %v10630 = vpack.c.bf16 %v10622, %v10622
    %v10631 = vpack.c.bf16 %v10623, %v10623
    %v10632 = vpack.c.bf16 %v10624, %v10624
    %v10633 = vpack.c.bf16 %v10625, %v10625
    %v10634 = vpack.c.bf16 %v10626, %v10626
    %v10635 = vpack.c.bf16 %v10627, %v10627
    %v10636 = vpack.c.bf16 %v10628, %v10628
    %10637 = vmatpush.bf16.msra.mxu0 %v6184
    %10638 = vmatpush.bf16.msra.mxu0 %v6176
    %10639 = vmatpush.bf16.msra.mxu0 %v6168
    %10640 = vmatpush.bf16.msra.mxu0 %v6160
    %10641 = vmatpush.bf16.msra.mxu0 %v6152
    %10642 = vmatpush.bf16.msra.mxu0 %v6144
    %10643 = vmatpush.bf16.msra.mxu0 %v6136
    %10644 = vmatpush.bf16.msra.mxu0 %v6128
    %10645 = vmatmul.bf16.gmra.mxu0 %v10629
    %v10646 = vpop.f32.mrf.mxu0
    %v10647 = vadd.f32 %v1137, %v10646
    %v10648 = vpop.f32.mrf.mxu0
    %10649 = vdwg.mxu0
    %10650 = vmatpush.bf16.msra.mxu0 %v6248
    %10651 = vmatpush.bf16.msra.mxu0 %v6240
    %10652 = vmatpush.bf16.msra.mxu0 %v6232
    %10653 = vmatpush.bf16.msra.mxu0 %v6224
    %10654 = vmatpush.bf16.msra.mxu0 %v6216
    %10655 = vmatpush.bf16.msra.mxu0 %v6208
    %10656 = vmatpush.bf16.msra.mxu0 %v6200
    %10657 = vmatpush.bf16.msra.mxu0 %v6192
    %10658 = vmatmul.bf16.gmra.mxu0 %v10630
    %v10659 = vpop.f32.mrf.mxu0
    %v10660 = vadd.f32 %v10647, %v10659
    %v10661 = vpop.f32.mrf.mxu0
    %10662 = vdwg.mxu0
    %10663 = vmatpush.bf16.msra.mxu0 %v6312
    %10664 = vmatpush.bf16.msra.mxu0 %v6304
    %10665 = vmatpush.bf16.msra.mxu0 %v6296
    %10666 = vmatpush.bf16.msra.mxu0 %v6288
    %10667 = vmatpush.bf16.msra.mxu0 %v6280
    %10668 = vmatpush.bf16.msra.mxu0 %v6272
    %10669 = vmatpush.bf16.msra.mxu0 %v6264
    %10670 = vmatpush.bf16.msra.mxu0 %v6256
    %10671 = vmatmul.bf16.gmra.mxu0 %v10631
    %v10672 = vpop.f32.mrf.mxu0
    %v10673 = vadd.f32 %v10660, %v10672
    %v10674 = vpop.f32.mrf.mxu0
    %10675 = vdwg.mxu0
    %10676 = vmatpush.bf16.msra.mxu0 %v6376
    %10677 = vmatpush.bf16.msra.mxu0 %v6368
    %10678 = vmatpush.bf16.msra.mxu0 %v6360
    %10679 = vmatpush.bf16.msra.mxu0 %v6352
    %10680 = vmatpush.bf16.msra.mxu0 %v6344
    %10681 = vmatpush.bf16.msra.mxu0 %v6336
    %10682 = vmatpush.bf16.msra.mxu0 %v6328
    %10683 = vmatpush.bf16.msra.mxu0 %v6320
    %10684 = vmatmul.bf16.gmra.mxu0 %v10632
    %v10685 = vpop.f32.mrf.mxu0
    %v10686 = vadd.f32 %v10673, %v10685
    %v10687 = vpop.f32.mrf.mxu0
    %10688 = vdwg.mxu0
    %10689 = vmatpush.bf16.msra.mxu0 %v6440
    %10690 = vmatpush.bf16.msra.mxu0 %v6432
    %10691 = vmatpush.bf16.msra.mxu0 %v6424
    %10692 = vmatpush.bf16.msra.mxu0 %v6416
    %10693 = vmatpush.bf16.msra.mxu0 %v6408
    %10694 = vmatpush.bf16.msra.mxu0 %v6400
    %10695 = vmatpush.bf16.msra.mxu0 %v6392
    %10696 = vmatpush.bf16.msra.mxu0 %v6384
    %10697 = vmatmul.bf16.gmra.mxu0 %v10633
    %v10698 = vpop.f32.mrf.mxu0
    %v10699 = vadd.f32 %v10686, %v10698
    %v10700 = vpop.f32.mrf.mxu0
    %10701 = vdwg.mxu0
    %10702 = vmatpush.bf16.msra.mxu0 %v6504
    %10703 = vmatpush.bf16.msra.mxu0 %v6496
    %10704 = vmatpush.bf16.msra.mxu0 %v6488
    %10705 = vmatpush.bf16.msra.mxu0 %v6480
    %10706 = vmatpush.bf16.msra.mxu0 %v6472
    %10707 = vmatpush.bf16.msra.mxu0 %v6464
    %10708 = vmatpush.bf16.msra.mxu0 %v6456
    %10709 = vmatpush.bf16.msra.mxu0 %v6448
    %10710 = vmatmul.bf16.gmra.mxu0 %v10634
    %v10711 = vpop.f32.mrf.mxu0
    %v10712 = vadd.f32 %v10699, %v10711
    %v10713 = vpop.f32.mrf.mxu0
    %10714 = vdwg.mxu0
    %10715 = vmatpush.bf16.msra.mxu0 %v6568
    %10716 = vmatpush.bf16.msra.mxu0 %v6560
    %10717 = vmatpush.bf16.msra.mxu0 %v6552
    %10718 = vmatpush.bf16.msra.mxu0 %v6544
    %10719 = vmatpush.bf16.msra.mxu0 %v6536
    %10720 = vmatpush.bf16.msra.mxu0 %v6528
    %10721 = vmatpush.bf16.msra.mxu0 %v6520
    %10722 = vmatpush.bf16.msra.mxu0 %v6512
    %10723 = vmatmul.bf16.gmra.mxu0 %v10635
    %v10724 = vpop.f32.mrf.mxu0
    %v10725 = vadd.f32 %v10712, %v10724
    %v10726 = vpop.f32.mrf.mxu0
    %10727 = vdwg.mxu0
    %10728 = vmatpush.bf16.msra.mxu0 %v6632
    %10729 = vmatpush.bf16.msra.mxu0 %v6624
    %10730 = vmatpush.bf16.msra.mxu0 %v6616
    %10731 = vmatpush.bf16.msra.mxu0 %v6608
    %10732 = vmatpush.bf16.msra.mxu0 %v6600
    %10733 = vmatpush.bf16.msra.mxu0 %v6592
    %10734 = vmatpush.bf16.msra.mxu0 %v6584
    %10735 = vmatpush.bf16.msra.mxu0 %v6576
    %10736 = vmatmul.bf16.gmra.mxu0 %v10636
    %v10737 = vpop.f32.mrf.mxu0
    %v10738 = vadd.f32 %v10725, %v10737
    %v10739 = vpop.f32.mrf.mxu0
    %10740 = vdwg.mxu0
    %10741 = vmatpush.bf16.msra.mxu0 %v6185
    %10742 = vmatpush.bf16.msra.mxu0 %v6177
    %10743 = vmatpush.bf16.msra.mxu0 %v6169
    %10744 = vmatpush.bf16.msra.mxu0 %v6161
    %10745 = vmatpush.bf16.msra.mxu0 %v6153
    %10746 = vmatpush.bf16.msra.mxu0 %v6145
    %10747 = vmatpush.bf16.msra.mxu0 %v6137
    %10748 = vmatpush.bf16.msra.mxu0 %v6129
    %10749 = vmatmul.bf16.gmra.mxu0 %v10629
    %v10750 = vpop.f32.mrf.mxu0
    %v10751 = vadd.f32 %v1138, %v10750
    %v10752 = vpop.f32.mrf.mxu0
    %10753 = vdwg.mxu0
    %10754 = vmatpush.bf16.msra.mxu0 %v6249
    %10755 = vmatpush.bf16.msra.mxu0 %v6241
    %10756 = vmatpush.bf16.msra.mxu0 %v6233
    %10757 = vmatpush.bf16.msra.mxu0 %v6225
    %10758 = vmatpush.bf16.msra.mxu0 %v6217
    %10759 = vmatpush.bf16.msra.mxu0 %v6209
    %10760 = vmatpush.bf16.msra.mxu0 %v6201
    %10761 = vmatpush.bf16.msra.mxu0 %v6193
    %10762 = vmatmul.bf16.gmra.mxu0 %v10630
    %v10763 = vpop.f32.mrf.mxu0
    %v10764 = vadd.f32 %v10751, %v10763
    %v10765 = vpop.f32.mrf.mxu0
    %10766 = vdwg.mxu0
    %10767 = vmatpush.bf16.msra.mxu0 %v6313
    %10768 = vmatpush.bf16.msra.mxu0 %v6305
    %10769 = vmatpush.bf16.msra.mxu0 %v6297
    %10770 = vmatpush.bf16.msra.mxu0 %v6289
    %10771 = vmatpush.bf16.msra.mxu0 %v6281
    %10772 = vmatpush.bf16.msra.mxu0 %v6273
    %10773 = vmatpush.bf16.msra.mxu0 %v6265
    %10774 = vmatpush.bf16.msra.mxu0 %v6257
    %10775 = vmatmul.bf16.gmra.mxu0 %v10631
    %v10776 = vpop.f32.mrf.mxu0
    %v10777 = vadd.f32 %v10764, %v10776
    %v10778 = vpop.f32.mrf.mxu0
    %10779 = vdwg.mxu0
    %10780 = vmatpush.bf16.msra.mxu0 %v6377
    %10781 = vmatpush.bf16.msra.mxu0 %v6369
    %10782 = vmatpush.bf16.msra.mxu0 %v6361
    %10783 = vmatpush.bf16.msra.mxu0 %v6353
    %10784 = vmatpush.bf16.msra.mxu0 %v6345
    %10785 = vmatpush.bf16.msra.mxu0 %v6337
    %10786 = vmatpush.bf16.msra.mxu0 %v6329
    %10787 = vmatpush.bf16.msra.mxu0 %v6321
    %10788 = vmatmul.bf16.gmra.mxu0 %v10632
    %v10789 = vpop.f32.mrf.mxu0
    %v10790 = vadd.f32 %v10777, %v10789
    %v10791 = vpop.f32.mrf.mxu0
    %10792 = vdwg.mxu0
    %10793 = vmatpush.bf16.msra.mxu0 %v6441
    %10794 = vmatpush.bf16.msra.mxu0 %v6433
    %10795 = vmatpush.bf16.msra.mxu0 %v6425
    %10796 = vmatpush.bf16.msra.mxu0 %v6417
    %10797 = vmatpush.bf16.msra.mxu0 %v6409
    %10798 = vmatpush.bf16.msra.mxu0 %v6401
    %10799 = vmatpush.bf16.msra.mxu0 %v6393
    %10800 = vmatpush.bf16.msra.mxu0 %v6385
    %10801 = vmatmul.bf16.gmra.mxu0 %v10633
    %v10802 = vpop.f32.mrf.mxu0
    %v10803 = vadd.f32 %v10790, %v10802
    %v10804 = vpop.f32.mrf.mxu0
    %10805 = vdwg.mxu0
    %10806 = vmatpush.bf16.msra.mxu0 %v6505
    %10807 = vmatpush.bf16.msra.mxu0 %v6497
    %10808 = vmatpush.bf16.msra.mxu0 %v6489
    %10809 = vmatpush.bf16.msra.mxu0 %v6481
    %10810 = vmatpush.bf16.msra.mxu0 %v6473
    %10811 = vmatpush.bf16.msra.mxu0 %v6465
    %10812 = vmatpush.bf16.msra.mxu0 %v6457
    %10813 = vmatpush.bf16.msra.mxu0 %v6449
    %10814 = vmatmul.bf16.gmra.mxu0 %v10634
    %v10815 = vpop.f32.mrf.mxu0
    %v10816 = vadd.f32 %v10803, %v10815
    %v10817 = vpop.f32.mrf.mxu0
    %10818 = vdwg.mxu0
    %10819 = vmatpush.bf16.msra.mxu0 %v6569
    %10820 = vmatpush.bf16.msra.mxu0 %v6561
    %10821 = vmatpush.bf16.msra.mxu0 %v6553
    %10822 = vmatpush.bf16.msra.mxu0 %v6545
    %10823 = vmatpush.bf16.msra.mxu0 %v6537
    %10824 = vmatpush.bf16.msra.mxu0 %v6529
    %10825 = vmatpush.bf16.msra.mxu0 %v6521
    %10826 = vmatpush.bf16.msra.mxu0 %v6513
    %10827 = vmatmul.bf16.gmra.mxu0 %v10635
    %v10828 = vpop.f32.mrf.mxu0
    %v10829 = vadd.f32 %v10816, %v10828
    %v10830 = vpop.f32.mrf.mxu0
    %10831 = vdwg.mxu0
    %10832 = vmatpush.bf16.msra.mxu0 %v6633
    %10833 = vmatpush.bf16.msra.mxu0 %v6625
    %10834 = vmatpush.bf16.msra.mxu0 %v6617
    %10835 = vmatpush.bf16.msra.mxu0 %v6609
    %10836 = vmatpush.bf16.msra.mxu0 %v6601
    %10837 = vmatpush.bf16.msra.mxu0 %v6593
    %10838 = vmatpush.bf16.msra.mxu0 %v6585
    %10839 = vmatpush.bf16.msra.mxu0 %v6577
    %10840 = vmatmul.bf16.gmra.mxu0 %v10636
    %v10841 = vpop.f32.mrf.mxu0
    %v10842 = vadd.f32 %v10829, %v10841
    %v10843 = vpop.f32.mrf.mxu0
    %10844 = vdwg.mxu0
    %10845 = vmatpush.bf16.msra.mxu0 %v6186
    %10846 = vmatpush.bf16.msra.mxu0 %v6178
    %10847 = vmatpush.bf16.msra.mxu0 %v6170
    %10848 = vmatpush.bf16.msra.mxu0 %v6162
    %10849 = vmatpush.bf16.msra.mxu0 %v6154
    %10850 = vmatpush.bf16.msra.mxu0 %v6146
    %10851 = vmatpush.bf16.msra.mxu0 %v6138
    %10852 = vmatpush.bf16.msra.mxu0 %v6130
    %10853 = vmatmul.bf16.gmra.mxu0 %v10629
    %v10854 = vpop.f32.mrf.mxu0
    %v10855 = vadd.f32 %v1139, %v10854
    %v10856 = vpop.f32.mrf.mxu0
    %10857 = vdwg.mxu0
    %10858 = vmatpush.bf16.msra.mxu0 %v6250
    %10859 = vmatpush.bf16.msra.mxu0 %v6242
    %10860 = vmatpush.bf16.msra.mxu0 %v6234
    %10861 = vmatpush.bf16.msra.mxu0 %v6226
    %10862 = vmatpush.bf16.msra.mxu0 %v6218
    %10863 = vmatpush.bf16.msra.mxu0 %v6210
    %10864 = vmatpush.bf16.msra.mxu0 %v6202
    %10865 = vmatpush.bf16.msra.mxu0 %v6194
    %10866 = vmatmul.bf16.gmra.mxu0 %v10630
    %v10867 = vpop.f32.mrf.mxu0
    %v10868 = vadd.f32 %v10855, %v10867
    %v10869 = vpop.f32.mrf.mxu0
    %10870 = vdwg.mxu0
    %10871 = vmatpush.bf16.msra.mxu0 %v6314
    %10872 = vmatpush.bf16.msra.mxu0 %v6306
    %10873 = vmatpush.bf16.msra.mxu0 %v6298
    %10874 = vmatpush.bf16.msra.mxu0 %v6290
    %10875 = vmatpush.bf16.msra.mxu0 %v6282
    %10876 = vmatpush.bf16.msra.mxu0 %v6274
    %10877 = vmatpush.bf16.msra.mxu0 %v6266
    %10878 = vmatpush.bf16.msra.mxu0 %v6258
    %10879 = vmatmul.bf16.gmra.mxu0 %v10631
    %v10880 = vpop.f32.mrf.mxu0
    %v10881 = vadd.f32 %v10868, %v10880
    %v10882 = vpop.f32.mrf.mxu0
    %10883 = vdwg.mxu0
    %10884 = vmatpush.bf16.msra.mxu0 %v6378
    %10885 = vmatpush.bf16.msra.mxu0 %v6370
    %10886 = vmatpush.bf16.msra.mxu0 %v6362
    %10887 = vmatpush.bf16.msra.mxu0 %v6354
    %10888 = vmatpush.bf16.msra.mxu0 %v6346
    %10889 = vmatpush.bf16.msra.mxu0 %v6338
    %10890 = vmatpush.bf16.msra.mxu0 %v6330
    %10891 = vmatpush.bf16.msra.mxu0 %v6322
    %10892 = vmatmul.bf16.gmra.mxu0 %v10632
    %v10893 = vpop.f32.mrf.mxu0
    %v10894 = vadd.f32 %v10881, %v10893
    %v10895 = vpop.f32.mrf.mxu0
    %10896 = vdwg.mxu0
    %10897 = vmatpush.bf16.msra.mxu0 %v6442
    %10898 = vmatpush.bf16.msra.mxu0 %v6434
    %10899 = vmatpush.bf16.msra.mxu0 %v6426
    %10900 = vmatpush.bf16.msra.mxu0 %v6418
    %10901 = vmatpush.bf16.msra.mxu0 %v6410
    %10902 = vmatpush.bf16.msra.mxu0 %v6402
    %10903 = vmatpush.bf16.msra.mxu0 %v6394
    %10904 = vmatpush.bf16.msra.mxu0 %v6386
    %10905 = vmatmul.bf16.gmra.mxu0 %v10633
    %v10906 = vpop.f32.mrf.mxu0
    %v10907 = vadd.f32 %v10894, %v10906
    %v10908 = vpop.f32.mrf.mxu0
    %10909 = vdwg.mxu0
    %10910 = vmatpush.bf16.msra.mxu0 %v6506
    %10911 = vmatpush.bf16.msra.mxu0 %v6498
    %10912 = vmatpush.bf16.msra.mxu0 %v6490
    %10913 = vmatpush.bf16.msra.mxu0 %v6482
    %10914 = vmatpush.bf16.msra.mxu0 %v6474
    %10915 = vmatpush.bf16.msra.mxu0 %v6466
    %10916 = vmatpush.bf16.msra.mxu0 %v6458
    %10917 = vmatpush.bf16.msra.mxu0 %v6450
    %10918 = vmatmul.bf16.gmra.mxu0 %v10634
    %v10919 = vpop.f32.mrf.mxu0
    %v10920 = vadd.f32 %v10907, %v10919
    %v10921 = vpop.f32.mrf.mxu0
    %10922 = vdwg.mxu0
    %10923 = vmatpush.bf16.msra.mxu0 %v6570
    %10924 = vmatpush.bf16.msra.mxu0 %v6562
    %10925 = vmatpush.bf16.msra.mxu0 %v6554
    %10926 = vmatpush.bf16.msra.mxu0 %v6546
    %10927 = vmatpush.bf16.msra.mxu0 %v6538
    %10928 = vmatpush.bf16.msra.mxu0 %v6530
    %10929 = vmatpush.bf16.msra.mxu0 %v6522
    %10930 = vmatpush.bf16.msra.mxu0 %v6514
    %10931 = vmatmul.bf16.gmra.mxu0 %v10635
    %v10932 = vpop.f32.mrf.mxu0
    %v10933 = vadd.f32 %v10920, %v10932
    %v10934 = vpop.f32.mrf.mxu0
    %10935 = vdwg.mxu0
    %10936 = vmatpush.bf16.msra.mxu0 %v6634
    %10937 = vmatpush.bf16.msra.mxu0 %v6626
    %10938 = vmatpush.bf16.msra.mxu0 %v6618
    %10939 = vmatpush.bf16.msra.mxu0 %v6610
    %10940 = vmatpush.bf16.msra.mxu0 %v6602
    %10941 = vmatpush.bf16.msra.mxu0 %v6594
    %10942 = vmatpush.bf16.msra.mxu0 %v6586
    %10943 = vmatpush.bf16.msra.mxu0 %v6578
    %10944 = vmatmul.bf16.gmra.mxu0 %v10636
    %v10945 = vpop.f32.mrf.mxu0
    %v10946 = vadd.f32 %v10933, %v10945
    %v10947 = vpop.f32.mrf.mxu0
    %10948 = vdwg.mxu0
    %10949 = vmatpush.bf16.msra.mxu0 %v6187
    %10950 = vmatpush.bf16.msra.mxu0 %v6179
    %10951 = vmatpush.bf16.msra.mxu0 %v6171
    %10952 = vmatpush.bf16.msra.mxu0 %v6163
    %10953 = vmatpush.bf16.msra.mxu0 %v6155
    %10954 = vmatpush.bf16.msra.mxu0 %v6147
    %10955 = vmatpush.bf16.msra.mxu0 %v6139
    %10956 = vmatpush.bf16.msra.mxu0 %v6131
    %10957 = vmatmul.bf16.gmra.mxu0 %v10629
    %v10958 = vpop.f32.mrf.mxu0
    %v10959 = vadd.f32 %v1140, %v10958
    %v10960 = vpop.f32.mrf.mxu0
    %10961 = vdwg.mxu0
    %10962 = vmatpush.bf16.msra.mxu0 %v6251
    %10963 = vmatpush.bf16.msra.mxu0 %v6243
    %10964 = vmatpush.bf16.msra.mxu0 %v6235
    %10965 = vmatpush.bf16.msra.mxu0 %v6227
    %10966 = vmatpush.bf16.msra.mxu0 %v6219
    %10967 = vmatpush.bf16.msra.mxu0 %v6211
    %10968 = vmatpush.bf16.msra.mxu0 %v6203
    %10969 = vmatpush.bf16.msra.mxu0 %v6195
    %10970 = vmatmul.bf16.gmra.mxu0 %v10630
    %v10971 = vpop.f32.mrf.mxu0
    %v10972 = vadd.f32 %v10959, %v10971
    %v10973 = vpop.f32.mrf.mxu0
    %10974 = vdwg.mxu0
    %10975 = vmatpush.bf16.msra.mxu0 %v6315
    %10976 = vmatpush.bf16.msra.mxu0 %v6307
    %10977 = vmatpush.bf16.msra.mxu0 %v6299
    %10978 = vmatpush.bf16.msra.mxu0 %v6291
    %10979 = vmatpush.bf16.msra.mxu0 %v6283
    %10980 = vmatpush.bf16.msra.mxu0 %v6275
    %10981 = vmatpush.bf16.msra.mxu0 %v6267
    %10982 = vmatpush.bf16.msra.mxu0 %v6259
    %10983 = vmatmul.bf16.gmra.mxu0 %v10631
    %v10984 = vpop.f32.mrf.mxu0
    %v10985 = vadd.f32 %v10972, %v10984
    %v10986 = vpop.f32.mrf.mxu0
    %10987 = vdwg.mxu0
    %10988 = vmatpush.bf16.msra.mxu0 %v6379
    %10989 = vmatpush.bf16.msra.mxu0 %v6371
    %10990 = vmatpush.bf16.msra.mxu0 %v6363
    %10991 = vmatpush.bf16.msra.mxu0 %v6355
    %10992 = vmatpush.bf16.msra.mxu0 %v6347
    %10993 = vmatpush.bf16.msra.mxu0 %v6339
    %10994 = vmatpush.bf16.msra.mxu0 %v6331
    %10995 = vmatpush.bf16.msra.mxu0 %v6323
    %10996 = vmatmul.bf16.gmra.mxu0 %v10632
    %v10997 = vpop.f32.mrf.mxu0
    %v10998 = vadd.f32 %v10985, %v10997
    %v10999 = vpop.f32.mrf.mxu0
    %11000 = vdwg.mxu0
    %11001 = vmatpush.bf16.msra.mxu0 %v6443
    %11002 = vmatpush.bf16.msra.mxu0 %v6435
    %11003 = vmatpush.bf16.msra.mxu0 %v6427
    %11004 = vmatpush.bf16.msra.mxu0 %v6419
    %11005 = vmatpush.bf16.msra.mxu0 %v6411
    %11006 = vmatpush.bf16.msra.mxu0 %v6403
    %11007 = vmatpush.bf16.msra.mxu0 %v6395
    %11008 = vmatpush.bf16.msra.mxu0 %v6387
    %11009 = vmatmul.bf16.gmra.mxu0 %v10633
    %v11010 = vpop.f32.mrf.mxu0
    %v11011 = vadd.f32 %v10998, %v11010
    %v11012 = vpop.f32.mrf.mxu0
    %11013 = vdwg.mxu0
    %11014 = vmatpush.bf16.msra.mxu0 %v6507
    %11015 = vmatpush.bf16.msra.mxu0 %v6499
    %11016 = vmatpush.bf16.msra.mxu0 %v6491
    %11017 = vmatpush.bf16.msra.mxu0 %v6483
    %11018 = vmatpush.bf16.msra.mxu0 %v6475
    %11019 = vmatpush.bf16.msra.mxu0 %v6467
    %11020 = vmatpush.bf16.msra.mxu0 %v6459
    %11021 = vmatpush.bf16.msra.mxu0 %v6451
    %11022 = vmatmul.bf16.gmra.mxu0 %v10634
    %v11023 = vpop.f32.mrf.mxu0
    %v11024 = vadd.f32 %v11011, %v11023
    %v11025 = vpop.f32.mrf.mxu0
    %11026 = vdwg.mxu0
    %11027 = vmatpush.bf16.msra.mxu0 %v6571
    %11028 = vmatpush.bf16.msra.mxu0 %v6563
    %11029 = vmatpush.bf16.msra.mxu0 %v6555
    %11030 = vmatpush.bf16.msra.mxu0 %v6547
    %11031 = vmatpush.bf16.msra.mxu0 %v6539
    %11032 = vmatpush.bf16.msra.mxu0 %v6531
    %11033 = vmatpush.bf16.msra.mxu0 %v6523
    %11034 = vmatpush.bf16.msra.mxu0 %v6515
    %11035 = vmatmul.bf16.gmra.mxu0 %v10635
    %v11036 = vpop.f32.mrf.mxu0
    %v11037 = vadd.f32 %v11024, %v11036
    %v11038 = vpop.f32.mrf.mxu0
    %11039 = vdwg.mxu0
    %11040 = vmatpush.bf16.msra.mxu0 %v6635
    %11041 = vmatpush.bf16.msra.mxu0 %v6627
    %11042 = vmatpush.bf16.msra.mxu0 %v6619
    %11043 = vmatpush.bf16.msra.mxu0 %v6611
    %11044 = vmatpush.bf16.msra.mxu0 %v6603
    %11045 = vmatpush.bf16.msra.mxu0 %v6595
    %11046 = vmatpush.bf16.msra.mxu0 %v6587
    %11047 = vmatpush.bf16.msra.mxu0 %v6579
    %11048 = vmatmul.bf16.gmra.mxu0 %v10636
    %v11049 = vpop.f32.mrf.mxu0
    %v11050 = vadd.f32 %v11037, %v11049
    %v11051 = vpop.f32.mrf.mxu0
    %11052 = vdwg.mxu0
    %11053 = vmatpush.bf16.msra.mxu0 %v6188
    %11054 = vmatpush.bf16.msra.mxu0 %v6180
    %11055 = vmatpush.bf16.msra.mxu0 %v6172
    %11056 = vmatpush.bf16.msra.mxu0 %v6164
    %11057 = vmatpush.bf16.msra.mxu0 %v6156
    %11058 = vmatpush.bf16.msra.mxu0 %v6148
    %11059 = vmatpush.bf16.msra.mxu0 %v6140
    %11060 = vmatpush.bf16.msra.mxu0 %v6132
    %11061 = vmatmul.bf16.gmra.mxu0 %v10629
    %v11062 = vpop.f32.mrf.mxu0
    %v11063 = vadd.f32 %v1141, %v11062
    %v11064 = vpop.f32.mrf.mxu0
    %11065 = vdwg.mxu0
    %11066 = vmatpush.bf16.msra.mxu0 %v6252
    %11067 = vmatpush.bf16.msra.mxu0 %v6244
    %11068 = vmatpush.bf16.msra.mxu0 %v6236
    %11069 = vmatpush.bf16.msra.mxu0 %v6228
    %11070 = vmatpush.bf16.msra.mxu0 %v6220
    %11071 = vmatpush.bf16.msra.mxu0 %v6212
    %11072 = vmatpush.bf16.msra.mxu0 %v6204
    %11073 = vmatpush.bf16.msra.mxu0 %v6196
    %11074 = vmatmul.bf16.gmra.mxu0 %v10630
    %v11075 = vpop.f32.mrf.mxu0
    %v11076 = vadd.f32 %v11063, %v11075
    %v11077 = vpop.f32.mrf.mxu0
    %11078 = vdwg.mxu0
    %11079 = vmatpush.bf16.msra.mxu0 %v6316
    %11080 = vmatpush.bf16.msra.mxu0 %v6308
    %11081 = vmatpush.bf16.msra.mxu0 %v6300
    %11082 = vmatpush.bf16.msra.mxu0 %v6292
    %11083 = vmatpush.bf16.msra.mxu0 %v6284
    %11084 = vmatpush.bf16.msra.mxu0 %v6276
    %11085 = vmatpush.bf16.msra.mxu0 %v6268
    %11086 = vmatpush.bf16.msra.mxu0 %v6260
    %11087 = vmatmul.bf16.gmra.mxu0 %v10631
    %v11088 = vpop.f32.mrf.mxu0
    %v11089 = vadd.f32 %v11076, %v11088
    %v11090 = vpop.f32.mrf.mxu0
    %11091 = vdwg.mxu0
    %11092 = vmatpush.bf16.msra.mxu0 %v6380
    %11093 = vmatpush.bf16.msra.mxu0 %v6372
    %11094 = vmatpush.bf16.msra.mxu0 %v6364
    %11095 = vmatpush.bf16.msra.mxu0 %v6356
    %11096 = vmatpush.bf16.msra.mxu0 %v6348
    %11097 = vmatpush.bf16.msra.mxu0 %v6340
    %11098 = vmatpush.bf16.msra.mxu0 %v6332
    %11099 = vmatpush.bf16.msra.mxu0 %v6324
    %11100 = vmatmul.bf16.gmra.mxu0 %v10632
    %v11101 = vpop.f32.mrf.mxu0
    %v11102 = vadd.f32 %v11089, %v11101
    %v11103 = vpop.f32.mrf.mxu0
    %11104 = vdwg.mxu0
    %11105 = vmatpush.bf16.msra.mxu0 %v6444
    %11106 = vmatpush.bf16.msra.mxu0 %v6436
    %11107 = vmatpush.bf16.msra.mxu0 %v6428
    %11108 = vmatpush.bf16.msra.mxu0 %v6420
    %11109 = vmatpush.bf16.msra.mxu0 %v6412
    %11110 = vmatpush.bf16.msra.mxu0 %v6404
    %11111 = vmatpush.bf16.msra.mxu0 %v6396
    %11112 = vmatpush.bf16.msra.mxu0 %v6388
    %11113 = vmatmul.bf16.gmra.mxu0 %v10633
    %v11114 = vpop.f32.mrf.mxu0
    %v11115 = vadd.f32 %v11102, %v11114
    %v11116 = vpop.f32.mrf.mxu0
    %11117 = vdwg.mxu0
    %11118 = vmatpush.bf16.msra.mxu0 %v6508
    %11119 = vmatpush.bf16.msra.mxu0 %v6500
    %11120 = vmatpush.bf16.msra.mxu0 %v6492
    %11121 = vmatpush.bf16.msra.mxu0 %v6484
    %11122 = vmatpush.bf16.msra.mxu0 %v6476
    %11123 = vmatpush.bf16.msra.mxu0 %v6468
    %11124 = vmatpush.bf16.msra.mxu0 %v6460
    %11125 = vmatpush.bf16.msra.mxu0 %v6452
    %11126 = vmatmul.bf16.gmra.mxu0 %v10634
    %v11127 = vpop.f32.mrf.mxu0
    %v11128 = vadd.f32 %v11115, %v11127
    %v11129 = vpop.f32.mrf.mxu0
    %11130 = vdwg.mxu0
    %11131 = vmatpush.bf16.msra.mxu0 %v6572
    %11132 = vmatpush.bf16.msra.mxu0 %v6564
    %11133 = vmatpush.bf16.msra.mxu0 %v6556
    %11134 = vmatpush.bf16.msra.mxu0 %v6548
    %11135 = vmatpush.bf16.msra.mxu0 %v6540
    %11136 = vmatpush.bf16.msra.mxu0 %v6532
    %11137 = vmatpush.bf16.msra.mxu0 %v6524
    %11138 = vmatpush.bf16.msra.mxu0 %v6516
    %11139 = vmatmul.bf16.gmra.mxu0 %v10635
    %v11140 = vpop.f32.mrf.mxu0
    %v11141 = vadd.f32 %v11128, %v11140
    %v11142 = vpop.f32.mrf.mxu0
    %11143 = vdwg.mxu0
    %11144 = vmatpush.bf16.msra.mxu0 %v6636
    %11145 = vmatpush.bf16.msra.mxu0 %v6628
    %11146 = vmatpush.bf16.msra.mxu0 %v6620
    %11147 = vmatpush.bf16.msra.mxu0 %v6612
    %11148 = vmatpush.bf16.msra.mxu0 %v6604
    %11149 = vmatpush.bf16.msra.mxu0 %v6596
    %11150 = vmatpush.bf16.msra.mxu0 %v6588
    %11151 = vmatpush.bf16.msra.mxu0 %v6580
    %11152 = vmatmul.bf16.gmra.mxu0 %v10636
    %v11153 = vpop.f32.mrf.mxu0
    %v11154 = vadd.f32 %v11141, %v11153
    %v11155 = vpop.f32.mrf.mxu0
    %11156 = vdwg.mxu0
    %11157 = vmatpush.bf16.msra.mxu0 %v6189
    %11158 = vmatpush.bf16.msra.mxu0 %v6181
    %11159 = vmatpush.bf16.msra.mxu0 %v6173
    %11160 = vmatpush.bf16.msra.mxu0 %v6165
    %11161 = vmatpush.bf16.msra.mxu0 %v6157
    %11162 = vmatpush.bf16.msra.mxu0 %v6149
    %11163 = vmatpush.bf16.msra.mxu0 %v6141
    %11164 = vmatpush.bf16.msra.mxu0 %v6133
    %11165 = vmatmul.bf16.gmra.mxu0 %v10629
    %v11166 = vpop.f32.mrf.mxu0
    %v11167 = vadd.f32 %v1142, %v11166
    %v11168 = vpop.f32.mrf.mxu0
    %11169 = vdwg.mxu0
    %11170 = vmatpush.bf16.msra.mxu0 %v6253
    %11171 = vmatpush.bf16.msra.mxu0 %v6245
    %11172 = vmatpush.bf16.msra.mxu0 %v6237
    %11173 = vmatpush.bf16.msra.mxu0 %v6229
    %11174 = vmatpush.bf16.msra.mxu0 %v6221
    %11175 = vmatpush.bf16.msra.mxu0 %v6213
    %11176 = vmatpush.bf16.msra.mxu0 %v6205
    %11177 = vmatpush.bf16.msra.mxu0 %v6197
    %11178 = vmatmul.bf16.gmra.mxu0 %v10630
    %v11179 = vpop.f32.mrf.mxu0
    %v11180 = vadd.f32 %v11167, %v11179
    %v11181 = vpop.f32.mrf.mxu0
    %11182 = vdwg.mxu0
    %11183 = vmatpush.bf16.msra.mxu0 %v6317
    %11184 = vmatpush.bf16.msra.mxu0 %v6309
    %11185 = vmatpush.bf16.msra.mxu0 %v6301
    %11186 = vmatpush.bf16.msra.mxu0 %v6293
    %11187 = vmatpush.bf16.msra.mxu0 %v6285
    %11188 = vmatpush.bf16.msra.mxu0 %v6277
    %11189 = vmatpush.bf16.msra.mxu0 %v6269
    %11190 = vmatpush.bf16.msra.mxu0 %v6261
    %11191 = vmatmul.bf16.gmra.mxu0 %v10631
    %v11192 = vpop.f32.mrf.mxu0
    %v11193 = vadd.f32 %v11180, %v11192
    %v11194 = vpop.f32.mrf.mxu0
    %11195 = vdwg.mxu0
    %11196 = vmatpush.bf16.msra.mxu0 %v6381
    %11197 = vmatpush.bf16.msra.mxu0 %v6373
    %11198 = vmatpush.bf16.msra.mxu0 %v6365
    %11199 = vmatpush.bf16.msra.mxu0 %v6357
    %11200 = vmatpush.bf16.msra.mxu0 %v6349
    %11201 = vmatpush.bf16.msra.mxu0 %v6341
    %11202 = vmatpush.bf16.msra.mxu0 %v6333
    %11203 = vmatpush.bf16.msra.mxu0 %v6325
    %11204 = vmatmul.bf16.gmra.mxu0 %v10632
    %v11205 = vpop.f32.mrf.mxu0
    %v11206 = vadd.f32 %v11193, %v11205
    %v11207 = vpop.f32.mrf.mxu0
    %11208 = vdwg.mxu0
    %11209 = vmatpush.bf16.msra.mxu0 %v6445
    %11210 = vmatpush.bf16.msra.mxu0 %v6437
    %11211 = vmatpush.bf16.msra.mxu0 %v6429
    %11212 = vmatpush.bf16.msra.mxu0 %v6421
    %11213 = vmatpush.bf16.msra.mxu0 %v6413
    %11214 = vmatpush.bf16.msra.mxu0 %v6405
    %11215 = vmatpush.bf16.msra.mxu0 %v6397
    %11216 = vmatpush.bf16.msra.mxu0 %v6389
    %11217 = vmatmul.bf16.gmra.mxu0 %v10633
    %v11218 = vpop.f32.mrf.mxu0
    %v11219 = vadd.f32 %v11206, %v11218
    %v11220 = vpop.f32.mrf.mxu0
    %11221 = vdwg.mxu0
    %11222 = vmatpush.bf16.msra.mxu0 %v6509
    %11223 = vmatpush.bf16.msra.mxu0 %v6501
    %11224 = vmatpush.bf16.msra.mxu0 %v6493
    %11225 = vmatpush.bf16.msra.mxu0 %v6485
    %11226 = vmatpush.bf16.msra.mxu0 %v6477
    %11227 = vmatpush.bf16.msra.mxu0 %v6469
    %11228 = vmatpush.bf16.msra.mxu0 %v6461
    %11229 = vmatpush.bf16.msra.mxu0 %v6453
    %11230 = vmatmul.bf16.gmra.mxu0 %v10634
    %v11231 = vpop.f32.mrf.mxu0
    %v11232 = vadd.f32 %v11219, %v11231
    %v11233 = vpop.f32.mrf.mxu0
    %11234 = vdwg.mxu0
    %11235 = vmatpush.bf16.msra.mxu0 %v6573
    %11236 = vmatpush.bf16.msra.mxu0 %v6565
    %11237 = vmatpush.bf16.msra.mxu0 %v6557
    %11238 = vmatpush.bf16.msra.mxu0 %v6549
    %11239 = vmatpush.bf16.msra.mxu0 %v6541
    %11240 = vmatpush.bf16.msra.mxu0 %v6533
    %11241 = vmatpush.bf16.msra.mxu0 %v6525
    %11242 = vmatpush.bf16.msra.mxu0 %v6517
    %11243 = vmatmul.bf16.gmra.mxu0 %v10635
    %v11244 = vpop.f32.mrf.mxu0
    %v11245 = vadd.f32 %v11232, %v11244
    %v11246 = vpop.f32.mrf.mxu0
    %11247 = vdwg.mxu0
    %11248 = vmatpush.bf16.msra.mxu0 %v6637
    %11249 = vmatpush.bf16.msra.mxu0 %v6629
    %11250 = vmatpush.bf16.msra.mxu0 %v6621
    %11251 = vmatpush.bf16.msra.mxu0 %v6613
    %11252 = vmatpush.bf16.msra.mxu0 %v6605
    %11253 = vmatpush.bf16.msra.mxu0 %v6597
    %11254 = vmatpush.bf16.msra.mxu0 %v6589
    %11255 = vmatpush.bf16.msra.mxu0 %v6581
    %11256 = vmatmul.bf16.gmra.mxu0 %v10636
    %v11257 = vpop.f32.mrf.mxu0
    %v11258 = vadd.f32 %v11245, %v11257
    %v11259 = vpop.f32.mrf.mxu0
    %11260 = vdwg.mxu0
    %11261 = vmatpush.bf16.msra.mxu0 %v6190
    %11262 = vmatpush.bf16.msra.mxu0 %v6182
    %11263 = vmatpush.bf16.msra.mxu0 %v6174
    %11264 = vmatpush.bf16.msra.mxu0 %v6166
    %11265 = vmatpush.bf16.msra.mxu0 %v6158
    %11266 = vmatpush.bf16.msra.mxu0 %v6150
    %11267 = vmatpush.bf16.msra.mxu0 %v6142
    %11268 = vmatpush.bf16.msra.mxu0 %v6134
    %11269 = vmatmul.bf16.gmra.mxu0 %v10629
    %v11270 = vpop.f32.mrf.mxu0
    %v11271 = vadd.f32 %v1143, %v11270
    %v11272 = vpop.f32.mrf.mxu0
    %11273 = vdwg.mxu0
    %11274 = vmatpush.bf16.msra.mxu0 %v6254
    %11275 = vmatpush.bf16.msra.mxu0 %v6246
    %11276 = vmatpush.bf16.msra.mxu0 %v6238
    %11277 = vmatpush.bf16.msra.mxu0 %v6230
    %11278 = vmatpush.bf16.msra.mxu0 %v6222
    %11279 = vmatpush.bf16.msra.mxu0 %v6214
    %11280 = vmatpush.bf16.msra.mxu0 %v6206
    %11281 = vmatpush.bf16.msra.mxu0 %v6198
    %11282 = vmatmul.bf16.gmra.mxu0 %v10630
    %v11283 = vpop.f32.mrf.mxu0
    %v11284 = vadd.f32 %v11271, %v11283
    %v11285 = vpop.f32.mrf.mxu0
    %11286 = vdwg.mxu0
    %11287 = vmatpush.bf16.msra.mxu0 %v6318
    %11288 = vmatpush.bf16.msra.mxu0 %v6310
    %11289 = vmatpush.bf16.msra.mxu0 %v6302
    %11290 = vmatpush.bf16.msra.mxu0 %v6294
    %11291 = vmatpush.bf16.msra.mxu0 %v6286
    %11292 = vmatpush.bf16.msra.mxu0 %v6278
    %11293 = vmatpush.bf16.msra.mxu0 %v6270
    %11294 = vmatpush.bf16.msra.mxu0 %v6262
    %11295 = vmatmul.bf16.gmra.mxu0 %v10631
    %v11296 = vpop.f32.mrf.mxu0
    %v11297 = vadd.f32 %v11284, %v11296
    %v11298 = vpop.f32.mrf.mxu0
    %11299 = vdwg.mxu0
    %11300 = vmatpush.bf16.msra.mxu0 %v6382
    %11301 = vmatpush.bf16.msra.mxu0 %v6374
    %11302 = vmatpush.bf16.msra.mxu0 %v6366
    %11303 = vmatpush.bf16.msra.mxu0 %v6358
    %11304 = vmatpush.bf16.msra.mxu0 %v6350
    %11305 = vmatpush.bf16.msra.mxu0 %v6342
    %11306 = vmatpush.bf16.msra.mxu0 %v6334
    %11307 = vmatpush.bf16.msra.mxu0 %v6326
    %11308 = vmatmul.bf16.gmra.mxu0 %v10632
    %v11309 = vpop.f32.mrf.mxu0
    %v11310 = vadd.f32 %v11297, %v11309
    %v11311 = vpop.f32.mrf.mxu0
    %11312 = vdwg.mxu0
    %11313 = vmatpush.bf16.msra.mxu0 %v6446
    %11314 = vmatpush.bf16.msra.mxu0 %v6438
    %11315 = vmatpush.bf16.msra.mxu0 %v6430
    %11316 = vmatpush.bf16.msra.mxu0 %v6422
    %11317 = vmatpush.bf16.msra.mxu0 %v6414
    %11318 = vmatpush.bf16.msra.mxu0 %v6406
    %11319 = vmatpush.bf16.msra.mxu0 %v6398
    %11320 = vmatpush.bf16.msra.mxu0 %v6390
    %11321 = vmatmul.bf16.gmra.mxu0 %v10633
    %v11322 = vpop.f32.mrf.mxu0
    %v11323 = vadd.f32 %v11310, %v11322
    %v11324 = vpop.f32.mrf.mxu0
    %11325 = vdwg.mxu0
    %11326 = vmatpush.bf16.msra.mxu0 %v6510
    %11327 = vmatpush.bf16.msra.mxu0 %v6502
    %11328 = vmatpush.bf16.msra.mxu0 %v6494
    %11329 = vmatpush.bf16.msra.mxu0 %v6486
    %11330 = vmatpush.bf16.msra.mxu0 %v6478
    %11331 = vmatpush.bf16.msra.mxu0 %v6470
    %11332 = vmatpush.bf16.msra.mxu0 %v6462
    %11333 = vmatpush.bf16.msra.mxu0 %v6454
    %11334 = vmatmul.bf16.gmra.mxu0 %v10634
    %v11335 = vpop.f32.mrf.mxu0
    %v11336 = vadd.f32 %v11323, %v11335
    %v11337 = vpop.f32.mrf.mxu0
    %11338 = vdwg.mxu0
    %11339 = vmatpush.bf16.msra.mxu0 %v6574
    %11340 = vmatpush.bf16.msra.mxu0 %v6566
    %11341 = vmatpush.bf16.msra.mxu0 %v6558
    %11342 = vmatpush.bf16.msra.mxu0 %v6550
    %11343 = vmatpush.bf16.msra.mxu0 %v6542
    %11344 = vmatpush.bf16.msra.mxu0 %v6534
    %11345 = vmatpush.bf16.msra.mxu0 %v6526
    %11346 = vmatpush.bf16.msra.mxu0 %v6518
    %11347 = vmatmul.bf16.gmra.mxu0 %v10635
    %v11348 = vpop.f32.mrf.mxu0
    %v11349 = vadd.f32 %v11336, %v11348
    %v11350 = vpop.f32.mrf.mxu0
    %11351 = vdwg.mxu0
    %11352 = vmatpush.bf16.msra.mxu0 %v6638
    %11353 = vmatpush.bf16.msra.mxu0 %v6630
    %11354 = vmatpush.bf16.msra.mxu0 %v6622
    %11355 = vmatpush.bf16.msra.mxu0 %v6614
    %11356 = vmatpush.bf16.msra.mxu0 %v6606
    %11357 = vmatpush.bf16.msra.mxu0 %v6598
    %11358 = vmatpush.bf16.msra.mxu0 %v6590
    %11359 = vmatpush.bf16.msra.mxu0 %v6582
    %11360 = vmatmul.bf16.gmra.mxu0 %v10636
    %v11361 = vpop.f32.mrf.mxu0
    %v11362 = vadd.f32 %v11349, %v11361
    %v11363 = vpop.f32.mrf.mxu0
    %11364 = vdwg.mxu0
    %11365 = vmatpush.bf16.msra.mxu0 %v6191
    %11366 = vmatpush.bf16.msra.mxu0 %v6183
    %11367 = vmatpush.bf16.msra.mxu0 %v6175
    %11368 = vmatpush.bf16.msra.mxu0 %v6167
    %11369 = vmatpush.bf16.msra.mxu0 %v6159
    %11370 = vmatpush.bf16.msra.mxu0 %v6151
    %11371 = vmatpush.bf16.msra.mxu0 %v6143
    %11372 = vmatpush.bf16.msra.mxu0 %v6135
    %11373 = vmatmul.bf16.gmra.mxu0 %v10629
    %v11374 = vpop.f32.mrf.mxu0
    %v11375 = vadd.f32 %v1144, %v11374
    %v11376 = vpop.f32.mrf.mxu0
    %11377 = vdwg.mxu0
    %11378 = vmatpush.bf16.msra.mxu0 %v6255
    %11379 = vmatpush.bf16.msra.mxu0 %v6247
    %11380 = vmatpush.bf16.msra.mxu0 %v6239
    %11381 = vmatpush.bf16.msra.mxu0 %v6231
    %11382 = vmatpush.bf16.msra.mxu0 %v6223
    %11383 = vmatpush.bf16.msra.mxu0 %v6215
    %11384 = vmatpush.bf16.msra.mxu0 %v6207
    %11385 = vmatpush.bf16.msra.mxu0 %v6199
    %11386 = vmatmul.bf16.gmra.mxu0 %v10630
    %v11387 = vpop.f32.mrf.mxu0
    %v11388 = vadd.f32 %v11375, %v11387
    %v11389 = vpop.f32.mrf.mxu0
    %11390 = vdwg.mxu0
    %11391 = vmatpush.bf16.msra.mxu0 %v6319
    %11392 = vmatpush.bf16.msra.mxu0 %v6311
    %11393 = vmatpush.bf16.msra.mxu0 %v6303
    %11394 = vmatpush.bf16.msra.mxu0 %v6295
    %11395 = vmatpush.bf16.msra.mxu0 %v6287
    %11396 = vmatpush.bf16.msra.mxu0 %v6279
    %11397 = vmatpush.bf16.msra.mxu0 %v6271
    %11398 = vmatpush.bf16.msra.mxu0 %v6263
    %11399 = vmatmul.bf16.gmra.mxu0 %v10631
    %v11400 = vpop.f32.mrf.mxu0
    %v11401 = vadd.f32 %v11388, %v11400
    %v11402 = vpop.f32.mrf.mxu0
    %11403 = vdwg.mxu0
    %11404 = vmatpush.bf16.msra.mxu0 %v6383
    %11405 = vmatpush.bf16.msra.mxu0 %v6375
    %11406 = vmatpush.bf16.msra.mxu0 %v6367
    %11407 = vmatpush.bf16.msra.mxu0 %v6359
    %11408 = vmatpush.bf16.msra.mxu0 %v6351
    %11409 = vmatpush.bf16.msra.mxu0 %v6343
    %11410 = vmatpush.bf16.msra.mxu0 %v6335
    %11411 = vmatpush.bf16.msra.mxu0 %v6327
    %11412 = vmatmul.bf16.gmra.mxu0 %v10632
    %v11413 = vpop.f32.mrf.mxu0
    %v11414 = vadd.f32 %v11401, %v11413
    %v11415 = vpop.f32.mrf.mxu0
    %11416 = vdwg.mxu0
    %11417 = vmatpush.bf16.msra.mxu0 %v6447
    %11418 = vmatpush.bf16.msra.mxu0 %v6439
    %11419 = vmatpush.bf16.msra.mxu0 %v6431
    %11420 = vmatpush.bf16.msra.mxu0 %v6423
    %11421 = vmatpush.bf16.msra.mxu0 %v6415
    %11422 = vmatpush.bf16.msra.mxu0 %v6407
    %11423 = vmatpush.bf16.msra.mxu0 %v6399
    %11424 = vmatpush.bf16.msra.mxu0 %v6391
    %11425 = vmatmul.bf16.gmra.mxu0 %v10633
    %v11426 = vpop.f32.mrf.mxu0
    %v11427 = vadd.f32 %v11414, %v11426
    %v11428 = vpop.f32.mrf.mxu0
    %11429 = vdwg.mxu0
    %11430 = vmatpush.bf16.msra.mxu0 %v6511
    %11431 = vmatpush.bf16.msra.mxu0 %v6503
    %11432 = vmatpush.bf16.msra.mxu0 %v6495
    %11433 = vmatpush.bf16.msra.mxu0 %v6487
    %11434 = vmatpush.bf16.msra.mxu0 %v6479
    %11435 = vmatpush.bf16.msra.mxu0 %v6471
    %11436 = vmatpush.bf16.msra.mxu0 %v6463
    %11437 = vmatpush.bf16.msra.mxu0 %v6455
    %11438 = vmatmul.bf16.gmra.mxu0 %v10634
    %v11439 = vpop.f32.mrf.mxu0
    %v11440 = vadd.f32 %v11427, %v11439
    %v11441 = vpop.f32.mrf.mxu0
    %11442 = vdwg.mxu0
    %11443 = vmatpush.bf16.msra.mxu0 %v6575
    %11444 = vmatpush.bf16.msra.mxu0 %v6567
    %11445 = vmatpush.bf16.msra.mxu0 %v6559
    %11446 = vmatpush.bf16.msra.mxu0 %v6551
    %11447 = vmatpush.bf16.msra.mxu0 %v6543
    %11448 = vmatpush.bf16.msra.mxu0 %v6535
    %11449 = vmatpush.bf16.msra.mxu0 %v6527
    %11450 = vmatpush.bf16.msra.mxu0 %v6519
    %11451 = vmatmul.bf16.gmra.mxu0 %v10635
    %v11452 = vpop.f32.mrf.mxu0
    %v11453 = vadd.f32 %v11440, %v11452
    %v11454 = vpop.f32.mrf.mxu0
    %11455 = vdwg.mxu0
    %11456 = vmatpush.bf16.msra.mxu0 %v6639
    %11457 = vmatpush.bf16.msra.mxu0 %v6631
    %11458 = vmatpush.bf16.msra.mxu0 %v6623
    %11459 = vmatpush.bf16.msra.mxu0 %v6615
    %11460 = vmatpush.bf16.msra.mxu0 %v6607
    %11461 = vmatpush.bf16.msra.mxu0 %v6599
    %11462 = vmatpush.bf16.msra.mxu0 %v6591
    %11463 = vmatpush.bf16.msra.mxu0 %v6583
    %11464 = vmatmul.bf16.gmra.mxu0 %v10636
    %v11465 = vpop.f32.mrf.mxu0
    %v11466 = vadd.f32 %v11453, %v11465
    %v11467 = vpop.f32.mrf.mxu0
    %11468 = vdwg.mxu0
    %v11469 = vsub.f32 %v7253, %v8997
    %v11470 = vsub.f32 %v7357, %v9101
    %v11471 = vsub.f32 %v7461, %v9205
    %v11472 = vsub.f32 %v7565, %v9309
    %v11473 = vsub.f32 %v7669, %v9413
    %v11474 = vsub.f32 %v7773, %v9517
    %v11475 = vsub.f32 %v7877, %v9621
    %v11476 = vsub.f32 %v7981, %v9725
    %v11477 = vadd.f32 %v11469, %v10738
    %v11478 = vadd.f32 %v11470, %v10842
    %v11479 = vadd.f32 %v11471, %v10946
    %v11480 = vadd.f32 %v11472, %v11050
    %v11481 = vadd.f32 %v11473, %v11154
    %v11482 = vadd.f32 %v11474, %v11258
    %v11483 = vadd.f32 %v11475, %v11362
    %v11484 = vadd.f32 %v11476, %v11466
    %v11493 = vrot.slane %v11478, 6
    %v11494 = vrot.slane %v11479, 4
    %v11495 = vrot.slane %v11480, 2
    %v11496 = vrot.slane %v11482, 6
    %v11497 = vrot.slane %v11483, 4
    %v11498 = vrot.slane %v11484, 2
    %v11499 = vsel %vm8006, %v11477, %v11493
    %v11500 = vsel %vm8008, %v11494, %v11495
    %v11501 = vsel %vm8010, %v11499, %v11500
    %v11502 = vsel %vm8006, %v11481, %v11496
    %v11503 = vsel %vm8008, %v11497, %v11498
    %v11504 = vsel %vm8010, %v11502, %v11503
    %v11507 = vadd.f32 %v1153, %v11501
    %v11508 = vadd.f32 %v1154, %v11504
    %11511 = vst [vmem:[#allocation1] ss:$4 sm:$0xff] %v11507
    %s11512 = scalar_lea.vmem [#allocation1], 32
    %11513 = vst [vmem:[%s11512] ss:$4 sm:$0xff] %v11508
    %v11514 = vld.sshfl [vmem:[#allocation1] sm:$0xff pattern:$0x73625140]
    %v11515 = vld.sshfl [vmem:[#allocation1 + $0x8] sm:$0xff pattern:$0x73625140]
    %v11516 = vld.sshfl [vmem:[#allocation1 + $0x10] sm:$0xff pattern:$0x73625140]
    %v11517 = vld.sshfl [vmem:[#allocation1 + $0x18] sm:$0xff pattern:$0x73625140]
    %v11518 = vld.sshfl [vmem:[#allocation1 + $0x20] sm:$0xff pattern:$0x73625140]
    %v11519 = vld.sshfl [vmem:[#allocation1 + $0x28] sm:$0xff pattern:$0x73625140]
    %v11520 = vld.sshfl [vmem:[#allocation1 + $0x30] sm:$0xff pattern:$0x73625140]
    %v11521 = vld.sshfl [vmem:[#allocation1 + $0x38] sm:$0xff pattern:$0x73625140]
    %v11530 = vpack.c.bf16 %v11514, %v11514
    %v11531 = vpack.c.bf16 %v11515, %v11515
    %v11532 = vpack.c.bf16 %v11516, %v11516
    %v11533 = vpack.c.bf16 %v11517, %v11517
    %v11534 = vpack.c.bf16 %v11518, %v11518
    %v11535 = vpack.c.bf16 %v11519, %v11519
    %v11536 = vpack.c.bf16 %v11520, %v11520
    %v11537 = vpack.c.bf16 %v11521, %v11521
    %11538 = vmatpush.bf16.msra.mxu0 %v2776
    %11539 = vmatpush.bf16.msra.mxu0 %v2768
    %11540 = vmatpush.bf16.msra.mxu0 %v2760
    %11541 = vmatpush.bf16.msra.mxu0 %v2752
    %11542 = vmatpush.bf16.msra.mxu0 %v2744
    %11543 = vmatpush.bf16.msra.mxu0 %v2736
    %11544 = vmatpush.bf16.msra.mxu0 %v2728
    %11545 = vmatpush.bf16.msra.mxu0 %v2720
    %11546 = vmatmul.bf16.gmra.mxu0 %v11530
    %v11547 = vpop.f32.mrf.mxu0
    %v11548 = vadd.f32 %v1119, %v11547
    %v11549 = vpop.f32.mrf.mxu0
    %11550 = vdwg.mxu0
    %11551 = vmatpush.bf16.msra.mxu0 %v2840
    %11552 = vmatpush.bf16.msra.mxu0 %v2832
    %11553 = vmatpush.bf16.msra.mxu0 %v2824
    %11554 = vmatpush.bf16.msra.mxu0 %v2816
    %11555 = vmatpush.bf16.msra.mxu0 %v2808
    %11556 = vmatpush.bf16.msra.mxu0 %v2800
    %11557 = vmatpush.bf16.msra.mxu0 %v2792
    %11558 = vmatpush.bf16.msra.mxu0 %v2784
    %11559 = vmatmul.bf16.gmra.mxu0 %v11531
    %v11560 = vpop.f32.mrf.mxu0
    %v11561 = vadd.f32 %v11548, %v11560
    %v11562 = vpop.f32.mrf.mxu0
    %11563 = vdwg.mxu0
    %11564 = vmatpush.bf16.msra.mxu0 %v2904
    %11565 = vmatpush.bf16.msra.mxu0 %v2896
    %11566 = vmatpush.bf16.msra.mxu0 %v2888
    %11567 = vmatpush.bf16.msra.mxu0 %v2880
    %11568 = vmatpush.bf16.msra.mxu0 %v2872
    %11569 = vmatpush.bf16.msra.mxu0 %v2864
    %11570 = vmatpush.bf16.msra.mxu0 %v2856
    %11571 = vmatpush.bf16.msra.mxu0 %v2848
    %11572 = vmatmul.bf16.gmra.mxu0 %v11532
    %v11573 = vpop.f32.mrf.mxu0
    %v11574 = vadd.f32 %v11561, %v11573
    %v11575 = vpop.f32.mrf.mxu0
    %11576 = vdwg.mxu0
    %11577 = vmatpush.bf16.msra.mxu0 %v2968
    %11578 = vmatpush.bf16.msra.mxu0 %v2960
    %11579 = vmatpush.bf16.msra.mxu0 %v2952
    %11580 = vmatpush.bf16.msra.mxu0 %v2944
    %11581 = vmatpush.bf16.msra.mxu0 %v2936
    %11582 = vmatpush.bf16.msra.mxu0 %v2928
    %11583 = vmatpush.bf16.msra.mxu0 %v2920
    %11584 = vmatpush.bf16.msra.mxu0 %v2912
    %11585 = vmatmul.bf16.gmra.mxu0 %v11533
    %v11586 = vpop.f32.mrf.mxu0
    %v11587 = vadd.f32 %v11574, %v11586
    %v11588 = vpop.f32.mrf.mxu0
    %11589 = vdwg.mxu0
    %11590 = vmatpush.bf16.msra.mxu0 %v3032
    %11591 = vmatpush.bf16.msra.mxu0 %v3024
    %11592 = vmatpush.bf16.msra.mxu0 %v3016
    %11593 = vmatpush.bf16.msra.mxu0 %v3008
    %11594 = vmatpush.bf16.msra.mxu0 %v3000
    %11595 = vmatpush.bf16.msra.mxu0 %v2992
    %11596 = vmatpush.bf16.msra.mxu0 %v2984
    %11597 = vmatpush.bf16.msra.mxu0 %v2976
    %11598 = vmatmul.bf16.gmra.mxu0 %v11534
    %v11599 = vpop.f32.mrf.mxu0
    %v11600 = vadd.f32 %v11587, %v11599
    %v11601 = vpop.f32.mrf.mxu0
    %11602 = vdwg.mxu0
    %11603 = vmatpush.bf16.msra.mxu0 %v3096
    %11604 = vmatpush.bf16.msra.mxu0 %v3088
    %11605 = vmatpush.bf16.msra.mxu0 %v3080
    %11606 = vmatpush.bf16.msra.mxu0 %v3072
    %11607 = vmatpush.bf16.msra.mxu0 %v3064
    %11608 = vmatpush.bf16.msra.mxu0 %v3056
    %11609 = vmatpush.bf16.msra.mxu0 %v3048
    %11610 = vmatpush.bf16.msra.mxu0 %v3040
    %11611 = vmatmul.bf16.gmra.mxu0 %v11535
    %v11612 = vpop.f32.mrf.mxu0
    %v11613 = vadd.f32 %v11600, %v11612
    %v11614 = vpop.f32.mrf.mxu0
    %11615 = vdwg.mxu0
    %11616 = vmatpush.bf16.msra.mxu0 %v3160
    %11617 = vmatpush.bf16.msra.mxu0 %v3152
    %11618 = vmatpush.bf16.msra.mxu0 %v3144
    %11619 = vmatpush.bf16.msra.mxu0 %v3136
    %11620 = vmatpush.bf16.msra.mxu0 %v3128
    %11621 = vmatpush.bf16.msra.mxu0 %v3120
    %11622 = vmatpush.bf16.msra.mxu0 %v3112
    %11623 = vmatpush.bf16.msra.mxu0 %v3104
    %11624 = vmatmul.bf16.gmra.mxu0 %v11536
    %v11625 = vpop.f32.mrf.mxu0
    %v11626 = vadd.f32 %v11613, %v11625
    %v11627 = vpop.f32.mrf.mxu0
    %11628 = vdwg.mxu0
    %11629 = vmatpush.bf16.msra.mxu0 %v3224
    %11630 = vmatpush.bf16.msra.mxu0 %v3216
    %11631 = vmatpush.bf16.msra.mxu0 %v3208
    %11632 = vmatpush.bf16.msra.mxu0 %v3200
    %11633 = vmatpush.bf16.msra.mxu0 %v3192
    %11634 = vmatpush.bf16.msra.mxu0 %v3184
    %11635 = vmatpush.bf16.msra.mxu0 %v3176
    %11636 = vmatpush.bf16.msra.mxu0 %v3168
    %11637 = vmatmul.bf16.gmra.mxu0 %v11537
    %v11638 = vpop.f32.mrf.mxu0
    %v11639 = vadd.f32 %v11626, %v11638
    %v11640 = vpop.f32.mrf.mxu0
    %11641 = vdwg.mxu0
    %11642 = vmatpush.bf16.msra.mxu0 %v2777
    %11643 = vmatpush.bf16.msra.mxu0 %v2769
    %11644 = vmatpush.bf16.msra.mxu0 %v2761
    %11645 = vmatpush.bf16.msra.mxu0 %v2753
    %11646 = vmatpush.bf16.msra.mxu0 %v2745
    %11647 = vmatpush.bf16.msra.mxu0 %v2737
    %11648 = vmatpush.bf16.msra.mxu0 %v2729
    %11649 = vmatpush.bf16.msra.mxu0 %v2721
    %11650 = vmatmul.bf16.gmra.mxu0 %v11530
    %v11651 = vpop.f32.mrf.mxu0
    %v11652 = vadd.f32 %v1120, %v11651
    %v11653 = vpop.f32.mrf.mxu0
    %11654 = vdwg.mxu0
    %11655 = vmatpush.bf16.msra.mxu0 %v2841
    %11656 = vmatpush.bf16.msra.mxu0 %v2833
    %11657 = vmatpush.bf16.msra.mxu0 %v2825
    %11658 = vmatpush.bf16.msra.mxu0 %v2817
    %11659 = vmatpush.bf16.msra.mxu0 %v2809
    %11660 = vmatpush.bf16.msra.mxu0 %v2801
    %11661 = vmatpush.bf16.msra.mxu0 %v2793
    %11662 = vmatpush.bf16.msra.mxu0 %v2785
    %11663 = vmatmul.bf16.gmra.mxu0 %v11531
    %v11664 = vpop.f32.mrf.mxu0
    %v11665 = vadd.f32 %v11652, %v11664
    %v11666 = vpop.f32.mrf.mxu0
    %11667 = vdwg.mxu0
    %11668 = vmatpush.bf16.msra.mxu0 %v2905
    %11669 = vmatpush.bf16.msra.mxu0 %v2897
    %11670 = vmatpush.bf16.msra.mxu0 %v2889
    %11671 = vmatpush.bf16.msra.mxu0 %v2881
    %11672 = vmatpush.bf16.msra.mxu0 %v2873
    %11673 = vmatpush.bf16.msra.mxu0 %v2865
    %11674 = vmatpush.bf16.msra.mxu0 %v2857
    %11675 = vmatpush.bf16.msra.mxu0 %v2849
    %11676 = vmatmul.bf16.gmra.mxu0 %v11532
    %v11677 = vpop.f32.mrf.mxu0
    %v11678 = vadd.f32 %v11665, %v11677
    %v11679 = vpop.f32.mrf.mxu0
    %11680 = vdwg.mxu0
    %11681 = vmatpush.bf16.msra.mxu0 %v2969
    %11682 = vmatpush.bf16.msra.mxu0 %v2961
    %11683 = vmatpush.bf16.msra.mxu0 %v2953
    %11684 = vmatpush.bf16.msra.mxu0 %v2945
    %11685 = vmatpush.bf16.msra.mxu0 %v2937
    %11686 = vmatpush.bf16.msra.mxu0 %v2929
    %11687 = vmatpush.bf16.msra.mxu0 %v2921
    %11688 = vmatpush.bf16.msra.mxu0 %v2913
    %11689 = vmatmul.bf16.gmra.mxu0 %v11533
    %v11690 = vpop.f32.mrf.mxu0
    %v11691 = vadd.f32 %v11678, %v11690
    %v11692 = vpop.f32.mrf.mxu0
    %11693 = vdwg.mxu0
    %11694 = vmatpush.bf16.msra.mxu0 %v3033
    %11695 = vmatpush.bf16.msra.mxu0 %v3025
    %11696 = vmatpush.bf16.msra.mxu0 %v3017
    %11697 = vmatpush.bf16.msra.mxu0 %v3009
    %11698 = vmatpush.bf16.msra.mxu0 %v3001
    %11699 = vmatpush.bf16.msra.mxu0 %v2993
    %11700 = vmatpush.bf16.msra.mxu0 %v2985
    %11701 = vmatpush.bf16.msra.mxu0 %v2977
    %11702 = vmatmul.bf16.gmra.mxu0 %v11534
    %v11703 = vpop.f32.mrf.mxu0
    %v11704 = vadd.f32 %v11691, %v11703
    %v11705 = vpop.f32.mrf.mxu0
    %11706 = vdwg.mxu0
    %11707 = vmatpush.bf16.msra.mxu0 %v3097
    %11708 = vmatpush.bf16.msra.mxu0 %v3089
    %11709 = vmatpush.bf16.msra.mxu0 %v3081
    %11710 = vmatpush.bf16.msra.mxu0 %v3073
    %11711 = vmatpush.bf16.msra.mxu0 %v3065
    %11712 = vmatpush.bf16.msra.mxu0 %v3057
    %11713 = vmatpush.bf16.msra.mxu0 %v3049
    %11714 = vmatpush.bf16.msra.mxu0 %v3041
    %11715 = vmatmul.bf16.gmra.mxu0 %v11535
    %v11716 = vpop.f32.mrf.mxu0
    %v11717 = vadd.f32 %v11704, %v11716
    %v11718 = vpop.f32.mrf.mxu0
    %11719 = vdwg.mxu0
    %11720 = vmatpush.bf16.msra.mxu0 %v3161
    %11721 = vmatpush.bf16.msra.mxu0 %v3153
    %11722 = vmatpush.bf16.msra.mxu0 %v3145
    %11723 = vmatpush.bf16.msra.mxu0 %v3137
    %11724 = vmatpush.bf16.msra.mxu0 %v3129
    %11725 = vmatpush.bf16.msra.mxu0 %v3121
    %11726 = vmatpush.bf16.msra.mxu0 %v3113
    %11727 = vmatpush.bf16.msra.mxu0 %v3105
    %11728 = vmatmul.bf16.gmra.mxu0 %v11536
    %v11729 = vpop.f32.mrf.mxu0
    %v11730 = vadd.f32 %v11717, %v11729
    %v11731 = vpop.f32.mrf.mxu0
    %11732 = vdwg.mxu0
    %11733 = vmatpush.bf16.msra.mxu0 %v3225
    %11734 = vmatpush.bf16.msra.mxu0 %v3217
    %11735 = vmatpush.bf16.msra.mxu0 %v3209
    %11736 = vmatpush.bf16.msra.mxu0 %v3201
    %11737 = vmatpush.bf16.msra.mxu0 %v3193
    %11738 = vmatpush.bf16.msra.mxu0 %v3185
    %11739 = vmatpush.bf16.msra.mxu0 %v3177
    %11740 = vmatpush.bf16.msra.mxu0 %v3169
    %11741 = vmatmul.bf16.gmra.mxu0 %v11537
    %v11742 = vpop.f32.mrf.mxu0
    %v11743 = vadd.f32 %v11730, %v11742
    %v11744 = vpop.f32.mrf.mxu0
    %11745 = vdwg.mxu0
    %11746 = vmatpush.bf16.msra.mxu0 %v2778
    %11747 = vmatpush.bf16.msra.mxu0 %v2770
    %11748 = vmatpush.bf16.msra.mxu0 %v2762
    %11749 = vmatpush.bf16.msra.mxu0 %v2754
    %11750 = vmatpush.bf16.msra.mxu0 %v2746
    %11751 = vmatpush.bf16.msra.mxu0 %v2738
    %11752 = vmatpush.bf16.msra.mxu0 %v2730
    %11753 = vmatpush.bf16.msra.mxu0 %v2722
    %11754 = vmatmul.bf16.gmra.mxu0 %v11530
    %v11755 = vpop.f32.mrf.mxu0
    %v11756 = vadd.f32 %v1121, %v11755
    %v11757 = vpop.f32.mrf.mxu0
    %11758 = vdwg.mxu0
    %11759 = vmatpush.bf16.msra.mxu0 %v2842
    %11760 = vmatpush.bf16.msra.mxu0 %v2834
    %11761 = vmatpush.bf16.msra.mxu0 %v2826
    %11762 = vmatpush.bf16.msra.mxu0 %v2818
    %11763 = vmatpush.bf16.msra.mxu0 %v2810
    %11764 = vmatpush.bf16.msra.mxu0 %v2802
    %11765 = vmatpush.bf16.msra.mxu0 %v2794
    %11766 = vmatpush.bf16.msra.mxu0 %v2786
    %11767 = vmatmul.bf16.gmra.mxu0 %v11531
    %v11768 = vpop.f32.mrf.mxu0
    %v11769 = vadd.f32 %v11756, %v11768
    %v11770 = vpop.f32.mrf.mxu0
    %11771 = vdwg.mxu0
    %11772 = vmatpush.bf16.msra.mxu0 %v2906
    %11773 = vmatpush.bf16.msra.mxu0 %v2898
    %11774 = vmatpush.bf16.msra.mxu0 %v2890
    %11775 = vmatpush.bf16.msra.mxu0 %v2882
    %11776 = vmatpush.bf16.msra.mxu0 %v2874
    %11777 = vmatpush.bf16.msra.mxu0 %v2866
    %11778 = vmatpush.bf16.msra.mxu0 %v2858
    %11779 = vmatpush.bf16.msra.mxu0 %v2850
    %11780 = vmatmul.bf16.gmra.mxu0 %v11532
    %v11781 = vpop.f32.mrf.mxu0
    %v11782 = vadd.f32 %v11769, %v11781
    %v11783 = vpop.f32.mrf.mxu0
    %11784 = vdwg.mxu0
    %11785 = vmatpush.bf16.msra.mxu0 %v2970
    %11786 = vmatpush.bf16.msra.mxu0 %v2962
    %11787 = vmatpush.bf16.msra.mxu0 %v2954
    %11788 = vmatpush.bf16.msra.mxu0 %v2946
    %11789 = vmatpush.bf16.msra.mxu0 %v2938
    %11790 = vmatpush.bf16.msra.mxu0 %v2930
    %11791 = vmatpush.bf16.msra.mxu0 %v2922
    %11792 = vmatpush.bf16.msra.mxu0 %v2914
    %11793 = vmatmul.bf16.gmra.mxu0 %v11533
    %v11794 = vpop.f32.mrf.mxu0
    %v11795 = vadd.f32 %v11782, %v11794
    %v11796 = vpop.f32.mrf.mxu0
    %11797 = vdwg.mxu0
    %11798 = vmatpush.bf16.msra.mxu0 %v3034
    %11799 = vmatpush.bf16.msra.mxu0 %v3026
    %11800 = vmatpush.bf16.msra.mxu0 %v3018
    %11801 = vmatpush.bf16.msra.mxu0 %v3010
    %11802 = vmatpush.bf16.msra.mxu0 %v3002
    %11803 = vmatpush.bf16.msra.mxu0 %v2994
    %11804 = vmatpush.bf16.msra.mxu0 %v2986
    %11805 = vmatpush.bf16.msra.mxu0 %v2978
    %11806 = vmatmul.bf16.gmra.mxu0 %v11534
    %v11807 = vpop.f32.mrf.mxu0
    %v11808 = vadd.f32 %v11795, %v11807
    %v11809 = vpop.f32.mrf.mxu0
    %11810 = vdwg.mxu0
    %11811 = vmatpush.bf16.msra.mxu0 %v3098
    %11812 = vmatpush.bf16.msra.mxu0 %v3090
    %11813 = vmatpush.bf16.msra.mxu0 %v3082
    %11814 = vmatpush.bf16.msra.mxu0 %v3074
    %11815 = vmatpush.bf16.msra.mxu0 %v3066
    %11816 = vmatpush.bf16.msra.mxu0 %v3058
    %11817 = vmatpush.bf16.msra.mxu0 %v3050
    %11818 = vmatpush.bf16.msra.mxu0 %v3042
    %11819 = vmatmul.bf16.gmra.mxu0 %v11535
    %v11820 = vpop.f32.mrf.mxu0
    %v11821 = vadd.f32 %v11808, %v11820
    %v11822 = vpop.f32.mrf.mxu0
    %11823 = vdwg.mxu0
    %11824 = vmatpush.bf16.msra.mxu0 %v3162
    %11825 = vmatpush.bf16.msra.mxu0 %v3154
    %11826 = vmatpush.bf16.msra.mxu0 %v3146
    %11827 = vmatpush.bf16.msra.mxu0 %v3138
    %11828 = vmatpush.bf16.msra.mxu0 %v3130
    %11829 = vmatpush.bf16.msra.mxu0 %v3122
    %11830 = vmatpush.bf16.msra.mxu0 %v3114
    %11831 = vmatpush.bf16.msra.mxu0 %v3106
    %11832 = vmatmul.bf16.gmra.mxu0 %v11536
    %v11833 = vpop.f32.mrf.mxu0
    %v11834 = vadd.f32 %v11821, %v11833
    %v11835 = vpop.f32.mrf.mxu0
    %11836 = vdwg.mxu0
    %11837 = vmatpush.bf16.msra.mxu0 %v3226
    %11838 = vmatpush.bf16.msra.mxu0 %v3218
    %11839 = vmatpush.bf16.msra.mxu0 %v3210
    %11840 = vmatpush.bf16.msra.mxu0 %v3202
    %11841 = vmatpush.bf16.msra.mxu0 %v3194
    %11842 = vmatpush.bf16.msra.mxu0 %v3186
    %11843 = vmatpush.bf16.msra.mxu0 %v3178
    %11844 = vmatpush.bf16.msra.mxu0 %v3170
    %11845 = vmatmul.bf16.gmra.mxu0 %v11537
    %v11846 = vpop.f32.mrf.mxu0
    %v11847 = vadd.f32 %v11834, %v11846
    %v11848 = vpop.f32.mrf.mxu0
    %11849 = vdwg.mxu0
    %11850 = vmatpush.bf16.msra.mxu0 %v2779
    %11851 = vmatpush.bf16.msra.mxu0 %v2771
    %11852 = vmatpush.bf16.msra.mxu0 %v2763
    %11853 = vmatpush.bf16.msra.mxu0 %v2755
    %11854 = vmatpush.bf16.msra.mxu0 %v2747
    %11855 = vmatpush.bf16.msra.mxu0 %v2739
    %11856 = vmatpush.bf16.msra.mxu0 %v2731
    %11857 = vmatpush.bf16.msra.mxu0 %v2723
    %11858 = vmatmul.bf16.gmra.mxu0 %v11530
    %v11859 = vpop.f32.mrf.mxu0
    %v11860 = vadd.f32 %v1122, %v11859
    %v11861 = vpop.f32.mrf.mxu0
    %11862 = vdwg.mxu0
    %11863 = vmatpush.bf16.msra.mxu0 %v2843
    %11864 = vmatpush.bf16.msra.mxu0 %v2835
    %11865 = vmatpush.bf16.msra.mxu0 %v2827
    %11866 = vmatpush.bf16.msra.mxu0 %v2819
    %11867 = vmatpush.bf16.msra.mxu0 %v2811
    %11868 = vmatpush.bf16.msra.mxu0 %v2803
    %11869 = vmatpush.bf16.msra.mxu0 %v2795
    %11870 = vmatpush.bf16.msra.mxu0 %v2787
    %11871 = vmatmul.bf16.gmra.mxu0 %v11531
    %v11872 = vpop.f32.mrf.mxu0
    %v11873 = vadd.f32 %v11860, %v11872
    %v11874 = vpop.f32.mrf.mxu0
    %11875 = vdwg.mxu0
    %11876 = vmatpush.bf16.msra.mxu0 %v2907
    %11877 = vmatpush.bf16.msra.mxu0 %v2899
    %11878 = vmatpush.bf16.msra.mxu0 %v2891
    %11879 = vmatpush.bf16.msra.mxu0 %v2883
    %11880 = vmatpush.bf16.msra.mxu0 %v2875
    %11881 = vmatpush.bf16.msra.mxu0 %v2867
    %11882 = vmatpush.bf16.msra.mxu0 %v2859
    %11883 = vmatpush.bf16.msra.mxu0 %v2851
    %11884 = vmatmul.bf16.gmra.mxu0 %v11532
    %v11885 = vpop.f32.mrf.mxu0
    %v11886 = vadd.f32 %v11873, %v11885
    %v11887 = vpop.f32.mrf.mxu0
    %11888 = vdwg.mxu0
    %11889 = vmatpush.bf16.msra.mxu0 %v2971
    %11890 = vmatpush.bf16.msra.mxu0 %v2963
    %11891 = vmatpush.bf16.msra.mxu0 %v2955
    %11892 = vmatpush.bf16.msra.mxu0 %v2947
    %11893 = vmatpush.bf16.msra.mxu0 %v2939
    %11894 = vmatpush.bf16.msra.mxu0 %v2931
    %11895 = vmatpush.bf16.msra.mxu0 %v2923
    %11896 = vmatpush.bf16.msra.mxu0 %v2915
    %11897 = vmatmul.bf16.gmra.mxu0 %v11533
    %v11898 = vpop.f32.mrf.mxu0
    %v11899 = vadd.f32 %v11886, %v11898
    %v11900 = vpop.f32.mrf.mxu0
    %11901 = vdwg.mxu0
    %11902 = vmatpush.bf16.msra.mxu0 %v3035
    %11903 = vmatpush.bf16.msra.mxu0 %v3027
    %11904 = vmatpush.bf16.msra.mxu0 %v3019
    %11905 = vmatpush.bf16.msra.mxu0 %v3011
    %11906 = vmatpush.bf16.msra.mxu0 %v3003
    %11907 = vmatpush.bf16.msra.mxu0 %v2995
    %11908 = vmatpush.bf16.msra.mxu0 %v2987
    %11909 = vmatpush.bf16.msra.mxu0 %v2979
    %11910 = vmatmul.bf16.gmra.mxu0 %v11534
    %v11911 = vpop.f32.mrf.mxu0
    %v11912 = vadd.f32 %v11899, %v11911
    %v11913 = vpop.f32.mrf.mxu0
    %11914 = vdwg.mxu0
    %11915 = vmatpush.bf16.msra.mxu0 %v3099
    %11916 = vmatpush.bf16.msra.mxu0 %v3091
    %11917 = vmatpush.bf16.msra.mxu0 %v3083
    %11918 = vmatpush.bf16.msra.mxu0 %v3075
    %11919 = vmatpush.bf16.msra.mxu0 %v3067
    %11920 = vmatpush.bf16.msra.mxu0 %v3059
    %11921 = vmatpush.bf16.msra.mxu0 %v3051
    %11922 = vmatpush.bf16.msra.mxu0 %v3043
    %11923 = vmatmul.bf16.gmra.mxu0 %v11535
    %v11924 = vpop.f32.mrf.mxu0
    %v11925 = vadd.f32 %v11912, %v11924
    %v11926 = vpop.f32.mrf.mxu0
    %11927 = vdwg.mxu0
    %11928 = vmatpush.bf16.msra.mxu0 %v3163
    %11929 = vmatpush.bf16.msra.mxu0 %v3155
    %11930 = vmatpush.bf16.msra.mxu0 %v3147
    %11931 = vmatpush.bf16.msra.mxu0 %v3139
    %11932 = vmatpush.bf16.msra.mxu0 %v3131
    %11933 = vmatpush.bf16.msra.mxu0 %v3123
    %11934 = vmatpush.bf16.msra.mxu0 %v3115
    %11935 = vmatpush.bf16.msra.mxu0 %v3107
    %11936 = vmatmul.bf16.gmra.mxu0 %v11536
    %v11937 = vpop.f32.mrf.mxu0
    %v11938 = vadd.f32 %v11925, %v11937
    %v11939 = vpop.f32.mrf.mxu0
    %11940 = vdwg.mxu0
    %11941 = vmatpush.bf16.msra.mxu0 %v3227
    %11942 = vmatpush.bf16.msra.mxu0 %v3219
    %11943 = vmatpush.bf16.msra.mxu0 %v3211
    %11944 = vmatpush.bf16.msra.mxu0 %v3203
    %11945 = vmatpush.bf16.msra.mxu0 %v3195
    %11946 = vmatpush.bf16.msra.mxu0 %v3187
    %11947 = vmatpush.bf16.msra.mxu0 %v3179
    %11948 = vmatpush.bf16.msra.mxu0 %v3171
    %11949 = vmatmul.bf16.gmra.mxu0 %v11537
    %v11950 = vpop.f32.mrf.mxu0
    %v11951 = vadd.f32 %v11938, %v11950
    %v11952 = vpop.f32.mrf.mxu0
    %11953 = vdwg.mxu0
    %11954 = vmatpush.bf16.msra.mxu0 %v2780
    %11955 = vmatpush.bf16.msra.mxu0 %v2772
    %11956 = vmatpush.bf16.msra.mxu0 %v2764
    %11957 = vmatpush.bf16.msra.mxu0 %v2756
    %11958 = vmatpush.bf16.msra.mxu0 %v2748
    %11959 = vmatpush.bf16.msra.mxu0 %v2740
    %11960 = vmatpush.bf16.msra.mxu0 %v2732
    %11961 = vmatpush.bf16.msra.mxu0 %v2724
    %11962 = vmatmul.bf16.gmra.mxu0 %v11530
    %v11963 = vpop.f32.mrf.mxu0
    %v11964 = vadd.f32 %v1123, %v11963
    %v11965 = vpop.f32.mrf.mxu0
    %11966 = vdwg.mxu0
    %11967 = vmatpush.bf16.msra.mxu0 %v2844
    %11968 = vmatpush.bf16.msra.mxu0 %v2836
    %11969 = vmatpush.bf16.msra.mxu0 %v2828
    %11970 = vmatpush.bf16.msra.mxu0 %v2820
    %11971 = vmatpush.bf16.msra.mxu0 %v2812
    %11972 = vmatpush.bf16.msra.mxu0 %v2804
    %11973 = vmatpush.bf16.msra.mxu0 %v2796
    %11974 = vmatpush.bf16.msra.mxu0 %v2788
    %11975 = vmatmul.bf16.gmra.mxu0 %v11531
    %v11976 = vpop.f32.mrf.mxu0
    %v11977 = vadd.f32 %v11964, %v11976
    %v11978 = vpop.f32.mrf.mxu0
    %11979 = vdwg.mxu0
    %11980 = vmatpush.bf16.msra.mxu0 %v2908
    %11981 = vmatpush.bf16.msra.mxu0 %v2900
    %11982 = vmatpush.bf16.msra.mxu0 %v2892
    %11983 = vmatpush.bf16.msra.mxu0 %v2884
    %11984 = vmatpush.bf16.msra.mxu0 %v2876
    %11985 = vmatpush.bf16.msra.mxu0 %v2868
    %11986 = vmatpush.bf16.msra.mxu0 %v2860
    %11987 = vmatpush.bf16.msra.mxu0 %v2852
    %11988 = vmatmul.bf16.gmra.mxu0 %v11532
    %v11989 = vpop.f32.mrf.mxu0
    %v11990 = vadd.f32 %v11977, %v11989
    %v11991 = vpop.f32.mrf.mxu0
    %11992 = vdwg.mxu0
    %11993 = vmatpush.bf16.msra.mxu0 %v2972
    %11994 = vmatpush.bf16.msra.mxu0 %v2964
    %11995 = vmatpush.bf16.msra.mxu0 %v2956
    %11996 = vmatpush.bf16.msra.mxu0 %v2948
    %11997 = vmatpush.bf16.msra.mxu0 %v2940
    %11998 = vmatpush.bf16.msra.mxu0 %v2932
    %11999 = vmatpush.bf16.msra.mxu0 %v2924
    %12000 = vmatpush.bf16.msra.mxu0 %v2916
    %12001 = vmatmul.bf16.gmra.mxu0 %v11533
    %v12002 = vpop.f32.mrf.mxu0
    %v12003 = vadd.f32 %v11990, %v12002
    %v12004 = vpop.f32.mrf.mxu0
    %12005 = vdwg.mxu0
    %12006 = vmatpush.bf16.msra.mxu0 %v3036
    %12007 = vmatpush.bf16.msra.mxu0 %v3028
    %12008 = vmatpush.bf16.msra.mxu0 %v3020
    %12009 = vmatpush.bf16.msra.mxu0 %v3012
    %12010 = vmatpush.bf16.msra.mxu0 %v3004
    %12011 = vmatpush.bf16.msra.mxu0 %v2996
    %12012 = vmatpush.bf16.msra.mxu0 %v2988
    %12013 = vmatpush.bf16.msra.mxu0 %v2980
    %12014 = vmatmul.bf16.gmra.mxu0 %v11534
    %v12015 = vpop.f32.mrf.mxu0
    %v12016 = vadd.f32 %v12003, %v12015
    %v12017 = vpop.f32.mrf.mxu0
    %12018 = vdwg.mxu0
    %12019 = vmatpush.bf16.msra.mxu0 %v3100
    %12020 = vmatpush.bf16.msra.mxu0 %v3092
    %12021 = vmatpush.bf16.msra.mxu0 %v3084
    %12022 = vmatpush.bf16.msra.mxu0 %v3076
    %12023 = vmatpush.bf16.msra.mxu0 %v3068
    %12024 = vmatpush.bf16.msra.mxu0 %v3060
    %12025 = vmatpush.bf16.msra.mxu0 %v3052
    %12026 = vmatpush.bf16.msra.mxu0 %v3044
    %12027 = vmatmul.bf16.gmra.mxu0 %v11535
    %v12028 = vpop.f32.mrf.mxu0
    %v12029 = vadd.f32 %v12016, %v12028
    %v12030 = vpop.f32.mrf.mxu0
    %12031 = vdwg.mxu0
    %12032 = vmatpush.bf16.msra.mxu0 %v3164
    %12033 = vmatpush.bf16.msra.mxu0 %v3156
    %12034 = vmatpush.bf16.msra.mxu0 %v3148
    %12035 = vmatpush.bf16.msra.mxu0 %v3140
    %12036 = vmatpush.bf16.msra.mxu0 %v3132
    %12037 = vmatpush.bf16.msra.mxu0 %v3124
    %12038 = vmatpush.bf16.msra.mxu0 %v3116
    %12039 = vmatpush.bf16.msra.mxu0 %v3108
    %12040 = vmatmul.bf16.gmra.mxu0 %v11536
    %v12041 = vpop.f32.mrf.mxu0
    %v12042 = vadd.f32 %v12029, %v12041
    %v12043 = vpop.f32.mrf.mxu0
    %12044 = vdwg.mxu0
    %12045 = vmatpush.bf16.msra.mxu0 %v3228
    %12046 = vmatpush.bf16.msra.mxu0 %v3220
    %12047 = vmatpush.bf16.msra.mxu0 %v3212
    %12048 = vmatpush.bf16.msra.mxu0 %v3204
    %12049 = vmatpush.bf16.msra.mxu0 %v3196
    %12050 = vmatpush.bf16.msra.mxu0 %v3188
    %12051 = vmatpush.bf16.msra.mxu0 %v3180
    %12052 = vmatpush.bf16.msra.mxu0 %v3172
    %12053 = vmatmul.bf16.gmra.mxu0 %v11537
    %v12054 = vpop.f32.mrf.mxu0
    %v12055 = vadd.f32 %v12042, %v12054
    %v12056 = vpop.f32.mrf.mxu0
    %12057 = vdwg.mxu0
    %12058 = vmatpush.bf16.msra.mxu0 %v2781
    %12059 = vmatpush.bf16.msra.mxu0 %v2773
    %12060 = vmatpush.bf16.msra.mxu0 %v2765
    %12061 = vmatpush.bf16.msra.mxu0 %v2757
    %12062 = vmatpush.bf16.msra.mxu0 %v2749
    %12063 = vmatpush.bf16.msra.mxu0 %v2741
    %12064 = vmatpush.bf16.msra.mxu0 %v2733
    %12065 = vmatpush.bf16.msra.mxu0 %v2725
    %12066 = vmatmul.bf16.gmra.mxu0 %v11530
    %v12067 = vpop.f32.mrf.mxu0
    %v12068 = vadd.f32 %v1124, %v12067
    %v12069 = vpop.f32.mrf.mxu0
    %12070 = vdwg.mxu0
    %12071 = vmatpush.bf16.msra.mxu0 %v2845
    %12072 = vmatpush.bf16.msra.mxu0 %v2837
    %12073 = vmatpush.bf16.msra.mxu0 %v2829
    %12074 = vmatpush.bf16.msra.mxu0 %v2821
    %12075 = vmatpush.bf16.msra.mxu0 %v2813
    %12076 = vmatpush.bf16.msra.mxu0 %v2805
    %12077 = vmatpush.bf16.msra.mxu0 %v2797
    %12078 = vmatpush.bf16.msra.mxu0 %v2789
    %12079 = vmatmul.bf16.gmra.mxu0 %v11531
    %v12080 = vpop.f32.mrf.mxu0
    %v12081 = vadd.f32 %v12068, %v12080
    %v12082 = vpop.f32.mrf.mxu0
    %12083 = vdwg.mxu0
    %12084 = vmatpush.bf16.msra.mxu0 %v2909
    %12085 = vmatpush.bf16.msra.mxu0 %v2901
    %12086 = vmatpush.bf16.msra.mxu0 %v2893
    %12087 = vmatpush.bf16.msra.mxu0 %v2885
    %12088 = vmatpush.bf16.msra.mxu0 %v2877
    %12089 = vmatpush.bf16.msra.mxu0 %v2869
    %12090 = vmatpush.bf16.msra.mxu0 %v2861
    %12091 = vmatpush.bf16.msra.mxu0 %v2853
    %12092 = vmatmul.bf16.gmra.mxu0 %v11532
    %v12093 = vpop.f32.mrf.mxu0
    %v12094 = vadd.f32 %v12081, %v12093
    %v12095 = vpop.f32.mrf.mxu0
    %12096 = vdwg.mxu0
    %12097 = vmatpush.bf16.msra.mxu0 %v2973
    %12098 = vmatpush.bf16.msra.mxu0 %v2965
    %12099 = vmatpush.bf16.msra.mxu0 %v2957
    %12100 = vmatpush.bf16.msra.mxu0 %v2949
    %12101 = vmatpush.bf16.msra.mxu0 %v2941
    %12102 = vmatpush.bf16.msra.mxu0 %v2933
    %12103 = vmatpush.bf16.msra.mxu0 %v2925
    %12104 = vmatpush.bf16.msra.mxu0 %v2917
    %12105 = vmatmul.bf16.gmra.mxu0 %v11533
    %v12106 = vpop.f32.mrf.mxu0
    %v12107 = vadd.f32 %v12094, %v12106
    %v12108 = vpop.f32.mrf.mxu0
    %12109 = vdwg.mxu0
    %12110 = vmatpush.bf16.msra.mxu0 %v3037
    %12111 = vmatpush.bf16.msra.mxu0 %v3029
    %12112 = vmatpush.bf16.msra.mxu0 %v3021
    %12113 = vmatpush.bf16.msra.mxu0 %v3013
    %12114 = vmatpush.bf16.msra.mxu0 %v3005
    %12115 = vmatpush.bf16.msra.mxu0 %v2997
    %12116 = vmatpush.bf16.msra.mxu0 %v2989
    %12117 = vmatpush.bf16.msra.mxu0 %v2981
    %12118 = vmatmul.bf16.gmra.mxu0 %v11534
    %v12119 = vpop.f32.mrf.mxu0
    %v12120 = vadd.f32 %v12107, %v12119
    %v12121 = vpop.f32.mrf.mxu0
    %12122 = vdwg.mxu0
    %12123 = vmatpush.bf16.msra.mxu0 %v3101
    %12124 = vmatpush.bf16.msra.mxu0 %v3093
    %12125 = vmatpush.bf16.msra.mxu0 %v3085
    %12126 = vmatpush.bf16.msra.mxu0 %v3077
    %12127 = vmatpush.bf16.msra.mxu0 %v3069
    %12128 = vmatpush.bf16.msra.mxu0 %v3061
    %12129 = vmatpush.bf16.msra.mxu0 %v3053
    %12130 = vmatpush.bf16.msra.mxu0 %v3045
    %12131 = vmatmul.bf16.gmra.mxu0 %v11535
    %v12132 = vpop.f32.mrf.mxu0
    %v12133 = vadd.f32 %v12120, %v12132
    %v12134 = vpop.f32.mrf.mxu0
    %12135 = vdwg.mxu0
    %12136 = vmatpush.bf16.msra.mxu0 %v3165
    %12137 = vmatpush.bf16.msra.mxu0 %v3157
    %12138 = vmatpush.bf16.msra.mxu0 %v3149
    %12139 = vmatpush.bf16.msra.mxu0 %v3141
    %12140 = vmatpush.bf16.msra.mxu0 %v3133
    %12141 = vmatpush.bf16.msra.mxu0 %v3125
    %12142 = vmatpush.bf16.msra.mxu0 %v3117
    %12143 = vmatpush.bf16.msra.mxu0 %v3109
    %12144 = vmatmul.bf16.gmra.mxu0 %v11536
    %v12145 = vpop.f32.mrf.mxu0
    %v12146 = vadd.f32 %v12133, %v12145
    %v12147 = vpop.f32.mrf.mxu0
    %12148 = vdwg.mxu0
    %12149 = vmatpush.bf16.msra.mxu0 %v3229
    %12150 = vmatpush.bf16.msra.mxu0 %v3221
    %12151 = vmatpush.bf16.msra.mxu0 %v3213
    %12152 = vmatpush.bf16.msra.mxu0 %v3205
    %12153 = vmatpush.bf16.msra.mxu0 %v3197
    %12154 = vmatpush.bf16.msra.mxu0 %v3189
    %12155 = vmatpush.bf16.msra.mxu0 %v3181
    %12156 = vmatpush.bf16.msra.mxu0 %v3173
    %12157 = vmatmul.bf16.gmra.mxu0 %v11537
    %v12158 = vpop.f32.mrf.mxu0
    %v12159 = vadd.f32 %v12146, %v12158
    %v12160 = vpop.f32.mrf.mxu0
    %12161 = vdwg.mxu0
    %12162 = vmatpush.bf16.msra.mxu0 %v2782
    %12163 = vmatpush.bf16.msra.mxu0 %v2774
    %12164 = vmatpush.bf16.msra.mxu0 %v2766
    %12165 = vmatpush.bf16.msra.mxu0 %v2758
    %12166 = vmatpush.bf16.msra.mxu0 %v2750
    %12167 = vmatpush.bf16.msra.mxu0 %v2742
    %12168 = vmatpush.bf16.msra.mxu0 %v2734
    %12169 = vmatpush.bf16.msra.mxu0 %v2726
    %12170 = vmatmul.bf16.gmra.mxu0 %v11530
    %v12171 = vpop.f32.mrf.mxu0
    %v12172 = vadd.f32 %v1125, %v12171
    %v12173 = vpop.f32.mrf.mxu0
    %12174 = vdwg.mxu0
    %12175 = vmatpush.bf16.msra.mxu0 %v2846
    %12176 = vmatpush.bf16.msra.mxu0 %v2838
    %12177 = vmatpush.bf16.msra.mxu0 %v2830
    %12178 = vmatpush.bf16.msra.mxu0 %v2822
    %12179 = vmatpush.bf16.msra.mxu0 %v2814
    %12180 = vmatpush.bf16.msra.mxu0 %v2806
    %12181 = vmatpush.bf16.msra.mxu0 %v2798
    %12182 = vmatpush.bf16.msra.mxu0 %v2790
    %12183 = vmatmul.bf16.gmra.mxu0 %v11531
    %v12184 = vpop.f32.mrf.mxu0
    %v12185 = vadd.f32 %v12172, %v12184
    %v12186 = vpop.f32.mrf.mxu0
    %12187 = vdwg.mxu0
    %12188 = vmatpush.bf16.msra.mxu0 %v2910
    %12189 = vmatpush.bf16.msra.mxu0 %v2902
    %12190 = vmatpush.bf16.msra.mxu0 %v2894
    %12191 = vmatpush.bf16.msra.mxu0 %v2886
    %12192 = vmatpush.bf16.msra.mxu0 %v2878
    %12193 = vmatpush.bf16.msra.mxu0 %v2870
    %12194 = vmatpush.bf16.msra.mxu0 %v2862
    %12195 = vmatpush.bf16.msra.mxu0 %v2854
    %12196 = vmatmul.bf16.gmra.mxu0 %v11532
    %v12197 = vpop.f32.mrf.mxu0
    %v12198 = vadd.f32 %v12185, %v12197
    %v12199 = vpop.f32.mrf.mxu0
    %12200 = vdwg.mxu0
    %12201 = vmatpush.bf16.msra.mxu0 %v2974
    %12202 = vmatpush.bf16.msra.mxu0 %v2966
    %12203 = vmatpush.bf16.msra.mxu0 %v2958
    %12204 = vmatpush.bf16.msra.mxu0 %v2950
    %12205 = vmatpush.bf16.msra.mxu0 %v2942
    %12206 = vmatpush.bf16.msra.mxu0 %v2934
    %12207 = vmatpush.bf16.msra.mxu0 %v2926
    %12208 = vmatpush.bf16.msra.mxu0 %v2918
    %12209 = vmatmul.bf16.gmra.mxu0 %v11533
    %v12210 = vpop.f32.mrf.mxu0
    %v12211 = vadd.f32 %v12198, %v12210
    %v12212 = vpop.f32.mrf.mxu0
    %12213 = vdwg.mxu0
    %12214 = vmatpush.bf16.msra.mxu0 %v3038
    %12215 = vmatpush.bf16.msra.mxu0 %v3030
    %12216 = vmatpush.bf16.msra.mxu0 %v3022
    %12217 = vmatpush.bf16.msra.mxu0 %v3014
    %12218 = vmatpush.bf16.msra.mxu0 %v3006
    %12219 = vmatpush.bf16.msra.mxu0 %v2998
    %12220 = vmatpush.bf16.msra.mxu0 %v2990
    %12221 = vmatpush.bf16.msra.mxu0 %v2982
    %12222 = vmatmul.bf16.gmra.mxu0 %v11534
    %v12223 = vpop.f32.mrf.mxu0
    %v12224 = vadd.f32 %v12211, %v12223
    %v12225 = vpop.f32.mrf.mxu0
    %12226 = vdwg.mxu0
    %12227 = vmatpush.bf16.msra.mxu0 %v3102
    %12228 = vmatpush.bf16.msra.mxu0 %v3094
    %12229 = vmatpush.bf16.msra.mxu0 %v3086
    %12230 = vmatpush.bf16.msra.mxu0 %v3078
    %12231 = vmatpush.bf16.msra.mxu0 %v3070
    %12232 = vmatpush.bf16.msra.mxu0 %v3062
    %12233 = vmatpush.bf16.msra.mxu0 %v3054
    %12234 = vmatpush.bf16.msra.mxu0 %v3046
    %12235 = vmatmul.bf16.gmra.mxu0 %v11535
    %v12236 = vpop.f32.mrf.mxu0
    %v12237 = vadd.f32 %v12224, %v12236
    %v12238 = vpop.f32.mrf.mxu0
    %12239 = vdwg.mxu0
    %12240 = vmatpush.bf16.msra.mxu0 %v3166
    %12241 = vmatpush.bf16.msra.mxu0 %v3158
    %12242 = vmatpush.bf16.msra.mxu0 %v3150
    %12243 = vmatpush.bf16.msra.mxu0 %v3142
    %12244 = vmatpush.bf16.msra.mxu0 %v3134
    %12245 = vmatpush.bf16.msra.mxu0 %v3126
    %12246 = vmatpush.bf16.msra.mxu0 %v3118
    %12247 = vmatpush.bf16.msra.mxu0 %v3110
    %12248 = vmatmul.bf16.gmra.mxu0 %v11536
    %v12249 = vpop.f32.mrf.mxu0
    %v12250 = vadd.f32 %v12237, %v12249
    %v12251 = vpop.f32.mrf.mxu0
    %12252 = vdwg.mxu0
    %12253 = vmatpush.bf16.msra.mxu0 %v3230
    %12254 = vmatpush.bf16.msra.mxu0 %v3222
    %12255 = vmatpush.bf16.msra.mxu0 %v3214
    %12256 = vmatpush.bf16.msra.mxu0 %v3206
    %12257 = vmatpush.bf16.msra.mxu0 %v3198
    %12258 = vmatpush.bf16.msra.mxu0 %v3190
    %12259 = vmatpush.bf16.msra.mxu0 %v3182
    %12260 = vmatpush.bf16.msra.mxu0 %v3174
    %12261 = vmatmul.bf16.gmra.mxu0 %v11537
    %v12262 = vpop.f32.mrf.mxu0
    %v12263 = vadd.f32 %v12250, %v12262
    %v12264 = vpop.f32.mrf.mxu0
    %12265 = vdwg.mxu0
    %12266 = vmatpush.bf16.msra.mxu0 %v2783
    %12267 = vmatpush.bf16.msra.mxu0 %v2775
    %12268 = vmatpush.bf16.msra.mxu0 %v2767
    %12269 = vmatpush.bf16.msra.mxu0 %v2759
    %12270 = vmatpush.bf16.msra.mxu0 %v2751
    %12271 = vmatpush.bf16.msra.mxu0 %v2743
    %12272 = vmatpush.bf16.msra.mxu0 %v2735
    %12273 = vmatpush.bf16.msra.mxu0 %v2727
    %12274 = vmatmul.bf16.gmra.mxu0 %v11530
    %v12275 = vpop.f32.mrf.mxu0
    %v12276 = vadd.f32 %v1126, %v12275
    %v12277 = vpop.f32.mrf.mxu0
    %12278 = vdwg.mxu0
    %12279 = vmatpush.bf16.msra.mxu0 %v2847
    %12280 = vmatpush.bf16.msra.mxu0 %v2839
    %12281 = vmatpush.bf16.msra.mxu0 %v2831
    %12282 = vmatpush.bf16.msra.mxu0 %v2823
    %12283 = vmatpush.bf16.msra.mxu0 %v2815
    %12284 = vmatpush.bf16.msra.mxu0 %v2807
    %12285 = vmatpush.bf16.msra.mxu0 %v2799
    %12286 = vmatpush.bf16.msra.mxu0 %v2791
    %12287 = vmatmul.bf16.gmra.mxu0 %v11531
    %v12288 = vpop.f32.mrf.mxu0
    %v12289 = vadd.f32 %v12276, %v12288
    %v12290 = vpop.f32.mrf.mxu0
    %12291 = vdwg.mxu0
    %12292 = vmatpush.bf16.msra.mxu0 %v2911
    %12293 = vmatpush.bf16.msra.mxu0 %v2903
    %12294 = vmatpush.bf16.msra.mxu0 %v2895
    %12295 = vmatpush.bf16.msra.mxu0 %v2887
    %12296 = vmatpush.bf16.msra.mxu0 %v2879
    %12297 = vmatpush.bf16.msra.mxu0 %v2871
    %12298 = vmatpush.bf16.msra.mxu0 %v2863
    %12299 = vmatpush.bf16.msra.mxu0 %v2855
    %12300 = vmatmul.bf16.gmra.mxu0 %v11532
    %v12301 = vpop.f32.mrf.mxu0
    %v12302 = vadd.f32 %v12289, %v12301
    %v12303 = vpop.f32.mrf.mxu0
    %12304 = vdwg.mxu0
    %12305 = vmatpush.bf16.msra.mxu0 %v2975
    %12306 = vmatpush.bf16.msra.mxu0 %v2967
    %12307 = vmatpush.bf16.msra.mxu0 %v2959
    %12308 = vmatpush.bf16.msra.mxu0 %v2951
    %12309 = vmatpush.bf16.msra.mxu0 %v2943
    %12310 = vmatpush.bf16.msra.mxu0 %v2935
    %12311 = vmatpush.bf16.msra.mxu0 %v2927
    %12312 = vmatpush.bf16.msra.mxu0 %v2919
    %12313 = vmatmul.bf16.gmra.mxu0 %v11533
    %v12314 = vpop.f32.mrf.mxu0
    %v12315 = vadd.f32 %v12302, %v12314
    %v12316 = vpop.f32.mrf.mxu0
    %12317 = vdwg.mxu0
    %12318 = vmatpush.bf16.msra.mxu0 %v3039
    %12319 = vmatpush.bf16.msra.mxu0 %v3031
    %12320 = vmatpush.bf16.msra.mxu0 %v3023
    %12321 = vmatpush.bf16.msra.mxu0 %v3015
    %12322 = vmatpush.bf16.msra.mxu0 %v3007
    %12323 = vmatpush.bf16.msra.mxu0 %v2999
    %12324 = vmatpush.bf16.msra.mxu0 %v2991
    %12325 = vmatpush.bf16.msra.mxu0 %v2983
    %12326 = vmatmul.bf16.gmra.mxu0 %v11534
    %v12327 = vpop.f32.mrf.mxu0
    %v12328 = vadd.f32 %v12315, %v12327
    %v12329 = vpop.f32.mrf.mxu0
    %12330 = vdwg.mxu0
    %12331 = vmatpush.bf16.msra.mxu0 %v3103
    %12332 = vmatpush.bf16.msra.mxu0 %v3095
    %12333 = vmatpush.bf16.msra.mxu0 %v3087
    %12334 = vmatpush.bf16.msra.mxu0 %v3079
    %12335 = vmatpush.bf16.msra.mxu0 %v3071
    %12336 = vmatpush.bf16.msra.mxu0 %v3063
    %12337 = vmatpush.bf16.msra.mxu0 %v3055
    %12338 = vmatpush.bf16.msra.mxu0 %v3047
    %12339 = vmatmul.bf16.gmra.mxu0 %v11535
    %v12340 = vpop.f32.mrf.mxu0
    %v12341 = vadd.f32 %v12328, %v12340
    %v12342 = vpop.f32.mrf.mxu0
    %12343 = vdwg.mxu0
    %12344 = vmatpush.bf16.msra.mxu0 %v3167
    %12345 = vmatpush.bf16.msra.mxu0 %v3159
    %12346 = vmatpush.bf16.msra.mxu0 %v3151
    %12347 = vmatpush.bf16.msra.mxu0 %v3143
    %12348 = vmatpush.bf16.msra.mxu0 %v3135
    %12349 = vmatpush.bf16.msra.mxu0 %v3127
    %12350 = vmatpush.bf16.msra.mxu0 %v3119
    %12351 = vmatpush.bf16.msra.mxu0 %v3111
    %12352 = vmatmul.bf16.gmra.mxu0 %v11536
    %v12353 = vpop.f32.mrf.mxu0
    %v12354 = vadd.f32 %v12341, %v12353
    %v12355 = vpop.f32.mrf.mxu0
    %12356 = vdwg.mxu0
    %12357 = vmatpush.bf16.msra.mxu0 %v3231
    %12358 = vmatpush.bf16.msra.mxu0 %v3223
    %12359 = vmatpush.bf16.msra.mxu0 %v3215
    %12360 = vmatpush.bf16.msra.mxu0 %v3207
    %12361 = vmatpush.bf16.msra.mxu0 %v3199
    %12362 = vmatpush.bf16.msra.mxu0 %v3191
    %12363 = vmatpush.bf16.msra.mxu0 %v3183
    %12364 = vmatpush.bf16.msra.mxu0 %v3175
    %12365 = vmatmul.bf16.gmra.mxu0 %v11537
    %v12366 = vpop.f32.mrf.mxu0
    %v12367 = vadd.f32 %v12354, %v12366
    %v12368 = vpop.f32.mrf.mxu0
    %12369 = vdwg.mxu0
    %v12370 = vmax.f32 %v11639, 0.0
    %v12371 = vmax.f32 %v11743, 0.0
    %v12372 = vmax.f32 %v11847, 0.0
    %v12373 = vmax.f32 %v11951, 0.0
    %v12374 = vmax.f32 %v12055, 0.0
    %v12375 = vmax.f32 %v12159, 0.0
    %v12376 = vmax.f32 %v12263, 0.0
    %v12377 = vmax.f32 %v12367, 0.0
    %v12378 = vpack.c.bf16 %v12370, %v12370
    %v12379 = vpack.c.bf16 %v12371, %v12371
    %v12380 = vpack.c.bf16 %v12372, %v12372
    %v12381 = vpack.c.bf16 %v12373, %v12373
    %v12382 = vpack.c.bf16 %v12374, %v12374
    %v12383 = vpack.c.bf16 %v12375, %v12375
    %v12384 = vpack.c.bf16 %v12376, %v12376
    %v12385 = vpack.c.bf16 %v12377, %v12377
    %12386 = vmatpush.bf16.msra.mxu0 %v6184
    %12387 = vmatpush.bf16.msra.mxu0 %v6176
    %12388 = vmatpush.bf16.msra.mxu0 %v6168
    %12389 = vmatpush.bf16.msra.mxu0 %v6160
    %12390 = vmatpush.bf16.msra.mxu0 %v6152
    %12391 = vmatpush.bf16.msra.mxu0 %v6144
    %12392 = vmatpush.bf16.msra.mxu0 %v6136
    %12393 = vmatpush.bf16.msra.mxu0 %v6128
    %12394 = vmatmul.bf16.gmra.mxu0 %v12378
    %v12395 = vpop.f32.mrf.mxu0
    %v12396 = vadd.f32 %v1137, %v12395
    %v12397 = vpop.f32.mrf.mxu0
    %12398 = vdwg.mxu0
    %12399 = vmatpush.bf16.msra.mxu0 %v6248
    %12400 = vmatpush.bf16.msra.mxu0 %v6240
    %12401 = vmatpush.bf16.msra.mxu0 %v6232
    %12402 = vmatpush.bf16.msra.mxu0 %v6224
    %12403 = vmatpush.bf16.msra.mxu0 %v6216
    %12404 = vmatpush.bf16.msra.mxu0 %v6208
    %12405 = vmatpush.bf16.msra.mxu0 %v6200
    %12406 = vmatpush.bf16.msra.mxu0 %v6192
    %12407 = vmatmul.bf16.gmra.mxu0 %v12379
    %v12408 = vpop.f32.mrf.mxu0
    %v12409 = vadd.f32 %v12396, %v12408
    %v12410 = vpop.f32.mrf.mxu0
    %12411 = vdwg.mxu0
    %12412 = vmatpush.bf16.msra.mxu0 %v6312
    %12413 = vmatpush.bf16.msra.mxu0 %v6304
    %12414 = vmatpush.bf16.msra.mxu0 %v6296
    %12415 = vmatpush.bf16.msra.mxu0 %v6288
    %12416 = vmatpush.bf16.msra.mxu0 %v6280
    %12417 = vmatpush.bf16.msra.mxu0 %v6272
    %12418 = vmatpush.bf16.msra.mxu0 %v6264
    %12419 = vmatpush.bf16.msra.mxu0 %v6256
    %12420 = vmatmul.bf16.gmra.mxu0 %v12380
    %v12421 = vpop.f32.mrf.mxu0
    %v12422 = vadd.f32 %v12409, %v12421
    %v12423 = vpop.f32.mrf.mxu0
    %12424 = vdwg.mxu0
    %12425 = vmatpush.bf16.msra.mxu0 %v6376
    %12426 = vmatpush.bf16.msra.mxu0 %v6368
    %12427 = vmatpush.bf16.msra.mxu0 %v6360
    %12428 = vmatpush.bf16.msra.mxu0 %v6352
    %12429 = vmatpush.bf16.msra.mxu0 %v6344
    %12430 = vmatpush.bf16.msra.mxu0 %v6336
    %12431 = vmatpush.bf16.msra.mxu0 %v6328
    %12432 = vmatpush.bf16.msra.mxu0 %v6320
    %12433 = vmatmul.bf16.gmra.mxu0 %v12381
    %v12434 = vpop.f32.mrf.mxu0
    %v12435 = vadd.f32 %v12422, %v12434
    %v12436 = vpop.f32.mrf.mxu0
    %12437 = vdwg.mxu0
    %12438 = vmatpush.bf16.msra.mxu0 %v6440
    %12439 = vmatpush.bf16.msra.mxu0 %v6432
    %12440 = vmatpush.bf16.msra.mxu0 %v6424
    %12441 = vmatpush.bf16.msra.mxu0 %v6416
    %12442 = vmatpush.bf16.msra.mxu0 %v6408
    %12443 = vmatpush.bf16.msra.mxu0 %v6400
    %12444 = vmatpush.bf16.msra.mxu0 %v6392
    %12445 = vmatpush.bf16.msra.mxu0 %v6384
    %12446 = vmatmul.bf16.gmra.mxu0 %v12382
    %v12447 = vpop.f32.mrf.mxu0
    %v12448 = vadd.f32 %v12435, %v12447
    %v12449 = vpop.f32.mrf.mxu0
    %12450 = vdwg.mxu0
    %12451 = vmatpush.bf16.msra.mxu0 %v6504
    %12452 = vmatpush.bf16.msra.mxu0 %v6496
    %12453 = vmatpush.bf16.msra.mxu0 %v6488
    %12454 = vmatpush.bf16.msra.mxu0 %v6480
    %12455 = vmatpush.bf16.msra.mxu0 %v6472
    %12456 = vmatpush.bf16.msra.mxu0 %v6464
    %12457 = vmatpush.bf16.msra.mxu0 %v6456
    %12458 = vmatpush.bf16.msra.mxu0 %v6448
    %12459 = vmatmul.bf16.gmra.mxu0 %v12383
    %v12460 = vpop.f32.mrf.mxu0
    %v12461 = vadd.f32 %v12448, %v12460
    %v12462 = vpop.f32.mrf.mxu0
    %12463 = vdwg.mxu0
    %12464 = vmatpush.bf16.msra.mxu0 %v6568
    %12465 = vmatpush.bf16.msra.mxu0 %v6560
    %12466 = vmatpush.bf16.msra.mxu0 %v6552
    %12467 = vmatpush.bf16.msra.mxu0 %v6544
    %12468 = vmatpush.bf16.msra.mxu0 %v6536
    %12469 = vmatpush.bf16.msra.mxu0 %v6528
    %12470 = vmatpush.bf16.msra.mxu0 %v6520
    %12471 = vmatpush.bf16.msra.mxu0 %v6512
    %12472 = vmatmul.bf16.gmra.mxu0 %v12384
    %v12473 = vpop.f32.mrf.mxu0
    %v12474 = vadd.f32 %v12461, %v12473
    %v12475 = vpop.f32.mrf.mxu0
    %12476 = vdwg.mxu0
    %12477 = vmatpush.bf16.msra.mxu0 %v6632
    %12478 = vmatpush.bf16.msra.mxu0 %v6624
    %12479 = vmatpush.bf16.msra.mxu0 %v6616
    %12480 = vmatpush.bf16.msra.mxu0 %v6608
    %12481 = vmatpush.bf16.msra.mxu0 %v6600
    %12482 = vmatpush.bf16.msra.mxu0 %v6592
    %12483 = vmatpush.bf16.msra.mxu0 %v6584
    %12484 = vmatpush.bf16.msra.mxu0 %v6576
    %12485 = vmatmul.bf16.gmra.mxu0 %v12385
    %v12486 = vpop.f32.mrf.mxu0
    %v12487 = vadd.f32 %v12474, %v12486
    %v12488 = vpop.f32.mrf.mxu0
    %12489 = vdwg.mxu0
    %12490 = vmatpush.bf16.msra.mxu0 %v6185
    %12491 = vmatpush.bf16.msra.mxu0 %v6177
    %12492 = vmatpush.bf16.msra.mxu0 %v6169
    %12493 = vmatpush.bf16.msra.mxu0 %v6161
    %12494 = vmatpush.bf16.msra.mxu0 %v6153
    %12495 = vmatpush.bf16.msra.mxu0 %v6145
    %12496 = vmatpush.bf16.msra.mxu0 %v6137
    %12497 = vmatpush.bf16.msra.mxu0 %v6129
    %12498 = vmatmul.bf16.gmra.mxu0 %v12378
    %v12499 = vpop.f32.mrf.mxu0
    %v12500 = vadd.f32 %v1138, %v12499
    %v12501 = vpop.f32.mrf.mxu0
    %12502 = vdwg.mxu0
    %12503 = vmatpush.bf16.msra.mxu0 %v6249
    %12504 = vmatpush.bf16.msra.mxu0 %v6241
    %12505 = vmatpush.bf16.msra.mxu0 %v6233
    %12506 = vmatpush.bf16.msra.mxu0 %v6225
    %12507 = vmatpush.bf16.msra.mxu0 %v6217
    %12508 = vmatpush.bf16.msra.mxu0 %v6209
    %12509 = vmatpush.bf16.msra.mxu0 %v6201
    %12510 = vmatpush.bf16.msra.mxu0 %v6193
    %12511 = vmatmul.bf16.gmra.mxu0 %v12379
    %v12512 = vpop.f32.mrf.mxu0
    %v12513 = vadd.f32 %v12500, %v12512
    %v12514 = vpop.f32.mrf.mxu0
    %12515 = vdwg.mxu0
    %12516 = vmatpush.bf16.msra.mxu0 %v6313
    %12517 = vmatpush.bf16.msra.mxu0 %v6305
    %12518 = vmatpush.bf16.msra.mxu0 %v6297
    %12519 = vmatpush.bf16.msra.mxu0 %v6289
    %12520 = vmatpush.bf16.msra.mxu0 %v6281
    %12521 = vmatpush.bf16.msra.mxu0 %v6273
    %12522 = vmatpush.bf16.msra.mxu0 %v6265
    %12523 = vmatpush.bf16.msra.mxu0 %v6257
    %12524 = vmatmul.bf16.gmra.mxu0 %v12380
    %v12525 = vpop.f32.mrf.mxu0
    %v12526 = vadd.f32 %v12513, %v12525
    %v12527 = vpop.f32.mrf.mxu0
    %12528 = vdwg.mxu0
    %12529 = vmatpush.bf16.msra.mxu0 %v6377
    %12530 = vmatpush.bf16.msra.mxu0 %v6369
    %12531 = vmatpush.bf16.msra.mxu0 %v6361
    %12532 = vmatpush.bf16.msra.mxu0 %v6353
    %12533 = vmatpush.bf16.msra.mxu0 %v6345
    %12534 = vmatpush.bf16.msra.mxu0 %v6337
    %12535 = vmatpush.bf16.msra.mxu0 %v6329
    %12536 = vmatpush.bf16.msra.mxu0 %v6321
    %12537 = vmatmul.bf16.gmra.mxu0 %v12381
    %v12538 = vpop.f32.mrf.mxu0
    %v12539 = vadd.f32 %v12526, %v12538
    %v12540 = vpop.f32.mrf.mxu0
    %12541 = vdwg.mxu0
    %12542 = vmatpush.bf16.msra.mxu0 %v6441
    %12543 = vmatpush.bf16.msra.mxu0 %v6433
    %12544 = vmatpush.bf16.msra.mxu0 %v6425
    %12545 = vmatpush.bf16.msra.mxu0 %v6417
    %12546 = vmatpush.bf16.msra.mxu0 %v6409
    %12547 = vmatpush.bf16.msra.mxu0 %v6401
    %12548 = vmatpush.bf16.msra.mxu0 %v6393
    %12549 = vmatpush.bf16.msra.mxu0 %v6385
    %12550 = vmatmul.bf16.gmra.mxu0 %v12382
    %v12551 = vpop.f32.mrf.mxu0
    %v12552 = vadd.f32 %v12539, %v12551
    %v12553 = vpop.f32.mrf.mxu0
    %12554 = vdwg.mxu0
    %12555 = vmatpush.bf16.msra.mxu0 %v6505
    %12556 = vmatpush.bf16.msra.mxu0 %v6497
    %12557 = vmatpush.bf16.msra.mxu0 %v6489
    %12558 = vmatpush.bf16.msra.mxu0 %v6481
    %12559 = vmatpush.bf16.msra.mxu0 %v6473
    %12560 = vmatpush.bf16.msra.mxu0 %v6465
    %12561 = vmatpush.bf16.msra.mxu0 %v6457
    %12562 = vmatpush.bf16.msra.mxu0 %v6449
    %12563 = vmatmul.bf16.gmra.mxu0 %v12383
    %v12564 = vpop.f32.mrf.mxu0
    %v12565 = vadd.f32 %v12552, %v12564
    %v12566 = vpop.f32.mrf.mxu0
    %12567 = vdwg.mxu0
    %12568 = vmatpush.bf16.msra.mxu0 %v6569
    %12569 = vmatpush.bf16.msra.mxu0 %v6561
    %12570 = vmatpush.bf16.msra.mxu0 %v6553
    %12571 = vmatpush.bf16.msra.mxu0 %v6545
    %12572 = vmatpush.bf16.msra.mxu0 %v6537
    %12573 = vmatpush.bf16.msra.mxu0 %v6529
    %12574 = vmatpush.bf16.msra.mxu0 %v6521
    %12575 = vmatpush.bf16.msra.mxu0 %v6513
    %12576 = vmatmul.bf16.gmra.mxu0 %v12384
    %v12577 = vpop.f32.mrf.mxu0
    %v12578 = vadd.f32 %v12565, %v12577
    %v12579 = vpop.f32.mrf.mxu0
    %12580 = vdwg.mxu0
    %12581 = vmatpush.bf16.msra.mxu0 %v6633
    %12582 = vmatpush.bf16.msra.mxu0 %v6625
    %12583 = vmatpush.bf16.msra.mxu0 %v6617
    %12584 = vmatpush.bf16.msra.mxu0 %v6609
    %12585 = vmatpush.bf16.msra.mxu0 %v6601
    %12586 = vmatpush.bf16.msra.mxu0 %v6593
    %12587 = vmatpush.bf16.msra.mxu0 %v6585
    %12588 = vmatpush.bf16.msra.mxu0 %v6577
    %12589 = vmatmul.bf16.gmra.mxu0 %v12385
    %v12590 = vpop.f32.mrf.mxu0
    %v12591 = vadd.f32 %v12578, %v12590
    %v12592 = vpop.f32.mrf.mxu0
    %12593 = vdwg.mxu0
    %12594 = vmatpush.bf16.msra.mxu0 %v6186
    %12595 = vmatpush.bf16.msra.mxu0 %v6178
    %12596 = vmatpush.bf16.msra.mxu0 %v6170
    %12597 = vmatpush.bf16.msra.mxu0 %v6162
    %12598 = vmatpush.bf16.msra.mxu0 %v6154
    %12599 = vmatpush.bf16.msra.mxu0 %v6146
    %12600 = vmatpush.bf16.msra.mxu0 %v6138
    %12601 = vmatpush.bf16.msra.mxu0 %v6130
    %12602 = vmatmul.bf16.gmra.mxu0 %v12378
    %v12603 = vpop.f32.mrf.mxu0
    %v12604 = vadd.f32 %v1139, %v12603
    %v12605 = vpop.f32.mrf.mxu0
    %12606 = vdwg.mxu0
    %12607 = vmatpush.bf16.msra.mxu0 %v6250
    %12608 = vmatpush.bf16.msra.mxu0 %v6242
    %12609 = vmatpush.bf16.msra.mxu0 %v6234
    %12610 = vmatpush.bf16.msra.mxu0 %v6226
    %12611 = vmatpush.bf16.msra.mxu0 %v6218
    %12612 = vmatpush.bf16.msra.mxu0 %v6210
    %12613 = vmatpush.bf16.msra.mxu0 %v6202
    %12614 = vmatpush.bf16.msra.mxu0 %v6194
    %12615 = vmatmul.bf16.gmra.mxu0 %v12379
    %v12616 = vpop.f32.mrf.mxu0
    %v12617 = vadd.f32 %v12604, %v12616
    %v12618 = vpop.f32.mrf.mxu0
    %12619 = vdwg.mxu0
    %12620 = vmatpush.bf16.msra.mxu0 %v6314
    %12621 = vmatpush.bf16.msra.mxu0 %v6306
    %12622 = vmatpush.bf16.msra.mxu0 %v6298
    %12623 = vmatpush.bf16.msra.mxu0 %v6290
    %12624 = vmatpush.bf16.msra.mxu0 %v6282
    %12625 = vmatpush.bf16.msra.mxu0 %v6274
    %12626 = vmatpush.bf16.msra.mxu0 %v6266
    %12627 = vmatpush.bf16.msra.mxu0 %v6258
    %12628 = vmatmul.bf16.gmra.mxu0 %v12380
    %v12629 = vpop.f32.mrf.mxu0
    %v12630 = vadd.f32 %v12617, %v12629
    %v12631 = vpop.f32.mrf.mxu0
    %12632 = vdwg.mxu0
    %12633 = vmatpush.bf16.msra.mxu0 %v6378
    %12634 = vmatpush.bf16.msra.mxu0 %v6370
    %12635 = vmatpush.bf16.msra.mxu0 %v6362
    %12636 = vmatpush.bf16.msra.mxu0 %v6354
    %12637 = vmatpush.bf16.msra.mxu0 %v6346
    %12638 = vmatpush.bf16.msra.mxu0 %v6338
    %12639 = vmatpush.bf16.msra.mxu0 %v6330
    %12640 = vmatpush.bf16.msra.mxu0 %v6322
    %12641 = vmatmul.bf16.gmra.mxu0 %v12381
    %v12642 = vpop.f32.mrf.mxu0
    %v12643 = vadd.f32 %v12630, %v12642
    %v12644 = vpop.f32.mrf.mxu0
    %12645 = vdwg.mxu0
    %12646 = vmatpush.bf16.msra.mxu0 %v6442
    %12647 = vmatpush.bf16.msra.mxu0 %v6434
    %12648 = vmatpush.bf16.msra.mxu0 %v6426
    %12649 = vmatpush.bf16.msra.mxu0 %v6418
    %12650 = vmatpush.bf16.msra.mxu0 %v6410
    %12651 = vmatpush.bf16.msra.mxu0 %v6402
    %12652 = vmatpush.bf16.msra.mxu0 %v6394
    %12653 = vmatpush.bf16.msra.mxu0 %v6386
    %12654 = vmatmul.bf16.gmra.mxu0 %v12382
    %v12655 = vpop.f32.mrf.mxu0
    %v12656 = vadd.f32 %v12643, %v12655
    %v12657 = vpop.f32.mrf.mxu0
    %12658 = vdwg.mxu0
    %12659 = vmatpush.bf16.msra.mxu0 %v6506
    %12660 = vmatpush.bf16.msra.mxu0 %v6498
    %12661 = vmatpush.bf16.msra.mxu0 %v6490
    %12662 = vmatpush.bf16.msra.mxu0 %v6482
    %12663 = vmatpush.bf16.msra.mxu0 %v6474
    %12664 = vmatpush.bf16.msra.mxu0 %v6466
    %12665 = vmatpush.bf16.msra.mxu0 %v6458
    %12666 = vmatpush.bf16.msra.mxu0 %v6450
    %12667 = vmatmul.bf16.gmra.mxu0 %v12383
    %v12668 = vpop.f32.mrf.mxu0
    %v12669 = vadd.f32 %v12656, %v12668
    %v12670 = vpop.f32.mrf.mxu0
    %12671 = vdwg.mxu0
    %12672 = vmatpush.bf16.msra.mxu0 %v6570
    %12673 = vmatpush.bf16.msra.mxu0 %v6562
    %12674 = vmatpush.bf16.msra.mxu0 %v6554
    %12675 = vmatpush.bf16.msra.mxu0 %v6546
    %12676 = vmatpush.bf16.msra.mxu0 %v6538
    %12677 = vmatpush.bf16.msra.mxu0 %v6530
    %12678 = vmatpush.bf16.msra.mxu0 %v6522
    %12679 = vmatpush.bf16.msra.mxu0 %v6514
    %12680 = vmatmul.bf16.gmra.mxu0 %v12384
    %v12681 = vpop.f32.mrf.mxu0
    %v12682 = vadd.f32 %v12669, %v12681
    %v12683 = vpop.f32.mrf.mxu0
    %12684 = vdwg.mxu0
    %12685 = vmatpush.bf16.msra.mxu0 %v6634
    %12686 = vmatpush.bf16.msra.mxu0 %v6626
    %12687 = vmatpush.bf16.msra.mxu0 %v6618
    %12688 = vmatpush.bf16.msra.mxu0 %v6610
    %12689 = vmatpush.bf16.msra.mxu0 %v6602
    %12690 = vmatpush.bf16.msra.mxu0 %v6594
    %12691 = vmatpush.bf16.msra.mxu0 %v6586
    %12692 = vmatpush.bf16.msra.mxu0 %v6578
    %12693 = vmatmul.bf16.gmra.mxu0 %v12385
    %v12694 = vpop.f32.mrf.mxu0
    %v12695 = vadd.f32 %v12682, %v12694
    %v12696 = vpop.f32.mrf.mxu0
    %12697 = vdwg.mxu0
    %12698 = vmatpush.bf16.msra.mxu0 %v6187
    %12699 = vmatpush.bf16.msra.mxu0 %v6179
    %12700 = vmatpush.bf16.msra.mxu0 %v6171
    %12701 = vmatpush.bf16.msra.mxu0 %v6163
    %12702 = vmatpush.bf16.msra.mxu0 %v6155
    %12703 = vmatpush.bf16.msra.mxu0 %v6147
    %12704 = vmatpush.bf16.msra.mxu0 %v6139
    %12705 = vmatpush.bf16.msra.mxu0 %v6131
    %12706 = vmatmul.bf16.gmra.mxu0 %v12378
    %v12707 = vpop.f32.mrf.mxu0
    %v12708 = vadd.f32 %v1140, %v12707
    %v12709 = vpop.f32.mrf.mxu0
    %12710 = vdwg.mxu0
    %12711 = vmatpush.bf16.msra.mxu0 %v6251
    %12712 = vmatpush.bf16.msra.mxu0 %v6243
    %12713 = vmatpush.bf16.msra.mxu0 %v6235
    %12714 = vmatpush.bf16.msra.mxu0 %v6227
    %12715 = vmatpush.bf16.msra.mxu0 %v6219
    %12716 = vmatpush.bf16.msra.mxu0 %v6211
    %12717 = vmatpush.bf16.msra.mxu0 %v6203
    %12718 = vmatpush.bf16.msra.mxu0 %v6195
    %12719 = vmatmul.bf16.gmra.mxu0 %v12379
    %v12720 = vpop.f32.mrf.mxu0
    %v12721 = vadd.f32 %v12708, %v12720
    %v12722 = vpop.f32.mrf.mxu0
    %12723 = vdwg.mxu0
    %12724 = vmatpush.bf16.msra.mxu0 %v6315
    %12725 = vmatpush.bf16.msra.mxu0 %v6307
    %12726 = vmatpush.bf16.msra.mxu0 %v6299
    %12727 = vmatpush.bf16.msra.mxu0 %v6291
    %12728 = vmatpush.bf16.msra.mxu0 %v6283
    %12729 = vmatpush.bf16.msra.mxu0 %v6275
    %12730 = vmatpush.bf16.msra.mxu0 %v6267
    %12731 = vmatpush.bf16.msra.mxu0 %v6259
    %12732 = vmatmul.bf16.gmra.mxu0 %v12380
    %v12733 = vpop.f32.mrf.mxu0
    %v12734 = vadd.f32 %v12721, %v12733
    %v12735 = vpop.f32.mrf.mxu0
    %12736 = vdwg.mxu0
    %12737 = vmatpush.bf16.msra.mxu0 %v6379
    %12738 = vmatpush.bf16.msra.mxu0 %v6371
    %12739 = vmatpush.bf16.msra.mxu0 %v6363
    %12740 = vmatpush.bf16.msra.mxu0 %v6355
    %12741 = vmatpush.bf16.msra.mxu0 %v6347
    %12742 = vmatpush.bf16.msra.mxu0 %v6339
    %12743 = vmatpush.bf16.msra.mxu0 %v6331
    %12744 = vmatpush.bf16.msra.mxu0 %v6323
    %12745 = vmatmul.bf16.gmra.mxu0 %v12381
    %v12746 = vpop.f32.mrf.mxu0
    %v12747 = vadd.f32 %v12734, %v12746
    %v12748 = vpop.f32.mrf.mxu0
    %12749 = vdwg.mxu0
    %12750 = vmatpush.bf16.msra.mxu0 %v6443
    %12751 = vmatpush.bf16.msra.mxu0 %v6435
    %12752 = vmatpush.bf16.msra.mxu0 %v6427
    %12753 = vmatpush.bf16.msra.mxu0 %v6419
    %12754 = vmatpush.bf16.msra.mxu0 %v6411
    %12755 = vmatpush.bf16.msra.mxu0 %v6403
    %12756 = vmatpush.bf16.msra.mxu0 %v6395
    %12757 = vmatpush.bf16.msra.mxu0 %v6387
    %12758 = vmatmul.bf16.gmra.mxu0 %v12382
    %v12759 = vpop.f32.mrf.mxu0
    %v12760 = vadd.f32 %v12747, %v12759
    %v12761 = vpop.f32.mrf.mxu0
    %12762 = vdwg.mxu0
    %12763 = vmatpush.bf16.msra.mxu0 %v6507
    %12764 = vmatpush.bf16.msra.mxu0 %v6499
    %12765 = vmatpush.bf16.msra.mxu0 %v6491
    %12766 = vmatpush.bf16.msra.mxu0 %v6483
    %12767 = vmatpush.bf16.msra.mxu0 %v6475
    %12768 = vmatpush.bf16.msra.mxu0 %v6467
    %12769 = vmatpush.bf16.msra.mxu0 %v6459
    %12770 = vmatpush.bf16.msra.mxu0 %v6451
    %12771 = vmatmul.bf16.gmra.mxu0 %v12383
    %v12772 = vpop.f32.mrf.mxu0
    %v12773 = vadd.f32 %v12760, %v12772
    %v12774 = vpop.f32.mrf.mxu0
    %12775 = vdwg.mxu0
    %12776 = vmatpush.bf16.msra.mxu0 %v6571
    %12777 = vmatpush.bf16.msra.mxu0 %v6563
    %12778 = vmatpush.bf16.msra.mxu0 %v6555
    %12779 = vmatpush.bf16.msra.mxu0 %v6547
    %12780 = vmatpush.bf16.msra.mxu0 %v6539
    %12781 = vmatpush.bf16.msra.mxu0 %v6531
    %12782 = vmatpush.bf16.msra.mxu0 %v6523
    %12783 = vmatpush.bf16.msra.mxu0 %v6515
    %12784 = vmatmul.bf16.gmra.mxu0 %v12384
    %v12785 = vpop.f32.mrf.mxu0
    %v12786 = vadd.f32 %v12773, %v12785
    %v12787 = vpop.f32.mrf.mxu0
    %12788 = vdwg.mxu0
    %12789 = vmatpush.bf16.msra.mxu0 %v6635
    %12790 = vmatpush.bf16.msra.mxu0 %v6627
    %12791 = vmatpush.bf16.msra.mxu0 %v6619
    %12792 = vmatpush.bf16.msra.mxu0 %v6611
    %12793 = vmatpush.bf16.msra.mxu0 %v6603
    %12794 = vmatpush.bf16.msra.mxu0 %v6595
    %12795 = vmatpush.bf16.msra.mxu0 %v6587
    %12796 = vmatpush.bf16.msra.mxu0 %v6579
    %12797 = vmatmul.bf16.gmra.mxu0 %v12385
    %v12798 = vpop.f32.mrf.mxu0
    %v12799 = vadd.f32 %v12786, %v12798
    %v12800 = vpop.f32.mrf.mxu0
    %12801 = vdwg.mxu0
    %12802 = vmatpush.bf16.msra.mxu0 %v6188
    %12803 = vmatpush.bf16.msra.mxu0 %v6180
    %12804 = vmatpush.bf16.msra.mxu0 %v6172
    %12805 = vmatpush.bf16.msra.mxu0 %v6164
    %12806 = vmatpush.bf16.msra.mxu0 %v6156
    %12807 = vmatpush.bf16.msra.mxu0 %v6148
    %12808 = vmatpush.bf16.msra.mxu0 %v6140
    %12809 = vmatpush.bf16.msra.mxu0 %v6132
    %12810 = vmatmul.bf16.gmra.mxu0 %v12378
    %v12811 = vpop.f32.mrf.mxu0
    %v12812 = vadd.f32 %v1141, %v12811
    %v12813 = vpop.f32.mrf.mxu0
    %12814 = vdwg.mxu0
    %12815 = vmatpush.bf16.msra.mxu0 %v6252
    %12816 = vmatpush.bf16.msra.mxu0 %v6244
    %12817 = vmatpush.bf16.msra.mxu0 %v6236
    %12818 = vmatpush.bf16.msra.mxu0 %v6228
    %12819 = vmatpush.bf16.msra.mxu0 %v6220
    %12820 = vmatpush.bf16.msra.mxu0 %v6212
    %12821 = vmatpush.bf16.msra.mxu0 %v6204
    %12822 = vmatpush.bf16.msra.mxu0 %v6196
    %12823 = vmatmul.bf16.gmra.mxu0 %v12379
    %v12824 = vpop.f32.mrf.mxu0
    %v12825 = vadd.f32 %v12812, %v12824
    %v12826 = vpop.f32.mrf.mxu0
    %12827 = vdwg.mxu0
    %12828 = vmatpush.bf16.msra.mxu0 %v6316
    %12829 = vmatpush.bf16.msra.mxu0 %v6308
    %12830 = vmatpush.bf16.msra.mxu0 %v6300
    %12831 = vmatpush.bf16.msra.mxu0 %v6292
    %12832 = vmatpush.bf16.msra.mxu0 %v6284
    %12833 = vmatpush.bf16.msra.mxu0 %v6276
    %12834 = vmatpush.bf16.msra.mxu0 %v6268
    %12835 = vmatpush.bf16.msra.mxu0 %v6260
    %12836 = vmatmul.bf16.gmra.mxu0 %v12380
    %v12837 = vpop.f32.mrf.mxu0
    %v12838 = vadd.f32 %v12825, %v12837
    %v12839 = vpop.f32.mrf.mxu0
    %12840 = vdwg.mxu0
    %12841 = vmatpush.bf16.msra.mxu0 %v6380
    %12842 = vmatpush.bf16.msra.mxu0 %v6372
    %12843 = vmatpush.bf16.msra.mxu0 %v6364
    %12844 = vmatpush.bf16.msra.mxu0 %v6356
    %12845 = vmatpush.bf16.msra.mxu0 %v6348
    %12846 = vmatpush.bf16.msra.mxu0 %v6340
    %12847 = vmatpush.bf16.msra.mxu0 %v6332
    %12848 = vmatpush.bf16.msra.mxu0 %v6324
    %12849 = vmatmul.bf16.gmra.mxu0 %v12381
    %v12850 = vpop.f32.mrf.mxu0
    %v12851 = vadd.f32 %v12838, %v12850
    %v12852 = vpop.f32.mrf.mxu0
    %12853 = vdwg.mxu0
    %12854 = vmatpush.bf16.msra.mxu0 %v6444
    %12855 = vmatpush.bf16.msra.mxu0 %v6436
    %12856 = vmatpush.bf16.msra.mxu0 %v6428
    %12857 = vmatpush.bf16.msra.mxu0 %v6420
    %12858 = vmatpush.bf16.msra.mxu0 %v6412
    %12859 = vmatpush.bf16.msra.mxu0 %v6404
    %12860 = vmatpush.bf16.msra.mxu0 %v6396
    %12861 = vmatpush.bf16.msra.mxu0 %v6388
    %12862 = vmatmul.bf16.gmra.mxu0 %v12382
    %v12863 = vpop.f32.mrf.mxu0
    %v12864 = vadd.f32 %v12851, %v12863
    %v12865 = vpop.f32.mrf.mxu0
    %12866 = vdwg.mxu0
    %12867 = vmatpush.bf16.msra.mxu0 %v6508
    %12868 = vmatpush.bf16.msra.mxu0 %v6500
    %12869 = vmatpush.bf16.msra.mxu0 %v6492
    %12870 = vmatpush.bf16.msra.mxu0 %v6484
    %12871 = vmatpush.bf16.msra.mxu0 %v6476
    %12872 = vmatpush.bf16.msra.mxu0 %v6468
    %12873 = vmatpush.bf16.msra.mxu0 %v6460
    %12874 = vmatpush.bf16.msra.mxu0 %v6452
    %12875 = vmatmul.bf16.gmra.mxu0 %v12383
    %v12876 = vpop.f32.mrf.mxu0
    %v12877 = vadd.f32 %v12864, %v12876
    %v12878 = vpop.f32.mrf.mxu0
    %12879 = vdwg.mxu0
    %12880 = vmatpush.bf16.msra.mxu0 %v6572
    %12881 = vmatpush.bf16.msra.mxu0 %v6564
    %12882 = vmatpush.bf16.msra.mxu0 %v6556
    %12883 = vmatpush.bf16.msra.mxu0 %v6548
    %12884 = vmatpush.bf16.msra.mxu0 %v6540
    %12885 = vmatpush.bf16.msra.mxu0 %v6532
    %12886 = vmatpush.bf16.msra.mxu0 %v6524
    %12887 = vmatpush.bf16.msra.mxu0 %v6516
    %12888 = vmatmul.bf16.gmra.mxu0 %v12384
    %v12889 = vpop.f32.mrf.mxu0
    %v12890 = vadd.f32 %v12877, %v12889
    %v12891 = vpop.f32.mrf.mxu0
    %12892 = vdwg.mxu0
    %12893 = vmatpush.bf16.msra.mxu0 %v6636
    %12894 = vmatpush.bf16.msra.mxu0 %v6628
    %12895 = vmatpush.bf16.msra.mxu0 %v6620
    %12896 = vmatpush.bf16.msra.mxu0 %v6612
    %12897 = vmatpush.bf16.msra.mxu0 %v6604
    %12898 = vmatpush.bf16.msra.mxu0 %v6596
    %12899 = vmatpush.bf16.msra.mxu0 %v6588
    %12900 = vmatpush.bf16.msra.mxu0 %v6580
    %12901 = vmatmul.bf16.gmra.mxu0 %v12385
    %v12902 = vpop.f32.mrf.mxu0
    %v12903 = vadd.f32 %v12890, %v12902
    %v12904 = vpop.f32.mrf.mxu0
    %12905 = vdwg.mxu0
    %12906 = vmatpush.bf16.msra.mxu0 %v6189
    %12907 = vmatpush.bf16.msra.mxu0 %v6181
    %12908 = vmatpush.bf16.msra.mxu0 %v6173
    %12909 = vmatpush.bf16.msra.mxu0 %v6165
    %12910 = vmatpush.bf16.msra.mxu0 %v6157
    %12911 = vmatpush.bf16.msra.mxu0 %v6149
    %12912 = vmatpush.bf16.msra.mxu0 %v6141
    %12913 = vmatpush.bf16.msra.mxu0 %v6133
    %12914 = vmatmul.bf16.gmra.mxu0 %v12378
    %v12915 = vpop.f32.mrf.mxu0
    %v12916 = vadd.f32 %v1142, %v12915
    %v12917 = vpop.f32.mrf.mxu0
    %12918 = vdwg.mxu0
    %12919 = vmatpush.bf16.msra.mxu0 %v6253
    %12920 = vmatpush.bf16.msra.mxu0 %v6245
    %12921 = vmatpush.bf16.msra.mxu0 %v6237
    %12922 = vmatpush.bf16.msra.mxu0 %v6229
    %12923 = vmatpush.bf16.msra.mxu0 %v6221
    %12924 = vmatpush.bf16.msra.mxu0 %v6213
    %12925 = vmatpush.bf16.msra.mxu0 %v6205
    %12926 = vmatpush.bf16.msra.mxu0 %v6197
    %12927 = vmatmul.bf16.gmra.mxu0 %v12379
    %v12928 = vpop.f32.mrf.mxu0
    %v12929 = vadd.f32 %v12916, %v12928
    %v12930 = vpop.f32.mrf.mxu0
    %12931 = vdwg.mxu0
    %12932 = vmatpush.bf16.msra.mxu0 %v6317
    %12933 = vmatpush.bf16.msra.mxu0 %v6309
    %12934 = vmatpush.bf16.msra.mxu0 %v6301
    %12935 = vmatpush.bf16.msra.mxu0 %v6293
    %12936 = vmatpush.bf16.msra.mxu0 %v6285
    %12937 = vmatpush.bf16.msra.mxu0 %v6277
    %12938 = vmatpush.bf16.msra.mxu0 %v6269
    %12939 = vmatpush.bf16.msra.mxu0 %v6261
    %12940 = vmatmul.bf16.gmra.mxu0 %v12380
    %v12941 = vpop.f32.mrf.mxu0
    %v12942 = vadd.f32 %v12929, %v12941
    %v12943 = vpop.f32.mrf.mxu0
    %12944 = vdwg.mxu0
    %12945 = vmatpush.bf16.msra.mxu0 %v6381
    %12946 = vmatpush.bf16.msra.mxu0 %v6373
    %12947 = vmatpush.bf16.msra.mxu0 %v6365
    %12948 = vmatpush.bf16.msra.mxu0 %v6357
    %12949 = vmatpush.bf16.msra.mxu0 %v6349
    %12950 = vmatpush.bf16.msra.mxu0 %v6341
    %12951 = vmatpush.bf16.msra.mxu0 %v6333
    %12952 = vmatpush.bf16.msra.mxu0 %v6325
    %12953 = vmatmul.bf16.gmra.mxu0 %v12381
    %v12954 = vpop.f32.mrf.mxu0
    %v12955 = vadd.f32 %v12942, %v12954
    %v12956 = vpop.f32.mrf.mxu0
    %12957 = vdwg.mxu0
    %12958 = vmatpush.bf16.msra.mxu0 %v6445
    %12959 = vmatpush.bf16.msra.mxu0 %v6437
    %12960 = vmatpush.bf16.msra.mxu0 %v6429
    %12961 = vmatpush.bf16.msra.mxu0 %v6421
    %12962 = vmatpush.bf16.msra.mxu0 %v6413
    %12963 = vmatpush.bf16.msra.mxu0 %v6405
    %12964 = vmatpush.bf16.msra.mxu0 %v6397
    %12965 = vmatpush.bf16.msra.mxu0 %v6389
    %12966 = vmatmul.bf16.gmra.mxu0 %v12382
    %v12967 = vpop.f32.mrf.mxu0
    %v12968 = vadd.f32 %v12955, %v12967
    %v12969 = vpop.f32.mrf.mxu0
    %12970 = vdwg.mxu0
    %12971 = vmatpush.bf16.msra.mxu0 %v6509
    %12972 = vmatpush.bf16.msra.mxu0 %v6501
    %12973 = vmatpush.bf16.msra.mxu0 %v6493
    %12974 = vmatpush.bf16.msra.mxu0 %v6485
    %12975 = vmatpush.bf16.msra.mxu0 %v6477
    %12976 = vmatpush.bf16.msra.mxu0 %v6469
    %12977 = vmatpush.bf16.msra.mxu0 %v6461
    %12978 = vmatpush.bf16.msra.mxu0 %v6453
    %12979 = vmatmul.bf16.gmra.mxu0 %v12383
    %v12980 = vpop.f32.mrf.mxu0
    %v12981 = vadd.f32 %v12968, %v12980
    %v12982 = vpop.f32.mrf.mxu0
    %12983 = vdwg.mxu0
    %12984 = vmatpush.bf16.msra.mxu0 %v6573
    %12985 = vmatpush.bf16.msra.mxu0 %v6565
    %12986 = vmatpush.bf16.msra.mxu0 %v6557
    %12987 = vmatpush.bf16.msra.mxu0 %v6549
    %12988 = vmatpush.bf16.msra.mxu0 %v6541
    %12989 = vmatpush.bf16.msra.mxu0 %v6533
    %12990 = vmatpush.bf16.msra.mxu0 %v6525
    %12991 = vmatpush.bf16.msra.mxu0 %v6517
    %12992 = vmatmul.bf16.gmra.mxu0 %v12384
    %v12993 = vpop.f32.mrf.mxu0
    %v12994 = vadd.f32 %v12981, %v12993
    %v12995 = vpop.f32.mrf.mxu0
    %12996 = vdwg.mxu0
    %12997 = vmatpush.bf16.msra.mxu0 %v6637
    %12998 = vmatpush.bf16.msra.mxu0 %v6629
    %12999 = vmatpush.bf16.msra.mxu0 %v6621
    %13000 = vmatpush.bf16.msra.mxu0 %v6613
    %13001 = vmatpush.bf16.msra.mxu0 %v6605
    %13002 = vmatpush.bf16.msra.mxu0 %v6597
    %13003 = vmatpush.bf16.msra.mxu0 %v6589
    %13004 = vmatpush.bf16.msra.mxu0 %v6581
    %13005 = vmatmul.bf16.gmra.mxu0 %v12385
    %v13006 = vpop.f32.mrf.mxu0
    %v13007 = vadd.f32 %v12994, %v13006
    %v13008 = vpop.f32.mrf.mxu0
    %13009 = vdwg.mxu0
    %13010 = vmatpush.bf16.msra.mxu0 %v6190
    %13011 = vmatpush.bf16.msra.mxu0 %v6182
    %13012 = vmatpush.bf16.msra.mxu0 %v6174
    %13013 = vmatpush.bf16.msra.mxu0 %v6166
    %13014 = vmatpush.bf16.msra.mxu0 %v6158
    %13015 = vmatpush.bf16.msra.mxu0 %v6150
    %13016 = vmatpush.bf16.msra.mxu0 %v6142
    %13017 = vmatpush.bf16.msra.mxu0 %v6134
    %13018 = vmatmul.bf16.gmra.mxu0 %v12378
    %v13019 = vpop.f32.mrf.mxu0
    %v13020 = vadd.f32 %v1143, %v13019
    %v13021 = vpop.f32.mrf.mxu0
    %13022 = vdwg.mxu0
    %13023 = vmatpush.bf16.msra.mxu0 %v6254
    %13024 = vmatpush.bf16.msra.mxu0 %v6246
    %13025 = vmatpush.bf16.msra.mxu0 %v6238
    %13026 = vmatpush.bf16.msra.mxu0 %v6230
    %13027 = vmatpush.bf16.msra.mxu0 %v6222
    %13028 = vmatpush.bf16.msra.mxu0 %v6214
    %13029 = vmatpush.bf16.msra.mxu0 %v6206
    %13030 = vmatpush.bf16.msra.mxu0 %v6198
    %13031 = vmatmul.bf16.gmra.mxu0 %v12379
    %v13032 = vpop.f32.mrf.mxu0
    %v13033 = vadd.f32 %v13020, %v13032
    %v13034 = vpop.f32.mrf.mxu0
    %13035 = vdwg.mxu0
    %13036 = vmatpush.bf16.msra.mxu0 %v6318
    %13037 = vmatpush.bf16.msra.mxu0 %v6310
    %13038 = vmatpush.bf16.msra.mxu0 %v6302
    %13039 = vmatpush.bf16.msra.mxu0 %v6294
    %13040 = vmatpush.bf16.msra.mxu0 %v6286
    %13041 = vmatpush.bf16.msra.mxu0 %v6278
    %13042 = vmatpush.bf16.msra.mxu0 %v6270
    %13043 = vmatpush.bf16.msra.mxu0 %v6262
    %13044 = vmatmul.bf16.gmra.mxu0 %v12380
    %v13045 = vpop.f32.mrf.mxu0
    %v13046 = vadd.f32 %v13033, %v13045
    %v13047 = vpop.f32.mrf.mxu0
    %13048 = vdwg.mxu0
    %13049 = vmatpush.bf16.msra.mxu0 %v6382
    %13050 = vmatpush.bf16.msra.mxu0 %v6374
    %13051 = vmatpush.bf16.msra.mxu0 %v6366
    %13052 = vmatpush.bf16.msra.mxu0 %v6358
    %13053 = vmatpush.bf16.msra.mxu0 %v6350
    %13054 = vmatpush.bf16.msra.mxu0 %v6342
    %13055 = vmatpush.bf16.msra.mxu0 %v6334
    %13056 = vmatpush.bf16.msra.mxu0 %v6326
    %13057 = vmatmul.bf16.gmra.mxu0 %v12381
    %v13058 = vpop.f32.mrf.mxu0
    %v13059 = vadd.f32 %v13046, %v13058
    %v13060 = vpop.f32.mrf.mxu0
    %13061 = vdwg.mxu0
    %13062 = vmatpush.bf16.msra.mxu0 %v6446
    %13063 = vmatpush.bf16.msra.mxu0 %v6438
    %13064 = vmatpush.bf16.msra.mxu0 %v6430
    %13065 = vmatpush.bf16.msra.mxu0 %v6422
    %13066 = vmatpush.bf16.msra.mxu0 %v6414
    %13067 = vmatpush.bf16.msra.mxu0 %v6406
    %13068 = vmatpush.bf16.msra.mxu0 %v6398
    %13069 = vmatpush.bf16.msra.mxu0 %v6390
    %13070 = vmatmul.bf16.gmra.mxu0 %v12382
    %v13071 = vpop.f32.mrf.mxu0
    %v13072 = vadd.f32 %v13059, %v13071
    %v13073 = vpop.f32.mrf.mxu0
    %13074 = vdwg.mxu0
    %13075 = vmatpush.bf16.msra.mxu0 %v6510
    %13076 = vmatpush.bf16.msra.mxu0 %v6502
    %13077 = vmatpush.bf16.msra.mxu0 %v6494
    %13078 = vmatpush.bf16.msra.mxu0 %v6486
    %13079 = vmatpush.bf16.msra.mxu0 %v6478
    %13080 = vmatpush.bf16.msra.mxu0 %v6470
    %13081 = vmatpush.bf16.msra.mxu0 %v6462
    %13082 = vmatpush.bf16.msra.mxu0 %v6454
    %13083 = vmatmul.bf16.gmra.mxu0 %v12383
    %v13084 = vpop.f32.mrf.mxu0
    %v13085 = vadd.f32 %v13072, %v13084
    %v13086 = vpop.f32.mrf.mxu0
    %13087 = vdwg.mxu0
    %13088 = vmatpush.bf16.msra.mxu0 %v6574
    %13089 = vmatpush.bf16.msra.mxu0 %v6566
    %13090 = vmatpush.bf16.msra.mxu0 %v6558
    %13091 = vmatpush.bf16.msra.mxu0 %v6550
    %13092 = vmatpush.bf16.msra.mxu0 %v6542
    %13093 = vmatpush.bf16.msra.mxu0 %v6534
    %13094 = vmatpush.bf16.msra.mxu0 %v6526
    %13095 = vmatpush.bf16.msra.mxu0 %v6518
    %13096 = vmatmul.bf16.gmra.mxu0 %v12384
    %v13097 = vpop.f32.mrf.mxu0
    %v13098 = vadd.f32 %v13085, %v13097
    %v13099 = vpop.f32.mrf.mxu0
    %13100 = vdwg.mxu0
    %13101 = vmatpush.bf16.msra.mxu0 %v6638
    %13102 = vmatpush.bf16.msra.mxu0 %v6630
    %13103 = vmatpush.bf16.msra.mxu0 %v6622
    %13104 = vmatpush.bf16.msra.mxu0 %v6614
    %13105 = vmatpush.bf16.msra.mxu0 %v6606
    %13106 = vmatpush.bf16.msra.mxu0 %v6598
    %13107 = vmatpush.bf16.msra.mxu0 %v6590
    %13108 = vmatpush.bf16.msra.mxu0 %v6582
    %13109 = vmatmul.bf16.gmra.mxu0 %v12385
    %v13110 = vpop.f32.mrf.mxu0
    %v13111 = vadd.f32 %v13098, %v13110
    %v13112 = vpop.f32.mrf.mxu0
    %13113 = vdwg.mxu0
    %13114 = vmatpush.bf16.msra.mxu0 %v6191
    %13115 = vmatpush.bf16.msra.mxu0 %v6183
    %13116 = vmatpush.bf16.msra.mxu0 %v6175
    %13117 = vmatpush.bf16.msra.mxu0 %v6167
    %13118 = vmatpush.bf16.msra.mxu0 %v6159
    %13119 = vmatpush.bf16.msra.mxu0 %v6151
    %13120 = vmatpush.bf16.msra.mxu0 %v6143
    %13121 = vmatpush.bf16.msra.mxu0 %v6135
    %13122 = vmatmul.bf16.gmra.mxu0 %v12378
    %v13123 = vpop.f32.mrf.mxu0
    %v13124 = vadd.f32 %v1144, %v13123
    %v13125 = vpop.f32.mrf.mxu0
    %13126 = vdwg.mxu0
    %13127 = vmatpush.bf16.msra.mxu0 %v6255
    %13128 = vmatpush.bf16.msra.mxu0 %v6247
    %13129 = vmatpush.bf16.msra.mxu0 %v6239
    %13130 = vmatpush.bf16.msra.mxu0 %v6231
    %13131 = vmatpush.bf16.msra.mxu0 %v6223
    %13132 = vmatpush.bf16.msra.mxu0 %v6215
    %13133 = vmatpush.bf16.msra.mxu0 %v6207
    %13134 = vmatpush.bf16.msra.mxu0 %v6199
    %13135 = vmatmul.bf16.gmra.mxu0 %v12379
    %v13136 = vpop.f32.mrf.mxu0
    %v13137 = vadd.f32 %v13124, %v13136
    %v13138 = vpop.f32.mrf.mxu0
    %13139 = vdwg.mxu0
    %13140 = vmatpush.bf16.msra.mxu0 %v6319
    %13141 = vmatpush.bf16.msra.mxu0 %v6311
    %13142 = vmatpush.bf16.msra.mxu0 %v6303
    %13143 = vmatpush.bf16.msra.mxu0 %v6295
    %13144 = vmatpush.bf16.msra.mxu0 %v6287
    %13145 = vmatpush.bf16.msra.mxu0 %v6279
    %13146 = vmatpush.bf16.msra.mxu0 %v6271
    %13147 = vmatpush.bf16.msra.mxu0 %v6263
    %13148 = vmatmul.bf16.gmra.mxu0 %v12380
    %v13149 = vpop.f32.mrf.mxu0
    %v13150 = vadd.f32 %v13137, %v13149
    %v13151 = vpop.f32.mrf.mxu0
    %13152 = vdwg.mxu0
    %13153 = vmatpush.bf16.msra.mxu0 %v6383
    %13154 = vmatpush.bf16.msra.mxu0 %v6375
    %13155 = vmatpush.bf16.msra.mxu0 %v6367
    %13156 = vmatpush.bf16.msra.mxu0 %v6359
    %13157 = vmatpush.bf16.msra.mxu0 %v6351
    %13158 = vmatpush.bf16.msra.mxu0 %v6343
    %13159 = vmatpush.bf16.msra.mxu0 %v6335
    %13160 = vmatpush.bf16.msra.mxu0 %v6327
    %13161 = vmatmul.bf16.gmra.mxu0 %v12381
    %v13162 = vpop.f32.mrf.mxu0
    %v13163 = vadd.f32 %v13150, %v13162
    %v13164 = vpop.f32.mrf.mxu0
    %13165 = vdwg.mxu0
    %13166 = vmatpush.bf16.msra.mxu0 %v6447
    %13167 = vmatpush.bf16.msra.mxu0 %v6439
    %13168 = vmatpush.bf16.msra.mxu0 %v6431
    %13169 = vmatpush.bf16.msra.mxu0 %v6423
    %13170 = vmatpush.bf16.msra.mxu0 %v6415
    %13171 = vmatpush.bf16.msra.mxu0 %v6407
    %13172 = vmatpush.bf16.msra.mxu0 %v6399
    %13173 = vmatpush.bf16.msra.mxu0 %v6391
    %13174 = vmatmul.bf16.gmra.mxu0 %v12382
    %v13175 = vpop.f32.mrf.mxu0
    %v13176 = vadd.f32 %v13163, %v13175
    %v13177 = vpop.f32.mrf.mxu0
    %13178 = vdwg.mxu0
    %13179 = vmatpush.bf16.msra.mxu0 %v6511
    %13180 = vmatpush.bf16.msra.mxu0 %v6503
    %13181 = vmatpush.bf16.msra.mxu0 %v6495
    %13182 = vmatpush.bf16.msra.mxu0 %v6487
    %13183 = vmatpush.bf16.msra.mxu0 %v6479
    %13184 = vmatpush.bf16.msra.mxu0 %v6471
    %13185 = vmatpush.bf16.msra.mxu0 %v6463
    %13186 = vmatpush.bf16.msra.mxu0 %v6455
    %13187 = vmatmul.bf16.gmra.mxu0 %v12383
    %v13188 = vpop.f32.mrf.mxu0
    %v13189 = vadd.f32 %v13176, %v13188
    %v13190 = vpop.f32.mrf.mxu0
    %13191 = vdwg.mxu0
    %13192 = vmatpush.bf16.msra.mxu0 %v6575
    %13193 = vmatpush.bf16.msra.mxu0 %v6567
    %13194 = vmatpush.bf16.msra.mxu0 %v6559
    %13195 = vmatpush.bf16.msra.mxu0 %v6551
    %13196 = vmatpush.bf16.msra.mxu0 %v6543
    %13197 = vmatpush.bf16.msra.mxu0 %v6535
    %13198 = vmatpush.bf16.msra.mxu0 %v6527
    %13199 = vmatpush.bf16.msra.mxu0 %v6519
    %13200 = vmatmul.bf16.gmra.mxu0 %v12384
    %v13201 = vpop.f32.mrf.mxu0
    %v13202 = vadd.f32 %v13189, %v13201
    %v13203 = vpop.f32.mrf.mxu0
    %13204 = vdwg.mxu0
    %13205 = vmatpush.bf16.msra.mxu0 %v6639
    %13206 = vmatpush.bf16.msra.mxu0 %v6631
    %13207 = vmatpush.bf16.msra.mxu0 %v6623
    %13208 = vmatpush.bf16.msra.mxu0 %v6615
    %13209 = vmatpush.bf16.msra.mxu0 %v6607
    %13210 = vmatpush.bf16.msra.mxu0 %v6599
    %13211 = vmatpush.bf16.msra.mxu0 %v6591
    %13212 = vmatpush.bf16.msra.mxu0 %v6583
    %13213 = vmatmul.bf16.gmra.mxu0 %v12385
    %v13214 = vpop.f32.mrf.mxu0
    %v13215 = vadd.f32 %v13202, %v13214
    %v13216 = vpop.f32.mrf.mxu0
    %13217 = vdwg.mxu0
    %v13218 = vadd.f32 %v8997, %v10738
    %v13219 = vadd.f32 %v9101, %v10842
    %v13220 = vadd.f32 %v9205, %v10946
    %v13221 = vadd.f32 %v9309, %v11050
    %v13222 = vadd.f32 %v9413, %v11154
    %v13223 = vadd.f32 %v9517, %v11258
    %v13224 = vadd.f32 %v9621, %v11362
    %v13225 = vadd.f32 %v9725, %v11466
    %v13226 = vmul.f32 %v13218, 3.0
    %v13227 = vmul.f32 %v13219, 3.0
    %v13228 = vmul.f32 %v13220, 3.0
    %v13229 = vmul.f32 %v13221, 3.0
    %v13230 = vmul.f32 %v13222, 3.0
    %v13231 = vmul.f32 %v13223, 3.0
    %v13232 = vmul.f32 %v13224, 3.0
    %v13233 = vmul.f32 %v13225, 3.0
    %v13234 = vadd.f32 %v7253, %v13226
    %v13235 = vadd.f32 %v7357, %v13227
    %v13236 = vadd.f32 %v7461, %v13228
    %v13237 = vadd.f32 %v7565, %v13229
    %v13238 = vadd.f32 %v7669, %v13230
    %v13239 = vadd.f32 %v7773, %v13231
    %v13240 = vadd.f32 %v7877, %v13232
    %v13241 = vadd.f32 %v7981, %v13233
    %v13242 = vadd.f32 %v13234, %v12487
    %v13243 = vadd.f32 %v13235, %v12591
    %v13244 = vadd.f32 %v13236, %v12695
    %v13245 = vadd.f32 %v13237, %v12799
    %v13246 = vadd.f32 %v13238, %v12903
    %v13247 = vadd.f32 %v13239, %v13007
    %v13248 = vadd.f32 %v13240, %v13111
    %v13249 = vadd.f32 %v13241, %v13215
    %v13250 = vmul.f32 %v13242, 0.125
    %v13251 = vmul.f32 %v13243, 0.125
    %v13252 = vmul.f32 %v13244, 0.125
    %v13253 = vmul.f32 %v13245, 0.125
    %v13254 = vmul.f32 %v13246, 0.125
    %v13255 = vmul.f32 %v13247, 0.125
    %v13256 = vmul.f32 %v13248, 0.125
    %v13257 = vmul.f32 %v13249, 0.125
    %v13266 = vrot.slane %v13251, 6
    %v13267 = vrot.slane %v13252, 4
    %v13268 = vrot.slane %v13253, 2
    %v13269 = vrot.slane %v13255, 6
    %v13270 = vrot.slane %v13256, 4
    %v13271 = vrot.slane %v13257, 2
    %v13272 = vsel %vm8006, %v13250, %v13266
    %v13273 = vsel %vm8008, %v13267, %v13268
    %v13274 = vsel %vm8010, %v13272, %v13273
    %v13275 = vsel %vm8006, %v13254, %v13269
    %v13276 = vsel %vm8008, %v13270, %v13271
    %v13277 = vsel %vm8010, %v13275, %v13276
    %v13280 = vadd.f32 %v1153, %v13274
    %v13281 = vadd.f32 %v1154, %v13277
    %13282 = vst [vmem:[#allocation11] sm:$0xff] %v13280
    %13283 = vst [vmem:[#allocation11 + $0x8] sm:$0xff] %v13281
    // Predicated region
    $region42: #{tpu_custom_call.1} parent=1 // pred_check
      _
    $region43: #{tpu_custom_call.1} parent=1 // pred_check_branch
      %13285 = sbr.rel (0) target = $region45
    $region44: #{tpu_custom_call.1} parent=1 // pred_region
      %13287 = vsyncadd [#allocation4], 0
      %s13289 = sshll.u32 [#allocation11], 4
      %s13290 = int_to_ptr.vmem [resolvable:$true] %s13289
      %s13291 = sshll.u32 %s5, 4
      %s13292 = int_to_ptr.hbm [resolvable:$true] %s13291
      %13294 = dma.vmem_to_hbm [thread:$0]  %s13290, 256, %s13292, [#allocation4]
    $region45: #{tpu_custom_call.1} parent=1 // pred_fallthru
      _
    // Predicated region
    $region46: #{tpu_custom_call.1} parent=1 // pred_check
      _
    $region47: #{tpu_custom_call.1} parent=1 // pred_check_branch
      %13296 = sbr.rel (0) target = $region49
    $region48: #{tpu_custom_call.1} parent=1 // pred_region
      %13298 = dma.done [#allocation4], 256
    $region49: #{tpu_custom_call.1} parent=1 // pred_fallthru
      _
    %13299 = vsyncpa [#allocation3], 1
    %13300 = vsyncpa [#allocation6], 1
    %13301 = vsyncpa [#allocation9], 1
    %13302 = vsyncpa [#allocation4], 1

</llo_original>
